<compile_context>
chip_gen: v7x
topology: tpu7x:2x2x1
jax: 0.10.0
libtpu: 0.0.40
codegen_flags: <defaults>
</compile_context>

<pallas_src>
import functools

import numpy as np
import jax
import jax.numpy as jnp
from jax.experimental import pallas as pl
from jax.experimental.pallas import tpu as pltpu

BN_EPS = 1e-5
HIGH = jax.lax.Precision.HIGHEST
BF16 = jnp.bfloat16


# ------------------------------ Fused Pallas kernel ------------------------------

def _attention_block(h, ws, bs, s_big, wo, bo, *, B, N):
    """1x1 conv + multi-head attention over the batch axis + residual + (folded) BN + ReLU.

    h     : (Cin, B*N)        f32 activations, batch-major along lanes
    ws    : (4*Cout, Cin)     bf16 stacked [scale*Wc ; Wq@Wc ; Wk@Wc ; Wv@Wc]
    bs    : (4*Cout, 1)       f32 stacked [0 ; bq ; bk ; bv]
    s_big : (B*Cout, B*Cout)  bf16 block-diag per-head summation matrix, scaled by 1/sqrt(Dh)
    wo    : (Cout, Cout)      bf16 scale*Wo        (BN scale folded)
    bo    : (Cout, 1)         f32 scale*bo + shift (BN fully folded)
    """
    Cout = wo.shape[0]

    # One wide MXU pass: (scaled) conv output + q/k/v projections for all batch elements.
    z = jnp.dot(ws, h.astype(BF16), preferred_element_type=jnp.float32) + bs  # (4C, B*N) f32
    hc = z[0:Cout]                      # BN-scaled conv output (residual path)
    q = z[Cout:2 * Cout]
    k = z[2 * Cout:3 * Cout]
    v = z[3 * Cout:4 * Cout]

    # All B*B per-(i, j) head-score maps in a single MXU matmul:
    #   P[(i)-row-block, (j)-col-block] = q_i * k_j   ->   blockdiag(S) @ P = all smaps.
    q_stack = jnp.concatenate([q[:, i * N:(i + 1) * N] for i in range(B)], axis=0)  # (B*C, N)
    k_stack = jnp.concatenate([k] * B, axis=0)                                      # (B*C, B*N)
    p = jnp.concatenate([q_stack] * B, axis=1) * k_stack                            # (B*C, B*N)
    smaps = jnp.dot(s_big, p.astype(BF16), preferred_element_type=jnp.float32)      # (B*C, B*N)

    if B == 2:
        # Closed-form 2-way softmax: weight of j=0 is sigmoid(s_i0 - s_i1).
        d = smaps[:, 0:N] - smaps[:, N:2 * N]                       # (2*Cout, N)
        a = pl.reciprocal(1.0 + jnp.exp(-d), approx=True)           # one exp + EUP vrcp
        v0 = v[:, 0:N]
        v1 = v[:, N:2 * N]
        parts = []
        for i in range(B):
            ai = a[i * Cout:(i + 1) * Cout]
            parts.append(ai * v0 + (1.0 - ai) * v1)
        ctx = jnp.concatenate(parts, axis=-1)                        # (Cout, B*N)
    else:
        # General online-softmax path (not exercised by the B==2 test).
        outs = []
        for i in range(B):
            si = smaps[i * Cout:(i + 1) * Cout]                      # (Cout, B*N)
            m = si[:, 0:N]
            for j in range(1, B):
                m = jnp.maximum(m, si[:, j * N:(j + 1) * N])
            e = jnp.exp(si[:, 0:N] - m)
            denom = e
            ctxi = e * v[:, 0:N]
            for j in range(1, B):
                e = jnp.exp(si[:, j * N:(j + 1) * N] - m)
                denom = denom + e
                ctxi = ctxi + e * v[:, j * N:(j + 1) * N]
            outs.append(ctxi * pl.reciprocal(denom, approx=True))
        ctx = jnp.concatenate(outs, axis=-1) if B > 1 else outs[0]   # (Cout, B*N)

    # Out-projection + residual; BatchNorm is fully folded into wo / bo / hc.
    y = jnp.dot(wo, ctx.astype(BF16), preferred_element_type=jnp.float32) + bo + hc
    return jnp.maximum(y, 0.0)


def fused_kernel(*refs, B, N):
    (x_ref, w1_ref, b1_ref,
     ws1, bs1, s1, wo1, bo1,
     ws2, bs2, s2, wo2, bo2,
     ws3, bs3, s3, wo3, bo3,
     b5_ref, d6_ref, wl2_ref, b2_ref,
     w5_hbm, wl1_hbm,
     out_ref,
     w5_buf, wl1_buf, dma_sems) = refs

    # Kick off the late-layer weight DMAs immediately so they stream in (HBM->VMEM)
    # underneath the block-1/2 compute instead of serializing before the body.
    c5 = pltpu.make_async_copy(w5_hbm, w5_buf, dma_sems.at[0])
    c5.start()
    cl1 = pltpu.make_async_copy(wl1_hbm, wl1_buf, dma_sems.at[1])
    cl1.start()

    # conv1 + bn1 + relu (BN folded into weight/bias); x is (3, B*N).
    h = jnp.maximum(
        jnp.dot(w1_ref[...], x_ref[...].astype(BF16),
                preferred_element_type=jnp.float32) + b1_ref[...], 0.0)

    h = _attention_block(h, ws1[...], bs1[...], s1[...], wo1[...], bo1[...], B=B, N=N)
    h = _attention_block(h, ws2[...], bs2[...], s2[...], wo2[...], bo2[...], B=B, N=N)
    h = _attention_block(h, ws3[...], bs3[...], s3[...], wo3[...], bo3[...], B=B, N=N)

    # conv5 + bn5 + relu (weights arrived via the async copy started above).
    c5.wait()
    y = jnp.maximum(
        jnp.dot(w5_buf[...], h.astype(BF16),
                preferred_element_type=jnp.float32) + b5_ref[...], 0.0)     # (emb, B*N)

    # adaptive_max_pool1d(1) per batch element, then the whole MLP head batched over B.
    # TODO(synk): nn.Dropout (dp1) treated as identity (inference-mode forward).
    pooled = jnp.concatenate(
        [jnp.max(y[:, b * N:(b + 1) * N], axis=-1, keepdims=True) for b in range(B)],
        axis=-1)                                                            # (emb, B)

    cl1.wait()
    hb = jnp.maximum(
        jnp.dot(wl1_buf[...], pooled.astype(BF16),
                preferred_element_type=jnp.float32) + d6_ref[...], 0.0)     # (512, B)
    out_ref[...] = (jnp.dot(wl2_ref[...], hb.astype(BF16),
                            preferred_element_type=jnp.float32) + b2_ref[...])  # (NC, B)


# ------------------------------ Host-side parameter prep ------------------------------

def fold_bn(p):
    scale = p["gamma"] / jnp.sqrt(p["var"] + BN_EPS)
    shift = p["beta"] - p["mean"] * scale
    return scale, shift


def _col(v):
    return v.reshape(-1, 1)


def _attn_block_params(wc, attn, bn, num_heads, B):
    """Stack conv + composed Q/K/V weights, build block-diag head-sum matrix, fold BN."""
    C = wc.shape[0]
    Dh = C // num_heads
    sc, sh = fold_bn(bn)
    ws = jnp.concatenate(
        [sc[:, None] * wc,                                  # residual path, BN scale folded
         jnp.dot(attn["wq"], wc, precision=HIGH),
         jnp.dot(attn["wk"], wc, precision=HIGH),
         jnp.dot(attn["wv"], wc, precision=HIGH)], axis=0).astype(BF16)      # (4C, Cin)
    bs = _col(jnp.concatenate(
        [jnp.zeros((C,), jnp.float32), attn["bq"], attn["bk"], attn["bv"]]))
    head = np.arange(C) // Dh
    s_small = (head[:, None] == head[None, :]).astype(np.float32) / np.sqrt(Dh)
    s_big = jnp.asarray(np.kron(np.eye(B, dtype=np.float32), s_small)).astype(BF16)
    wo = (sc[:, None] * attn["wo"]).astype(BF16)
    bo = _col(sc * attn["bo"] + sh)
    return [ws, bs, s_big, wo, bo]


def forward_pallas(x, P, num_heads):
    B, Cin, N = x.shape
    NC = P["linear2_w"].shape[0]

    sc1, sh1 = fold_bn(P["bn1"])
    w1f, b1c = (sc1[:, None] * P["conv1"]).astype(BF16), _col(sh1)
    sc5, sh5 = fold_bn(P["bn5"])
    w5f, b5c = (sc5[:, None] * P["conv5"]).astype(BF16), _col(sh5)
    sc6, sh6 = fold_bn(P["bn6"])
    wl1f, d6c = (sc6[:, None] * P["linear1"]).astype(BF16), _col(sh6)   # bn6 folded in
    wl2b, b2c = P["linear2_w"].astype(BF16), _col(P["linear2_b"])

    blk1 = _attn_block_params(P["conv2"], P["attn1"], P["bn2"], num_heads, B)
    blk2 = _attn_block_params(P["conv3"], P["attn2"], P["bn3"], num_heads, B)
    blk3 = _attn_block_params(P["conv4"], P["attn3"], P["bn4"], num_heads, B)

    # Channel-major, batch-major along lanes: (Cin, B*N).
    x_wide = jnp.transpose(x, (1, 0, 2)).reshape(Cin, B * N)

    dense_args = ([x_wide, w1f, b1c] + blk1 + blk2 + blk3 + [b5c, d6c, wl2b, b2c])
    hbm_args = [w5f, wl1f]                    # streamed manually inside the kernel

    def full_spec(a):
        return pl.BlockSpec(a.shape, lambda i, _nd=a.ndim: (0,) * _nd)

    logits_t = pl.pallas_call(
        functools.partial(fused_kernel, B=B, N=N),
        out_shape=jax.ShapeDtypeStruct((NC, B), jnp.float32),
        grid=(1,),
        in_specs=([full_spec(a) for a in dense_args]
                  + [pl.BlockSpec(memory_space=pl.ANY)] * len(hbm_args)),
        out_specs=pl.BlockSpec((NC, B), lambda i: (0, 0)),
        scratch_shapes=[pltpu.VMEM(w5f.shape, BF16),
                        pltpu.VMEM(wl1f.shape, BF16),
                        pltpu.SemaphoreType.DMA((2,))],
        compiler_params=pltpu.CompilerParams(
            dimension_semantics=("arbitrary",),
            vmem_limit_bytes=32 * 1024 * 1024),
    )(*dense_args, *hbm_args)
    return logits_t.T                                                   # (B, num_classes)


# ------------------------------ Pure-JAX reference ------------------------------

def forward_ref(x, P, num_heads):
    def bn3(y, p):
        s, sh = fold_bn(p)
        return y * s[None, :, None] + sh[None, :, None]

    def bn2d(y, p):
        s, sh = fold_bn(p)
        return y * s[None, :] + sh[None, :]

    def conv(y, w):
        return jnp.einsum("oc,bcn->bon", w, y, precision=HIGH)

    def mha(y, p):
        B, C, N = y.shape
        Dh = C // num_heads
        xt = jnp.transpose(y, (0, 2, 1))      # (L=B, batch=N, E=C), as in the PyTorch code
        q = jnp.einsum("bnc,oc->bno", xt, p["wq"], precision=HIGH) + p["bq"]
        k = jnp.einsum("bnc,oc->bno", xt, p["wk"], precision=HIGH) + p["bk"]
        v = jnp.einsum("bnc,oc->bno", xt, p["wv"], precision=HIGH) + p["bv"]
        q = q.reshape(B, N, num_heads, Dh) / np.sqrt(Dh)
        k = k.reshape(B, N, num_heads, Dh)
        v = v.reshape(B, N, num_heads, Dh)
        s = jnp.einsum("inhd,jnhd->nhij", q, k, precision=HIGH)
        a = jax.nn.softmax(s, axis=-1)
        ctx = jnp.einsum("nhij,jnhd->inhd", a, v, precision=HIGH).reshape(B, N, C)
        o = jnp.einsum("bnc,oc->bno", ctx, p["wo"], precision=HIGH) + p["bo"]
        return jnp.transpose(o, (0, 2, 1)) + y

    y = jax.nn.relu(bn3(conv(x, P["conv1"]), P["bn1"]))
    y = jax.nn.relu(bn3(mha(conv(y, P["conv2"]), P["attn1"]), P["bn2"]))
    y = jax.nn.relu(bn3(mha(conv(y, P["conv3"]), P["attn2"]), P["bn3"]))
    y = jax.nn.relu(bn3(mha(conv(y, P["conv4"]), P["attn3"]), P["bn4"]))
    y = jax.nn.relu(bn3(conv(y, P["conv5"]), P["bn5"]))
    y = jnp.max(y, axis=-1)                                  # adaptive_max_pool1d + squeeze
    y = jax.nn.relu(bn2d(jnp.einsum("be,oe->bo", y, P["linear1"], precision=HIGH), P["bn6"]))
    return jnp.einsum("bh,oh->bo", y, P["linear2_w"], precision=HIGH) + P["linear2_b"]


# ------------------------------ Deterministic params ------------------------------

def make_params(key, emb_dims, num_classes):
    keys = iter(jax.random.split(key, 64))

    def w(shape):
        return (1.0 / np.sqrt(shape[-1])) * jax.random.normal(next(keys), shape, jnp.float32)

    def bn(c):
        k = jax.random.split(next(keys), 4)
        return dict(gamma=1.0 + 0.1 * jax.random.normal(k[0], (c,), jnp.float32),
                    beta=0.1 * jax.random.normal(k[1], (c,), jnp.float32),
                    mean=0.1 * jax.random.normal(k[2], (c,), jnp.float32),
                    var=0.5 + jax.random.uniform(k[3], (c,), jnp.float32))

    def attn(c):
        return dict(wq=w((c, c)), wk=w((c, c)), wv=w((c, c)), wo=w((c, c)),
                    bq=0.05 * jax.random.normal(next(keys), (c,), jnp.float32),
                    bk=0.05 * jax.random.normal(next(keys), (c,), jnp.float32),
                    bv=0.05 * jax.random.normal(next(keys), (c,), jnp.float32),
                    bo=0.05 * jax.random.normal(next(keys), (c,), jnp.float32))

    return dict(
        conv1=w((64, 3)), conv2=w((64, 64)), conv3=w((64, 64)),
        conv4=w((128, 64)), conv5=w((emb_dims, 128)),
        bn1=bn(64), bn2=bn(64), bn3=bn(64), bn4=bn(128), bn5=bn(emb_dims),
        attn1=attn(64), attn2=attn(64), attn3=attn(128),
        linear1=w((512, emb_dims)), bn6=bn(512),
        linear2_w=w((num_classes, 512)),
        linear2_b=0.05 * jax.random.normal(next(keys), (num_classes,), jnp.float32),
    )


if __name__ == "__main__":
    B, N = 2, 256            # batch, number of points
    att_heads = 4            # args.att_heads
    emb_dims = 256           # args.emb_dims
    num_classes = 10         # args.number_classes

    key = jax.random.PRNGKey(0)
    kx, kp = jax.random.split(key)
    x = jax.random.normal(kx, (B, 3, N), jnp.float32)
    P = make_params(kp, emb_dims, num_classes)

    logits = jax.block_until_ready(forward_pallas(x, P, att_heads))

    ref = forward_ref(x, P, att_heads)
    # Tolerance slightly wider than 2e-2: bf16 MXU operands (per perf review) add ~1%
    # relative error vs the f32-HIGHEST reference, on top of the approx reciprocal.
    np.testing.assert_allclose(np.asarray(logits), np.asarray(ref), rtol=3e-2, atol=3e-2)

    print("KERNEL_OK")
</pallas_src>

<mosaic_0001>
module attributes {stable_mosaic.version = 11 : i64} {
  func.func @fused_kernel(%arg0: i32, %arg1: memref<3x512xf32, #tpu.memory_space<vmem>>, %arg2: memref<64x3xbf16, #tpu.memory_space<vmem>>, %arg3: memref<64x1xf32, #tpu.memory_space<vmem>>, %arg4: memref<256x64xbf16, #tpu.memory_space<vmem>>, %arg5: memref<256x1xf32, #tpu.memory_space<vmem>>, %arg6: memref<128x128xbf16, #tpu.memory_space<vmem>>, %arg7: memref<64x64xbf16, #tpu.memory_space<vmem>>, %arg8: memref<64x1xf32, #tpu.memory_space<vmem>>, %arg9: memref<256x64xbf16, #tpu.memory_space<vmem>>, %arg10: memref<256x1xf32, #tpu.memory_space<vmem>>, %arg11: memref<128x128xbf16, #tpu.memory_space<vmem>>, %arg12: memref<64x64xbf16, #tpu.memory_space<vmem>>, %arg13: memref<64x1xf32, #tpu.memory_space<vmem>>, %arg14: memref<512x64xbf16, #tpu.memory_space<vmem>>, %arg15: memref<512x1xf32, #tpu.memory_space<vmem>>, %arg16: memref<256x256xbf16, #tpu.memory_space<vmem>>, %arg17: memref<128x128xbf16, #tpu.memory_space<vmem>>, %arg18: memref<128x1xf32, #tpu.memory_space<vmem>>, %arg19: memref<256x1xf32, #tpu.memory_space<vmem>>, %arg20: memref<512x1xf32, #tpu.memory_space<vmem>>, %arg21: memref<10x512xbf16, #tpu.memory_space<vmem>>, %arg22: memref<10x1xf32, #tpu.memory_space<vmem>>, %arg23: memref<256x128xbf16, #tpu.memory_space<any>>, %arg24: memref<512x256xbf16, #tpu.memory_space<any>>, %arg25: memref<10x2xf32, #tpu.memory_space<vmem>>, %arg26: memref<256x128xbf16, #tpu.memory_space<vmem>>, %arg27: memref<512x256xbf16, #tpu.memory_space<vmem>>, %arg28: memref<2x!tpu.dma_semaphore, #tpu.memory_space<semaphore_mem>>) attributes {dimension_semantics = [#tpu.dimension_semantics<arbitrary>], iteration_bounds = array<i64: 1>, scalar_prefetch = 0 : i64, scratch_operands = 3 : i64, tpu.core_type = #tpu.core_type<tc>, window_params = [{pipeline_mode = #tpu.pipeline_mode<synchronous>, transform_indices = @transform_0, window_bounds = array<i64: 3, 512>}, {pipeline_mode = #tpu.pipeline_mode<synchronous>, transform_indices = @transform_1, window_bounds = array<i64: 64, 3>}, {pipeline_mode = #tpu.pipeline_mode<synchronous>, transform_indices = @transform_2, window_bounds = array<i64: 64, 1>}, {pipeline_mode = #tpu.pipeline_mode<synchronous>, transform_indices = @transform_3, window_bounds = array<i64: 256, 64>}, {pipeline_mode = #tpu.pipeline_mode<synchronous>, transform_indices = @transform_4, window_bounds = array<i64: 256, 1>}, {pipeline_mode = #tpu.pipeline_mode<synchronous>, transform_indices = @transform_5, window_bounds = array<i64: 128, 128>}, {pipeline_mode = #tpu.pipeline_mode<synchronous>, transform_indices = @transform_6, window_bounds = array<i64: 64, 64>}, {pipeline_mode = #tpu.pipeline_mode<synchronous>, transform_indices = @transform_7, window_bounds = array<i64: 64, 1>}, {pipeline_mode = #tpu.pipeline_mode<synchronous>, transform_indices = @transform_8, window_bounds = array<i64: 256, 64>}, {pipeline_mode = #tpu.pipeline_mode<synchronous>, transform_indices = @transform_9, window_bounds = array<i64: 256, 1>}, {pipeline_mode = #tpu.pipeline_mode<synchronous>, transform_indices = @transform_10, window_bounds = array<i64: 128, 128>}, {pipeline_mode = #tpu.pipeline_mode<synchronous>, transform_indices = @transform_11, window_bounds = array<i64: 64, 64>}, {pipeline_mode = #tpu.pipeline_mode<synchronous>, transform_indices = @transform_12, window_bounds = array<i64: 64, 1>}, {pipeline_mode = #tpu.pipeline_mode<synchronous>, transform_indices = @transform_13, window_bounds = array<i64: 512, 64>}, {pipeline_mode = #tpu.pipeline_mode<synchronous>, transform_indices = @transform_14, window_bounds = array<i64: 512, 1>}, {pipeline_mode = #tpu.pipeline_mode<synchronous>, transform_indices = @transform_15, window_bounds = array<i64: 256, 256>}, {pipeline_mode = #tpu.pipeline_mode<synchronous>, transform_indices = @transform_16, window_bounds = array<i64: 128, 128>}, {pipeline_mode = #tpu.pipeline_mode<synchronous>, transform_indices = @transform_17, window_bounds = array<i64: 128, 1>}, {pipeline_mode = #tpu.pipeline_mode<synchronous>, transform_indices = @transform_18, window_bounds = array<i64: 256, 1>}, {pipeline_mode = #tpu.pipeline_mode<synchronous>, transform_indices = @transform_19, window_bounds = array<i64: 512, 1>}, {pipeline_mode = #tpu.pipeline_mode<synchronous>, transform_indices = @transform_20, window_bounds = array<i64: 10, 512>}, {pipeline_mode = #tpu.pipeline_mode<synchronous>, transform_indices = @transform_21, window_bounds = array<i64: 10, 1>}, {}, {}, {pipeline_mode = #tpu.pipeline_mode<synchronous>, transform_indices = @transform_24, window_bounds = array<i64: 10, 2>}]} {
    %c0_i32 = arith.constant 0 : i32
    %0 = tpu.memref_slice %arg28[%c0_i32] : memref<2x!tpu.dma_semaphore, #tpu.memory_space<semaphore_mem>> -> memref<1x!tpu.dma_semaphore, #tpu.memory_space<semaphore_mem>>
    %1 = tpu.memref_squeeze %0 : memref<1x!tpu.dma_semaphore, #tpu.memory_space<semaphore_mem>> -> memref<!tpu.dma_semaphore, #tpu.memory_space<semaphore_mem>>
    tpu.enqueue_dma source(%arg23 : memref<256x128xbf16, #tpu.memory_space<any>>) target(%arg26 : memref<256x128xbf16, #tpu.memory_space<vmem>>) target_semaphore(%1 : memref<!tpu.dma_semaphore, #tpu.memory_space<semaphore_mem>>)
    %c1_i32 = arith.constant 1 : i32
    %2 = tpu.memref_slice %arg28[%c1_i32] : memref<2x!tpu.dma_semaphore, #tpu.memory_space<semaphore_mem>> -> memref<1x!tpu.dma_semaphore, #tpu.memory_space<semaphore_mem>>
    %3 = tpu.memref_squeeze %2 : memref<1x!tpu.dma_semaphore, #tpu.memory_space<semaphore_mem>> -> memref<!tpu.dma_semaphore, #tpu.memory_space<semaphore_mem>>
    tpu.enqueue_dma source(%arg24 : memref<512x256xbf16, #tpu.memory_space<any>>) target(%arg27 : memref<512x256xbf16, #tpu.memory_space<vmem>>) target_semaphore(%3 : memref<!tpu.dma_semaphore, #tpu.memory_space<semaphore_mem>>)
    %c0 = arith.constant 0 : index
    %c0_0 = arith.constant 0 : index
    %4 = vector.load %arg2[%c0, %c0_0] : memref<64x3xbf16, #tpu.memory_space<vmem>>, vector<64x3xbf16>
    %c0_1 = arith.constant 0 : index
    %c0_2 = arith.constant 0 : index
    %5 = vector.load %arg1[%c0_1, %c0_2] : memref<3x512xf32, #tpu.memory_space<vmem>>, vector<3x512xf32>
    %6 = arith.truncf %5 : vector<3x512xf32> to vector<3x512xbf16>
    %cst = arith.constant dense<0.000000e+00> : vector<64x512xf32>
    %7 = tpu.matmul %4, %6, %cst {dimension_numbers = #tpu.dot_dimension_numbers<[1], [0], [0], [1], [0, 0, 1, 1], [], []>} : vector<64x3xbf16>, vector<3x512xbf16>, vector<64x512xf32> -> vector<64x512xf32>
    %c0_3 = arith.constant 0 : index
    %c0_4 = arith.constant 0 : index
    %8 = vector.load %arg3[%c0_3, %c0_4] : memref<64x1xf32, #tpu.memory_space<vmem>>, vector<64x1xf32>
    %9 = vector.broadcast %8 : vector<64x1xf32> to vector<64x512xf32>
    %10 = arith.addf %7, %9 : vector<64x512xf32>
    %cst_5 = arith.constant 0.000000e+00 : f32
    %11 = vector.broadcast %cst_5 : f32 to vector<64x512xf32>
    %12 = arith.maximumf %10, %11 : vector<64x512xf32>
    %c0_6 = arith.constant 0 : index
    %c0_7 = arith.constant 0 : index
    %13 = vector.load %arg4[%c0_6, %c0_7] : memref<256x64xbf16, #tpu.memory_space<vmem>>, vector<256x64xbf16>
    %c0_8 = arith.constant 0 : index
    %c0_9 = arith.constant 0 : index
    %14 = vector.load %arg5[%c0_8, %c0_9] : memref<256x1xf32, #tpu.memory_space<vmem>>, vector<256x1xf32>
    %c0_10 = arith.constant 0 : index
    %c0_11 = arith.constant 0 : index
    %15 = vector.load %arg6[%c0_10, %c0_11] : memref<128x128xbf16, #tpu.memory_space<vmem>>, vector<128x128xbf16>
    %c0_12 = arith.constant 0 : index
    %c0_13 = arith.constant 0 : index
    %16 = vector.load %arg7[%c0_12, %c0_13] : memref<64x64xbf16, #tpu.memory_space<vmem>>, vector<64x64xbf16>
    %c0_14 = arith.constant 0 : index
    %c0_15 = arith.constant 0 : index
    %17 = vector.load %arg8[%c0_14, %c0_15] : memref<64x1xf32, #tpu.memory_space<vmem>>, vector<64x1xf32>
    %18 = arith.truncf %12 : vector<64x512xf32> to vector<64x512xbf16>
    %cst_16 = arith.constant dense<0.000000e+00> : vector<256x512xf32>
    %19 = tpu.matmul %13, %18, %cst_16 {dimension_numbers = #tpu.dot_dimension_numbers<[1], [0], [0], [1], [0, 0, 1, 1], [], []>} : vector<256x64xbf16>, vector<64x512xbf16>, vector<256x512xf32> -> vector<256x512xf32>
    %20 = vector.broadcast %14 : vector<256x1xf32> to vector<256x512xf32>
    %21 = arith.addf %19, %20 : vector<256x512xf32>
    %22 = vector.extract_strided_slice %21 {offsets = [0, 0], sizes = [64, 512], strides = [1, 1]} : vector<256x512xf32> to vector<64x512xf32>
    %23 = vector.extract_strided_slice %21 {offsets = [64, 0], sizes = [64, 512], strides = [1, 1]} : vector<256x512xf32> to vector<64x512xf32>
    %24 = vector.extract_strided_slice %21 {offsets = [128, 0], sizes = [64, 512], strides = [1, 1]} : vector<256x512xf32> to vector<64x512xf32>
    %25 = vector.extract_strided_slice %21 {offsets = [192, 0], sizes = [64, 512], strides = [1, 1]} : vector<256x512xf32> to vector<64x512xf32>
    %26 = vector.extract_strided_slice %23 {offsets = [0, 0], sizes = [64, 256], strides = [1, 1]} : vector<64x512xf32> to vector<64x256xf32>
    %27 = vector.extract_strided_slice %23 {offsets = [0, 256], sizes = [64, 256], strides = [1, 1]} : vector<64x512xf32> to vector<64x256xf32>
    %28 = tpu.concatenate %26, %27 in 0 : vector<64x256xf32>, vector<64x256xf32> -> vector<128x256xf32>
    %29 = tpu.concatenate %24, %24 in 0 : vector<64x512xf32>, vector<64x512xf32> -> vector<128x512xf32>
    %30 = tpu.concatenate %28, %28 in 1 : vector<128x256xf32>, vector<128x256xf32> -> vector<128x512xf32>
    %31 = arith.mulf %30, %29 : vector<128x512xf32>
    %32 = arith.truncf %31 : vector<128x512xf32> to vector<128x512xbf16>
    %cst_17 = arith.constant dense<0.000000e+00> : vector<128x512xf32>
    %33 = tpu.matmul %15, %32, %cst_17 {dimension_numbers = #tpu.dot_dimension_numbers<[1], [0], [0], [1], [0, 0, 1, 1], [], []>} : vector<128x128xbf16>, vector<128x512xbf16>, vector<128x512xf32> -> vector<128x512xf32>
    %34 = vector.extract_strided_slice %33 {offsets = [0, 0], sizes = [128, 256], strides = [1, 1]} : vector<128x512xf32> to vector<128x256xf32>
    %35 = vector.extract_strided_slice %33 {offsets = [0, 256], sizes = [128, 256], strides = [1, 1]} : vector<128x512xf32> to vector<128x256xf32>
    %36 = arith.subf %34, %35 : vector<128x256xf32>
    %cst_18 = arith.constant 0.000000e+00 : f32
    %37 = vector.broadcast %cst_18 : f32 to vector<128x256xf32>
    %38 = arith.subf %37, %36 : vector<128x256xf32>
    %39 = math.exp %38 : vector<128x256xf32>
    %cst_19 = arith.constant 1.000000e+00 : f32
    %40 = vector.broadcast %cst_19 : f32 to vector<128x256xf32>
    %41 = arith.addf %40, %39 : vector<128x256xf32>
    %42 = tpu.reciprocal %41 {approx = true} : vector<128x256xf32> -> vector<128x256xf32>
    %43 = vector.extract_strided_slice %25 {offsets = [0, 0], sizes = [64, 256], strides = [1, 1]} : vector<64x512xf32> to vector<64x256xf32>
    %44 = vector.extract_strided_slice %25 {offsets = [0, 256], sizes = [64, 256], strides = [1, 1]} : vector<64x512xf32> to vector<64x256xf32>
    %45 = vector.extract_strided_slice %42 {offsets = [0, 0], sizes = [64, 256], strides = [1, 1]} : vector<128x256xf32> to vector<64x256xf32>
    %46 = arith.mulf %45, %43 : vector<64x256xf32>
    %cst_20 = arith.constant 1.000000e+00 : f32
    %47 = vector.broadcast %cst_20 : f32 to vector<64x256xf32>
    %48 = arith.subf %47, %45 : vector<64x256xf32>
    %49 = arith.mulf %48, %44 : vector<64x256xf32>
    %50 = arith.addf %46, %49 : vector<64x256xf32>
    %51 = vector.extract_strided_slice %42 {offsets = [64, 0], sizes = [64, 256], strides = [1, 1]} : vector<128x256xf32> to vector<64x256xf32>
    %52 = arith.mulf %51, %43 : vector<64x256xf32>
    %cst_21 = arith.constant 1.000000e+00 : f32
    %53 = vector.broadcast %cst_21 : f32 to vector<64x256xf32>
    %54 = arith.subf %53, %51 : vector<64x256xf32>
    %55 = arith.mulf %54, %44 : vector<64x256xf32>
    %56 = arith.addf %52, %55 : vector<64x256xf32>
    %57 = tpu.concatenate %50, %56 in 1 : vector<64x256xf32>, vector<64x256xf32> -> vector<64x512xf32>
    %58 = arith.truncf %57 : vector<64x512xf32> to vector<64x512xbf16>
    %cst_22 = arith.constant dense<0.000000e+00> : vector<64x512xf32>
    %59 = tpu.matmul %16, %58, %cst_22 {dimension_numbers = #tpu.dot_dimension_numbers<[1], [0], [0], [1], [0, 0, 1, 1], [], []>} : vector<64x64xbf16>, vector<64x512xbf16>, vector<64x512xf32> -> vector<64x512xf32>
    %60 = vector.broadcast %17 : vector<64x1xf32> to vector<64x512xf32>
    %61 = arith.addf %59, %60 : vector<64x512xf32>
    %62 = arith.addf %61, %22 : vector<64x512xf32>
    %cst_23 = arith.constant 0.000000e+00 : f32
    %63 = vector.broadcast %cst_23 : f32 to vector<64x512xf32>
    %64 = arith.maximumf %62, %63 : vector<64x512xf32>
    %c0_24 = arith.constant 0 : index
    %c0_25 = arith.constant 0 : index
    %65 = vector.load %arg9[%c0_24, %c0_25] : memref<256x64xbf16, #tpu.memory_space<vmem>>, vector<256x64xbf16>
    %c0_26 = arith.constant 0 : index
    %c0_27 = arith.constant 0 : index
    %66 = vector.load %arg10[%c0_26, %c0_27] : memref<256x1xf32, #tpu.memory_space<vmem>>, vector<256x1xf32>
    %c0_28 = arith.constant 0 : index
    %c0_29 = arith.constant 0 : index
    %67 = vector.load %arg11[%c0_28, %c0_29] : memref<128x128xbf16, #tpu.memory_space<vmem>>, vector<128x128xbf16>
    %c0_30 = arith.constant 0 : index
    %c0_31 = arith.constant 0 : index
    %68 = vector.load %arg12[%c0_30, %c0_31] : memref<64x64xbf16, #tpu.memory_space<vmem>>, vector<64x64xbf16>
    %c0_32 = arith.constant 0 : index
    %c0_33 = arith.constant 0 : index
    %69 = vector.load %arg13[%c0_32, %c0_33] : memref<64x1xf32, #tpu.memory_space<vmem>>, vector<64x1xf32>
    %70 = arith.truncf %64 : vector<64x512xf32> to vector<64x512xbf16>
    %cst_34 = arith.constant dense<0.000000e+00> : vector<256x512xf32>
    %71 = tpu.matmul %65, %70, %cst_34 {dimension_numbers = #tpu.dot_dimension_numbers<[1], [0], [0], [1], [0, 0, 1, 1], [], []>} : vector<256x64xbf16>, vector<64x512xbf16>, vector<256x512xf32> -> vector<256x512xf32>
    %72 = vector.broadcast %66 : vector<256x1xf32> to vector<256x512xf32>
    %73 = arith.addf %71, %72 : vector<256x512xf32>
    %74 = vector.extract_strided_slice %73 {offsets = [0, 0], sizes = [64, 512], strides = [1, 1]} : vector<256x512xf32> to vector<64x512xf32>
    %75 = vector.extract_strided_slice %73 {offsets = [64, 0], sizes = [64, 512], strides = [1, 1]} : vector<256x512xf32> to vector<64x512xf32>
    %76 = vector.extract_strided_slice %73 {offsets = [128, 0], sizes = [64, 512], strides = [1, 1]} : vector<256x512xf32> to vector<64x512xf32>
    %77 = vector.extract_strided_slice %73 {offsets = [192, 0], sizes = [64, 512], strides = [1, 1]} : vector<256x512xf32> to vector<64x512xf32>
    %78 = vector.extract_strided_slice %75 {offsets = [0, 0], sizes = [64, 256], strides = [1, 1]} : vector<64x512xf32> to vector<64x256xf32>
    %79 = vector.extract_strided_slice %75 {offsets = [0, 256], sizes = [64, 256], strides = [1, 1]} : vector<64x512xf32> to vector<64x256xf32>
    %80 = tpu.concatenate %78, %79 in 0 : vector<64x256xf32>, vector<64x256xf32> -> vector<128x256xf32>
    %81 = tpu.concatenate %76, %76 in 0 : vector<64x512xf32>, vector<64x512xf32> -> vector<128x512xf32>
    %82 = tpu.concatenate %80, %80 in 1 : vector<128x256xf32>, vector<128x256xf32> -> vector<128x512xf32>
    %83 = arith.mulf %82, %81 : vector<128x512xf32>
    %84 = arith.truncf %83 : vector<128x512xf32> to vector<128x512xbf16>
    %cst_35 = arith.constant dense<0.000000e+00> : vector<128x512xf32>
    %85 = tpu.matmul %67, %84, %cst_35 {dimension_numbers = #tpu.dot_dimension_numbers<[1], [0], [0], [1], [0, 0, 1, 1], [], []>} : vector<128x128xbf16>, vector<128x512xbf16>, vector<128x512xf32> -> vector<128x512xf32>
    %86 = vector.extract_strided_slice %85 {offsets = [0, 0], sizes = [128, 256], strides = [1, 1]} : vector<128x512xf32> to vector<128x256xf32>
    %87 = vector.extract_strided_slice %85 {offsets = [0, 256], sizes = [128, 256], strides = [1, 1]} : vector<128x512xf32> to vector<128x256xf32>
    %88 = arith.subf %86, %87 : vector<128x256xf32>
    %cst_36 = arith.constant 0.000000e+00 : f32
    %89 = vector.broadcast %cst_36 : f32 to vector<128x256xf32>
    %90 = arith.subf %89, %88 : vector<128x256xf32>
    %91 = math.exp %90 : vector<128x256xf32>
    %cst_37 = arith.constant 1.000000e+00 : f32
    %92 = vector.broadcast %cst_37 : f32 to vector<128x256xf32>
    %93 = arith.addf %92, %91 : vector<128x256xf32>
    %94 = tpu.reciprocal %93 {approx = true} : vector<128x256xf32> -> vector<128x256xf32>
    %95 = vector.extract_strided_slice %77 {offsets = [0, 0], sizes = [64, 256], strides = [1, 1]} : vector<64x512xf32> to vector<64x256xf32>
    %96 = vector.extract_strided_slice %77 {offsets = [0, 256], sizes = [64, 256], strides = [1, 1]} : vector<64x512xf32> to vector<64x256xf32>
    %97 = vector.extract_strided_slice %94 {offsets = [0, 0], sizes = [64, 256], strides = [1, 1]} : vector<128x256xf32> to vector<64x256xf32>
    %98 = arith.mulf %97, %95 : vector<64x256xf32>
    %cst_38 = arith.constant 1.000000e+00 : f32
    %99 = vector.broadcast %cst_38 : f32 to vector<64x256xf32>
    %100 = arith.subf %99, %97 : vector<64x256xf32>
    %101 = arith.mulf %100, %96 : vector<64x256xf32>
    %102 = arith.addf %98, %101 : vector<64x256xf32>
    %103 = vector.extract_strided_slice %94 {offsets = [64, 0], sizes = [64, 256], strides = [1, 1]} : vector<128x256xf32> to vector<64x256xf32>
    %104 = arith.mulf %103, %95 : vector<64x256xf32>
    %cst_39 = arith.constant 1.000000e+00 : f32
    %105 = vector.broadcast %cst_39 : f32 to vector<64x256xf32>
    %106 = arith.subf %105, %103 : vector<64x256xf32>
    %107 = arith.mulf %106, %96 : vector<64x256xf32>
    %108 = arith.addf %104, %107 : vector<64x256xf32>
    %109 = tpu.concatenate %102, %108 in 1 : vector<64x256xf32>, vector<64x256xf32> -> vector<64x512xf32>
    %110 = arith.truncf %109 : vector<64x512xf32> to vector<64x512xbf16>
    %cst_40 = arith.constant dense<0.000000e+00> : vector<64x512xf32>
    %111 = tpu.matmul %68, %110, %cst_40 {dimension_numbers = #tpu.dot_dimension_numbers<[1], [0], [0], [1], [0, 0, 1, 1], [], []>} : vector<64x64xbf16>, vector<64x512xbf16>, vector<64x512xf32> -> vector<64x512xf32>
    %112 = vector.broadcast %69 : vector<64x1xf32> to vector<64x512xf32>
    %113 = arith.addf %111, %112 : vector<64x512xf32>
    %114 = arith.addf %113, %74 : vector<64x512xf32>
    %cst_41 = arith.constant 0.000000e+00 : f32
    %115 = vector.broadcast %cst_41 : f32 to vector<64x512xf32>
    %116 = arith.maximumf %114, %115 : vector<64x512xf32>
    %c0_42 = arith.constant 0 : index
    %c0_43 = arith.constant 0 : index
    %117 = vector.load %arg14[%c0_42, %c0_43] : memref<512x64xbf16, #tpu.memory_space<vmem>>, vector<512x64xbf16>
    %c0_44 = arith.constant 0 : index
    %c0_45 = arith.constant 0 : index
    %118 = vector.load %arg15[%c0_44, %c0_45] : memref<512x1xf32, #tpu.memory_space<vmem>>, vector<512x1xf32>
    %c0_46 = arith.constant 0 : index
    %c0_47 = arith.constant 0 : index
    %119 = vector.load %arg16[%c0_46, %c0_47] : memref<256x256xbf16, #tpu.memory_space<vmem>>, vector<256x256xbf16>
    %c0_48 = arith.constant 0 : index
    %c0_49 = arith.constant 0 : index
    %120 = vector.load %arg17[%c0_48, %c0_49] : memref<128x128xbf16, #tpu.memory_space<vmem>>, vector<128x128xbf16>
    %c0_50 = arith.constant 0 : index
    %c0_51 = arith.constant 0 : index
    %121 = vector.load %arg18[%c0_50, %c0_51] : memref<128x1xf32, #tpu.memory_space<vmem>>, vector<128x1xf32>
    %122 = arith.truncf %116 : vector<64x512xf32> to vector<64x512xbf16>
    %cst_52 = arith.constant dense<0.000000e+00> : vector<512x512xf32>
    %123 = tpu.matmul %117, %122, %cst_52 {dimension_numbers = #tpu.dot_dimension_numbers<[1], [0], [0], [1], [0, 0, 1, 1], [], []>} : vector<512x64xbf16>, vector<64x512xbf16>, vector<512x512xf32> -> vector<512x512xf32>
    %124 = vector.broadcast %118 : vector<512x1xf32> to vector<512x512xf32>
    %125 = arith.addf %123, %124 : vector<512x512xf32>
    %126 = vector.extract_strided_slice %125 {offsets = [0, 0], sizes = [128, 512], strides = [1, 1]} : vector<512x512xf32> to vector<128x512xf32>
    %127 = vector.extract_strided_slice %125 {offsets = [128, 0], sizes = [128, 512], strides = [1, 1]} : vector<512x512xf32> to vector<128x512xf32>
    %128 = vector.extract_strided_slice %125 {offsets = [256, 0], sizes = [128, 512], strides = [1, 1]} : vector<512x512xf32> to vector<128x512xf32>
    %129 = vector.extract_strided_slice %125 {offsets = [384, 0], sizes = [128, 512], strides = [1, 1]} : vector<512x512xf32> to vector<128x512xf32>
    %130 = vector.extract_strided_slice %127 {offsets = [0, 0], sizes = [128, 256], strides = [1, 1]} : vector<128x512xf32> to vector<128x256xf32>
    %131 = vector.extract_strided_slice %127 {offsets = [0, 256], sizes = [128, 256], strides = [1, 1]} : vector<128x512xf32> to vector<128x256xf32>
    %132 = tpu.concatenate %130, %131 in 0 : vector<128x256xf32>, vector<128x256xf32> -> vector<256x256xf32>
    %133 = tpu.concatenate %128, %128 in 0 : vector<128x512xf32>, vector<128x512xf32> -> vector<256x512xf32>
    %134 = tpu.concatenate %132, %132 in 1 : vector<256x256xf32>, vector<256x256xf32> -> vector<256x512xf32>
    %135 = arith.mulf %134, %133 : vector<256x512xf32>
    %136 = arith.truncf %135 : vector<256x512xf32> to vector<256x512xbf16>
    %cst_53 = arith.constant dense<0.000000e+00> : vector<256x512xf32>
    %137 = tpu.matmul %119, %136, %cst_53 {dimension_numbers = #tpu.dot_dimension_numbers<[1], [0], [0], [1], [0, 0, 1, 1], [], []>} : vector<256x256xbf16>, vector<256x512xbf16>, vector<256x512xf32> -> vector<256x512xf32>
    %138 = vector.extract_strided_slice %137 {offsets = [0, 0], sizes = [256, 256], strides = [1, 1]} : vector<256x512xf32> to vector<256x256xf32>
    %139 = vector.extract_strided_slice %137 {offsets = [0, 256], sizes = [256, 256], strides = [1, 1]} : vector<256x512xf32> to vector<256x256xf32>
    %140 = arith.subf %138, %139 : vector<256x256xf32>
    %cst_54 = arith.constant 0.000000e+00 : f32
    %141 = vector.broadcast %cst_54 : f32 to vector<256x256xf32>
    %142 = arith.subf %141, %140 : vector<256x256xf32>
    %143 = math.exp %142 : vector<256x256xf32>
    %cst_55 = arith.constant 1.000000e+00 : f32
    %144 = vector.broadcast %cst_55 : f32 to vector<256x256xf32>
    %145 = arith.addf %144, %143 : vector<256x256xf32>
    %146 = tpu.reciprocal %145 {approx = true} : vector<256x256xf32> -> vector<256x256xf32>
    %147 = vector.extract_strided_slice %129 {offsets = [0, 0], sizes = [128, 256], strides = [1, 1]} : vector<128x512xf32> to vector<128x256xf32>
    %148 = vector.extract_strided_slice %129 {offsets = [0, 256], sizes = [128, 256], strides = [1, 1]} : vector<128x512xf32> to vector<128x256xf32>
    %149 = vector.extract_strided_slice %146 {offsets = [0, 0], sizes = [128, 256], strides = [1, 1]} : vector<256x256xf32> to vector<128x256xf32>
    %150 = arith.mulf %149, %147 : vector<128x256xf32>
    %cst_56 = arith.constant 1.000000e+00 : f32
    %151 = vector.broadcast %cst_56 : f32 to vector<128x256xf32>
    %152 = arith.subf %151, %149 : vector<128x256xf32>
    %153 = arith.mulf %152, %148 : vector<128x256xf32>
    %154 = arith.addf %150, %153 : vector<128x256xf32>
    %155 = vector.extract_strided_slice %146 {offsets = [128, 0], sizes = [128, 256], strides = [1, 1]} : vector<256x256xf32> to vector<128x256xf32>
    %156 = arith.mulf %155, %147 : vector<128x256xf32>
    %cst_57 = arith.constant 1.000000e+00 : f32
    %157 = vector.broadcast %cst_57 : f32 to vector<128x256xf32>
    %158 = arith.subf %157, %155 : vector<128x256xf32>
    %159 = arith.mulf %158, %148 : vector<128x256xf32>
    %160 = arith.addf %156, %159 : vector<128x256xf32>
    %161 = tpu.concatenate %154, %160 in 1 : vector<128x256xf32>, vector<128x256xf32> -> vector<128x512xf32>
    %162 = arith.truncf %161 : vector<128x512xf32> to vector<128x512xbf16>
    %cst_58 = arith.constant dense<0.000000e+00> : vector<128x512xf32>
    %163 = tpu.matmul %120, %162, %cst_58 {dimension_numbers = #tpu.dot_dimension_numbers<[1], [0], [0], [1], [0, 0, 1, 1], [], []>} : vector<128x128xbf16>, vector<128x512xbf16>, vector<128x512xf32> -> vector<128x512xf32>
    %164 = vector.broadcast %121 : vector<128x1xf32> to vector<128x512xf32>
    %165 = arith.addf %163, %164 : vector<128x512xf32>
    %166 = arith.addf %165, %126 : vector<128x512xf32>
    %cst_59 = arith.constant 0.000000e+00 : f32
    %167 = vector.broadcast %cst_59 : f32 to vector<128x512xf32>
    %168 = arith.maximumf %166, %167 : vector<128x512xf32>
    %c0_i32_60 = arith.constant 0 : i32
    %169 = tpu.memref_slice %arg28[%c0_i32_60] : memref<2x!tpu.dma_semaphore, #tpu.memory_space<semaphore_mem>> -> memref<1x!tpu.dma_semaphore, #tpu.memory_space<semaphore_mem>>
    %170 = tpu.memref_squeeze %169 : memref<1x!tpu.dma_semaphore, #tpu.memory_space<semaphore_mem>> -> memref<!tpu.dma_semaphore, #tpu.memory_space<semaphore_mem>>
    tpu.wait_dma2 semaphore(%170 : memref<!tpu.dma_semaphore, #tpu.memory_space<semaphore_mem>>) src(%arg23 : memref<256x128xbf16, #tpu.memory_space<any>>) dst(%arg26 : memref<256x128xbf16, #tpu.memory_space<vmem>>)
    %c0_61 = arith.constant 0 : index
    %c0_62 = arith.constant 0 : index
    %171 = vector.load %arg26[%c0_61, %c0_62] : memref<256x128xbf16, #tpu.memory_space<vmem>>, vector<256x128xbf16>
    %172 = arith.truncf %168 : vector<128x512xf32> to vector<128x512xbf16>
    %cst_63 = arith.constant dense<0.000000e+00> : vector<256x512xf32>
    %173 = tpu.matmul %171, %172, %cst_63 {dimension_numbers = #tpu.dot_dimension_numbers<[1], [0], [0], [1], [0, 0, 1, 1], [], []>} : vector<256x128xbf16>, vector<128x512xbf16>, vector<256x512xf32> -> vector<256x512xf32>
    %c0_64 = arith.constant 0 : index
    %c0_65 = arith.constant 0 : index
    %174 = vector.load %arg19[%c0_64, %c0_65] : memref<256x1xf32, #tpu.memory_space<vmem>>, vector<256x1xf32>
    %175 = vector.broadcast %174 : vector<256x1xf32> to vector<256x512xf32>
    %176 = arith.addf %173, %175 : vector<256x512xf32>
    %cst_66 = arith.constant 0.000000e+00 : f32
    %177 = vector.broadcast %cst_66 : f32 to vector<256x512xf32>
    %178 = arith.maximumf %176, %177 : vector<256x512xf32>
    %179 = vector.extract_strided_slice %178 {offsets = [0, 0], sizes = [256, 256], strides = [1, 1]} : vector<256x512xf32> to vector<256x256xf32>
    %cst_67 = arith.constant dense<0xFF800000> : vector<256xf32>
    %180 = vector.multi_reduction <maximumf>, %179, %cst_67 [1] : vector<256x256xf32> to vector<256xf32>
    %181 = vector.shape_cast %180 : vector<256xf32> to vector<256x1xf32>
    %182 = vector.extract_strided_slice %178 {offsets = [0, 256], sizes = [256, 256], strides = [1, 1]} : vector<256x512xf32> to vector<256x256xf32>
    %cst_68 = arith.constant dense<0xFF800000> : vector<256xf32>
    %183 = vector.multi_reduction <maximumf>, %182, %cst_68 [1] : vector<256x256xf32> to vector<256xf32>
    %184 = vector.shape_cast %183 : vector<256xf32> to vector<256x1xf32>
    %185 = tpu.concatenate %181, %184 in 1 : vector<256x1xf32>, vector<256x1xf32> -> vector<256x2xf32>
    %c1_i32_69 = arith.constant 1 : i32
    %186 = tpu.memref_slice %arg28[%c1_i32_69] : memref<2x!tpu.dma_semaphore, #tpu.memory_space<semaphore_mem>> -> memref<1x!tpu.dma_semaphore, #tpu.memory_space<semaphore_mem>>
    %187 = tpu.memref_squeeze %186 : memref<1x!tpu.dma_semaphore, #tpu.memory_space<semaphore_mem>> -> memref<!tpu.dma_semaphore, #tpu.memory_space<semaphore_mem>>
    tpu.wait_dma2 semaphore(%187 : memref<!tpu.dma_semaphore, #tpu.memory_space<semaphore_mem>>) src(%arg24 : memref<512x256xbf16, #tpu.memory_space<any>>) dst(%arg27 : memref<512x256xbf16, #tpu.memory_space<vmem>>)
    %c0_70 = arith.constant 0 : index
    %c0_71 = arith.constant 0 : index
    %188 = vector.load %arg27[%c0_70, %c0_71] : memref<512x256xbf16, #tpu.memory_space<vmem>>, vector<512x256xbf16>
    %189 = arith.truncf %185 : vector<256x2xf32> to vector<256x2xbf16>
    %cst_72 = arith.constant dense<0.000000e+00> : vector<512x2xf32>
    %190 = tpu.matmul %188, %189, %cst_72 {dimension_numbers = #tpu.dot_dimension_numbers<[1], [0], [0], [1], [0, 0, 1, 1], [], []>} : vector<512x256xbf16>, vector<256x2xbf16>, vector<512x2xf32> -> vector<512x2xf32>
    %c0_73 = arith.constant 0 : index
    %c0_74 = arith.constant 0 : index
    %191 = vector.load %arg20[%c0_73, %c0_74] : memref<512x1xf32, #tpu.memory_space<vmem>>, vector<512x1xf32>
    %192 = vector.broadcast %191 : vector<512x1xf32> to vector<512x2xf32>
    %193 = arith.addf %190, %192 : vector<512x2xf32>
    %cst_75 = arith.constant 0.000000e+00 : f32
    %194 = vector.broadcast %cst_75 : f32 to vector<512x2xf32>
    %195 = arith.maximumf %193, %194 : vector<512x2xf32>
    %c0_76 = arith.constant 0 : index
    %c0_77 = arith.constant 0 : index
    %196 = vector.load %arg21[%c0_76, %c0_77] : memref<10x512xbf16, #tpu.memory_space<vmem>>, vector<10x512xbf16>
    %197 = arith.truncf %195 : vector<512x2xf32> to vector<512x2xbf16>
    %cst_78 = arith.constant dense<0.000000e+00> : vector<10x2xf32>
    %198 = tpu.matmul %196, %197, %cst_78 {dimension_numbers = #tpu.dot_dimension_numbers<[1], [0], [0], [1], [0, 0, 1, 1], [], []>} : vector<10x512xbf16>, vector<512x2xbf16>, vector<10x2xf32> -> vector<10x2xf32>
    %c0_79 = arith.constant 0 : index
    %c0_80 = arith.constant 0 : index
    %199 = vector.load %arg22[%c0_79, %c0_80] : memref<10x1xf32, #tpu.memory_space<vmem>>, vector<10x1xf32>
    %200 = vector.broadcast %199 : vector<10x1xf32> to vector<10x2xf32>
    %201 = arith.addf %198, %200 : vector<10x2xf32>
    %c0_81 = arith.constant 0 : index
    %c0_82 = arith.constant 0 : index
    %202 = vector.load %arg25[%c0_81, %c0_82] : memref<10x2xf32, #tpu.memory_space<vmem>>, vector<10x2xf32>
    tpu.vector_store %arg25[%c0_81, %c0_82], %201 {strides = array<i32>} : memref<10x2xf32, #tpu.memory_space<vmem>>, vector<10x2xf32>,
    return
  }
  func.func @transform_0(%arg0: i32) -> (i32, i32) {
    %c0_i32 = arith.constant 0 : i32
    %c0_i32_0 = arith.constant 0 : i32
    %c0_i32_1 = arith.constant 0 : i32
    return %c0_i32, %c0_i32_0 : i32, i32
  }
  func.func @transform_1(%arg0: i32) -> (i32, i32) {
    %c0_i32 = arith.constant 0 : i32
    %c0_i32_0 = arith.constant 0 : i32
    %c0_i32_1 = arith.constant 0 : i32
    return %c0_i32, %c0_i32_0 : i32, i32
  }
  func.func @transform_2(%arg0: i32) -> (i32, i32) {
    %c0_i32 = arith.constant 0 : i32
    %c0_i32_0 = arith.constant 0 : i32
    %c0_i32_1 = arith.constant 0 : i32
    return %c0_i32, %c0_i32_0 : i32, i32
  }
  func.func @transform_3(%arg0: i32) -> (i32, i32) {
    %c0_i32 = arith.constant 0 : i32
    %c0_i32_0 = arith.constant 0 : i32
    %c0_i32_1 = arith.constant 0 : i32
    return %c0_i32, %c0_i32_0 : i32, i32
  }
  func.func @transform_4(%arg0: i32) -> (i32, i32) {
    %c0_i32 = arith.constant 0 : i32
    %c0_i32_0 = arith.constant 0 : i32
    %c0_i32_1 = arith.constant 0 : i32
    return %c0_i32, %c0_i32_0 : i32, i32
  }
  func.func @transform_5(%arg0: i32) -> (i32, i32) {
    %c0_i32 = arith.constant 0 : i32
    %c0_i32_0 = arith.constant 0 : i32
    %c0_i32_1 = arith.constant 0 : i32
    return %c0_i32, %c0_i32_0 : i32, i32
  }
  func.func @transform_6(%arg0: i32) -> (i32, i32) {
    %c0_i32 = arith.constant 0 : i32
    %c0_i32_0 = arith.constant 0 : i32
    %c0_i32_1 = arith.constant 0 : i32
    return %c0_i32, %c0_i32_0 : i32, i32
  }
  func.func @transform_7(%arg0: i32) -> (i32, i32) {
    %c0_i32 = arith.constant 0 : i32
    %c0_i32_0 = arith.constant 0 : i32
    %c0_i32_1 = arith.constant 0 : i32
    return %c0_i32, %c0_i32_0 : i32, i32
  }
  func.func @transform_8(%arg0: i32) -> (i32, i32) {
    %c0_i32 = arith.constant 0 : i32
    %c0_i32_0 = arith.constant 0 : i32
    %c0_i32_1 = arith.constant 0 : i32
    return %c0_i32, %c0_i32_0 : i32, i32
  }
  func.func @transform_9(%arg0: i32) -> (i32, i32) {
    %c0_i32 = arith.constant 0 : i32
    %c0_i32_0 = arith.constant 0 : i32
    %c0_i32_1 = arith.constant 0 : i32
    return %c0_i32, %c0_i32_0 : i32, i32
  }
  func.func @transform_10(%arg0: i32) -> (i32, i32) {
    %c0_i32 = arith.constant 0 : i32
    %c0_i32_0 = arith.constant 0 : i32
    %c0_i32_1 = arith.constant 0 : i32
    return %c0_i32, %c0_i32_0 : i32, i32
  }
  func.func @transform_11(%arg0: i32) -> (i32, i32) {
    %c0_i32 = arith.constant 0 : i32
    %c0_i32_0 = arith.constant 0 : i32
    %c0_i32_1 = arith.constant 0 : i32
    return %c0_i32, %c0_i32_0 : i32, i32
  }
  func.func @transform_12(%arg0: i32) -> (i32, i32) {
    %c0_i32 = arith.constant 0 : i32
    %c0_i32_0 = arith.constant 0 : i32
    %c0_i32_1 = arith.constant 0 : i32
    return %c0_i32, %c0_i32_0 : i32, i32
  }
  func.func @transform_13(%arg0: i32) -> (i32, i32) {
    %c0_i32 = arith.constant 0 : i32
    %c0_i32_0 = arith.constant 0 : i32
    %c0_i32_1 = arith.constant 0 : i32
    return %c0_i32, %c0_i32_0 : i32, i32
  }
  func.func @transform_14(%arg0: i32) -> (i32, i32) {
    %c0_i32 = arith.constant 0 : i32
    %c0_i32_0 = arith.constant 0 : i32
    %c0_i32_1 = arith.constant 0 : i32
    return %c0_i32, %c0_i32_0 : i32, i32
  }
  func.func @transform_15(%arg0: i32) -> (i32, i32) {
    %c0_i32 = arith.constant 0 : i32
    %c0_i32_0 = arith.constant 0 : i32
    %c0_i32_1 = arith.constant 0 : i32
    return %c0_i32, %c0_i32_0 : i32, i32
  }
  func.func @transform_16(%arg0: i32) -> (i32, i32) {
    %c0_i32 = arith.constant 0 : i32
    %c0_i32_0 = arith.constant 0 : i32
    %c0_i32_1 = arith.constant 0 : i32
    return %c0_i32, %c0_i32_0 : i32, i32
  }
  func.func @transform_17(%arg0: i32) -> (i32, i32) {
    %c0_i32 = arith.constant 0 : i32
    %c0_i32_0 = arith.constant 0 : i32
    %c0_i32_1 = arith.constant 0 : i32
    return %c0_i32, %c0_i32_0 : i32, i32
  }
  func.func @transform_18(%arg0: i32) -> (i32, i32) {
    %c0_i32 = arith.constant 0 : i32
    %c0_i32_0 = arith.constant 0 : i32
    %c0_i32_1 = arith.constant 0 : i32
    return %c0_i32, %c0_i32_0 : i32, i32
  }
  func.func @transform_19(%arg0: i32) -> (i32, i32) {
    %c0_i32 = arith.constant 0 : i32
    %c0_i32_0 = arith.constant 0 : i32
    %c0_i32_1 = arith.constant 0 : i32
    return %c0_i32, %c0_i32_0 : i32, i32
  }
  func.func @transform_20(%arg0: i32) -> (i32, i32) {
    %c0_i32 = arith.constant 0 : i32
    %c0_i32_0 = arith.constant 0 : i32
    %c0_i32_1 = arith.constant 0 : i32
    return %c0_i32, %c0_i32_0 : i32, i32
  }
  func.func @transform_21(%arg0: i32) -> (i32, i32) {
    %c0_i32 = arith.constant 0 : i32
    %c0_i32_0 = arith.constant 0 : i32
    %c0_i32_1 = arith.constant 0 : i32
    return %c0_i32, %c0_i32_0 : i32, i32
  }
  func.func @transform_24(%arg0: i32) -> (i32, i32) {
    %c0_i32 = arith.constant 0 : i32
    %c0_i32_0 = arith.constant 0 : i32
    %c0_i32_1 = arith.constant 0 : i32
    return %c0_i32, %c0_i32_0 : i32, i32
  }
}

</mosaic_0001>

<llo_original>
// kernel: tpu_custom_call.1
$region0: #{tpu_custom_call.1}
  #allocation0 [shape = 'u32[]', space=smem, size = 0x4, offset = 0x4, fixed_abs, tag = 'smem constant byte address 0x4 - core index']
  #allocation1 [shape = 'u32[144,128]{1,0:T(1,128)}', space=vmem, size = 0x12000, scoped, tag = 'internal scratch']
  #allocation2 [shape = 'bf16[256,128]{1,0:T(16,128)(2,1)}', space=vmem, size = 0x10000, scoped, tag = 'scratch operand']
  #allocation3 [shape = 'bf16[512,256]{1,0:T(16,128)(2,1)}', space=vmem, size = 0x40000, scoped, tag = 'scratch operand']
  #allocation4 [shape = 's32[2]{0}', space=sflag, size = 0x8, scoped, tag = 'scratch operand']
  #allocation5 [shape = 's32[]', space=sflag, size = 0x4, offset = 0, fixed_abs, tag = 'sflag constant byte address 0x0 - dummy sync flag']
  #allocation6 [shape = 's32[]', space=sflag, size = 0x4, offset = 0, fixed_abs, tag = 'sflag constant byte address 0x0 - dummy sync flag']
  %s0 = inlined_call_operand.vmem [shape: f32[3,512], index: 0, kind: input, shape index: {}]
  %s1 = inlined_call_operand.vmem [shape: bf16[64,3], index: 1, kind: input, shape index: {}]
  %s2 = inlined_call_operand.vmem [shape: f32[64,1], index: 2, kind: input, shape index: {}]
  %s3 = inlined_call_operand.vmem [shape: bf16[256,64], index: 3, kind: input, shape index: {}]
  %s4 = inlined_call_operand.vmem [shape: f32[256,1], index: 4, kind: input, shape index: {}]
  %s5 = inlined_call_operand.vmem [shape: bf16[128,128], index: 5, kind: input, shape index: {}]
  %s6 = inlined_call_operand.vmem [shape: bf16[64,64], index: 6, kind: input, shape index: {}]
  %s7 = inlined_call_operand.vmem [shape: f32[64,1], index: 7, kind: input, shape index: {}]
  %s8 = inlined_call_operand.vmem [shape: bf16[256,64], index: 8, kind: input, shape index: {}]
  %s9 = inlined_call_operand.vmem [shape: f32[256,1], index: 9, kind: input, shape index: {}]
  %s10 = inlined_call_operand.vmem [shape: bf16[128,128], index: 10, kind: input, shape index: {}]
  %s11 = inlined_call_operand.vmem [shape: bf16[64,64], index: 11, kind: input, shape index: {}]
  %s12 = inlined_call_operand.vmem [shape: f32[64,1], index: 12, kind: input, shape index: {}]
  %s13 = inlined_call_operand.vmem [shape: bf16[512,64], index: 13, kind: input, shape index: {}]
  %s14 = inlined_call_operand.vmem [shape: f32[512,1], index: 14, kind: input, shape index: {}]
  %s15 = inlined_call_operand.vmem [shape: bf16[256,256], index: 15, kind: input, shape index: {}]
  %s16 = inlined_call_operand.vmem [shape: bf16[128,128], index: 16, kind: input, shape index: {}]
  %s17 = inlined_call_operand.vmem [shape: f32[128,1], index: 17, kind: input, shape index: {}]
  %s18 = inlined_call_operand.vmem [shape: f32[256,1], index: 18, kind: input, shape index: {}]
  %s19 = inlined_call_operand.vmem [shape: f32[512,1], index: 19, kind: input, shape index: {}]
  %s20 = inlined_call_operand.vmem [shape: bf16[10,512], index: 20, kind: input, shape index: {}]
  %s21 = inlined_call_operand.vmem [shape: f32[10,1], index: 21, kind: input, shape index: {}]
  %s22 = inlined_call_operand.vmem [shape: bf16[256,128], index: 22, kind: input, shape index: {}]
  %s23 = inlined_call_operand.vmem [shape: bf16[512,256], index: 23, kind: input, shape index: {}]
  %s24 = inlined_call_operand.vmem [shape: f32[10,2], index: 24, kind: output, shape index: {}]
  %s25 = sld [smem:[#allocation0]]
  $region169: #{tpu_custom_call.1} parent=0
    _
  %s27 = ssub.s32 1, %s25
  %s28 = scalar_select 0, %s27, %s25
  // Predicated region
  $region2: #{tpu_custom_call.1} parent=0 // pred_check
    _
  $region3: #{tpu_custom_call.1} parent=0 // pred_check_branch
    %30 = sbr.rel (0) target = $region5
  $region4: #{tpu_custom_call.1} parent=0 // pred_region
    _
  $region5: #{tpu_custom_call.1} parent=0 // pred_fallthru
    _
  // Predicated region
  $region6: #{tpu_custom_call.1} parent=0 // pred_check
    _
  $region7: #{tpu_custom_call.1} parent=0 // pred_check_branch
    %32 = sbr.rel (0) target = $region9
  $region8: #{tpu_custom_call.1} parent=0 // pred_region
    _
  $region9: #{tpu_custom_call.1} parent=0 // pred_fallthru
    _
  // Predicated region
  $region10: #{tpu_custom_call.1} parent=0 // pred_check
    _
  $region11: #{tpu_custom_call.1} parent=0 // pred_check_branch
    %34 = sbr.rel (0) target = $region13
  $region12: #{tpu_custom_call.1} parent=0 // pred_region
    _
  $region13: #{tpu_custom_call.1} parent=0 // pred_fallthru
    _
  // Predicated region
  $region14: #{tpu_custom_call.1} parent=0 // pred_check
    _
  $region15: #{tpu_custom_call.1} parent=0 // pred_check_branch
    %36 = sbr.rel (0) target = $region17
  $region16: #{tpu_custom_call.1} parent=0 // pred_region
    _
  $region17: #{tpu_custom_call.1} parent=0 // pred_fallthru
    _
  // Predicated region
  $region18: #{tpu_custom_call.1} parent=0 // pred_check
    _
  $region19: #{tpu_custom_call.1} parent=0 // pred_check_branch
    %38 = sbr.rel (0) target = $region21
  $region20: #{tpu_custom_call.1} parent=0 // pred_region
    _
  $region21: #{tpu_custom_call.1} parent=0 // pred_fallthru
    _
  // Predicated region
  $region22: #{tpu_custom_call.1} parent=0 // pred_check
    _
  $region23: #{tpu_custom_call.1} parent=0 // pred_check_branch
    %40 = sbr.rel (0) target = $region25
  $region24: #{tpu_custom_call.1} parent=0 // pred_region
    _
  $region25: #{tpu_custom_call.1} parent=0 // pred_fallthru
    _
  // Predicated region
  $region26: #{tpu_custom_call.1} parent=0 // pred_check
    _
  $region27: #{tpu_custom_call.1} parent=0 // pred_check_branch
    %42 = sbr.rel (0) target = $region29
  $region28: #{tpu_custom_call.1} parent=0 // pred_region
    _
  $region29: #{tpu_custom_call.1} parent=0 // pred_fallthru
    _
  // Predicated region
  $region30: #{tpu_custom_call.1} parent=0 // pred_check
    _
  $region31: #{tpu_custom_call.1} parent=0 // pred_check_branch
    %44 = sbr.rel (0) target = $region33
  $region32: #{tpu_custom_call.1} parent=0 // pred_region
    _
  $region33: #{tpu_custom_call.1} parent=0 // pred_fallthru
    _
  // Predicated region
  $region34: #{tpu_custom_call.1} parent=0 // pred_check
    _
  $region35: #{tpu_custom_call.1} parent=0 // pred_check_branch
    %46 = sbr.rel (0) target = $region37
  $region36: #{tpu_custom_call.1} parent=0 // pred_region
    _
  $region37: #{tpu_custom_call.1} parent=0 // pred_fallthru
    _
  // Predicated region
  $region38: #{tpu_custom_call.1} parent=0 // pred_check
    _
  $region39: #{tpu_custom_call.1} parent=0 // pred_check_branch
    %48 = sbr.rel (0) target = $region41
  $region40: #{tpu_custom_call.1} parent=0 // pred_region
    _
  $region41: #{tpu_custom_call.1} parent=0 // pred_fallthru
    _
  // Predicated region
  $region42: #{tpu_custom_call.1} parent=0 // pred_check
    _
  $region43: #{tpu_custom_call.1} parent=0 // pred_check_branch
    %50 = sbr.rel (0) target = $region45
  $region44: #{tpu_custom_call.1} parent=0 // pred_region
    _
  $region45: #{tpu_custom_call.1} parent=0 // pred_fallthru
    _
  // Predicated region
  $region46: #{tpu_custom_call.1} parent=0 // pred_check
    _
  $region47: #{tpu_custom_call.1} parent=0 // pred_check_branch
    %52 = sbr.rel (0) target = $region49
  $region48: #{tpu_custom_call.1} parent=0 // pred_region
    _
  $region49: #{tpu_custom_call.1} parent=0 // pred_fallthru
    _
  // Predicated region
  $region50: #{tpu_custom_call.1} parent=0 // pred_check
    _
  $region51: #{tpu_custom_call.1} parent=0 // pred_check_branch
    %54 = sbr.rel (0) target = $region53
  $region52: #{tpu_custom_call.1} parent=0 // pred_region
    _
  $region53: #{tpu_custom_call.1} parent=0 // pred_fallthru
    _
  // Predicated region
  $region54: #{tpu_custom_call.1} parent=0 // pred_check
    _
  $region55: #{tpu_custom_call.1} parent=0 // pred_check_branch
    %56 = sbr.rel (0) target = $region57
  $region56: #{tpu_custom_call.1} parent=0 // pred_region
    _
  $region57: #{tpu_custom_call.1} parent=0 // pred_fallthru
    _
  // Predicated region
  $region58: #{tpu_custom_call.1} parent=0 // pred_check
    _
  $region59: #{tpu_custom_call.1} parent=0 // pred_check_branch
    %58 = sbr.rel (0) target = $region61
  $region60: #{tpu_custom_call.1} parent=0 // pred_region
    _
  $region61: #{tpu_custom_call.1} parent=0 // pred_fallthru
    _
  // Predicated region
  $region62: #{tpu_custom_call.1} parent=0 // pred_check
    _
  $region63: #{tpu_custom_call.1} parent=0 // pred_check_branch
    %60 = sbr.rel (0) target = $region65
  $region64: #{tpu_custom_call.1} parent=0 // pred_region
    _
  $region65: #{tpu_custom_call.1} parent=0 // pred_fallthru
    _
  // Predicated region
  $region66: #{tpu_custom_call.1} parent=0 // pred_check
    _
  $region67: #{tpu_custom_call.1} parent=0 // pred_check_branch
    %62 = sbr.rel (0) target = $region69
  $region68: #{tpu_custom_call.1} parent=0 // pred_region
    _
  $region69: #{tpu_custom_call.1} parent=0 // pred_fallthru
    _
  // Predicated region
  $region70: #{tpu_custom_call.1} parent=0 // pred_check
    _
  $region71: #{tpu_custom_call.1} parent=0 // pred_check_branch
    %64 = sbr.rel (0) target = $region73
  $region72: #{tpu_custom_call.1} parent=0 // pred_region
    _
  $region73: #{tpu_custom_call.1} parent=0 // pred_fallthru
    _
  // Predicated region
  $region74: #{tpu_custom_call.1} parent=0 // pred_check
    _
  $region75: #{tpu_custom_call.1} parent=0 // pred_check_branch
    %66 = sbr.rel (0) target = $region77
  $region76: #{tpu_custom_call.1} parent=0 // pred_region
    _
  $region77: #{tpu_custom_call.1} parent=0 // pred_fallthru
    _
  // Predicated region
  $region78: #{tpu_custom_call.1} parent=0 // pred_check
    _
  $region79: #{tpu_custom_call.1} parent=0 // pred_check_branch
    %68 = sbr.rel (0) target = $region81
  $region80: #{tpu_custom_call.1} parent=0 // pred_region
    _
  $region81: #{tpu_custom_call.1} parent=0 // pred_fallthru
    _
  // Predicated region
  $region82: #{tpu_custom_call.1} parent=0 // pred_check
    _
  $region83: #{tpu_custom_call.1} parent=0 // pred_check_branch
    %70 = sbr.rel (0) target = $region85
  $region84: #{tpu_custom_call.1} parent=0 // pred_region
    _
  $region85: #{tpu_custom_call.1} parent=0 // pred_fallthru
    _
  // Predicated region
  $region86: #{tpu_custom_call.1} parent=0 // pred_check
    _
  $region87: #{tpu_custom_call.1} parent=0 // pred_check_branch
    %72 = sbr.rel (0) target = $region89
  $region88: #{tpu_custom_call.1} parent=0 // pred_region
    _
  $region89: #{tpu_custom_call.1} parent=0 // pred_fallthru
    _
  %p75 = scmp.lt.u32.totalorder 128, 8
  %p76 = pneg %p75
  // Predicated region
  $region90: #{tpu_custom_call.1} parent=0 // pred_check
    _
  $region91: #{tpu_custom_call.1} parent=0 // pred_check_branch
    %78 = sbr.rel (%p75) target = $region93
  $region92: #{tpu_custom_call.1} parent=0 // pred_region
    %s93 = sand.u32 128, 7
    %p94 = scmp.eq.s32.totalorder %s93, 0
    // Predicated region
    $region105: #{tpu_custom_call.1} parent=92 // pred_check
      %p95 = pneg %p94
    $region106: #{tpu_custom_call.1} parent=92 // pred_check_branch
      %97 = sbr.rel (%p95) target = $region108
    $region107: #{tpu_custom_call.1} parent=92 // pred_region
      loop: start=0, step=1, limit=1
      $region109: #{tpu_custom_call.1} parent=107 // loop_pre_header
        _
      $region110: #{tpu_custom_call.1} parent=107 // loop_header
        %s99 = sphi 0, %s103
        %p100 = scmp.ge.s32.totalorder %s99, 1
        %s104 = sphi %s22, %s22
        %s105 = sphi [#allocation2], [#allocation2]
      $region111: #{tpu_custom_call.1} parent=107 // loop_header_branch
        %102 = sbr.rel (%p100) target = $region115
      $region112: #{tpu_custom_call.1} parent=107 // loop_body
        %v106 = vld [vmem:[%s104] sm:$0xff]
        %107 = vst [vmem:[%s105] sm:$0xff] %v106
        %v108 = vld [vmem:[%s104 + $0x8] sm:$0xff]
        %109 = vst [vmem:[%s105 + $0x8] sm:$0xff] %v108
        %v110 = vld [vmem:[%s104 + $0x10] sm:$0xff]
        %111 = vst [vmem:[%s105 + $0x10] sm:$0xff] %v110
        %v112 = vld [vmem:[%s104 + $0x18] sm:$0xff]
        %113 = vst [vmem:[%s105 + $0x18] sm:$0xff] %v112
        %v114 = vld [vmem:[%s104 + $0x20] sm:$0xff]
        %115 = vst [vmem:[%s105 + $0x20] sm:$0xff] %v114
        %v116 = vld [vmem:[%s104 + $0x28] sm:$0xff]
        %117 = vst [vmem:[%s105 + $0x28] sm:$0xff] %v116
        %v118 = vld [vmem:[%s104 + $0x30] sm:$0xff]
        %119 = vst [vmem:[%s105 + $0x30] sm:$0xff] %v118
        %v120 = vld [vmem:[%s104 + $0x38] sm:$0xff]
        %121 = vst [vmem:[%s105 + $0x38] sm:$0xff] %v120
        %v122 = vld [vmem:[%s104 + $0x40] sm:$0xff]
        %123 = vst [vmem:[%s105 + $0x40] sm:$0xff] %v122
        %v124 = vld [vmem:[%s104 + $0x48] sm:$0xff]
        %125 = vst [vmem:[%s105 + $0x48] sm:$0xff] %v124
        %v126 = vld [vmem:[%s104 + $0x50] sm:$0xff]
        %127 = vst [vmem:[%s105 + $0x50] sm:$0xff] %v126
        %v128 = vld [vmem:[%s104 + $0x58] sm:$0xff]
        %129 = vst [vmem:[%s105 + $0x58] sm:$0xff] %v128
        %v130 = vld [vmem:[%s104 + $0x60] sm:$0xff]
        %131 = vst [vmem:[%s105 + $0x60] sm:$0xff] %v130
        %v132 = vld [vmem:[%s104 + $0x68] sm:$0xff]
        %133 = vst [vmem:[%s105 + $0x68] sm:$0xff] %v132
        %v134 = vld [vmem:[%s104 + $0x70] sm:$0xff]
        %135 = vst [vmem:[%s105 + $0x70] sm:$0xff] %v134
        %v136 = vld [vmem:[%s104 + $0x78] sm:$0xff]
        %137 = vst [vmem:[%s105 + $0x78] sm:$0xff] %v136
      $region113: #{tpu_custom_call.1} parent=107 // loop_footer
        %s103 = sadd.s32 1, %s99
      $region114: #{tpu_custom_call.1} parent=107 // loop_footer_branch
        %98 = sbr.rel target = $region110
      $region115: #{tpu_custom_call.1} parent=107 // loop_exit
        _
    $region108: #{tpu_custom_call.1} parent=92 // pred_fallthru
      _
    %p138 = pneg %p94
    // Predicated region
    $region116: #{tpu_custom_call.1} parent=92 // pred_check
      _
    $region117: #{tpu_custom_call.1} parent=92 // pred_check_branch
      %140 = sbr.rel (%p94) target = $region119
    $region118: #{tpu_custom_call.1} parent=92 // pred_region
      %s141 = sand.u32 128, 7
    $region119: #{tpu_custom_call.1} parent=92 // pred_fallthru
      _
  $region93: #{tpu_custom_call.1} parent=0 // pred_fallthru
    _
  // Predicated region
  $region94: #{tpu_custom_call.1} parent=0 // pred_check
    %p79 = pneg %p75
  $region95: #{tpu_custom_call.1} parent=0 // pred_check_branch
    %81 = sbr.rel (%p79) target = $region97
  $region96: #{tpu_custom_call.1} parent=0 // pred_region
    %s82 = sshllo.u32 0, 128
    loop: start=0, step=1, limit=1
    $region98: #{tpu_custom_call.1} parent=96 // loop_pre_header
      _
    $region99: #{tpu_custom_call.1} parent=96 // loop_header
      %s84 = sphi 0, %s88
      %p85 = scmp.ge.s32.totalorder %s84, 1
      %s89 = sphi %s22, %s22
      %s90 = sphi [#allocation2], [#allocation2]
    $region100: #{tpu_custom_call.1} parent=96 // loop_header_branch
      %87 = sbr.rel (%p85) target = $region104
    $region101: #{tpu_custom_call.1} parent=96 // loop_body
      %v91 = vld [vmem:[%s89] sm:%s82]
      %92 = vst [vmem:[%s90] sm:%s82] %v91
    $region102: #{tpu_custom_call.1} parent=96 // loop_footer
      %s88 = sadd.s32 1, %s84
    $region103: #{tpu_custom_call.1} parent=96 // loop_footer_branch
      %83 = sbr.rel target = $region99
    $region104: #{tpu_custom_call.1} parent=96 // loop_exit
      _
  $region97: #{tpu_custom_call.1} parent=0 // pred_fallthru
    _
  // Predicated region
  $region120: #{tpu_custom_call.1} parent=0 // pred_check
    _
  $region121: #{tpu_custom_call.1} parent=0 // pred_check_branch
    %144 = sbr.rel (0) target = $region123
  $region122: #{tpu_custom_call.1} parent=0 // pred_region
    %145 = vsyncadd [#allocation4], 2048
  $region123: #{tpu_custom_call.1} parent=0 // pred_fallthru
    _
  %s146 = scalar_lea.sflag [#allocation4], 1
  %p148 = scmp.lt.u32.totalorder 4, 8
  %p149 = pneg %p148
  // Predicated region
  $region124: #{tpu_custom_call.1} parent=0 // pred_check
    _
  $region125: #{tpu_custom_call.1} parent=0 // pred_check_branch
    %151 = sbr.rel (%p148) target = $region127
  $region126: #{tpu_custom_call.1} parent=0 // pred_region
    %s420 = sand.u32 4, 7
    %p421 = scmp.eq.s32.totalorder %s420, 0
    %p422 = pneg %p421
    // Predicated region
    $region139: #{tpu_custom_call.1} parent=126 // pred_check
      _
    $region140: #{tpu_custom_call.1} parent=126 // pred_check_branch
      %424 = sbr.rel (%p421) target = $region142
    $region141: #{tpu_custom_call.1} parent=126 // pred_region
      %s425 = sand.u32 4, 7
      %s426 = ssub.s32 4, %s425
      %s427 = scalar_lea.vmem %s23, %s426
      %s428 = ssub.s32 4, %s425
      %s429 = scalar_lea.vmem [#allocation3], %s428
      loop: start=0, step=1, limit=1
      $region143: #{tpu_custom_call.1} parent=141 // loop_pre_header
        _
      $region144: #{tpu_custom_call.1} parent=141 // loop_header
        %s431 = sphi 0, %s435
        %p432 = scmp.ge.s32.totalorder %s431, 1
        %s436 = sphi %s23, %s23
        %s437 = sphi [#allocation3], [#allocation3]
      $region145: #{tpu_custom_call.1} parent=141 // loop_header_branch
        %434 = sbr.rel (%p432) target = $region149
      $region146: #{tpu_custom_call.1} parent=141 // loop_body
        _
      $region147: #{tpu_custom_call.1} parent=141 // loop_footer
        %s435 = sadd.s32 1, %s431
      $region148: #{tpu_custom_call.1} parent=141 // loop_footer_branch
        %430 = sbr.rel target = $region144
      $region149: #{tpu_custom_call.1} parent=141 // loop_exit
        _
      %s438 = sshllo.u32 0, %s425
      loop: start=0, step=1, limit=1
      $region150: #{tpu_custom_call.1} parent=141 // loop_pre_header
        _
      $region151: #{tpu_custom_call.1} parent=141 // loop_header
        %s440 = sphi 0, %s444
        %p441 = scmp.ge.s32.totalorder %s440, 1
        %s445 = sphi %s427, %s427
        %s446 = sphi %s429, %s429
      $region152: #{tpu_custom_call.1} parent=141 // loop_header_branch
        %443 = sbr.rel (%p441) target = $region156
      $region153: #{tpu_custom_call.1} parent=141 // loop_body
        %v447 = vld [vmem:[%s445] sm:%s438]
        %448 = vst [vmem:[%s446] sm:%s438] %v447
        %v449 = vld [vmem:[%s445 + $0x8] sm:%s438]
        %450 = vst [vmem:[%s446 + $0x4] sm:%s438] %v449
        %v451 = vld [vmem:[%s445 + $0x4] sm:%s438]
        %452 = vst [vmem:[%s446 + $0x8] sm:%s438] %v451
        %v453 = vld [vmem:[%s445 + $0xc] sm:%s438]
        %454 = vst [vmem:[%s446 + $0xc] sm:%s438] %v453
        %v455 = vld [vmem:[%s445 + $0x10] sm:%s438]
        %456 = vst [vmem:[%s446 + $0x10] sm:%s438] %v455
        %v457 = vld [vmem:[%s445 + $0x18] sm:%s438]
        %458 = vst [vmem:[%s446 + $0x14] sm:%s438] %v457
        %v459 = vld [vmem:[%s445 + $0x14] sm:%s438]
        %460 = vst [vmem:[%s446 + $0x18] sm:%s438] %v459
        %v461 = vld [vmem:[%s445 + $0x1c] sm:%s438]
        %462 = vst [vmem:[%s446 + $0x1c] sm:%s438] %v461
        %v463 = vld [vmem:[%s445 + $0x20] sm:%s438]
        %464 = vst [vmem:[%s446 + $0x20] sm:%s438] %v463
        %v465 = vld [vmem:[%s445 + $0x28] sm:%s438]
        %466 = vst [vmem:[%s446 + $0x24] sm:%s438] %v465
        %v467 = vld [vmem:[%s445 + $0x24] sm:%s438]
        %468 = vst [vmem:[%s446 + $0x28] sm:%s438] %v467
        %v469 = vld [vmem:[%s445 + $0x2c] sm:%s438]
        %470 = vst [vmem:[%s446 + $0x2c] sm:%s438] %v469
        %v471 = vld [vmem:[%s445 + $0x30] sm:%s438]
        %472 = vst [vmem:[%s446 + $0x30] sm:%s438] %v471
        %v473 = vld [vmem:[%s445 + $0x38] sm:%s438]
        %474 = vst [vmem:[%s446 + $0x34] sm:%s438] %v473
        %v475 = vld [vmem:[%s445 + $0x34] sm:%s438]
        %476 = vst [vmem:[%s446 + $0x38] sm:%s438] %v475
        %v477 = vld [vmem:[%s445 + $0x3c] sm:%s438]
        %478 = vst [vmem:[%s446 + $0x3c] sm:%s438] %v477
        %v479 = vld [vmem:[%s445 + $0x40] sm:%s438]
        %480 = vst [vmem:[%s446 + $0x40] sm:%s438] %v479
        %v481 = vld [vmem:[%s445 + $0x48] sm:%s438]
        %482 = vst [vmem:[%s446 + $0x44] sm:%s438] %v481
        %v483 = vld [vmem:[%s445 + $0x44] sm:%s438]
        %484 = vst [vmem:[%s446 + $0x48] sm:%s438] %v483
        %v485 = vld [vmem:[%s445 + $0x4c] sm:%s438]
        %486 = vst [vmem:[%s446 + $0x4c] sm:%s438] %v485
        %v487 = vld [vmem:[%s445 + $0x50] sm:%s438]
        %488 = vst [vmem:[%s446 + $0x50] sm:%s438] %v487
        %v489 = vld [vmem:[%s445 + $0x58] sm:%s438]
        %490 = vst [vmem:[%s446 + $0x54] sm:%s438] %v489
        %v491 = vld [vmem:[%s445 + $0x54] sm:%s438]
        %492 = vst [vmem:[%s446 + $0x58] sm:%s438] %v491
        %v493 = vld [vmem:[%s445 + $0x5c] sm:%s438]
        %494 = vst [vmem:[%s446 + $0x5c] sm:%s438] %v493
        %v495 = vld [vmem:[%s445 + $0x60] sm:%s438]
        %496 = vst [vmem:[%s446 + $0x60] sm:%s438] %v495
        %v497 = vld [vmem:[%s445 + $0x68] sm:%s438]
        %498 = vst [vmem:[%s446 + $0x64] sm:%s438] %v497
        %v499 = vld [vmem:[%s445 + $0x64] sm:%s438]
        %500 = vst [vmem:[%s446 + $0x68] sm:%s438] %v499
        %v501 = vld [vmem:[%s445 + $0x6c] sm:%s438]
        %502 = vst [vmem:[%s446 + $0x6c] sm:%s438] %v501
        %v503 = vld [vmem:[%s445 + $0x70] sm:%s438]
        %504 = vst [vmem:[%s446 + $0x70] sm:%s438] %v503
        %v505 = vld [vmem:[%s445 + $0x78] sm:%s438]
        %506 = vst [vmem:[%s446 + $0x74] sm:%s438] %v505
        %v507 = vld [vmem:[%s445 + $0x74] sm:%s438]
        %508 = vst [vmem:[%s446 + $0x78] sm:%s438] %v507
        %v509 = vld [vmem:[%s445 + $0x7c] sm:%s438]
        %510 = vst [vmem:[%s446 + $0x7c] sm:%s438] %v509
        %v511 = vld [vmem:[%s445 + $0x80] sm:%s438]
        %512 = vst [vmem:[%s446 + $0x80] sm:%s438] %v511
        %v513 = vld [vmem:[%s445 + $0x88] sm:%s438]
        %514 = vst [vmem:[%s446 + $0x84] sm:%s438] %v513
        %v515 = vld [vmem:[%s445 + $0x84] sm:%s438]
        %516 = vst [vmem:[%s446 + $0x88] sm:%s438] %v515
        %v517 = vld [vmem:[%s445 + $0x8c] sm:%s438]
        %518 = vst [vmem:[%s446 + $0x8c] sm:%s438] %v517
        %v519 = vld [vmem:[%s445 + $0x90] sm:%s438]
        %520 = vst [vmem:[%s446 + $0x90] sm:%s438] %v519
        %v521 = vld [vmem:[%s445 + $0x98] sm:%s438]
        %522 = vst [vmem:[%s446 + $0x94] sm:%s438] %v521
        %v523 = vld [vmem:[%s445 + $0x94] sm:%s438]
        %524 = vst [vmem:[%s446 + $0x98] sm:%s438] %v523
        %v525 = vld [vmem:[%s445 + $0x9c] sm:%s438]
        %526 = vst [vmem:[%s446 + $0x9c] sm:%s438] %v525
        %v527 = vld [vmem:[%s445 + $0xa0] sm:%s438]
        %528 = vst [vmem:[%s446 + $0xa0] sm:%s438] %v527
        %v529 = vld [vmem:[%s445 + $0xa8] sm:%s438]
        %530 = vst [vmem:[%s446 + $0xa4] sm:%s438] %v529
        %v531 = vld [vmem:[%s445 + $0xa4] sm:%s438]
        %532 = vst [vmem:[%s446 + $0xa8] sm:%s438] %v531
        %v533 = vld [vmem:[%s445 + $0xac] sm:%s438]
        %534 = vst [vmem:[%s446 + $0xac] sm:%s438] %v533
        %v535 = vld [vmem:[%s445 + $0xb0] sm:%s438]
        %536 = vst [vmem:[%s446 + $0xb0] sm:%s438] %v535
        %v537 = vld [vmem:[%s445 + $0xb8] sm:%s438]
        %538 = vst [vmem:[%s446 + $0xb4] sm:%s438] %v537
        %v539 = vld [vmem:[%s445 + $0xb4] sm:%s438]
        %540 = vst [vmem:[%s446 + $0xb8] sm:%s438] %v539
        %v541 = vld [vmem:[%s445 + $0xbc] sm:%s438]
        %542 = vst [vmem:[%s446 + $0xbc] sm:%s438] %v541
        %v543 = vld [vmem:[%s445 + $0xc0] sm:%s438]
        %544 = vst [vmem:[%s446 + $0xc0] sm:%s438] %v543
        %v545 = vld [vmem:[%s445 + $0xc8] sm:%s438]
        %546 = vst [vmem:[%s446 + $0xc4] sm:%s438] %v545
        %v547 = vld [vmem:[%s445 + $0xc4] sm:%s438]
        %548 = vst [vmem:[%s446 + $0xc8] sm:%s438] %v547
        %v549 = vld [vmem:[%s445 + $0xcc] sm:%s438]
        %550 = vst [vmem:[%s446 + $0xcc] sm:%s438] %v549
        %v551 = vld [vmem:[%s445 + $0xd0] sm:%s438]
        %552 = vst [vmem:[%s446 + $0xd0] sm:%s438] %v551
        %v553 = vld [vmem:[%s445 + $0xd8] sm:%s438]
        %554 = vst [vmem:[%s446 + $0xd4] sm:%s438] %v553
        %v555 = vld [vmem:[%s445 + $0xd4] sm:%s438]
        %556 = vst [vmem:[%s446 + $0xd8] sm:%s438] %v555
        %v557 = vld [vmem:[%s445 + $0xdc] sm:%s438]
        %558 = vst [vmem:[%s446 + $0xdc] sm:%s438] %v557
        %v559 = vld [vmem:[%s445 + $0xe0] sm:%s438]
        %560 = vst [vmem:[%s446 + $0xe0] sm:%s438] %v559
        %v561 = vld [vmem:[%s445 + $0xe8] sm:%s438]
        %562 = vst [vmem:[%s446 + $0xe4] sm:%s438] %v561
        %v563 = vld [vmem:[%s445 + $0xe4] sm:%s438]
        %564 = vst [vmem:[%s446 + $0xe8] sm:%s438] %v563
        %v565 = vld [vmem:[%s445 + $0xec] sm:%s438]
        %566 = vst [vmem:[%s446 + $0xec] sm:%s438] %v565
        %v567 = vld [vmem:[%s445 + $0xf0] sm:%s438]
        %568 = vst [vmem:[%s446 + $0xf0] sm:%s438] %v567
        %v569 = vld [vmem:[%s445 + $0xf8] sm:%s438]
        %570 = vst [vmem:[%s446 + $0xf4] sm:%s438] %v569
        %v571 = vld [vmem:[%s445 + $0xf4] sm:%s438]
        %572 = vst [vmem:[%s446 + $0xf8] sm:%s438] %v571
        %v573 = vld [vmem:[%s445 + $0xfc] sm:%s438]
        %574 = vst [vmem:[%s446 + $0xfc] sm:%s438] %v573
        %v575 = vld [vmem:[%s445 + $0x100] sm:%s438]
        %576 = vst [vmem:[%s446 + $0x100] sm:%s438] %v575
        %v577 = vld [vmem:[%s445 + $0x108] sm:%s438]
        %578 = vst [vmem:[%s446 + $0x104] sm:%s438] %v577
        %v579 = vld [vmem:[%s445 + $0x104] sm:%s438]
        %580 = vst [vmem:[%s446 + $0x108] sm:%s438] %v579
        %v581 = vld [vmem:[%s445 + $0x10c] sm:%s438]
        %582 = vst [vmem:[%s446 + $0x10c] sm:%s438] %v581
        %v583 = vld [vmem:[%s445 + $0x110] sm:%s438]
        %584 = vst [vmem:[%s446 + $0x110] sm:%s438] %v583
        %v585 = vld [vmem:[%s445 + $0x118] sm:%s438]
        %586 = vst [vmem:[%s446 + $0x114] sm:%s438] %v585
        %v587 = vld [vmem:[%s445 + $0x114] sm:%s438]
        %588 = vst [vmem:[%s446 + $0x118] sm:%s438] %v587
        %v589 = vld [vmem:[%s445 + $0x11c] sm:%s438]
        %590 = vst [vmem:[%s446 + $0x11c] sm:%s438] %v589
        %v591 = vld [vmem:[%s445 + $0x120] sm:%s438]
        %592 = vst [vmem:[%s446 + $0x120] sm:%s438] %v591
        %v593 = vld [vmem:[%s445 + $0x128] sm:%s438]
        %594 = vst [vmem:[%s446 + $0x124] sm:%s438] %v593
        %v595 = vld [vmem:[%s445 + $0x124] sm:%s438]
        %596 = vst [vmem:[%s446 + $0x128] sm:%s438] %v595
        %v597 = vld [vmem:[%s445 + $0x12c] sm:%s438]
        %598 = vst [vmem:[%s446 + $0x12c] sm:%s438] %v597
        %v599 = vld [vmem:[%s445 + $0x130] sm:%s438]
        %600 = vst [vmem:[%s446 + $0x130] sm:%s438] %v599
        %v601 = vld [vmem:[%s445 + $0x138] sm:%s438]
        %602 = vst [vmem:[%s446 + $0x134] sm:%s438] %v601
        %v603 = vld [vmem:[%s445 + $0x134] sm:%s438]
        %604 = vst [vmem:[%s446 + $0x138] sm:%s438] %v603
        %v605 = vld [vmem:[%s445 + $0x13c] sm:%s438]
        %606 = vst [vmem:[%s446 + $0x13c] sm:%s438] %v605
        %v607 = vld [vmem:[%s445 + $0x140] sm:%s438]
        %608 = vst [vmem:[%s446 + $0x140] sm:%s438] %v607
        %v609 = vld [vmem:[%s445 + $0x148] sm:%s438]
        %610 = vst [vmem:[%s446 + $0x144] sm:%s438] %v609
        %v611 = vld [vmem:[%s445 + $0x144] sm:%s438]
        %612 = vst [vmem:[%s446 + $0x148] sm:%s438] %v611
        %v613 = vld [vmem:[%s445 + $0x14c] sm:%s438]
        %614 = vst [vmem:[%s446 + $0x14c] sm:%s438] %v613
        %v615 = vld [vmem:[%s445 + $0x150] sm:%s438]
        %616 = vst [vmem:[%s446 + $0x150] sm:%s438] %v615
        %v617 = vld [vmem:[%s445 + $0x158] sm:%s438]
        %618 = vst [vmem:[%s446 + $0x154] sm:%s438] %v617
        %v619 = vld [vmem:[%s445 + $0x154] sm:%s438]
        %620 = vst [vmem:[%s446 + $0x158] sm:%s438] %v619
        %v621 = vld [vmem:[%s445 + $0x15c] sm:%s438]
        %622 = vst [vmem:[%s446 + $0x15c] sm:%s438] %v621
        %v623 = vld [vmem:[%s445 + $0x160] sm:%s438]
        %624 = vst [vmem:[%s446 + $0x160] sm:%s438] %v623
        %v625 = vld [vmem:[%s445 + $0x168] sm:%s438]
        %626 = vst [vmem:[%s446 + $0x164] sm:%s438] %v625
        %v627 = vld [vmem:[%s445 + $0x164] sm:%s438]
        %628 = vst [vmem:[%s446 + $0x168] sm:%s438] %v627
        %v629 = vld [vmem:[%s445 + $0x16c] sm:%s438]
        %630 = vst [vmem:[%s446 + $0x16c] sm:%s438] %v629
        %v631 = vld [vmem:[%s445 + $0x170] sm:%s438]
        %632 = vst [vmem:[%s446 + $0x170] sm:%s438] %v631
        %v633 = vld [vmem:[%s445 + $0x178] sm:%s438]
        %634 = vst [vmem:[%s446 + $0x174] sm:%s438] %v633
        %v635 = vld [vmem:[%s445 + $0x174] sm:%s438]
        %636 = vst [vmem:[%s446 + $0x178] sm:%s438] %v635
        %v637 = vld [vmem:[%s445 + $0x17c] sm:%s438]
        %638 = vst [vmem:[%s446 + $0x17c] sm:%s438] %v637
        %v639 = vld [vmem:[%s445 + $0x180] sm:%s438]
        %640 = vst [vmem:[%s446 + $0x180] sm:%s438] %v639
        %v641 = vld [vmem:[%s445 + $0x188] sm:%s438]
        %642 = vst [vmem:[%s446 + $0x184] sm:%s438] %v641
        %v643 = vld [vmem:[%s445 + $0x184] sm:%s438]
        %644 = vst [vmem:[%s446 + $0x188] sm:%s438] %v643
        %v645 = vld [vmem:[%s445 + $0x18c] sm:%s438]
        %646 = vst [vmem:[%s446 + $0x18c] sm:%s438] %v645
        %v647 = vld [vmem:[%s445 + $0x190] sm:%s438]
        %648 = vst [vmem:[%s446 + $0x190] sm:%s438] %v647
        %v649 = vld [vmem:[%s445 + $0x198] sm:%s438]
        %650 = vst [vmem:[%s446 + $0x194] sm:%s438] %v649
        %v651 = vld [vmem:[%s445 + $0x194] sm:%s438]
        %652 = vst [vmem:[%s446 + $0x198] sm:%s438] %v651
        %v653 = vld [vmem:[%s445 + $0x19c] sm:%s438]
        %654 = vst [vmem:[%s446 + $0x19c] sm:%s438] %v653
        %v655 = vld [vmem:[%s445 + $0x1a0] sm:%s438]
        %656 = vst [vmem:[%s446 + $0x1a0] sm:%s438] %v655
        %v657 = vld [vmem:[%s445 + $0x1a8] sm:%s438]
        %658 = vst [vmem:[%s446 + $0x1a4] sm:%s438] %v657
        %v659 = vld [vmem:[%s445 + $0x1a4] sm:%s438]
        %660 = vst [vmem:[%s446 + $0x1a8] sm:%s438] %v659
        %v661 = vld [vmem:[%s445 + $0x1ac] sm:%s438]
        %662 = vst [vmem:[%s446 + $0x1ac] sm:%s438] %v661
        %v663 = vld [vmem:[%s445 + $0x1b0] sm:%s438]
        %664 = vst [vmem:[%s446 + $0x1b0] sm:%s438] %v663
        %v665 = vld [vmem:[%s445 + $0x1b8] sm:%s438]
        %666 = vst [vmem:[%s446 + $0x1b4] sm:%s438] %v665
        %v667 = vld [vmem:[%s445 + $0x1b4] sm:%s438]
        %668 = vst [vmem:[%s446 + $0x1b8] sm:%s438] %v667
        %v669 = vld [vmem:[%s445 + $0x1bc] sm:%s438]
        %670 = vst [vmem:[%s446 + $0x1bc] sm:%s438] %v669
        %v671 = vld [vmem:[%s445 + $0x1c0] sm:%s438]
        %672 = vst [vmem:[%s446 + $0x1c0] sm:%s438] %v671
        %v673 = vld [vmem:[%s445 + $0x1c8] sm:%s438]
        %674 = vst [vmem:[%s446 + $0x1c4] sm:%s438] %v673
        %v675 = vld [vmem:[%s445 + $0x1c4] sm:%s438]
        %676 = vst [vmem:[%s446 + $0x1c8] sm:%s438] %v675
        %v677 = vld [vmem:[%s445 + $0x1cc] sm:%s438]
        %678 = vst [vmem:[%s446 + $0x1cc] sm:%s438] %v677
        %v679 = vld [vmem:[%s445 + $0x1d0] sm:%s438]
        %680 = vst [vmem:[%s446 + $0x1d0] sm:%s438] %v679
        %v681 = vld [vmem:[%s445 + $0x1d8] sm:%s438]
        %682 = vst [vmem:[%s446 + $0x1d4] sm:%s438] %v681
        %v683 = vld [vmem:[%s445 + $0x1d4] sm:%s438]
        %684 = vst [vmem:[%s446 + $0x1d8] sm:%s438] %v683
        %v685 = vld [vmem:[%s445 + $0x1dc] sm:%s438]
        %686 = vst [vmem:[%s446 + $0x1dc] sm:%s438] %v685
        %v687 = vld [vmem:[%s445 + $0x1e0] sm:%s438]
        %688 = vst [vmem:[%s446 + $0x1e0] sm:%s438] %v687
        %v689 = vld [vmem:[%s445 + $0x1e8] sm:%s438]
        %690 = vst [vmem:[%s446 + $0x1e4] sm:%s438] %v689
        %v691 = vld [vmem:[%s445 + $0x1e4] sm:%s438]
        %692 = vst [vmem:[%s446 + $0x1e8] sm:%s438] %v691
        %v693 = vld [vmem:[%s445 + $0x1ec] sm:%s438]
        %694 = vst [vmem:[%s446 + $0x1ec] sm:%s438] %v693
        %v695 = vld [vmem:[%s445 + $0x1f0] sm:%s438]
        %696 = vst [vmem:[%s446 + $0x1f0] sm:%s438] %v695
        %v697 = vld [vmem:[%s445 + $0x1f8] sm:%s438]
        %698 = vst [vmem:[%s446 + $0x1f4] sm:%s438] %v697
        %v699 = vld [vmem:[%s445 + $0x1f4] sm:%s438]
        %700 = vst [vmem:[%s446 + $0x1f8] sm:%s438] %v699
        %v701 = vld [vmem:[%s445 + $0x1fc] sm:%s438]
        %702 = vst [vmem:[%s446 + $0x1fc] sm:%s438] %v701
      $region154: #{tpu_custom_call.1} parent=141 // loop_footer
        %s444 = sadd.s32 1, %s440
      $region155: #{tpu_custom_call.1} parent=141 // loop_footer_branch
        %439 = sbr.rel target = $region151
      $region156: #{tpu_custom_call.1} parent=141 // loop_exit
        _
    $region142: #{tpu_custom_call.1} parent=126 // pred_fallthru
      _
  $region127: #{tpu_custom_call.1} parent=0 // pred_fallthru
    _
  // Predicated region
  $region128: #{tpu_custom_call.1} parent=0 // pred_check
    %p152 = pneg %p148
  $region129: #{tpu_custom_call.1} parent=0 // pred_check_branch
    %154 = sbr.rel (%p152) target = $region131
  $region130: #{tpu_custom_call.1} parent=0 // pred_region
    %s155 = sshllo.u32 0, 4
    loop: start=0, step=1, limit=1
    $region132: #{tpu_custom_call.1} parent=130 // loop_pre_header
      _
    $region133: #{tpu_custom_call.1} parent=130 // loop_header
      %s157 = sphi 0, %s161
      %p158 = scmp.ge.s32.totalorder %s157, 1
      %s162 = sphi %s23, %s23
      %s163 = sphi [#allocation3], [#allocation3]
    $region134: #{tpu_custom_call.1} parent=130 // loop_header_branch
      %160 = sbr.rel (%p158) target = $region138
    $region135: #{tpu_custom_call.1} parent=130 // loop_body
      %v164 = vld [vmem:[%s162] sm:%s155]
      %165 = vst [vmem:[%s163] sm:%s155] %v164
      %v166 = vld [vmem:[%s162 + $0x8] sm:%s155]
      %167 = vst [vmem:[%s163 + $0x4] sm:%s155] %v166
      %v168 = vld [vmem:[%s162 + $0x4] sm:%s155]
      %169 = vst [vmem:[%s163 + $0x8] sm:%s155] %v168
      %v170 = vld [vmem:[%s162 + $0xc] sm:%s155]
      %171 = vst [vmem:[%s163 + $0xc] sm:%s155] %v170
      %v172 = vld [vmem:[%s162 + $0x10] sm:%s155]
      %173 = vst [vmem:[%s163 + $0x10] sm:%s155] %v172
      %v174 = vld [vmem:[%s162 + $0x18] sm:%s155]
      %175 = vst [vmem:[%s163 + $0x14] sm:%s155] %v174
      %v176 = vld [vmem:[%s162 + $0x14] sm:%s155]
      %177 = vst [vmem:[%s163 + $0x18] sm:%s155] %v176
      %v178 = vld [vmem:[%s162 + $0x1c] sm:%s155]
      %179 = vst [vmem:[%s163 + $0x1c] sm:%s155] %v178
      %v180 = vld [vmem:[%s162 + $0x20] sm:%s155]
      %181 = vst [vmem:[%s163 + $0x20] sm:%s155] %v180
      %v182 = vld [vmem:[%s162 + $0x28] sm:%s155]
      %183 = vst [vmem:[%s163 + $0x24] sm:%s155] %v182
      %v184 = vld [vmem:[%s162 + $0x24] sm:%s155]
      %185 = vst [vmem:[%s163 + $0x28] sm:%s155] %v184
      %v186 = vld [vmem:[%s162 + $0x2c] sm:%s155]
      %187 = vst [vmem:[%s163 + $0x2c] sm:%s155] %v186
      %v188 = vld [vmem:[%s162 + $0x30] sm:%s155]
      %189 = vst [vmem:[%s163 + $0x30] sm:%s155] %v188
      %v190 = vld [vmem:[%s162 + $0x38] sm:%s155]
      %191 = vst [vmem:[%s163 + $0x34] sm:%s155] %v190
      %v192 = vld [vmem:[%s162 + $0x34] sm:%s155]
      %193 = vst [vmem:[%s163 + $0x38] sm:%s155] %v192
      %v194 = vld [vmem:[%s162 + $0x3c] sm:%s155]
      %195 = vst [vmem:[%s163 + $0x3c] sm:%s155] %v194
      %v196 = vld [vmem:[%s162 + $0x40] sm:%s155]
      %197 = vst [vmem:[%s163 + $0x40] sm:%s155] %v196
      %v198 = vld [vmem:[%s162 + $0x48] sm:%s155]
      %199 = vst [vmem:[%s163 + $0x44] sm:%s155] %v198
      %v200 = vld [vmem:[%s162 + $0x44] sm:%s155]
      %201 = vst [vmem:[%s163 + $0x48] sm:%s155] %v200
      %v202 = vld [vmem:[%s162 + $0x4c] sm:%s155]
      %203 = vst [vmem:[%s163 + $0x4c] sm:%s155] %v202
      %v204 = vld [vmem:[%s162 + $0x50] sm:%s155]
      %205 = vst [vmem:[%s163 + $0x50] sm:%s155] %v204
      %v206 = vld [vmem:[%s162 + $0x58] sm:%s155]
      %207 = vst [vmem:[%s163 + $0x54] sm:%s155] %v206
      %v208 = vld [vmem:[%s162 + $0x54] sm:%s155]
      %209 = vst [vmem:[%s163 + $0x58] sm:%s155] %v208
      %v210 = vld [vmem:[%s162 + $0x5c] sm:%s155]
      %211 = vst [vmem:[%s163 + $0x5c] sm:%s155] %v210
      %v212 = vld [vmem:[%s162 + $0x60] sm:%s155]
      %213 = vst [vmem:[%s163 + $0x60] sm:%s155] %v212
      %v214 = vld [vmem:[%s162 + $0x68] sm:%s155]
      %215 = vst [vmem:[%s163 + $0x64] sm:%s155] %v214
      %v216 = vld [vmem:[%s162 + $0x64] sm:%s155]
      %217 = vst [vmem:[%s163 + $0x68] sm:%s155] %v216
      %v218 = vld [vmem:[%s162 + $0x6c] sm:%s155]
      %219 = vst [vmem:[%s163 + $0x6c] sm:%s155] %v218
      %v220 = vld [vmem:[%s162 + $0x70] sm:%s155]
      %221 = vst [vmem:[%s163 + $0x70] sm:%s155] %v220
      %v222 = vld [vmem:[%s162 + $0x78] sm:%s155]
      %223 = vst [vmem:[%s163 + $0x74] sm:%s155] %v222
      %v224 = vld [vmem:[%s162 + $0x74] sm:%s155]
      %225 = vst [vmem:[%s163 + $0x78] sm:%s155] %v224
      %v226 = vld [vmem:[%s162 + $0x7c] sm:%s155]
      %227 = vst [vmem:[%s163 + $0x7c] sm:%s155] %v226
      %v228 = vld [vmem:[%s162 + $0x80] sm:%s155]
      %229 = vst [vmem:[%s163 + $0x80] sm:%s155] %v228
      %v230 = vld [vmem:[%s162 + $0x88] sm:%s155]
      %231 = vst [vmem:[%s163 + $0x84] sm:%s155] %v230
      %v232 = vld [vmem:[%s162 + $0x84] sm:%s155]
      %233 = vst [vmem:[%s163 + $0x88] sm:%s155] %v232
      %v234 = vld [vmem:[%s162 + $0x8c] sm:%s155]
      %235 = vst [vmem:[%s163 + $0x8c] sm:%s155] %v234
      %v236 = vld [vmem:[%s162 + $0x90] sm:%s155]
      %237 = vst [vmem:[%s163 + $0x90] sm:%s155] %v236
      %v238 = vld [vmem:[%s162 + $0x98] sm:%s155]
      %239 = vst [vmem:[%s163 + $0x94] sm:%s155] %v238
      %v240 = vld [vmem:[%s162 + $0x94] sm:%s155]
      %241 = vst [vmem:[%s163 + $0x98] sm:%s155] %v240
      %v242 = vld [vmem:[%s162 + $0x9c] sm:%s155]
      %243 = vst [vmem:[%s163 + $0x9c] sm:%s155] %v242
      %v244 = vld [vmem:[%s162 + $0xa0] sm:%s155]
      %245 = vst [vmem:[%s163 + $0xa0] sm:%s155] %v244
      %v246 = vld [vmem:[%s162 + $0xa8] sm:%s155]
      %247 = vst [vmem:[%s163 + $0xa4] sm:%s155] %v246
      %v248 = vld [vmem:[%s162 + $0xa4] sm:%s155]
      %249 = vst [vmem:[%s163 + $0xa8] sm:%s155] %v248
      %v250 = vld [vmem:[%s162 + $0xac] sm:%s155]
      %251 = vst [vmem:[%s163 + $0xac] sm:%s155] %v250
      %v252 = vld [vmem:[%s162 + $0xb0] sm:%s155]
      %253 = vst [vmem:[%s163 + $0xb0] sm:%s155] %v252
      %v254 = vld [vmem:[%s162 + $0xb8] sm:%s155]
      %255 = vst [vmem:[%s163 + $0xb4] sm:%s155] %v254
      %v256 = vld [vmem:[%s162 + $0xb4] sm:%s155]
      %257 = vst [vmem:[%s163 + $0xb8] sm:%s155] %v256
      %v258 = vld [vmem:[%s162 + $0xbc] sm:%s155]
      %259 = vst [vmem:[%s163 + $0xbc] sm:%s155] %v258
      %v260 = vld [vmem:[%s162 + $0xc0] sm:%s155]
      %261 = vst [vmem:[%s163 + $0xc0] sm:%s155] %v260
      %v262 = vld [vmem:[%s162 + $0xc8] sm:%s155]
      %263 = vst [vmem:[%s163 + $0xc4] sm:%s155] %v262
      %v264 = vld [vmem:[%s162 + $0xc4] sm:%s155]
      %265 = vst [vmem:[%s163 + $0xc8] sm:%s155] %v264
      %v266 = vld [vmem:[%s162 + $0xcc] sm:%s155]
      %267 = vst [vmem:[%s163 + $0xcc] sm:%s155] %v266
      %v268 = vld [vmem:[%s162 + $0xd0] sm:%s155]
      %269 = vst [vmem:[%s163 + $0xd0] sm:%s155] %v268
      %v270 = vld [vmem:[%s162 + $0xd8] sm:%s155]
      %271 = vst [vmem:[%s163 + $0xd4] sm:%s155] %v270
      %v272 = vld [vmem:[%s162 + $0xd4] sm:%s155]
      %273 = vst [vmem:[%s163 + $0xd8] sm:%s155] %v272
      %v274 = vld [vmem:[%s162 + $0xdc] sm:%s155]
      %275 = vst [vmem:[%s163 + $0xdc] sm:%s155] %v274
      %v276 = vld [vmem:[%s162 + $0xe0] sm:%s155]
      %277 = vst [vmem:[%s163 + $0xe0] sm:%s155] %v276
      %v278 = vld [vmem:[%s162 + $0xe8] sm:%s155]
      %279 = vst [vmem:[%s163 + $0xe4] sm:%s155] %v278
      %v280 = vld [vmem:[%s162 + $0xe4] sm:%s155]
      %281 = vst [vmem:[%s163 + $0xe8] sm:%s155] %v280
      %v282 = vld [vmem:[%s162 + $0xec] sm:%s155]
      %283 = vst [vmem:[%s163 + $0xec] sm:%s155] %v282
      %v284 = vld [vmem:[%s162 + $0xf0] sm:%s155]
      %285 = vst [vmem:[%s163 + $0xf0] sm:%s155] %v284
      %v286 = vld [vmem:[%s162 + $0xf8] sm:%s155]
      %287 = vst [vmem:[%s163 + $0xf4] sm:%s155] %v286
      %v288 = vld [vmem:[%s162 + $0xf4] sm:%s155]
      %289 = vst [vmem:[%s163 + $0xf8] sm:%s155] %v288
      %v290 = vld [vmem:[%s162 + $0xfc] sm:%s155]
      %291 = vst [vmem:[%s163 + $0xfc] sm:%s155] %v290
      %v292 = vld [vmem:[%s162 + $0x100] sm:%s155]
      %293 = vst [vmem:[%s163 + $0x100] sm:%s155] %v292
      %v294 = vld [vmem:[%s162 + $0x108] sm:%s155]
      %295 = vst [vmem:[%s163 + $0x104] sm:%s155] %v294
      %v296 = vld [vmem:[%s162 + $0x104] sm:%s155]
      %297 = vst [vmem:[%s163 + $0x108] sm:%s155] %v296
      %v298 = vld [vmem:[%s162 + $0x10c] sm:%s155]
      %299 = vst [vmem:[%s163 + $0x10c] sm:%s155] %v298
      %v300 = vld [vmem:[%s162 + $0x110] sm:%s155]
      %301 = vst [vmem:[%s163 + $0x110] sm:%s155] %v300
      %v302 = vld [vmem:[%s162 + $0x118] sm:%s155]
      %303 = vst [vmem:[%s163 + $0x114] sm:%s155] %v302
      %v304 = vld [vmem:[%s162 + $0x114] sm:%s155]
      %305 = vst [vmem:[%s163 + $0x118] sm:%s155] %v304
      %v306 = vld [vmem:[%s162 + $0x11c] sm:%s155]
      %307 = vst [vmem:[%s163 + $0x11c] sm:%s155] %v306
      %v308 = vld [vmem:[%s162 + $0x120] sm:%s155]
      %309 = vst [vmem:[%s163 + $0x120] sm:%s155] %v308
      %v310 = vld [vmem:[%s162 + $0x128] sm:%s155]
      %311 = vst [vmem:[%s163 + $0x124] sm:%s155] %v310
      %v312 = vld [vmem:[%s162 + $0x124] sm:%s155]
      %313 = vst [vmem:[%s163 + $0x128] sm:%s155] %v312
      %v314 = vld [vmem:[%s162 + $0x12c] sm:%s155]
      %315 = vst [vmem:[%s163 + $0x12c] sm:%s155] %v314
      %v316 = vld [vmem:[%s162 + $0x130] sm:%s155]
      %317 = vst [vmem:[%s163 + $0x130] sm:%s155] %v316
      %v318 = vld [vmem:[%s162 + $0x138] sm:%s155]
      %319 = vst [vmem:[%s163 + $0x134] sm:%s155] %v318
      %v320 = vld [vmem:[%s162 + $0x134] sm:%s155]
      %321 = vst [vmem:[%s163 + $0x138] sm:%s155] %v320
      %v322 = vld [vmem:[%s162 + $0x13c] sm:%s155]
      %323 = vst [vmem:[%s163 + $0x13c] sm:%s155] %v322
      %v324 = vld [vmem:[%s162 + $0x140] sm:%s155]
      %325 = vst [vmem:[%s163 + $0x140] sm:%s155] %v324
      %v326 = vld [vmem:[%s162 + $0x148] sm:%s155]
      %327 = vst [vmem:[%s163 + $0x144] sm:%s155] %v326
      %v328 = vld [vmem:[%s162 + $0x144] sm:%s155]
      %329 = vst [vmem:[%s163 + $0x148] sm:%s155] %v328
      %v330 = vld [vmem:[%s162 + $0x14c] sm:%s155]
      %331 = vst [vmem:[%s163 + $0x14c] sm:%s155] %v330
      %v332 = vld [vmem:[%s162 + $0x150] sm:%s155]
      %333 = vst [vmem:[%s163 + $0x150] sm:%s155] %v332
      %v334 = vld [vmem:[%s162 + $0x158] sm:%s155]
      %335 = vst [vmem:[%s163 + $0x154] sm:%s155] %v334
      %v336 = vld [vmem:[%s162 + $0x154] sm:%s155]
      %337 = vst [vmem:[%s163 + $0x158] sm:%s155] %v336
      %v338 = vld [vmem:[%s162 + $0x15c] sm:%s155]
      %339 = vst [vmem:[%s163 + $0x15c] sm:%s155] %v338
      %v340 = vld [vmem:[%s162 + $0x160] sm:%s155]
      %341 = vst [vmem:[%s163 + $0x160] sm:%s155] %v340
      %v342 = vld [vmem:[%s162 + $0x168] sm:%s155]
      %343 = vst [vmem:[%s163 + $0x164] sm:%s155] %v342
      %v344 = vld [vmem:[%s162 + $0x164] sm:%s155]
      %345 = vst [vmem:[%s163 + $0x168] sm:%s155] %v344
      %v346 = vld [vmem:[%s162 + $0x16c] sm:%s155]
      %347 = vst [vmem:[%s163 + $0x16c] sm:%s155] %v346
      %v348 = vld [vmem:[%s162 + $0x170] sm:%s155]
      %349 = vst [vmem:[%s163 + $0x170] sm:%s155] %v348
      %v350 = vld [vmem:[%s162 + $0x178] sm:%s155]
      %351 = vst [vmem:[%s163 + $0x174] sm:%s155] %v350
      %v352 = vld [vmem:[%s162 + $0x174] sm:%s155]
      %353 = vst [vmem:[%s163 + $0x178] sm:%s155] %v352
      %v354 = vld [vmem:[%s162 + $0x17c] sm:%s155]
      %355 = vst [vmem:[%s163 + $0x17c] sm:%s155] %v354
      %v356 = vld [vmem:[%s162 + $0x180] sm:%s155]
      %357 = vst [vmem:[%s163 + $0x180] sm:%s155] %v356
      %v358 = vld [vmem:[%s162 + $0x188] sm:%s155]
      %359 = vst [vmem:[%s163 + $0x184] sm:%s155] %v358
      %v360 = vld [vmem:[%s162 + $0x184] sm:%s155]
      %361 = vst [vmem:[%s163 + $0x188] sm:%s155] %v360
      %v362 = vld [vmem:[%s162 + $0x18c] sm:%s155]
      %363 = vst [vmem:[%s163 + $0x18c] sm:%s155] %v362
      %v364 = vld [vmem:[%s162 + $0x190] sm:%s155]
      %365 = vst [vmem:[%s163 + $0x190] sm:%s155] %v364
      %v366 = vld [vmem:[%s162 + $0x198] sm:%s155]
      %367 = vst [vmem:[%s163 + $0x194] sm:%s155] %v366
      %v368 = vld [vmem:[%s162 + $0x194] sm:%s155]
      %369 = vst [vmem:[%s163 + $0x198] sm:%s155] %v368
      %v370 = vld [vmem:[%s162 + $0x19c] sm:%s155]
      %371 = vst [vmem:[%s163 + $0x19c] sm:%s155] %v370
      %v372 = vld [vmem:[%s162 + $0x1a0] sm:%s155]
      %373 = vst [vmem:[%s163 + $0x1a0] sm:%s155] %v372
      %v374 = vld [vmem:[%s162 + $0x1a8] sm:%s155]
      %375 = vst [vmem:[%s163 + $0x1a4] sm:%s155] %v374
      %v376 = vld [vmem:[%s162 + $0x1a4] sm:%s155]
      %377 = vst [vmem:[%s163 + $0x1a8] sm:%s155] %v376
      %v378 = vld [vmem:[%s162 + $0x1ac] sm:%s155]
      %379 = vst [vmem:[%s163 + $0x1ac] sm:%s155] %v378
      %v380 = vld [vmem:[%s162 + $0x1b0] sm:%s155]
      %381 = vst [vmem:[%s163 + $0x1b0] sm:%s155] %v380
      %v382 = vld [vmem:[%s162 + $0x1b8] sm:%s155]
      %383 = vst [vmem:[%s163 + $0x1b4] sm:%s155] %v382
      %v384 = vld [vmem:[%s162 + $0x1b4] sm:%s155]
      %385 = vst [vmem:[%s163 + $0x1b8] sm:%s155] %v384
      %v386 = vld [vmem:[%s162 + $0x1bc] sm:%s155]
      %387 = vst [vmem:[%s163 + $0x1bc] sm:%s155] %v386
      %v388 = vld [vmem:[%s162 + $0x1c0] sm:%s155]
      %389 = vst [vmem:[%s163 + $0x1c0] sm:%s155] %v388
      %v390 = vld [vmem:[%s162 + $0x1c8] sm:%s155]
      %391 = vst [vmem:[%s163 + $0x1c4] sm:%s155] %v390
      %v392 = vld [vmem:[%s162 + $0x1c4] sm:%s155]
      %393 = vst [vmem:[%s163 + $0x1c8] sm:%s155] %v392
      %v394 = vld [vmem:[%s162 + $0x1cc] sm:%s155]
      %395 = vst [vmem:[%s163 + $0x1cc] sm:%s155] %v394
      %v396 = vld [vmem:[%s162 + $0x1d0] sm:%s155]
      %397 = vst [vmem:[%s163 + $0x1d0] sm:%s155] %v396
      %v398 = vld [vmem:[%s162 + $0x1d8] sm:%s155]
      %399 = vst [vmem:[%s163 + $0x1d4] sm:%s155] %v398
      %v400 = vld [vmem:[%s162 + $0x1d4] sm:%s155]
      %401 = vst [vmem:[%s163 + $0x1d8] sm:%s155] %v400
      %v402 = vld [vmem:[%s162 + $0x1dc] sm:%s155]
      %403 = vst [vmem:[%s163 + $0x1dc] sm:%s155] %v402
      %v404 = vld [vmem:[%s162 + $0x1e0] sm:%s155]
      %405 = vst [vmem:[%s163 + $0x1e0] sm:%s155] %v404
      %v406 = vld [vmem:[%s162 + $0x1e8] sm:%s155]
      %407 = vst [vmem:[%s163 + $0x1e4] sm:%s155] %v406
      %v408 = vld [vmem:[%s162 + $0x1e4] sm:%s155]
      %409 = vst [vmem:[%s163 + $0x1e8] sm:%s155] %v408
      %v410 = vld [vmem:[%s162 + $0x1ec] sm:%s155]
      %411 = vst [vmem:[%s163 + $0x1ec] sm:%s155] %v410
      %v412 = vld [vmem:[%s162 + $0x1f0] sm:%s155]
      %413 = vst [vmem:[%s163 + $0x1f0] sm:%s155] %v412
      %v414 = vld [vmem:[%s162 + $0x1f8] sm:%s155]
      %415 = vst [vmem:[%s163 + $0x1f4] sm:%s155] %v414
      %v416 = vld [vmem:[%s162 + $0x1f4] sm:%s155]
      %417 = vst [vmem:[%s163 + $0x1f8] sm:%s155] %v416
      %v418 = vld [vmem:[%s162 + $0x1fc] sm:%s155]
      %419 = vst [vmem:[%s163 + $0x1fc] sm:%s155] %v418
    $region136: #{tpu_custom_call.1} parent=130 // loop_footer
      %s161 = sadd.s32 1, %s157
    $region137: #{tpu_custom_call.1} parent=130 // loop_footer_branch
      %156 = sbr.rel target = $region133
    $region138: #{tpu_custom_call.1} parent=130 // loop_exit
      _
  $region131: #{tpu_custom_call.1} parent=0 // pred_fallthru
    _
  // Predicated region
  $region157: #{tpu_custom_call.1} parent=0 // pred_check
    _
  $region158: #{tpu_custom_call.1} parent=0 // pred_check_branch
    %705 = sbr.rel (0) target = $region160
  $region159: #{tpu_custom_call.1} parent=0 // pred_region
    %706 = vsyncadd %s146, 8192
  $region160: #{tpu_custom_call.1} parent=0 // pred_fallthru
    _
  %v707 = vld [vmem:[%s1] sm:$0xf]
  %v708 = vld [vmem:[%s1 + $0x4] sm:$0xf]
  %v709 = vld [vmem:[%s1 + $0x8] sm:$0xf]
  %v710 = vld [vmem:[%s1 + $0xc] sm:$0xf]
  %v711 = vld [vmem:[%s1 + $0x10] sm:$0xf]
  %v712 = vld [vmem:[%s1 + $0x14] sm:$0xf]
  %v713 = vld [vmem:[%s1 + $0x18] sm:$0xf]
  %v714 = vld [vmem:[%s1 + $0x1c] sm:$0xf]
  %v715 = vld [vmem:[%s0] sm:$0x77]
  %v716 = vld [vmem:[%s0 + $0x8] sm:$0x77]
  %v719 = vcombine.high %v715, %v715
  %v720 = vcombine.high %v716, %v716
  %v723 = vpack.c.bf16 %v715, %v715
  %v724 = vpack.c.bf16 %v719, %v719
  %v725 = vpack.c.bf16 %v716, %v716
  %v726 = vpack.c.bf16 %v720, %v720
  %v727 = vld [vmem:[%s2] sm:$0xff]
  %v728 = vld [vmem:[%s2 + $0x8] sm:$0xff]
  %v729 = vld [vmem:[%s2 + $0x10] sm:$0xff]
  %v730 = vld [vmem:[%s2 + $0x18] sm:$0xff]
  %v731 = vld [vmem:[%s2 + $0x20] sm:$0xff]
  %v732 = vld [vmem:[%s2 + $0x28] sm:$0xff]
  %v733 = vld [vmem:[%s2 + $0x30] sm:$0xff]
  %v734 = vld [vmem:[%s2 + $0x38] sm:$0xff]
  %736 = vset.pattern.permute.xlu0 0
  %737 = vperm.xlu0 %736, %v727
  %v738 = vpop.permute.xlu0 %737
  %741 = vset.pattern.permute.xlu0 0
  %742 = vperm.xlu0 %741, %v728
  %v743 = vpop.permute.xlu0 %742
  %746 = vset.pattern.permute.xlu0 0
  %747 = vperm.xlu0 %746, %v729
  %v748 = vpop.permute.xlu0 %747
  %751 = vset.pattern.permute.xlu0 0
  %752 = vperm.xlu0 %751, %v730
  %v753 = vpop.permute.xlu0 %752
  %756 = vset.pattern.permute.xlu0 0
  %757 = vperm.xlu0 %756, %v731
  %v758 = vpop.permute.xlu0 %757
  %761 = vset.pattern.permute.xlu0 0
  %762 = vperm.xlu0 %761, %v732
  %v763 = vpop.permute.xlu0 %762
  %766 = vset.pattern.permute.xlu0 0
  %767 = vperm.xlu0 %766, %v733
  %v768 = vpop.permute.xlu0 %767
  %771 = vset.pattern.permute.xlu0 0
  %772 = vperm.xlu0 %771, %v734
  %v773 = vpop.permute.xlu0 %772
  %v783 = vunpack.c.l.b16 %v707
  %v784 = vunpack.c.l.b16 %v708
  %v785 = vunpack.c.l.b16 %v709
  %v786 = vunpack.c.l.b16 %v710
  %v787 = vunpack.c.l.b16 %v711
  %v788 = vunpack.c.l.b16 %v712
  %v789 = vunpack.c.l.b16 %v713
  %v790 = vunpack.c.l.b16 %v714
  %v791 = vpack.c.b16 %v784, %v783
  %v792 = vpack.c.b16 %v786, %v785
  %v793 = vpack.c.b16 %v788, %v787
  %v794 = vpack.c.b16 %v790, %v789
  %vm795 = vcmask 23552
  %v797 = vsel %vm795, %v791, 0
  %v800 = vsel %vm795, %v792, 0
  %v803 = vsel %vm795, %v793, 0
  %v806 = vsel %vm795, %v794, 0
  %vm808 = vcmask 1040384
  %vm809 = vcmask 1041408
  %v810 = vsel %vm808, 4294967295, 65535
  %v811 = vsel %vm809, %v810, 0
  %v813 = vand.u32 %v723, %v811
  %v816 = vand.u32 %v724, %v811
  %v819 = vand.u32 %v725, %v811
  %v822 = vand.u32 %v726, %v811
  %824 = vmatprep.subr.bf16.mxu0 %v816
  %825 = vmatpush1.bf16.msra.mxu0 %v813
  %826 = vmatprep.subr.bf16.mxu0 0
  %827 = vmatpush1.bf16.msra.mxu0 0
  %828 = vmatprep.subr.bf16.mxu0 0
  %829 = vmatpush1.bf16.msra.mxu0 0
  %830 = vmatprep.subr.bf16.mxu0 0
  %831 = vmatpush1.bf16.msra.mxu0 0
  %832 = vmatprep.subr.bf16.mxu0 0
  %833 = vmatpush1.bf16.msra.mxu0 0
  %834 = vmatprep.subr.bf16.mxu0 0
  %835 = vmatpush1.bf16.msra.mxu0 0
  %836 = vmatprep.subr.bf16.mxu0 0
  %837 = vmatpush1.bf16.msra.mxu0 0
  %838 = vmatprep.subr.bf16.mxu0 0
  %839 = vmatpush1.bf16.msra.mxu0 0
  %840 = vmatprep.subr.bf16.mxu0 0
  %841 = vmatpush1.bf16.msra.mxu0 0
  %842 = vmatprep.subr.bf16.mxu0 0
  %843 = vmatpush1.bf16.msra.mxu0 0
  %844 = vmatprep.subr.bf16.mxu0 0
  %845 = vmatpush1.bf16.msra.mxu0 0
  %846 = vmatprep.subr.bf16.mxu0 0
  %847 = vmatpush1.bf16.msra.mxu0 0
  %848 = vmatprep.subr.bf16.mxu0 0
  %849 = vmatpush1.bf16.msra.mxu0 0
  %850 = vmatprep.subr.bf16.mxu0 0
  %851 = vmatpush1.bf16.msra.mxu0 0
  %852 = vmatprep.subr.bf16.mxu0 0
  %853 = vmatpush1.bf16.msra.mxu0 0
  %854 = vmatprep.subr.bf16.mxu0 0
  %855 = vmatpush1.bf16.msra.mxu0 0
  %856 = vmatprep.mubr.bf16.mxu0 0
  %857 = vmatmul.mubr.bf16.gmra.mrb[0].mxu0 %v797
  %v858 = vpop.f32.mrb[0].mxu0
  %v859 = vadd.f32 %v738, %v858
  %v860 = vpop.f32.mrb[0].mxu0
  %v861 = vadd.f32 %v738, %v860
  %v862 = vpop.f32.mrb[0].mxu0
  %v863 = vadd.f32 %v743, %v862
  %v864 = vpop.f32.mrb[0].mxu0
  %v865 = vadd.f32 %v743, %v864
  %866 = vmatprep.mubr.bf16.mxu0 0
  %867 = vmatmul.mubr.bf16.gmra.mrb[0].mxu0 %v800
  %v868 = vpop.f32.mrb[0].mxu0
  %v869 = vadd.f32 %v748, %v868
  %v870 = vpop.f32.mrb[0].mxu0
  %v871 = vadd.f32 %v748, %v870
  %v872 = vpop.f32.mrb[0].mxu0
  %v873 = vadd.f32 %v753, %v872
  %v874 = vpop.f32.mrb[0].mxu0
  %v875 = vadd.f32 %v753, %v874
  %876 = vmatprep.mubr.bf16.mxu0 0
  %877 = vmatmul.mubr.bf16.gmra.mrb[0].mxu0 %v803
  %v878 = vpop.f32.mrb[0].mxu0
  %v879 = vadd.f32 %v758, %v878
  %v880 = vpop.f32.mrb[0].mxu0
  %v881 = vadd.f32 %v758, %v880
  %v882 = vpop.f32.mrb[0].mxu0
  %v883 = vadd.f32 %v763, %v882
  %v884 = vpop.f32.mrb[0].mxu0
  %v885 = vadd.f32 %v763, %v884
  %886 = vmatprep.mubr.bf16.mxu0 0
  %887 = vmatmul.mubr.bf16.gmra.mrb[0].mxu0 %v806
  %v888 = vpop.f32.mrb[0].mxu0
  %v889 = vadd.f32 %v768, %v888
  %v890 = vpop.f32.mrb[0].mxu0
  %v891 = vadd.f32 %v768, %v890
  %v892 = vpop.f32.mrb[0].mxu0
  %v893 = vadd.f32 %v773, %v892
  %v894 = vpop.f32.mrb[0].mxu0
  %v895 = vadd.f32 %v773, %v894
  %896 = vdwg.mxu0
  %897 = vmatprep.subr.bf16.mxu0 %v822
  %898 = vmatpush1.bf16.msra.mxu0 %v819
  %899 = vmatprep.subr.bf16.mxu0 0
  %900 = vmatpush1.bf16.msra.mxu0 0
  %901 = vmatprep.subr.bf16.mxu0 0
  %902 = vmatpush1.bf16.msra.mxu0 0
  %903 = vmatprep.subr.bf16.mxu0 0
  %904 = vmatpush1.bf16.msra.mxu0 0
  %905 = vmatprep.subr.bf16.mxu0 0
  %906 = vmatpush1.bf16.msra.mxu0 0
  %907 = vmatprep.subr.bf16.mxu0 0
  %908 = vmatpush1.bf16.msra.mxu0 0
  %909 = vmatprep.subr.bf16.mxu0 0
  %910 = vmatpush1.bf16.msra.mxu0 0
  %911 = vmatprep.subr.bf16.mxu0 0
  %912 = vmatpush1.bf16.msra.mxu0 0
  %913 = vmatprep.subr.bf16.mxu0 0
  %914 = vmatpush1.bf16.msra.mxu0 0
  %915 = vmatprep.subr.bf16.mxu0 0
  %916 = vmatpush1.bf16.msra.mxu0 0
  %917 = vmatprep.subr.bf16.mxu0 0
  %918 = vmatpush1.bf16.msra.mxu0 0
  %919 = vmatprep.subr.bf16.mxu0 0
  %920 = vmatpush1.bf16.msra.mxu0 0
  %921 = vmatprep.subr.bf16.mxu0 0
  %922 = vmatpush1.bf16.msra.mxu0 0
  %923 = vmatprep.subr.bf16.mxu0 0
  %924 = vmatpush1.bf16.msra.mxu0 0
  %925 = vmatprep.subr.bf16.mxu0 0
  %926 = vmatpush1.bf16.msra.mxu0 0
  %927 = vmatprep.subr.bf16.mxu0 0
  %928 = vmatpush1.bf16.msra.mxu0 0
  %929 = vmatprep.mubr.bf16.mxu0 0
  %930 = vmatmul.mubr.bf16.gmra.mrb[0].mxu0 %v797
  %v931 = vpop.f32.mrb[0].mxu0
  %v932 = vadd.f32 %v738, %v931
  %v933 = vpop.f32.mrb[0].mxu0
  %v934 = vadd.f32 %v738, %v933
  %v935 = vpop.f32.mrb[0].mxu0
  %v936 = vadd.f32 %v743, %v935
  %v937 = vpop.f32.mrb[0].mxu0
  %v938 = vadd.f32 %v743, %v937
  %939 = vmatprep.mubr.bf16.mxu0 0
  %940 = vmatmul.mubr.bf16.gmra.mrb[0].mxu0 %v800
  %v941 = vpop.f32.mrb[0].mxu0
  %v942 = vadd.f32 %v748, %v941
  %v943 = vpop.f32.mrb[0].mxu0
  %v944 = vadd.f32 %v748, %v943
  %v945 = vpop.f32.mrb[0].mxu0
  %v946 = vadd.f32 %v753, %v945
  %v947 = vpop.f32.mrb[0].mxu0
  %v948 = vadd.f32 %v753, %v947
  %949 = vmatprep.mubr.bf16.mxu0 0
  %950 = vmatmul.mubr.bf16.gmra.mrb[0].mxu0 %v803
  %v951 = vpop.f32.mrb[0].mxu0
  %v952 = vadd.f32 %v758, %v951
  %v953 = vpop.f32.mrb[0].mxu0
  %v954 = vadd.f32 %v758, %v953
  %v955 = vpop.f32.mrb[0].mxu0
  %v956 = vadd.f32 %v763, %v955
  %v957 = vpop.f32.mrb[0].mxu0
  %v958 = vadd.f32 %v763, %v957
  %959 = vmatprep.mubr.bf16.mxu0 0
  %960 = vmatmul.mubr.bf16.gmra.mrb[0].mxu0 %v806
  %v961 = vpop.f32.mrb[0].mxu0
  %v962 = vadd.f32 %v768, %v961
  %v963 = vpop.f32.mrb[0].mxu0
  %v964 = vadd.f32 %v768, %v963
  %v965 = vpop.f32.mrb[0].mxu0
  %v966 = vadd.f32 %v773, %v965
  %v967 = vpop.f32.mrb[0].mxu0
  %v968 = vadd.f32 %v773, %v967
  %969 = vdwg.mxu0
  %v970 = vmax.f32 %v859, 0.0
  %v971 = vmax.f32 %v861, 0.0
  %v972 = vmax.f32 %v932, 0.0
  %v973 = vmax.f32 %v934, 0.0
  %v974 = vmax.f32 %v863, 0.0
  %v975 = vmax.f32 %v865, 0.0
  %v976 = vmax.f32 %v936, 0.0
  %v977 = vmax.f32 %v938, 0.0
  %v978 = vmax.f32 %v869, 0.0
  %v979 = vmax.f32 %v871, 0.0
  %v980 = vmax.f32 %v942, 0.0
  %v981 = vmax.f32 %v944, 0.0
  %v982 = vmax.f32 %v873, 0.0
  %v983 = vmax.f32 %v875, 0.0
  %v984 = vmax.f32 %v946, 0.0
  %v985 = vmax.f32 %v948, 0.0
  %v986 = vmax.f32 %v879, 0.0
  %v987 = vmax.f32 %v881, 0.0
  %v988 = vmax.f32 %v952, 0.0
  %v989 = vmax.f32 %v954, 0.0
  %v990 = vmax.f32 %v883, 0.0
  %v991 = vmax.f32 %v885, 0.0
  %v992 = vmax.f32 %v956, 0.0
  %v993 = vmax.f32 %v958, 0.0
  %v994 = vmax.f32 %v889, 0.0
  %v995 = vmax.f32 %v891, 0.0
  %v996 = vmax.f32 %v962, 0.0
  %v997 = vmax.f32 %v964, 0.0
  %v998 = vmax.f32 %v893, 0.0
  %v999 = vmax.f32 %v895, 0.0
  %v1000 = vmax.f32 %v966, 0.0
  %v1001 = vmax.f32 %v968, 0.0
  %v1002 = vld [vmem:[%s3] sm:$0xf]
  %v1003 = vld [vmem:[%s3 + $0x4] sm:$0xf]
  %v1004 = vld [vmem:[%s3 + $0x8] sm:$0xf]
  %v1005 = vld [vmem:[%s3 + $0xc] sm:$0xf]
  %v1006 = vld [vmem:[%s3 + $0x10] sm:$0xf]
  %v1007 = vld [vmem:[%s3 + $0x14] sm:$0xf]
  %v1008 = vld [vmem:[%s3 + $0x18] sm:$0xf]
  %v1009 = vld [vmem:[%s3 + $0x1c] sm:$0xf]
  %v1010 = vld [vmem:[%s3 + $0x20] sm:$0xf]
  %v1011 = vld [vmem:[%s3 + $0x24] sm:$0xf]
  %v1012 = vld [vmem:[%s3 + $0x28] sm:$0xf]
  %v1013 = vld [vmem:[%s3 + $0x2c] sm:$0xf]
  %v1014 = vld [vmem:[%s3 + $0x30] sm:$0xf]
  %v1015 = vld [vmem:[%s3 + $0x34] sm:$0xf]
  %v1016 = vld [vmem:[%s3 + $0x38] sm:$0xf]
  %v1017 = vld [vmem:[%s3 + $0x3c] sm:$0xf]
  %v1018 = vld [vmem:[%s3 + $0x40] sm:$0xf]
  %v1019 = vld [vmem:[%s3 + $0x44] sm:$0xf]
  %v1020 = vld [vmem:[%s3 + $0x48] sm:$0xf]
  %v1021 = vld [vmem:[%s3 + $0x4c] sm:$0xf]
  %v1022 = vld [vmem:[%s3 + $0x50] sm:$0xf]
  %v1023 = vld [vmem:[%s3 + $0x54] sm:$0xf]
  %v1024 = vld [vmem:[%s3 + $0x58] sm:$0xf]
  %v1025 = vld [vmem:[%s3 + $0x5c] sm:$0xf]
  %v1026 = vld [vmem:[%s3 + $0x60] sm:$0xf]
  %v1027 = vld [vmem:[%s3 + $0x64] sm:$0xf]
  %v1028 = vld [vmem:[%s3 + $0x68] sm:$0xf]
  %v1029 = vld [vmem:[%s3 + $0x6c] sm:$0xf]
  %v1030 = vld [vmem:[%s3 + $0x70] sm:$0xf]
  %v1031 = vld [vmem:[%s3 + $0x74] sm:$0xf]
  %v1032 = vld [vmem:[%s3 + $0x78] sm:$0xf]
  %v1033 = vld [vmem:[%s3 + $0x7c] sm:$0xf]
  %v1034 = vld [vmem:[%s4] sm:$0xff]
  %v1035 = vld [vmem:[%s4 + $0x8] sm:$0xff]
  %v1036 = vld [vmem:[%s4 + $0x10] sm:$0xff]
  %v1037 = vld [vmem:[%s4 + $0x18] sm:$0xff]
  %v1038 = vld [vmem:[%s4 + $0x20] sm:$0xff]
  %v1039 = vld [vmem:[%s4 + $0x28] sm:$0xff]
  %v1040 = vld [vmem:[%s4 + $0x30] sm:$0xff]
  %v1041 = vld [vmem:[%s4 + $0x38] sm:$0xff]
  %v1042 = vld [vmem:[%s4 + $0x40] sm:$0xff]
  %v1043 = vld [vmem:[%s4 + $0x48] sm:$0xff]
  %v1044 = vld [vmem:[%s4 + $0x50] sm:$0xff]
  %v1045 = vld [vmem:[%s4 + $0x58] sm:$0xff]
  %v1046 = vld [vmem:[%s4 + $0x60] sm:$0xff]
  %v1047 = vld [vmem:[%s4 + $0x68] sm:$0xff]
  %v1048 = vld [vmem:[%s4 + $0x70] sm:$0xff]
  %v1049 = vld [vmem:[%s4 + $0x78] sm:$0xff]
  %v1050 = vld [vmem:[%s4 + $0x80] sm:$0xff]
  %v1051 = vld [vmem:[%s4 + $0x88] sm:$0xff]
  %v1052 = vld [vmem:[%s4 + $0x90] sm:$0xff]
  %v1053 = vld [vmem:[%s4 + $0x98] sm:$0xff]
  %v1054 = vld [vmem:[%s4 + $0xa0] sm:$0xff]
  %v1055 = vld [vmem:[%s4 + $0xa8] sm:$0xff]
  %v1056 = vld [vmem:[%s4 + $0xb0] sm:$0xff]
  %v1057 = vld [vmem:[%s4 + $0xb8] sm:$0xff]
  %v1058 = vld [vmem:[%s4 + $0xc0] sm:$0xff]
  %v1059 = vld [vmem:[%s4 + $0xc8] sm:$0xff]
  %v1060 = vld [vmem:[%s4 + $0xd0] sm:$0xff]
  %v1061 = vld [vmem:[%s4 + $0xd8] sm:$0xff]
  %v1062 = vld [vmem:[%s4 + $0xe0] sm:$0xff]
  %v1063 = vld [vmem:[%s4 + $0xe8] sm:$0xff]
  %v1064 = vld [vmem:[%s4 + $0xf0] sm:$0xff]
  %v1065 = vld [vmem:[%s4 + $0xf8] sm:$0xff]
  %v1066 = vld [vmem:[%s5] sm:$0xf]
  %v1067 = vld [vmem:[%s5 + $0x4] sm:$0xf]
  %v1068 = vld [vmem:[%s5 + $0x8] sm:$0xf]
  %v1069 = vld [vmem:[%s5 + $0xc] sm:$0xf]
  %v1070 = vld [vmem:[%s5 + $0x10] sm:$0xf]
  %v1071 = vld [vmem:[%s5 + $0x14] sm:$0xf]
  %v1072 = vld [vmem:[%s5 + $0x18] sm:$0xf]
  %v1073 = vld [vmem:[%s5 + $0x1c] sm:$0xf]
  %v1074 = vld [vmem:[%s5 + $0x20] sm:$0xf]
  %v1075 = vld [vmem:[%s5 + $0x24] sm:$0xf]
  %v1076 = vld [vmem:[%s5 + $0x28] sm:$0xf]
  %v1077 = vld [vmem:[%s5 + $0x2c] sm:$0xf]
  %v1078 = vld [vmem:[%s5 + $0x30] sm:$0xf]
  %v1079 = vld [vmem:[%s5 + $0x34] sm:$0xf]
  %v1080 = vld [vmem:[%s5 + $0x38] sm:$0xf]
  %v1081 = vld [vmem:[%s5 + $0x3c] sm:$0xf]
  %v1082 = vld [vmem:[%s6] sm:$0xf]
  %v1083 = vld [vmem:[%s6 + $0x4] sm:$0xf]
  %v1084 = vld [vmem:[%s6 + $0x8] sm:$0xf]
  %v1085 = vld [vmem:[%s6 + $0xc] sm:$0xf]
  %v1086 = vld [vmem:[%s6 + $0x10] sm:$0xf]
  %v1087 = vld [vmem:[%s6 + $0x14] sm:$0xf]
  %v1088 = vld [vmem:[%s6 + $0x18] sm:$0xf]
  %v1089 = vld [vmem:[%s6 + $0x1c] sm:$0xf]
  %v1090 = vld [vmem:[%s7] sm:$0xff]
  %v1091 = vld [vmem:[%s7 + $0x8] sm:$0xff]
  %v1092 = vld [vmem:[%s7 + $0x10] sm:$0xff]
  %v1093 = vld [vmem:[%s7 + $0x18] sm:$0xff]
  %v1094 = vld [vmem:[%s7 + $0x20] sm:$0xff]
  %v1095 = vld [vmem:[%s7 + $0x28] sm:$0xff]
  %v1096 = vld [vmem:[%s7 + $0x30] sm:$0xff]
  %v1097 = vld [vmem:[%s7 + $0x38] sm:$0xff]
  %v1098 = vpack.c.bf16 %v974, %v970
  %v1099 = vpack.c.bf16 %v975, %v971
  %v1100 = vpack.c.bf16 %v976, %v972
  %v1101 = vpack.c.bf16 %v977, %v973
  %v1102 = vpack.c.bf16 %v982, %v978
  %v1103 = vpack.c.bf16 %v983, %v979
  %v1104 = vpack.c.bf16 %v984, %v980
  %v1105 = vpack.c.bf16 %v985, %v981
  %v1106 = vpack.c.bf16 %v990, %v986
  %v1107 = vpack.c.bf16 %v991, %v987
  %v1108 = vpack.c.bf16 %v992, %v988
  %v1109 = vpack.c.bf16 %v993, %v989
  %v1110 = vpack.c.bf16 %v998, %v994
  %v1111 = vpack.c.bf16 %v999, %v995
  %v1112 = vpack.c.bf16 %v1000, %v996
  %v1113 = vpack.c.bf16 %v1001, %v997
  %1115 = vset.pattern.permute.xlu0 0
  %1116 = vperm.xlu0 %1115, %v1034
  %v1117 = vpop.permute.xlu0 %1116
  %1120 = vset.pattern.permute.xlu0 0
  %1121 = vperm.xlu0 %1120, %v1035
  %v1122 = vpop.permute.xlu0 %1121
  %1125 = vset.pattern.permute.xlu0 0
  %1126 = vperm.xlu0 %1125, %v1036
  %v1127 = vpop.permute.xlu0 %1126
  %1130 = vset.pattern.permute.xlu0 0
  %1131 = vperm.xlu0 %1130, %v1037
  %v1132 = vpop.permute.xlu0 %1131
  %1135 = vset.pattern.permute.xlu0 0
  %1136 = vperm.xlu0 %1135, %v1038
  %v1137 = vpop.permute.xlu0 %1136
  %1140 = vset.pattern.permute.xlu0 0
  %1141 = vperm.xlu0 %1140, %v1039
  %v1142 = vpop.permute.xlu0 %1141
  %1145 = vset.pattern.permute.xlu0 0
  %1146 = vperm.xlu0 %1145, %v1040
  %v1147 = vpop.permute.xlu0 %1146
  %1150 = vset.pattern.permute.xlu0 0
  %1151 = vperm.xlu0 %1150, %v1041
  %v1152 = vpop.permute.xlu0 %1151
  %1155 = vset.pattern.permute.xlu0 0
  %1156 = vperm.xlu0 %1155, %v1042
  %v1157 = vpop.permute.xlu0 %1156
  %1160 = vset.pattern.permute.xlu0 0
  %1161 = vperm.xlu0 %1160, %v1043
  %v1162 = vpop.permute.xlu0 %1161
  %1165 = vset.pattern.permute.xlu0 0
  %1166 = vperm.xlu0 %1165, %v1044
  %v1167 = vpop.permute.xlu0 %1166
  %1170 = vset.pattern.permute.xlu0 0
  %1171 = vperm.xlu0 %1170, %v1045
  %v1172 = vpop.permute.xlu0 %1171
  %1175 = vset.pattern.permute.xlu0 0
  %1176 = vperm.xlu0 %1175, %v1046
  %v1177 = vpop.permute.xlu0 %1176
  %1180 = vset.pattern.permute.xlu0 0
  %1181 = vperm.xlu0 %1180, %v1047
  %v1182 = vpop.permute.xlu0 %1181
  %1185 = vset.pattern.permute.xlu0 0
  %1186 = vperm.xlu0 %1185, %v1048
  %v1187 = vpop.permute.xlu0 %1186
  %1190 = vset.pattern.permute.xlu0 0
  %1191 = vperm.xlu0 %1190, %v1049
  %v1192 = vpop.permute.xlu0 %1191
  %1195 = vset.pattern.permute.xlu0 0
  %1196 = vperm.xlu0 %1195, %v1050
  %v1197 = vpop.permute.xlu0 %1196
  %1200 = vset.pattern.permute.xlu0 0
  %1201 = vperm.xlu0 %1200, %v1051
  %v1202 = vpop.permute.xlu0 %1201
  %1205 = vset.pattern.permute.xlu0 0
  %1206 = vperm.xlu0 %1205, %v1052
  %v1207 = vpop.permute.xlu0 %1206
  %1210 = vset.pattern.permute.xlu0 0
  %1211 = vperm.xlu0 %1210, %v1053
  %v1212 = vpop.permute.xlu0 %1211
  %1215 = vset.pattern.permute.xlu0 0
  %1216 = vperm.xlu0 %1215, %v1054
  %v1217 = vpop.permute.xlu0 %1216
  %1220 = vset.pattern.permute.xlu0 0
  %1221 = vperm.xlu0 %1220, %v1055
  %v1222 = vpop.permute.xlu0 %1221
  %1225 = vset.pattern.permute.xlu0 0
  %1226 = vperm.xlu0 %1225, %v1056
  %v1227 = vpop.permute.xlu0 %1226
  %1230 = vset.pattern.permute.xlu0 0
  %1231 = vperm.xlu0 %1230, %v1057
  %v1232 = vpop.permute.xlu0 %1231
  %1235 = vset.pattern.permute.xlu0 0
  %1236 = vperm.xlu0 %1235, %v1058
  %v1237 = vpop.permute.xlu0 %1236
  %1240 = vset.pattern.permute.xlu0 0
  %1241 = vperm.xlu0 %1240, %v1059
  %v1242 = vpop.permute.xlu0 %1241
  %1245 = vset.pattern.permute.xlu0 0
  %1246 = vperm.xlu0 %1245, %v1060
  %v1247 = vpop.permute.xlu0 %1246
  %1250 = vset.pattern.permute.xlu0 0
  %1251 = vperm.xlu0 %1250, %v1061
  %v1252 = vpop.permute.xlu0 %1251
  %1255 = vset.pattern.permute.xlu0 0
  %1256 = vperm.xlu0 %1255, %v1062
  %v1257 = vpop.permute.xlu0 %1256
  %1260 = vset.pattern.permute.xlu0 0
  %1261 = vperm.xlu0 %1260, %v1063
  %v1262 = vpop.permute.xlu0 %1261
  %1265 = vset.pattern.permute.xlu0 0
  %1266 = vperm.xlu0 %1265, %v1064
  %v1267 = vpop.permute.xlu0 %1266
  %1270 = vset.pattern.permute.xlu0 0
  %1271 = vperm.xlu0 %1270, %v1065
  %v1272 = vpop.permute.xlu0 %1271
  %v1306 = vunpack.c.l.b16 %v1002
  %v1307 = vunpack.c.l.b16 %v1003
  %v1308 = vunpack.c.l.b16 %v1004
  %v1309 = vunpack.c.l.b16 %v1005
  %v1310 = vunpack.c.l.b16 %v1006
  %v1311 = vunpack.c.l.b16 %v1007
  %v1312 = vunpack.c.l.b16 %v1008
  %v1313 = vunpack.c.l.b16 %v1009
  %v1314 = vunpack.c.l.b16 %v1010
  %v1315 = vunpack.c.l.b16 %v1011
  %v1316 = vunpack.c.l.b16 %v1012
  %v1317 = vunpack.c.l.b16 %v1013
  %v1318 = vunpack.c.l.b16 %v1014
  %v1319 = vunpack.c.l.b16 %v1015
  %v1320 = vunpack.c.l.b16 %v1016
  %v1321 = vunpack.c.l.b16 %v1017
  %v1322 = vunpack.c.l.b16 %v1018
  %v1323 = vunpack.c.l.b16 %v1019
  %v1324 = vunpack.c.l.b16 %v1020
  %v1325 = vunpack.c.l.b16 %v1021
  %v1326 = vunpack.c.l.b16 %v1022
  %v1327 = vunpack.c.l.b16 %v1023
  %v1328 = vunpack.c.l.b16 %v1024
  %v1329 = vunpack.c.l.b16 %v1025
  %v1330 = vunpack.c.l.b16 %v1026
  %v1331 = vunpack.c.l.b16 %v1027
  %v1332 = vunpack.c.l.b16 %v1028
  %v1333 = vunpack.c.l.b16 %v1029
  %v1334 = vunpack.c.l.b16 %v1030
  %v1335 = vunpack.c.l.b16 %v1031
  %v1336 = vunpack.c.l.b16 %v1032
  %v1337 = vunpack.c.l.b16 %v1033
  %v1338 = vpack.c.b16 %v1307, %v1306
  %v1339 = vpack.c.b16 %v1309, %v1308
  %v1340 = vpack.c.b16 %v1311, %v1310
  %v1341 = vpack.c.b16 %v1313, %v1312
  %v1342 = vpack.c.b16 %v1315, %v1314
  %v1343 = vpack.c.b16 %v1317, %v1316
  %v1344 = vpack.c.b16 %v1319, %v1318
  %v1345 = vpack.c.b16 %v1321, %v1320
  %v1346 = vpack.c.b16 %v1323, %v1322
  %v1347 = vpack.c.b16 %v1325, %v1324
  %v1348 = vpack.c.b16 %v1327, %v1326
  %v1349 = vpack.c.b16 %v1329, %v1328
  %v1350 = vpack.c.b16 %v1331, %v1330
  %v1351 = vpack.c.b16 %v1333, %v1332
  %v1352 = vpack.c.b16 %v1335, %v1334
  %v1353 = vpack.c.b16 %v1337, %v1336
  %vm1354 = vcmask 523264
  %v1356 = vsel %vm1354, %v1338, 0
  %v1359 = vsel %vm1354, %v1339, 0
  %v1362 = vsel %vm1354, %v1340, 0
  %v1365 = vsel %vm1354, %v1341, 0
  %v1368 = vsel %vm1354, %v1342, 0
  %v1371 = vsel %vm1354, %v1343, 0
  %v1374 = vsel %vm1354, %v1344, 0
  %v1377 = vsel %vm1354, %v1345, 0
  %v1380 = vsel %vm1354, %v1346, 0
  %v1383 = vsel %vm1354, %v1347, 0
  %v1386 = vsel %vm1354, %v1348, 0
  %v1389 = vsel %vm1354, %v1349, 0
  %v1392 = vsel %vm1354, %v1350, 0
  %v1395 = vsel %vm1354, %v1351, 0
  %v1398 = vsel %vm1354, %v1352, 0
  %v1401 = vsel %vm1354, %v1353, 0
  %1403 = vmatprep.subr.bf16.mxu0 %v1099
  %1404 = vmatpush1.bf16.msra.mxu0 %v1098
  %1405 = vmatprep.subr.bf16.mxu0 %v1103
  %1406 = vmatpush1.bf16.msra.mxu0 %v1102
  %1407 = vmatprep.subr.bf16.mxu0 %v1107
  %1408 = vmatpush1.bf16.msra.mxu0 %v1106
  %1409 = vmatprep.subr.bf16.mxu0 %v1111
  %1410 = vmatpush1.bf16.msra.mxu0 %v1110
  %1411 = vmatprep.subr.bf16.mxu0 0
  %1412 = vmatpush1.bf16.msra.mxu0 0
  %1413 = vmatprep.subr.bf16.mxu0 0
  %1414 = vmatpush1.bf16.msra.mxu0 0
  %1415 = vmatprep.subr.bf16.mxu0 0
  %1416 = vmatpush1.bf16.msra.mxu0 0
  %1417 = vmatprep.subr.bf16.mxu0 0
  %1418 = vmatpush1.bf16.msra.mxu0 0
  %1419 = vmatprep.subr.bf16.mxu0 0
  %1420 = vmatpush1.bf16.msra.mxu0 0
  %1421 = vmatprep.subr.bf16.mxu0 0
  %1422 = vmatpush1.bf16.msra.mxu0 0
  %1423 = vmatprep.subr.bf16.mxu0 0
  %1424 = vmatpush1.bf16.msra.mxu0 0
  %1425 = vmatprep.subr.bf16.mxu0 0
  %1426 = vmatpush1.bf16.msra.mxu0 0
  %1427 = vmatprep.subr.bf16.mxu0 0
  %1428 = vmatpush1.bf16.msra.mxu0 0
  %1429 = vmatprep.subr.bf16.mxu0 0
  %1430 = vmatpush1.bf16.msra.mxu0 0
  %1431 = vmatprep.subr.bf16.mxu0 0
  %1432 = vmatpush1.bf16.msra.mxu0 0
  %1433 = vmatprep.subr.bf16.mxu0 0
  %1434 = vmatpush1.bf16.msra.mxu0 0
  %1435 = vmatprep.mubr.bf16.mxu0 0
  %1436 = vmatmul.mubr.bf16.gmra.mrb[0].mxu0 %v1356
  %v1437 = vpop.f32.mrb[0].mxu0
  %v1438 = vadd.f32 %v1117, %v1437
  %v1439 = vpop.f32.mrb[0].mxu0
  %v1440 = vadd.f32 %v1117, %v1439
  %v1441 = vpop.f32.mrb[0].mxu0
  %v1442 = vadd.f32 %v1122, %v1441
  %v1443 = vpop.f32.mrb[0].mxu0
  %v1444 = vadd.f32 %v1122, %v1443
  %1445 = vmatprep.mubr.bf16.mxu0 0
  %1446 = vmatmul.mubr.bf16.gmra.mrb[0].mxu0 %v1359
  %v1447 = vpop.f32.mrb[0].mxu0
  %v1448 = vadd.f32 %v1127, %v1447
  %v1449 = vpop.f32.mrb[0].mxu0
  %v1450 = vadd.f32 %v1127, %v1449
  %v1451 = vpop.f32.mrb[0].mxu0
  %v1452 = vadd.f32 %v1132, %v1451
  %v1453 = vpop.f32.mrb[0].mxu0
  %v1454 = vadd.f32 %v1132, %v1453
  %1455 = vmatprep.mubr.bf16.mxu0 0
  %1456 = vmatmul.mubr.bf16.gmra.mrb[0].mxu0 %v1362
  %v1457 = vpop.f32.mrb[0].mxu0
  %v1458 = vadd.f32 %v1137, %v1457
  %v1459 = vpop.f32.mrb[0].mxu0
  %v1460 = vadd.f32 %v1137, %v1459
  %v1461 = vpop.f32.mrb[0].mxu0
  %v1462 = vadd.f32 %v1142, %v1461
  %v1463 = vpop.f32.mrb[0].mxu0
  %v1464 = vadd.f32 %v1142, %v1463
  %1465 = vmatprep.mubr.bf16.mxu0 0
  %1466 = vmatmul.mubr.bf16.gmra.mrb[0].mxu0 %v1365
  %v1467 = vpop.f32.mrb[0].mxu0
  %v1468 = vadd.f32 %v1147, %v1467
  %v1469 = vpop.f32.mrb[0].mxu0
  %v1470 = vadd.f32 %v1147, %v1469
  %v1471 = vpop.f32.mrb[0].mxu0
  %v1472 = vadd.f32 %v1152, %v1471
  %v1473 = vpop.f32.mrb[0].mxu0
  %v1474 = vadd.f32 %v1152, %v1473
  %1475 = vmatprep.mubr.bf16.mxu0 0
  %1476 = vmatmul.mubr.bf16.gmra.mrb[0].mxu0 %v1368
  %v1477 = vpop.f32.mrb[0].mxu0
  %v1478 = vadd.f32 %v1157, %v1477
  %v1479 = vpop.f32.mrb[0].mxu0
  %v1480 = vadd.f32 %v1157, %v1479
  %v1481 = vpop.f32.mrb[0].mxu0
  %v1482 = vadd.f32 %v1162, %v1481
  %v1483 = vpop.f32.mrb[0].mxu0
  %v1484 = vadd.f32 %v1162, %v1483
  %1485 = vmatprep.mubr.bf16.mxu0 0
  %1486 = vmatmul.mubr.bf16.gmra.mrb[0].mxu0 %v1371
  %v1487 = vpop.f32.mrb[0].mxu0
  %v1488 = vadd.f32 %v1167, %v1487
  %v1489 = vpop.f32.mrb[0].mxu0
  %v1490 = vadd.f32 %v1167, %v1489
  %v1491 = vpop.f32.mrb[0].mxu0
  %v1492 = vadd.f32 %v1172, %v1491
  %v1493 = vpop.f32.mrb[0].mxu0
  %v1494 = vadd.f32 %v1172, %v1493
  %1495 = vmatprep.mubr.bf16.mxu0 0
  %1496 = vmatmul.mubr.bf16.gmra.mrb[0].mxu0 %v1374
  %v1497 = vpop.f32.mrb[0].mxu0
  %v1498 = vadd.f32 %v1177, %v1497
  %v1499 = vpop.f32.mrb[0].mxu0
  %v1500 = vadd.f32 %v1177, %v1499
  %v1501 = vpop.f32.mrb[0].mxu0
  %v1502 = vadd.f32 %v1182, %v1501
  %v1503 = vpop.f32.mrb[0].mxu0
  %v1504 = vadd.f32 %v1182, %v1503
  %1505 = vmatprep.mubr.bf16.mxu0 0
  %1506 = vmatmul.mubr.bf16.gmra.mrb[0].mxu0 %v1377
  %v1507 = vpop.f32.mrb[0].mxu0
  %v1508 = vadd.f32 %v1187, %v1507
  %v1509 = vpop.f32.mrb[0].mxu0
  %v1510 = vadd.f32 %v1187, %v1509
  %v1511 = vpop.f32.mrb[0].mxu0
  %v1512 = vadd.f32 %v1192, %v1511
  %v1513 = vpop.f32.mrb[0].mxu0
  %v1514 = vadd.f32 %v1192, %v1513
  %1515 = vmatprep.mubr.bf16.mxu0 0
  %1516 = vmatmul.mubr.bf16.gmra.mrb[0].mxu0 %v1380
  %v1517 = vpop.f32.mrb[0].mxu0
  %v1518 = vadd.f32 %v1197, %v1517
  %v1519 = vpop.f32.mrb[0].mxu0
  %v1520 = vadd.f32 %v1197, %v1519
  %v1521 = vpop.f32.mrb[0].mxu0
  %v1522 = vadd.f32 %v1202, %v1521
  %v1523 = vpop.f32.mrb[0].mxu0
  %v1524 = vadd.f32 %v1202, %v1523
  %1525 = vmatprep.mubr.bf16.mxu0 0
  %1526 = vmatmul.mubr.bf16.gmra.mrb[0].mxu0 %v1383
  %v1527 = vpop.f32.mrb[0].mxu0
  %v1528 = vadd.f32 %v1207, %v1527
  %v1529 = vpop.f32.mrb[0].mxu0
  %v1530 = vadd.f32 %v1207, %v1529
  %v1531 = vpop.f32.mrb[0].mxu0
  %v1532 = vadd.f32 %v1212, %v1531
  %v1533 = vpop.f32.mrb[0].mxu0
  %v1534 = vadd.f32 %v1212, %v1533
  %1535 = vmatprep.mubr.bf16.mxu0 0
  %1536 = vmatmul.mubr.bf16.gmra.mrb[0].mxu0 %v1386
  %v1537 = vpop.f32.mrb[0].mxu0
  %v1538 = vadd.f32 %v1217, %v1537
  %v1539 = vpop.f32.mrb[0].mxu0
  %v1540 = vadd.f32 %v1217, %v1539
  %v1541 = vpop.f32.mrb[0].mxu0
  %v1542 = vadd.f32 %v1222, %v1541
  %v1543 = vpop.f32.mrb[0].mxu0
  %v1544 = vadd.f32 %v1222, %v1543
  %1545 = vmatprep.mubr.bf16.mxu0 0
  %1546 = vmatmul.mubr.bf16.gmra.mrb[0].mxu0 %v1389
  %v1547 = vpop.f32.mrb[0].mxu0
  %v1548 = vadd.f32 %v1227, %v1547
  %v1549 = vpop.f32.mrb[0].mxu0
  %v1550 = vadd.f32 %v1227, %v1549
  %v1551 = vpop.f32.mrb[0].mxu0
  %v1552 = vadd.f32 %v1232, %v1551
  %v1553 = vpop.f32.mrb[0].mxu0
  %v1554 = vadd.f32 %v1232, %v1553
  %1555 = vmatprep.mubr.bf16.mxu0 0
  %1556 = vmatmul.mubr.bf16.gmra.mrb[0].mxu0 %v1392
  %v1557 = vpop.f32.mrb[0].mxu0
  %v1558 = vadd.f32 %v1237, %v1557
  %v1559 = vpop.f32.mrb[0].mxu0
  %v1560 = vadd.f32 %v1237, %v1559
  %v1561 = vpop.f32.mrb[0].mxu0
  %v1562 = vadd.f32 %v1242, %v1561
  %v1563 = vpop.f32.mrb[0].mxu0
  %v1564 = vadd.f32 %v1242, %v1563
  %1565 = vmatprep.mubr.bf16.mxu0 0
  %1566 = vmatmul.mubr.bf16.gmra.mrb[0].mxu0 %v1395
  %v1567 = vpop.f32.mrb[0].mxu0
  %v1568 = vadd.f32 %v1247, %v1567
  %v1569 = vpop.f32.mrb[0].mxu0
  %v1570 = vadd.f32 %v1247, %v1569
  %v1571 = vpop.f32.mrb[0].mxu0
  %v1572 = vadd.f32 %v1252, %v1571
  %v1573 = vpop.f32.mrb[0].mxu0
  %v1574 = vadd.f32 %v1252, %v1573
  %1575 = vmatprep.mubr.bf16.mxu0 0
  %1576 = vmatmul.mubr.bf16.gmra.mrb[0].mxu0 %v1398
  %v1577 = vpop.f32.mrb[0].mxu0
  %v1578 = vadd.f32 %v1257, %v1577
  %v1579 = vpop.f32.mrb[0].mxu0
  %v1580 = vadd.f32 %v1257, %v1579
  %v1581 = vpop.f32.mrb[0].mxu0
  %v1582 = vadd.f32 %v1262, %v1581
  %v1583 = vpop.f32.mrb[0].mxu0
  %v1584 = vadd.f32 %v1262, %v1583
  %1585 = vmatprep.mubr.bf16.mxu0 0
  %1586 = vmatmul.mubr.bf16.gmra.mrb[0].mxu0 %v1401
  %v1587 = vpop.f32.mrb[0].mxu0
  %v1588 = vadd.f32 %v1267, %v1587
  %v1589 = vpop.f32.mrb[0].mxu0
  %v1590 = vadd.f32 %v1267, %v1589
  %v1591 = vpop.f32.mrb[0].mxu0
  %v1592 = vadd.f32 %v1272, %v1591
  %v1593 = vpop.f32.mrb[0].mxu0
  %v1594 = vadd.f32 %v1272, %v1593
  %1595 = vdwg.mxu0
  %1596 = vmatprep.subr.bf16.mxu0 %v1101
  %1597 = vmatpush1.bf16.msra.mxu0 %v1100
  %1598 = vmatprep.subr.bf16.mxu0 %v1105
  %1599 = vmatpush1.bf16.msra.mxu0 %v1104
  %1600 = vmatprep.subr.bf16.mxu0 %v1109
  %1601 = vmatpush1.bf16.msra.mxu0 %v1108
  %1602 = vmatprep.subr.bf16.mxu0 %v1113
  %1603 = vmatpush1.bf16.msra.mxu0 %v1112
  %1604 = vmatprep.subr.bf16.mxu0 0
  %1605 = vmatpush1.bf16.msra.mxu0 0
  %1606 = vmatprep.subr.bf16.mxu0 0
  %1607 = vmatpush1.bf16.msra.mxu0 0
  %1608 = vmatprep.subr.bf16.mxu0 0
  %1609 = vmatpush1.bf16.msra.mxu0 0
  %1610 = vmatprep.subr.bf16.mxu0 0
  %1611 = vmatpush1.bf16.msra.mxu0 0
  %1612 = vmatprep.subr.bf16.mxu0 0
  %1613 = vmatpush1.bf16.msra.mxu0 0
  %1614 = vmatprep.subr.bf16.mxu0 0
  %1615 = vmatpush1.bf16.msra.mxu0 0
  %1616 = vmatprep.subr.bf16.mxu0 0
  %1617 = vmatpush1.bf16.msra.mxu0 0
  %1618 = vmatprep.subr.bf16.mxu0 0
  %1619 = vmatpush1.bf16.msra.mxu0 0
  %1620 = vmatprep.subr.bf16.mxu0 0
  %1621 = vmatpush1.bf16.msra.mxu0 0
  %1622 = vmatprep.subr.bf16.mxu0 0
  %1623 = vmatpush1.bf16.msra.mxu0 0
  %1624 = vmatprep.subr.bf16.mxu0 0
  %1625 = vmatpush1.bf16.msra.mxu0 0
  %1626 = vmatprep.subr.bf16.mxu0 0
  %1627 = vmatpush1.bf16.msra.mxu0 0
  %1628 = vmatprep.mubr.bf16.mxu0 0
  %1629 = vmatmul.mubr.bf16.gmra.mrb[0].mxu0 %v1356
  %v1630 = vpop.f32.mrb[0].mxu0
  %v1631 = vadd.f32 %v1117, %v1630
  %v1632 = vpop.f32.mrb[0].mxu0
  %v1633 = vadd.f32 %v1117, %v1632
  %v1634 = vpop.f32.mrb[0].mxu0
  %v1635 = vadd.f32 %v1122, %v1634
  %v1636 = vpop.f32.mrb[0].mxu0
  %v1637 = vadd.f32 %v1122, %v1636
  %1638 = vmatprep.mubr.bf16.mxu0 0
  %1639 = vmatmul.mubr.bf16.gmra.mrb[0].mxu0 %v1359
  %v1640 = vpop.f32.mrb[0].mxu0
  %v1641 = vadd.f32 %v1127, %v1640
  %v1642 = vpop.f32.mrb[0].mxu0
  %v1643 = vadd.f32 %v1127, %v1642
  %v1644 = vpop.f32.mrb[0].mxu0
  %v1645 = vadd.f32 %v1132, %v1644
  %v1646 = vpop.f32.mrb[0].mxu0
  %v1647 = vadd.f32 %v1132, %v1646
  %1648 = vmatprep.mubr.bf16.mxu0 0
  %1649 = vmatmul.mubr.bf16.gmra.mrb[0].mxu0 %v1362
  %v1650 = vpop.f32.mrb[0].mxu0
  %v1651 = vadd.f32 %v1137, %v1650
  %v1652 = vpop.f32.mrb[0].mxu0
  %v1653 = vadd.f32 %v1137, %v1652
  %v1654 = vpop.f32.mrb[0].mxu0
  %v1655 = vadd.f32 %v1142, %v1654
  %v1656 = vpop.f32.mrb[0].mxu0
  %v1657 = vadd.f32 %v1142, %v1656
  %1658 = vmatprep.mubr.bf16.mxu0 0
  %1659 = vmatmul.mubr.bf16.gmra.mrb[0].mxu0 %v1365
  %v1660 = vpop.f32.mrb[0].mxu0
  %v1661 = vadd.f32 %v1147, %v1660
  %v1662 = vpop.f32.mrb[0].mxu0
  %v1663 = vadd.f32 %v1147, %v1662
  %v1664 = vpop.f32.mrb[0].mxu0
  %v1665 = vadd.f32 %v1152, %v1664
  %v1666 = vpop.f32.mrb[0].mxu0
  %v1667 = vadd.f32 %v1152, %v1666
  %1668 = vmatprep.mubr.bf16.mxu0 0
  %1669 = vmatmul.mubr.bf16.gmra.mrb[0].mxu0 %v1368
  %v1670 = vpop.f32.mrb[0].mxu0
  %v1671 = vadd.f32 %v1157, %v1670
  %v1672 = vpop.f32.mrb[0].mxu0
  %v1673 = vadd.f32 %v1157, %v1672
  %v1674 = vpop.f32.mrb[0].mxu0
  %v1675 = vadd.f32 %v1162, %v1674
  %v1676 = vpop.f32.mrb[0].mxu0
  %v1677 = vadd.f32 %v1162, %v1676
  %1678 = vmatprep.mubr.bf16.mxu0 0
  %1679 = vmatmul.mubr.bf16.gmra.mrb[0].mxu0 %v1371
  %v1680 = vpop.f32.mrb[0].mxu0
  %v1681 = vadd.f32 %v1167, %v1680
  %v1682 = vpop.f32.mrb[0].mxu0
  %v1683 = vadd.f32 %v1167, %v1682
  %v1684 = vpop.f32.mrb[0].mxu0
  %v1685 = vadd.f32 %v1172, %v1684
  %v1686 = vpop.f32.mrb[0].mxu0
  %v1687 = vadd.f32 %v1172, %v1686
  %1688 = vmatprep.mubr.bf16.mxu0 0
  %1689 = vmatmul.mubr.bf16.gmra.mrb[0].mxu0 %v1374
  %v1690 = vpop.f32.mrb[0].mxu0
  %v1691 = vadd.f32 %v1177, %v1690
  %v1692 = vpop.f32.mrb[0].mxu0
  %v1693 = vadd.f32 %v1177, %v1692
  %v1694 = vpop.f32.mrb[0].mxu0
  %v1695 = vadd.f32 %v1182, %v1694
  %v1696 = vpop.f32.mrb[0].mxu0
  %v1697 = vadd.f32 %v1182, %v1696
  %1698 = vmatprep.mubr.bf16.mxu0 0
  %1699 = vmatmul.mubr.bf16.gmra.mrb[0].mxu0 %v1377
  %v1700 = vpop.f32.mrb[0].mxu0
  %v1701 = vadd.f32 %v1187, %v1700
  %v1702 = vpop.f32.mrb[0].mxu0
  %v1703 = vadd.f32 %v1187, %v1702
  %v1704 = vpop.f32.mrb[0].mxu0
  %v1705 = vadd.f32 %v1192, %v1704
  %v1706 = vpop.f32.mrb[0].mxu0
  %v1707 = vadd.f32 %v1192, %v1706
  %1708 = vmatprep.mubr.bf16.mxu0 0
  %1709 = vmatmul.mubr.bf16.gmra.mrb[0].mxu0 %v1380
  %v1710 = vpop.f32.mrb[0].mxu0
  %v1711 = vadd.f32 %v1197, %v1710
  %v1712 = vpop.f32.mrb[0].mxu0
  %v1713 = vadd.f32 %v1197, %v1712
  %v1714 = vpop.f32.mrb[0].mxu0
  %v1715 = vadd.f32 %v1202, %v1714
  %v1716 = vpop.f32.mrb[0].mxu0
  %v1717 = vadd.f32 %v1202, %v1716
  %1718 = vmatprep.mubr.bf16.mxu0 0
  %1719 = vmatmul.mubr.bf16.gmra.mrb[0].mxu0 %v1383
  %v1720 = vpop.f32.mrb[0].mxu0
  %v1721 = vadd.f32 %v1207, %v1720
  %v1722 = vpop.f32.mrb[0].mxu0
  %v1723 = vadd.f32 %v1207, %v1722
  %v1724 = vpop.f32.mrb[0].mxu0
  %v1725 = vadd.f32 %v1212, %v1724
  %v1726 = vpop.f32.mrb[0].mxu0
  %v1727 = vadd.f32 %v1212, %v1726
  %1728 = vmatprep.mubr.bf16.mxu0 0
  %1729 = vmatmul.mubr.bf16.gmra.mrb[0].mxu0 %v1386
  %v1730 = vpop.f32.mrb[0].mxu0
  %v1731 = vadd.f32 %v1217, %v1730
  %v1732 = vpop.f32.mrb[0].mxu0
  %v1733 = vadd.f32 %v1217, %v1732
  %v1734 = vpop.f32.mrb[0].mxu0
  %v1735 = vadd.f32 %v1222, %v1734
  %v1736 = vpop.f32.mrb[0].mxu0
  %v1737 = vadd.f32 %v1222, %v1736
  %1738 = vmatprep.mubr.bf16.mxu0 0
  %1739 = vmatmul.mubr.bf16.gmra.mrb[0].mxu0 %v1389
  %v1740 = vpop.f32.mrb[0].mxu0
  %v1741 = vadd.f32 %v1227, %v1740
  %v1742 = vpop.f32.mrb[0].mxu0
  %v1743 = vadd.f32 %v1227, %v1742
  %v1744 = vpop.f32.mrb[0].mxu0
  %v1745 = vadd.f32 %v1232, %v1744
  %v1746 = vpop.f32.mrb[0].mxu0
  %v1747 = vadd.f32 %v1232, %v1746
  %1748 = vmatprep.mubr.bf16.mxu0 0
  %1749 = vmatmul.mubr.bf16.gmra.mrb[0].mxu0 %v1392
  %v1750 = vpop.f32.mrb[0].mxu0
  %v1751 = vadd.f32 %v1237, %v1750
  %v1752 = vpop.f32.mrb[0].mxu0
  %v1753 = vadd.f32 %v1237, %v1752
  %v1754 = vpop.f32.mrb[0].mxu0
  %v1755 = vadd.f32 %v1242, %v1754
  %v1756 = vpop.f32.mrb[0].mxu0
  %v1757 = vadd.f32 %v1242, %v1756
  %1758 = vmatprep.mubr.bf16.mxu0 0
  %1759 = vmatmul.mubr.bf16.gmra.mrb[0].mxu0 %v1395
  %v1760 = vpop.f32.mrb[0].mxu0
  %v1761 = vadd.f32 %v1247, %v1760
  %v1762 = vpop.f32.mrb[0].mxu0
  %v1763 = vadd.f32 %v1247, %v1762
  %v1764 = vpop.f32.mrb[0].mxu0
  %v1765 = vadd.f32 %v1252, %v1764
  %v1766 = vpop.f32.mrb[0].mxu0
  %v1767 = vadd.f32 %v1252, %v1766
  %1768 = vmatprep.mubr.bf16.mxu0 0
  %1769 = vmatmul.mubr.bf16.gmra.mrb[0].mxu0 %v1398
  %v1770 = vpop.f32.mrb[0].mxu0
  %v1771 = vadd.f32 %v1257, %v1770
  %v1772 = vpop.f32.mrb[0].mxu0
  %v1773 = vadd.f32 %v1257, %v1772
  %v1774 = vpop.f32.mrb[0].mxu0
  %v1775 = vadd.f32 %v1262, %v1774
  %v1776 = vpop.f32.mrb[0].mxu0
  %v1777 = vadd.f32 %v1262, %v1776
  %1778 = vmatprep.mubr.bf16.mxu0 0
  %1779 = vmatmul.mubr.bf16.gmra.mrb[0].mxu0 %v1401
  %v1780 = vpop.f32.mrb[0].mxu0
  %v1781 = vadd.f32 %v1267, %v1780
  %v1782 = vpop.f32.mrb[0].mxu0
  %v1783 = vadd.f32 %v1267, %v1782
  %v1784 = vpop.f32.mrb[0].mxu0
  %v1785 = vadd.f32 %v1272, %v1784
  %v1786 = vpop.f32.mrb[0].mxu0
  %v1787 = vadd.f32 %v1272, %v1786
  %1788 = vdwg.mxu0
  %v1789 = vmul.f32 %v1478, %v1518
  %v1790 = vmul.f32 %v1480, %v1520
  %v1791 = vmul.f32 %v1478, %v1711
  %v1792 = vmul.f32 %v1480, %v1713
  %v1793 = vmul.f32 %v1482, %v1522
  %v1794 = vmul.f32 %v1484, %v1524
  %v1795 = vmul.f32 %v1482, %v1715
  %v1796 = vmul.f32 %v1484, %v1717
  %v1797 = vmul.f32 %v1488, %v1528
  %v1798 = vmul.f32 %v1490, %v1530
  %v1799 = vmul.f32 %v1488, %v1721
  %v1800 = vmul.f32 %v1490, %v1723
  %v1801 = vmul.f32 %v1492, %v1532
  %v1802 = vmul.f32 %v1494, %v1534
  %v1803 = vmul.f32 %v1492, %v1725
  %v1804 = vmul.f32 %v1494, %v1727
  %v1805 = vmul.f32 %v1498, %v1538
  %v1806 = vmul.f32 %v1500, %v1540
  %v1807 = vmul.f32 %v1498, %v1731
  %v1808 = vmul.f32 %v1500, %v1733
  %v1809 = vmul.f32 %v1502, %v1542
  %v1810 = vmul.f32 %v1504, %v1544
  %v1811 = vmul.f32 %v1502, %v1735
  %v1812 = vmul.f32 %v1504, %v1737
  %v1813 = vmul.f32 %v1508, %v1548
  %v1814 = vmul.f32 %v1510, %v1550
  %v1815 = vmul.f32 %v1508, %v1741
  %v1816 = vmul.f32 %v1510, %v1743
  %v1817 = vmul.f32 %v1512, %v1552
  %v1818 = vmul.f32 %v1514, %v1554
  %v1819 = vmul.f32 %v1512, %v1745
  %v1820 = vmul.f32 %v1514, %v1747
  %v1821 = vmul.f32 %v1671, %v1518
  %v1822 = vmul.f32 %v1673, %v1520
  %v1823 = vmul.f32 %v1671, %v1711
  %v1824 = vmul.f32 %v1673, %v1713
  %v1825 = vmul.f32 %v1675, %v1522
  %v1826 = vmul.f32 %v1677, %v1524
  %v1827 = vmul.f32 %v1675, %v1715
  %v1828 = vmul.f32 %v1677, %v1717
  %v1829 = vmul.f32 %v1681, %v1528
  %v1830 = vmul.f32 %v1683, %v1530
  %v1831 = vmul.f32 %v1681, %v1721
  %v1832 = vmul.f32 %v1683, %v1723
  %v1833 = vmul.f32 %v1685, %v1532
  %v1834 = vmul.f32 %v1687, %v1534
  %v1835 = vmul.f32 %v1685, %v1725
  %v1836 = vmul.f32 %v1687, %v1727
  %v1837 = vmul.f32 %v1691, %v1538
  %v1838 = vmul.f32 %v1693, %v1540
  %v1839 = vmul.f32 %v1691, %v1731
  %v1840 = vmul.f32 %v1693, %v1733
  %v1841 = vmul.f32 %v1695, %v1542
  %v1842 = vmul.f32 %v1697, %v1544
  %v1843 = vmul.f32 %v1695, %v1735
  %v1844 = vmul.f32 %v1697, %v1737
  %v1845 = vmul.f32 %v1701, %v1548
  %v1846 = vmul.f32 %v1703, %v1550
  %v1847 = vmul.f32 %v1701, %v1741
  %v1848 = vmul.f32 %v1703, %v1743
  %v1849 = vmul.f32 %v1705, %v1552
  %v1850 = vmul.f32 %v1707, %v1554
  %v1851 = vmul.f32 %v1705, %v1745
  %v1852 = vmul.f32 %v1707, %v1747
  %v1853 = vpack.c.bf16 %v1793, %v1789
  %v1854 = vpack.c.bf16 %v1794, %v1790
  %v1855 = vpack.c.bf16 %v1795, %v1791
  %v1856 = vpack.c.bf16 %v1796, %v1792
  %v1857 = vpack.c.bf16 %v1801, %v1797
  %v1858 = vpack.c.bf16 %v1802, %v1798
  %v1859 = vpack.c.bf16 %v1803, %v1799
  %v1860 = vpack.c.bf16 %v1804, %v1800
  %v1861 = vpack.c.bf16 %v1809, %v1805
  %v1862 = vpack.c.bf16 %v1810, %v1806
  %v1863 = vpack.c.bf16 %v1811, %v1807
  %v1864 = vpack.c.bf16 %v1812, %v1808
  %v1865 = vpack.c.bf16 %v1817, %v1813
  %v1866 = vpack.c.bf16 %v1818, %v1814
  %v1867 = vpack.c.bf16 %v1819, %v1815
  %v1868 = vpack.c.bf16 %v1820, %v1816
  %v1869 = vpack.c.bf16 %v1825, %v1821
  %v1870 = vpack.c.bf16 %v1826, %v1822
  %v1871 = vpack.c.bf16 %v1827, %v1823
  %v1872 = vpack.c.bf16 %v1828, %v1824
  %v1873 = vpack.c.bf16 %v1833, %v1829
  %v1874 = vpack.c.bf16 %v1834, %v1830
  %v1875 = vpack.c.bf16 %v1835, %v1831
  %v1876 = vpack.c.bf16 %v1836, %v1832
  %v1877 = vpack.c.bf16 %v1841, %v1837
  %v1878 = vpack.c.bf16 %v1842, %v1838
  %v1879 = vpack.c.bf16 %v1843, %v1839
  %v1880 = vpack.c.bf16 %v1844, %v1840
  %v1881 = vpack.c.bf16 %v1849, %v1845
  %v1882 = vpack.c.bf16 %v1850, %v1846
  %v1883 = vpack.c.bf16 %v1851, %v1847
  %v1884 = vpack.c.bf16 %v1852, %v1848
  %v1901 = vunpack.c.l.b16 %v1066
  %v1902 = vunpack.c.l.b16 %v1067
  %v1903 = vunpack.c.l.b16 %v1068
  %v1904 = vunpack.c.l.b16 %v1069
  %v1905 = vunpack.c.l.b16 %v1070
  %v1906 = vunpack.c.l.b16 %v1071
  %v1907 = vunpack.c.l.b16 %v1072
  %v1908 = vunpack.c.l.b16 %v1073
  %v1909 = vunpack.c.l.b16 %v1074
  %v1910 = vunpack.c.l.b16 %v1075
  %v1911 = vunpack.c.l.b16 %v1076
  %v1912 = vunpack.c.l.b16 %v1077
  %v1913 = vunpack.c.l.b16 %v1078
  %v1914 = vunpack.c.l.b16 %v1079
  %v1915 = vunpack.c.l.b16 %v1080
  %v1916 = vunpack.c.l.b16 %v1081
  %v1917 = vpack.c.b16 %v1902, %v1901
  %v1918 = vpack.c.b16 %v1904, %v1903
  %v1919 = vpack.c.b16 %v1906, %v1905
  %v1920 = vpack.c.b16 %v1908, %v1907
  %v1921 = vpack.c.b16 %v1910, %v1909
  %v1922 = vpack.c.b16 %v1912, %v1911
  %v1923 = vpack.c.b16 %v1914, %v1913
  %v1924 = vpack.c.b16 %v1916, %v1915
  %1933 = vmatprep.subr.bf16.mxu0 %v1854
  %1934 = vmatpush1.bf16.msra.mxu0 %v1853
  %1935 = vmatprep.subr.bf16.mxu0 %v1858
  %1936 = vmatpush1.bf16.msra.mxu0 %v1857
  %1937 = vmatprep.subr.bf16.mxu0 %v1862
  %1938 = vmatpush1.bf16.msra.mxu0 %v1861
  %1939 = vmatprep.subr.bf16.mxu0 %v1866
  %1940 = vmatpush1.bf16.msra.mxu0 %v1865
  %1941 = vmatprep.subr.bf16.mxu0 %v1870
  %1942 = vmatpush1.bf16.msra.mxu0 %v1869
  %1943 = vmatprep.subr.bf16.mxu0 %v1874
  %1944 = vmatpush1.bf16.msra.mxu0 %v1873
  %1945 = vmatprep.subr.bf16.mxu0 %v1878
  %1946 = vmatpush1.bf16.msra.mxu0 %v1877
  %1947 = vmatprep.subr.bf16.mxu0 %v1882
  %1948 = vmatpush1.bf16.msra.mxu0 %v1881
  %1949 = vmatprep.subr.bf16.mxu0 0
  %1950 = vmatpush1.bf16.msra.mxu0 0
  %1951 = vmatprep.subr.bf16.mxu0 0
  %1952 = vmatpush1.bf16.msra.mxu0 0
  %1953 = vmatprep.subr.bf16.mxu0 0
  %1954 = vmatpush1.bf16.msra.mxu0 0
  %1955 = vmatprep.subr.bf16.mxu0 0
  %1956 = vmatpush1.bf16.msra.mxu0 0
  %1957 = vmatprep.subr.bf16.mxu0 0
  %1958 = vmatpush1.bf16.msra.mxu0 0
  %1959 = vmatprep.subr.bf16.mxu0 0
  %1960 = vmatpush1.bf16.msra.mxu0 0
  %1961 = vmatprep.subr.bf16.mxu0 0
  %1962 = vmatpush1.bf16.msra.mxu0 0
  %1963 = vmatprep.subr.bf16.mxu0 0
  %1964 = vmatpush1.bf16.msra.mxu0 0
  %1965 = vmatprep.mubr.bf16.mxu0 0
  %1966 = vmatmul.mubr.bf16.gmra.mrb[0].mxu0 %v1917
  %v1967 = vpop.f32.mrb[0].mxu0
  %v1968 = vadd.f32 0.0, %v1967
  %v1969 = vpop.f32.mrb[0].mxu0
  %v1970 = vadd.f32 0.0, %v1969
  %v1971 = vpop.f32.mrb[0].mxu0
  %v1972 = vadd.f32 0.0, %v1971
  %v1973 = vpop.f32.mrb[0].mxu0
  %v1974 = vadd.f32 0.0, %v1973
  %1975 = vmatprep.mubr.bf16.mxu0 0
  %1976 = vmatmul.mubr.bf16.gmra.mrb[0].mxu0 %v1918
  %v1977 = vpop.f32.mrb[0].mxu0
  %v1978 = vadd.f32 0.0, %v1977
  %v1979 = vpop.f32.mrb[0].mxu0
  %v1980 = vadd.f32 0.0, %v1979
  %v1981 = vpop.f32.mrb[0].mxu0
  %v1982 = vadd.f32 0.0, %v1981
  %v1983 = vpop.f32.mrb[0].mxu0
  %v1984 = vadd.f32 0.0, %v1983
  %1985 = vmatprep.mubr.bf16.mxu0 0
  %1986 = vmatmul.mubr.bf16.gmra.mrb[0].mxu0 %v1919
  %v1987 = vpop.f32.mrb[0].mxu0
  %v1988 = vadd.f32 0.0, %v1987
  %v1989 = vpop.f32.mrb[0].mxu0
  %v1990 = vadd.f32 0.0, %v1989
  %v1991 = vpop.f32.mrb[0].mxu0
  %v1992 = vadd.f32 0.0, %v1991
  %v1993 = vpop.f32.mrb[0].mxu0
  %v1994 = vadd.f32 0.0, %v1993
  %1995 = vmatprep.mubr.bf16.mxu0 0
  %1996 = vmatmul.mubr.bf16.gmra.mrb[0].mxu0 %v1920
  %v1997 = vpop.f32.mrb[0].mxu0
  %v1998 = vadd.f32 0.0, %v1997
  %v1999 = vpop.f32.mrb[0].mxu0
  %v2000 = vadd.f32 0.0, %v1999
  %v2001 = vpop.f32.mrb[0].mxu0
  %v2002 = vadd.f32 0.0, %v2001
  %v2003 = vpop.f32.mrb[0].mxu0
  %v2004 = vadd.f32 0.0, %v2003
  %2005 = vmatprep.mubr.bf16.mxu0 0
  %2006 = vmatmul.mubr.bf16.gmra.mrb[0].mxu0 %v1921
  %v2007 = vpop.f32.mrb[0].mxu0
  %v2008 = vadd.f32 0.0, %v2007
  %v2009 = vpop.f32.mrb[0].mxu0
  %v2010 = vadd.f32 0.0, %v2009
  %v2011 = vpop.f32.mrb[0].mxu0
  %v2012 = vadd.f32 0.0, %v2011
  %v2013 = vpop.f32.mrb[0].mxu0
  %v2014 = vadd.f32 0.0, %v2013
  %2015 = vmatprep.mubr.bf16.mxu0 0
  %2016 = vmatmul.mubr.bf16.gmra.mrb[0].mxu0 %v1922
  %v2017 = vpop.f32.mrb[0].mxu0
  %v2018 = vadd.f32 0.0, %v2017
  %v2019 = vpop.f32.mrb[0].mxu0
  %v2020 = vadd.f32 0.0, %v2019
  %v2021 = vpop.f32.mrb[0].mxu0
  %v2022 = vadd.f32 0.0, %v2021
  %v2023 = vpop.f32.mrb[0].mxu0
  %v2024 = vadd.f32 0.0, %v2023
  %2025 = vmatprep.mubr.bf16.mxu0 0
  %2026 = vmatmul.mubr.bf16.gmra.mrb[0].mxu0 %v1923
  %v2027 = vpop.f32.mrb[0].mxu0
  %v2028 = vadd.f32 0.0, %v2027
  %v2029 = vpop.f32.mrb[0].mxu0
  %v2030 = vadd.f32 0.0, %v2029
  %v2031 = vpop.f32.mrb[0].mxu0
  %v2032 = vadd.f32 0.0, %v2031
  %v2033 = vpop.f32.mrb[0].mxu0
  %v2034 = vadd.f32 0.0, %v2033
  %2035 = vmatprep.mubr.bf16.mxu0 0
  %2036 = vmatmul.mubr.bf16.gmra.mrb[0].mxu0 %v1924
  %v2037 = vpop.f32.mrb[0].mxu0
  %v2038 = vadd.f32 0.0, %v2037
  %v2039 = vpop.f32.mrb[0].mxu0
  %v2040 = vadd.f32 0.0, %v2039
  %v2041 = vpop.f32.mrb[0].mxu0
  %v2042 = vadd.f32 0.0, %v2041
  %v2043 = vpop.f32.mrb[0].mxu0
  %v2044 = vadd.f32 0.0, %v2043
  %2045 = vdwg.mxu0
  %2046 = vmatprep.subr.bf16.mxu0 %v1856
  %2047 = vmatpush1.bf16.msra.mxu0 %v1855
  %2048 = vmatprep.subr.bf16.mxu0 %v1860
  %2049 = vmatpush1.bf16.msra.mxu0 %v1859
  %2050 = vmatprep.subr.bf16.mxu0 %v1864
  %2051 = vmatpush1.bf16.msra.mxu0 %v1863
  %2052 = vmatprep.subr.bf16.mxu0 %v1868
  %2053 = vmatpush1.bf16.msra.mxu0 %v1867
  %2054 = vmatprep.subr.bf16.mxu0 %v1872
  %2055 = vmatpush1.bf16.msra.mxu0 %v1871
  %2056 = vmatprep.subr.bf16.mxu0 %v1876
  %2057 = vmatpush1.bf16.msra.mxu0 %v1875
  %2058 = vmatprep.subr.bf16.mxu0 %v1880
  %2059 = vmatpush1.bf16.msra.mxu0 %v1879
  %2060 = vmatprep.subr.bf16.mxu0 %v1884
  %2061 = vmatpush1.bf16.msra.mxu0 %v1883
  %2062 = vmatprep.subr.bf16.mxu0 0
  %2063 = vmatpush1.bf16.msra.mxu0 0
  %2064 = vmatprep.subr.bf16.mxu0 0
  %2065 = vmatpush1.bf16.msra.mxu0 0
  %2066 = vmatprep.subr.bf16.mxu0 0
  %2067 = vmatpush1.bf16.msra.mxu0 0
  %2068 = vmatprep.subr.bf16.mxu0 0
  %2069 = vmatpush1.bf16.msra.mxu0 0
  %2070 = vmatprep.subr.bf16.mxu0 0
  %2071 = vmatpush1.bf16.msra.mxu0 0
  %2072 = vmatprep.subr.bf16.mxu0 0
  %2073 = vmatpush1.bf16.msra.mxu0 0
  %2074 = vmatprep.subr.bf16.mxu0 0
  %2075 = vmatpush1.bf16.msra.mxu0 0
  %2076 = vmatprep.subr.bf16.mxu0 0
  %2077 = vmatpush1.bf16.msra.mxu0 0
  %2078 = vmatprep.mubr.bf16.mxu0 0
  %2079 = vmatmul.mubr.bf16.gmra.mrb[0].mxu0 %v1917
  %v2080 = vpop.f32.mrb[0].mxu0
  %v2081 = vadd.f32 0.0, %v2080
  %v2082 = vpop.f32.mrb[0].mxu0
  %v2083 = vadd.f32 0.0, %v2082
  %v2084 = vpop.f32.mrb[0].mxu0
  %v2085 = vadd.f32 0.0, %v2084
  %v2086 = vpop.f32.mrb[0].mxu0
  %v2087 = vadd.f32 0.0, %v2086
  %2088 = vmatprep.mubr.bf16.mxu0 0
  %2089 = vmatmul.mubr.bf16.gmra.mrb[0].mxu0 %v1918
  %v2090 = vpop.f32.mrb[0].mxu0
  %v2091 = vadd.f32 0.0, %v2090
  %v2092 = vpop.f32.mrb[0].mxu0
  %v2093 = vadd.f32 0.0, %v2092
  %v2094 = vpop.f32.mrb[0].mxu0
  %v2095 = vadd.f32 0.0, %v2094
  %v2096 = vpop.f32.mrb[0].mxu0
  %v2097 = vadd.f32 0.0, %v2096
  %2098 = vmatprep.mubr.bf16.mxu0 0
  %2099 = vmatmul.mubr.bf16.gmra.mrb[0].mxu0 %v1919
  %v2100 = vpop.f32.mrb[0].mxu0
  %v2101 = vadd.f32 0.0, %v2100
  %v2102 = vpop.f32.mrb[0].mxu0
  %v2103 = vadd.f32 0.0, %v2102
  %v2104 = vpop.f32.mrb[0].mxu0
  %v2105 = vadd.f32 0.0, %v2104
  %v2106 = vpop.f32.mrb[0].mxu0
  %v2107 = vadd.f32 0.0, %v2106
  %2108 = vmatprep.mubr.bf16.mxu0 0
  %2109 = vmatmul.mubr.bf16.gmra.mrb[0].mxu0 %v1920
  %v2110 = vpop.f32.mrb[0].mxu0
  %v2111 = vadd.f32 0.0, %v2110
  %v2112 = vpop.f32.mrb[0].mxu0
  %v2113 = vadd.f32 0.0, %v2112
  %v2114 = vpop.f32.mrb[0].mxu0
  %v2115 = vadd.f32 0.0, %v2114
  %v2116 = vpop.f32.mrb[0].mxu0
  %v2117 = vadd.f32 0.0, %v2116
  %2118 = vmatprep.mubr.bf16.mxu0 0
  %2119 = vmatmul.mubr.bf16.gmra.mrb[0].mxu0 %v1921
  %v2120 = vpop.f32.mrb[0].mxu0
  %v2121 = vadd.f32 0.0, %v2120
  %v2122 = vpop.f32.mrb[0].mxu0
  %v2123 = vadd.f32 0.0, %v2122
  %v2124 = vpop.f32.mrb[0].mxu0
  %v2125 = vadd.f32 0.0, %v2124
  %v2126 = vpop.f32.mrb[0].mxu0
  %v2127 = vadd.f32 0.0, %v2126
  %2128 = vmatprep.mubr.bf16.mxu0 0
  %2129 = vmatmul.mubr.bf16.gmra.mrb[0].mxu0 %v1922
  %v2130 = vpop.f32.mrb[0].mxu0
  %v2131 = vadd.f32 0.0, %v2130
  %v2132 = vpop.f32.mrb[0].mxu0
  %v2133 = vadd.f32 0.0, %v2132
  %v2134 = vpop.f32.mrb[0].mxu0
  %v2135 = vadd.f32 0.0, %v2134
  %v2136 = vpop.f32.mrb[0].mxu0
  %v2137 = vadd.f32 0.0, %v2136
  %2138 = vmatprep.mubr.bf16.mxu0 0
  %2139 = vmatmul.mubr.bf16.gmra.mrb[0].mxu0 %v1923
  %v2140 = vpop.f32.mrb[0].mxu0
  %v2141 = vadd.f32 0.0, %v2140
  %v2142 = vpop.f32.mrb[0].mxu0
  %v2143 = vadd.f32 0.0, %v2142
  %v2144 = vpop.f32.mrb[0].mxu0
  %v2145 = vadd.f32 0.0, %v2144
  %v2146 = vpop.f32.mrb[0].mxu0
  %v2147 = vadd.f32 0.0, %v2146
  %2148 = vmatprep.mubr.bf16.mxu0 0
  %2149 = vmatmul.mubr.bf16.gmra.mrb[0].mxu0 %v1924
  %v2150 = vpop.f32.mrb[0].mxu0
  %v2151 = vadd.f32 0.0, %v2150
  %v2152 = vpop.f32.mrb[0].mxu0
  %v2153 = vadd.f32 0.0, %v2152
  %v2154 = vpop.f32.mrb[0].mxu0
  %v2155 = vadd.f32 0.0, %v2154
  %v2156 = vpop.f32.mrb[0].mxu0
  %v2157 = vadd.f32 0.0, %v2156
  %2158 = vdwg.mxu0
  %v2159 = vsub.f32 %v1968, %v2081
  %v2160 = vsub.f32 %v1970, %v2083
  %v2161 = vsub.f32 %v1972, %v2085
  %v2162 = vsub.f32 %v1974, %v2087
  %v2163 = vsub.f32 %v1978, %v2091
  %v2164 = vsub.f32 %v1980, %v2093
  %v2165 = vsub.f32 %v1982, %v2095
  %v2166 = vsub.f32 %v1984, %v2097
  %v2167 = vsub.f32 %v1988, %v2101
  %v2168 = vsub.f32 %v1990, %v2103
  %v2169 = vsub.f32 %v1992, %v2105
  %v2170 = vsub.f32 %v1994, %v2107
  %v2171 = vsub.f32 %v1998, %v2111
  %v2172 = vsub.f32 %v2000, %v2113
  %v2173 = vsub.f32 %v2002, %v2115
  %v2174 = vsub.f32 %v2004, %v2117
  %v2175 = vsub.f32 %v2008, %v2121
  %v2176 = vsub.f32 %v2010, %v2123
  %v2177 = vsub.f32 %v2012, %v2125
  %v2178 = vsub.f32 %v2014, %v2127
  %v2179 = vsub.f32 %v2018, %v2131
  %v2180 = vsub.f32 %v2020, %v2133
  %v2181 = vsub.f32 %v2022, %v2135
  %v2182 = vsub.f32 %v2024, %v2137
  %v2183 = vsub.f32 %v2028, %v2141
  %v2184 = vsub.f32 %v2030, %v2143
  %v2185 = vsub.f32 %v2032, %v2145
  %v2186 = vsub.f32 %v2034, %v2147
  %v2187 = vsub.f32 %v2038, %v2151
  %v2188 = vsub.f32 %v2040, %v2153
  %v2189 = vsub.f32 %v2042, %v2155
  %v2190 = vsub.f32 %v2044, %v2157
  %v2191 = vsub.f32 0.0, %v2159
  %v2192 = vsub.f32 0.0, %v2160
  %v2193 = vsub.f32 0.0, %v2161
  %v2194 = vsub.f32 0.0, %v2162
  %v2195 = vsub.f32 0.0, %v2163
  %v2196 = vsub.f32 0.0, %v2164
  %v2197 = vsub.f32 0.0, %v2165
  %v2198 = vsub.f32 0.0, %v2166
  %v2199 = vsub.f32 0.0, %v2167
  %v2200 = vsub.f32 0.0, %v2168
  %v2201 = vsub.f32 0.0, %v2169
  %v2202 = vsub.f32 0.0, %v2170
  %v2203 = vsub.f32 0.0, %v2171
  %v2204 = vsub.f32 0.0, %v2172
  %v2205 = vsub.f32 0.0, %v2173
  %v2206 = vsub.f32 0.0, %v2174
  %v2207 = vsub.f32 0.0, %v2175
  %v2208 = vsub.f32 0.0, %v2176
  %v2209 = vsub.f32 0.0, %v2177
  %v2210 = vsub.f32 0.0, %v2178
  %v2211 = vsub.f32 0.0, %v2179
  %v2212 = vsub.f32 0.0, %v2180
  %v2213 = vsub.f32 0.0, %v2181
  %v2214 = vsub.f32 0.0, %v2182
  %v2215 = vsub.f32 0.0, %v2183
  %v2216 = vsub.f32 0.0, %v2184
  %v2217 = vsub.f32 0.0, %v2185
  %v2218 = vsub.f32 0.0, %v2186
  %v2219 = vsub.f32 0.0, %v2187
  %v2220 = vsub.f32 0.0, %v2188
  %v2221 = vsub.f32 0.0, %v2189
  %v2222 = vsub.f32 0.0, %v2190
  %v2223 = vmul.f32 %v2191, 1.442695
  %v2224 = vpow.pop %v2223
  %v2225 = vmul.f32 %v2192, 1.442695
  %v2226 = vpow.pop %v2225
  %v2227 = vmul.f32 %v2193, 1.442695
  %v2228 = vpow.pop %v2227
  %v2229 = vmul.f32 %v2194, 1.442695
  %v2230 = vpow.pop %v2229
  %v2231 = vmul.f32 %v2195, 1.442695
  %v2232 = vpow.pop %v2231
  %v2233 = vmul.f32 %v2196, 1.442695
  %v2234 = vpow.pop %v2233
  %v2235 = vmul.f32 %v2197, 1.442695
  %v2236 = vpow.pop %v2235
  %v2237 = vmul.f32 %v2198, 1.442695
  %v2238 = vpow.pop %v2237
  %v2239 = vmul.f32 %v2199, 1.442695
  %v2240 = vpow.pop %v2239
  %v2241 = vmul.f32 %v2200, 1.442695
  %v2242 = vpow.pop %v2241
  %v2243 = vmul.f32 %v2201, 1.442695
  %v2244 = vpow.pop %v2243
  %v2245 = vmul.f32 %v2202, 1.442695
  %v2246 = vpow.pop %v2245
  %v2247 = vmul.f32 %v2203, 1.442695
  %v2248 = vpow.pop %v2247
  %v2249 = vmul.f32 %v2204, 1.442695
  %v2250 = vpow.pop %v2249
  %v2251 = vmul.f32 %v2205, 1.442695
  %v2252 = vpow.pop %v2251
  %v2253 = vmul.f32 %v2206, 1.442695
  %v2254 = vpow.pop %v2253
  %v2255 = vmul.f32 %v2207, 1.442695
  %v2256 = vpow.pop %v2255
  %v2257 = vmul.f32 %v2208, 1.442695
  %v2258 = vpow.pop %v2257
  %v2259 = vmul.f32 %v2209, 1.442695
  %v2260 = vpow.pop %v2259
  %v2261 = vmul.f32 %v2210, 1.442695
  %v2262 = vpow.pop %v2261
  %v2263 = vmul.f32 %v2211, 1.442695
  %v2264 = vpow.pop %v2263
  %v2265 = vmul.f32 %v2212, 1.442695
  %v2266 = vpow.pop %v2265
  %v2267 = vmul.f32 %v2213, 1.442695
  %v2268 = vpow.pop %v2267
  %v2269 = vmul.f32 %v2214, 1.442695
  %v2270 = vpow.pop %v2269
  %v2271 = vmul.f32 %v2215, 1.442695
  %v2272 = vpow.pop %v2271
  %v2273 = vmul.f32 %v2216, 1.442695
  %v2274 = vpow.pop %v2273
  %v2275 = vmul.f32 %v2217, 1.442695
  %v2276 = vpow.pop %v2275
  %v2277 = vmul.f32 %v2218, 1.442695
  %v2278 = vpow.pop %v2277
  %v2279 = vmul.f32 %v2219, 1.442695
  %v2280 = vpow.pop %v2279
  %v2281 = vmul.f32 %v2220, 1.442695
  %v2282 = vpow.pop %v2281
  %v2283 = vmul.f32 %v2221, 1.442695
  %v2284 = vpow.pop %v2283
  %v2285 = vmul.f32 %v2222, 1.442695
  %v2286 = vpow.pop %v2285
  %v2287 = vadd.f32 %v2224, 1.0
  %v2288 = vadd.f32 %v2226, 1.0
  %v2289 = vadd.f32 %v2228, 1.0
  %v2290 = vadd.f32 %v2230, 1.0
  %v2291 = vadd.f32 %v2232, 1.0
  %v2292 = vadd.f32 %v2234, 1.0
  %v2293 = vadd.f32 %v2236, 1.0
  %v2294 = vadd.f32 %v2238, 1.0
  %v2295 = vadd.f32 %v2240, 1.0
  %v2296 = vadd.f32 %v2242, 1.0
  %v2297 = vadd.f32 %v2244, 1.0
  %v2298 = vadd.f32 %v2246, 1.0
  %v2299 = vadd.f32 %v2248, 1.0
  %v2300 = vadd.f32 %v2250, 1.0
  %v2301 = vadd.f32 %v2252, 1.0
  %v2302 = vadd.f32 %v2254, 1.0
  %v2303 = vadd.f32 %v2256, 1.0
  %v2304 = vadd.f32 %v2258, 1.0
  %v2305 = vadd.f32 %v2260, 1.0
  %v2306 = vadd.f32 %v2262, 1.0
  %v2307 = vadd.f32 %v2264, 1.0
  %v2308 = vadd.f32 %v2266, 1.0
  %v2309 = vadd.f32 %v2268, 1.0
  %v2310 = vadd.f32 %v2270, 1.0
  %v2311 = vadd.f32 %v2272, 1.0
  %v2312 = vadd.f32 %v2274, 1.0
  %v2313 = vadd.f32 %v2276, 1.0
  %v2314 = vadd.f32 %v2278, 1.0
  %v2315 = vadd.f32 %v2280, 1.0
  %v2316 = vadd.f32 %v2282, 1.0
  %v2317 = vadd.f32 %v2284, 1.0
  %v2318 = vadd.f32 %v2286, 1.0
  %v2319 = vrcp.pop %v2287
  %v2320 = vrcp.pop %v2288
  %v2321 = vrcp.pop %v2289
  %v2322 = vrcp.pop %v2290
  %v2323 = vrcp.pop %v2291
  %v2324 = vrcp.pop %v2292
  %v2325 = vrcp.pop %v2293
  %v2326 = vrcp.pop %v2294
  %v2327 = vrcp.pop %v2295
  %v2328 = vrcp.pop %v2296
  %v2329 = vrcp.pop %v2297
  %v2330 = vrcp.pop %v2298
  %v2331 = vrcp.pop %v2299
  %v2332 = vrcp.pop %v2300
  %v2333 = vrcp.pop %v2301
  %v2334 = vrcp.pop %v2302
  %v2335 = vrcp.pop %v2303
  %v2336 = vrcp.pop %v2304
  %v2337 = vrcp.pop %v2305
  %v2338 = vrcp.pop %v2306
  %v2339 = vrcp.pop %v2307
  %v2340 = vrcp.pop %v2308
  %v2341 = vrcp.pop %v2309
  %v2342 = vrcp.pop %v2310
  %v2343 = vrcp.pop %v2311
  %v2344 = vrcp.pop %v2312
  %v2345 = vrcp.pop %v2313
  %v2346 = vrcp.pop %v2314
  %v2347 = vrcp.pop %v2315
  %v2348 = vrcp.pop %v2316
  %v2349 = vrcp.pop %v2317
  %v2350 = vrcp.pop %v2318
  %v2351 = vmul.f32 %v2319, %v1558
  %v2352 = vmul.f32 %v2320, %v1560
  %v2353 = vmul.f32 %v2321, %v1562
  %v2354 = vmul.f32 %v2322, %v1564
  %v2355 = vmul.f32 %v2323, %v1568
  %v2356 = vmul.f32 %v2324, %v1570
  %v2357 = vmul.f32 %v2325, %v1572
  %v2358 = vmul.f32 %v2326, %v1574
  %v2359 = vmul.f32 %v2327, %v1578
  %v2360 = vmul.f32 %v2328, %v1580
  %v2361 = vmul.f32 %v2329, %v1582
  %v2362 = vmul.f32 %v2330, %v1584
  %v2363 = vmul.f32 %v2331, %v1588
  %v2364 = vmul.f32 %v2332, %v1590
  %v2365 = vmul.f32 %v2333, %v1592
  %v2366 = vmul.f32 %v2334, %v1594
  %v2367 = vsub.f32 1.0, %v2319
  %v2368 = vsub.f32 1.0, %v2320
  %v2369 = vsub.f32 1.0, %v2321
  %v2370 = vsub.f32 1.0, %v2322
  %v2371 = vsub.f32 1.0, %v2323
  %v2372 = vsub.f32 1.0, %v2324
  %v2373 = vsub.f32 1.0, %v2325
  %v2374 = vsub.f32 1.0, %v2326
  %v2375 = vsub.f32 1.0, %v2327
  %v2376 = vsub.f32 1.0, %v2328
  %v2377 = vsub.f32 1.0, %v2329
  %v2378 = vsub.f32 1.0, %v2330
  %v2379 = vsub.f32 1.0, %v2331
  %v2380 = vsub.f32 1.0, %v2332
  %v2381 = vsub.f32 1.0, %v2333
  %v2382 = vsub.f32 1.0, %v2334
  %v2383 = vmul.f32 %v2367, %v1751
  %v2384 = vmul.f32 %v2368, %v1753
  %v2385 = vmul.f32 %v2369, %v1755
  %v2386 = vmul.f32 %v2370, %v1757
  %v2387 = vmul.f32 %v2371, %v1761
  %v2388 = vmul.f32 %v2372, %v1763
  %v2389 = vmul.f32 %v2373, %v1765
  %v2390 = vmul.f32 %v2374, %v1767
  %v2391 = vmul.f32 %v2375, %v1771
  %v2392 = vmul.f32 %v2376, %v1773
  %v2393 = vmul.f32 %v2377, %v1775
  %v2394 = vmul.f32 %v2378, %v1777
  %v2395 = vmul.f32 %v2379, %v1781
  %v2396 = vmul.f32 %v2380, %v1783
  %v2397 = vmul.f32 %v2381, %v1785
  %v2398 = vmul.f32 %v2382, %v1787
  %v2399 = vadd.f32 %v2351, %v2383
  %v2400 = vadd.f32 %v2352, %v2384
  %v2401 = vadd.f32 %v2353, %v2385
  %v2402 = vadd.f32 %v2354, %v2386
  %v2403 = vadd.f32 %v2355, %v2387
  %v2404 = vadd.f32 %v2356, %v2388
  %v2405 = vadd.f32 %v2357, %v2389
  %v2406 = vadd.f32 %v2358, %v2390
  %v2407 = vadd.f32 %v2359, %v2391
  %v2408 = vadd.f32 %v2360, %v2392
  %v2409 = vadd.f32 %v2361, %v2393
  %v2410 = vadd.f32 %v2362, %v2394
  %v2411 = vadd.f32 %v2363, %v2395
  %v2412 = vadd.f32 %v2364, %v2396
  %v2413 = vadd.f32 %v2365, %v2397
  %v2414 = vadd.f32 %v2366, %v2398
  %v2415 = vmul.f32 %v2335, %v1558
  %v2416 = vmul.f32 %v2336, %v1560
  %v2417 = vmul.f32 %v2337, %v1562
  %v2418 = vmul.f32 %v2338, %v1564
  %v2419 = vmul.f32 %v2339, %v1568
  %v2420 = vmul.f32 %v2340, %v1570
  %v2421 = vmul.f32 %v2341, %v1572
  %v2422 = vmul.f32 %v2342, %v1574
  %v2423 = vmul.f32 %v2343, %v1578
  %v2424 = vmul.f32 %v2344, %v1580
  %v2425 = vmul.f32 %v2345, %v1582
  %v2426 = vmul.f32 %v2346, %v1584
  %v2427 = vmul.f32 %v2347, %v1588
  %v2428 = vmul.f32 %v2348, %v1590
  %v2429 = vmul.f32 %v2349, %v1592
  %v2430 = vmul.f32 %v2350, %v1594
  %v2431 = vsub.f32 1.0, %v2335
  %v2432 = vsub.f32 1.0, %v2336
  %v2433 = vsub.f32 1.0, %v2337
  %v2434 = vsub.f32 1.0, %v2338
  %v2435 = vsub.f32 1.0, %v2339
  %v2436 = vsub.f32 1.0, %v2340
  %v2437 = vsub.f32 1.0, %v2341
  %v2438 = vsub.f32 1.0, %v2342
  %v2439 = vsub.f32 1.0, %v2343
  %v2440 = vsub.f32 1.0, %v2344
  %v2441 = vsub.f32 1.0, %v2345
  %v2442 = vsub.f32 1.0, %v2346
  %v2443 = vsub.f32 1.0, %v2347
  %v2444 = vsub.f32 1.0, %v2348
  %v2445 = vsub.f32 1.0, %v2349
  %v2446 = vsub.f32 1.0, %v2350
  %v2447 = vmul.f32 %v2431, %v1751
  %v2448 = vmul.f32 %v2432, %v1753
  %v2449 = vmul.f32 %v2433, %v1755
  %v2450 = vmul.f32 %v2434, %v1757
  %v2451 = vmul.f32 %v2435, %v1761
  %v2452 = vmul.f32 %v2436, %v1763
  %v2453 = vmul.f32 %v2437, %v1765
  %v2454 = vmul.f32 %v2438, %v1767
  %v2455 = vmul.f32 %v2439, %v1771
  %v2456 = vmul.f32 %v2440, %v1773
  %v2457 = vmul.f32 %v2441, %v1775
  %v2458 = vmul.f32 %v2442, %v1777
  %v2459 = vmul.f32 %v2443, %v1781
  %v2460 = vmul.f32 %v2444, %v1783
  %v2461 = vmul.f32 %v2445, %v1785
  %v2462 = vmul.f32 %v2446, %v1787
  %v2463 = vadd.f32 %v2415, %v2447
  %v2464 = vadd.f32 %v2416, %v2448
  %v2465 = vadd.f32 %v2417, %v2449
  %v2466 = vadd.f32 %v2418, %v2450
  %v2467 = vadd.f32 %v2419, %v2451
  %v2468 = vadd.f32 %v2420, %v2452
  %v2469 = vadd.f32 %v2421, %v2453
  %v2470 = vadd.f32 %v2422, %v2454
  %v2471 = vadd.f32 %v2423, %v2455
  %v2472 = vadd.f32 %v2424, %v2456
  %v2473 = vadd.f32 %v2425, %v2457
  %v2474 = vadd.f32 %v2426, %v2458
  %v2475 = vadd.f32 %v2427, %v2459
  %v2476 = vadd.f32 %v2428, %v2460
  %v2477 = vadd.f32 %v2429, %v2461
  %v2478 = vadd.f32 %v2430, %v2462
  %v2479 = vpack.c.bf16 %v2401, %v2399
  %v2480 = vpack.c.bf16 %v2402, %v2400
  %v2481 = vpack.c.bf16 %v2465, %v2463
  %v2482 = vpack.c.bf16 %v2466, %v2464
  %v2483 = vpack.c.bf16 %v2405, %v2403
  %v2484 = vpack.c.bf16 %v2406, %v2404
  %v2485 = vpack.c.bf16 %v2469, %v2467
  %v2486 = vpack.c.bf16 %v2470, %v2468
  %v2487 = vpack.c.bf16 %v2409, %v2407
  %v2488 = vpack.c.bf16 %v2410, %v2408
  %v2489 = vpack.c.bf16 %v2473, %v2471
  %v2490 = vpack.c.bf16 %v2474, %v2472
  %v2491 = vpack.c.bf16 %v2413, %v2411
  %v2492 = vpack.c.bf16 %v2414, %v2412
  %v2493 = vpack.c.bf16 %v2477, %v2475
  %v2494 = vpack.c.bf16 %v2478, %v2476
  %2496 = vset.pattern.permute.xlu0 0
  %2497 = vperm.xlu0 %2496, %v1090
  %v2498 = vpop.permute.xlu0 %2497
  %2501 = vset.pattern.permute.xlu0 0
  %2502 = vperm.xlu0 %2501, %v1091
  %v2503 = vpop.permute.xlu0 %2502
  %2506 = vset.pattern.permute.xlu0 0
  %2507 = vperm.xlu0 %2506, %v1092
  %v2508 = vpop.permute.xlu0 %2507
  %2511 = vset.pattern.permute.xlu0 0
  %2512 = vperm.xlu0 %2511, %v1093
  %v2513 = vpop.permute.xlu0 %2512
  %2516 = vset.pattern.permute.xlu0 0
  %2517 = vperm.xlu0 %2516, %v1094
  %v2518 = vpop.permute.xlu0 %2517
  %2521 = vset.pattern.permute.xlu0 0
  %2522 = vperm.xlu0 %2521, %v1095
  %v2523 = vpop.permute.xlu0 %2522
  %2526 = vset.pattern.permute.xlu0 0
  %2527 = vperm.xlu0 %2526, %v1096
  %v2528 = vpop.permute.xlu0 %2527
  %2531 = vset.pattern.permute.xlu0 0
  %2532 = vperm.xlu0 %2531, %v1097
  %v2533 = vpop.permute.xlu0 %2532
  %v2543 = vunpack.c.l.b16 %v1082
  %v2544 = vunpack.c.l.b16 %v1083
  %v2545 = vunpack.c.l.b16 %v1084
  %v2546 = vunpack.c.l.b16 %v1085
  %v2547 = vunpack.c.l.b16 %v1086
  %v2548 = vunpack.c.l.b16 %v1087
  %v2549 = vunpack.c.l.b16 %v1088
  %v2550 = vunpack.c.l.b16 %v1089
  %v2551 = vpack.c.b16 %v2544, %v2543
  %v2552 = vpack.c.b16 %v2546, %v2545
  %v2553 = vpack.c.b16 %v2548, %v2547
  %v2554 = vpack.c.b16 %v2550, %v2549
  %v2556 = vsel %vm1354, %v2551, 0
  %v2559 = vsel %vm1354, %v2552, 0
  %v2562 = vsel %vm1354, %v2553, 0
  %v2565 = vsel %vm1354, %v2554, 0
  %2567 = vmatprep.subr.bf16.mxu0 %v2480
  %2568 = vmatpush1.bf16.msra.mxu0 %v2479
  %2569 = vmatprep.subr.bf16.mxu0 %v2484
  %2570 = vmatpush1.bf16.msra.mxu0 %v2483
  %2571 = vmatprep.subr.bf16.mxu0 %v2488
  %2572 = vmatpush1.bf16.msra.mxu0 %v2487
  %2573 = vmatprep.subr.bf16.mxu0 %v2492
  %2574 = vmatpush1.bf16.msra.mxu0 %v2491
  %2575 = vmatprep.subr.bf16.mxu0 0
  %2576 = vmatpush1.bf16.msra.mxu0 0
  %2577 = vmatprep.subr.bf16.mxu0 0
  %2578 = vmatpush1.bf16.msra.mxu0 0
  %2579 = vmatprep.subr.bf16.mxu0 0
  %2580 = vmatpush1.bf16.msra.mxu0 0
  %2581 = vmatprep.subr.bf16.mxu0 0
  %2582 = vmatpush1.bf16.msra.mxu0 0
  %2583 = vmatprep.subr.bf16.mxu0 0
  %2584 = vmatpush1.bf16.msra.mxu0 0
  %2585 = vmatprep.subr.bf16.mxu0 0
  %2586 = vmatpush1.bf16.msra.mxu0 0
  %2587 = vmatprep.subr.bf16.mxu0 0
  %2588 = vmatpush1.bf16.msra.mxu0 0
  %2589 = vmatprep.subr.bf16.mxu0 0
  %2590 = vmatpush1.bf16.msra.mxu0 0
  %2591 = vmatprep.subr.bf16.mxu0 0
  %2592 = vmatpush1.bf16.msra.mxu0 0
  %2593 = vmatprep.subr.bf16.mxu0 0
  %2594 = vmatpush1.bf16.msra.mxu0 0
  %2595 = vmatprep.subr.bf16.mxu0 0
  %2596 = vmatpush1.bf16.msra.mxu0 0
  %2597 = vmatprep.subr.bf16.mxu0 0
  %2598 = vmatpush1.bf16.msra.mxu0 0
  %2599 = vmatprep.mubr.bf16.mxu0 0
  %2600 = vmatmul.mubr.bf16.gmra.mrb[0].mxu0 %v2556
  %v2601 = vpop.f32.mrb[0].mxu0
  %v2602 = vadd.f32 %v2498, %v2601
  %v2603 = vpop.f32.mrb[0].mxu0
  %v2604 = vadd.f32 %v2498, %v2603
  %v2605 = vpop.f32.mrb[0].mxu0
  %v2606 = vadd.f32 %v2503, %v2605
  %v2607 = vpop.f32.mrb[0].mxu0
  %v2608 = vadd.f32 %v2503, %v2607
  %2609 = vmatprep.mubr.bf16.mxu0 0
  %2610 = vmatmul.mubr.bf16.gmra.mrb[0].mxu0 %v2559
  %v2611 = vpop.f32.mrb[0].mxu0
  %v2612 = vadd.f32 %v2508, %v2611
  %v2613 = vpop.f32.mrb[0].mxu0
  %v2614 = vadd.f32 %v2508, %v2613
  %v2615 = vpop.f32.mrb[0].mxu0
  %v2616 = vadd.f32 %v2513, %v2615
  %v2617 = vpop.f32.mrb[0].mxu0
  %v2618 = vadd.f32 %v2513, %v2617
  %2619 = vmatprep.mubr.bf16.mxu0 0
  %2620 = vmatmul.mubr.bf16.gmra.mrb[0].mxu0 %v2562
  %v2621 = vpop.f32.mrb[0].mxu0
  %v2622 = vadd.f32 %v2518, %v2621
  %v2623 = vpop.f32.mrb[0].mxu0
  %v2624 = vadd.f32 %v2518, %v2623
  %v2625 = vpop.f32.mrb[0].mxu0
  %v2626 = vadd.f32 %v2523, %v2625
  %v2627 = vpop.f32.mrb[0].mxu0
  %v2628 = vadd.f32 %v2523, %v2627
  %2629 = vmatprep.mubr.bf16.mxu0 0
  %2630 = vmatmul.mubr.bf16.gmra.mrb[0].mxu0 %v2565
  %v2631 = vpop.f32.mrb[0].mxu0
  %v2632 = vadd.f32 %v2528, %v2631
  %v2633 = vpop.f32.mrb[0].mxu0
  %v2634 = vadd.f32 %v2528, %v2633
  %v2635 = vpop.f32.mrb[0].mxu0
  %v2636 = vadd.f32 %v2533, %v2635
  %v2637 = vpop.f32.mrb[0].mxu0
  %v2638 = vadd.f32 %v2533, %v2637
  %2639 = vdwg.mxu0
  %2640 = vmatprep.subr.bf16.mxu0 %v2482
  %2641 = vmatpush1.bf16.msra.mxu0 %v2481
  %2642 = vmatprep.subr.bf16.mxu0 %v2486
  %2643 = vmatpush1.bf16.msra.mxu0 %v2485
  %2644 = vmatprep.subr.bf16.mxu0 %v2490
  %2645 = vmatpush1.bf16.msra.mxu0 %v2489
  %2646 = vmatprep.subr.bf16.mxu0 %v2494
  %2647 = vmatpush1.bf16.msra.mxu0 %v2493
  %2648 = vmatprep.subr.bf16.mxu0 0
  %2649 = vmatpush1.bf16.msra.mxu0 0
  %2650 = vmatprep.subr.bf16.mxu0 0
  %2651 = vmatpush1.bf16.msra.mxu0 0
  %2652 = vmatprep.subr.bf16.mxu0 0
  %2653 = vmatpush1.bf16.msra.mxu0 0
  %2654 = vmatprep.subr.bf16.mxu0 0
  %2655 = vmatpush1.bf16.msra.mxu0 0
  %2656 = vmatprep.subr.bf16.mxu0 0
  %2657 = vmatpush1.bf16.msra.mxu0 0
  %2658 = vmatprep.subr.bf16.mxu0 0
  %2659 = vmatpush1.bf16.msra.mxu0 0
  %2660 = vmatprep.subr.bf16.mxu0 0
  %2661 = vmatpush1.bf16.msra.mxu0 0
  %2662 = vmatprep.subr.bf16.mxu0 0
  %2663 = vmatpush1.bf16.msra.mxu0 0
  %2664 = vmatprep.subr.bf16.mxu0 0
  %2665 = vmatpush1.bf16.msra.mxu0 0
  %2666 = vmatprep.subr.bf16.mxu0 0
  %2667 = vmatpush1.bf16.msra.mxu0 0
  %2668 = vmatprep.subr.bf16.mxu0 0
  %2669 = vmatpush1.bf16.msra.mxu0 0
  %2670 = vmatprep.subr.bf16.mxu0 0
  %2671 = vmatpush1.bf16.msra.mxu0 0
  %2672 = vmatprep.mubr.bf16.mxu0 0
  %2673 = vmatmul.mubr.bf16.gmra.mrb[0].mxu0 %v2556
  %v2674 = vpop.f32.mrb[0].mxu0
  %v2675 = vadd.f32 %v2498, %v2674
  %v2676 = vpop.f32.mrb[0].mxu0
  %v2677 = vadd.f32 %v2498, %v2676
  %v2678 = vpop.f32.mrb[0].mxu0
  %v2679 = vadd.f32 %v2503, %v2678
  %v2680 = vpop.f32.mrb[0].mxu0
  %v2681 = vadd.f32 %v2503, %v2680
  %2682 = vmatprep.mubr.bf16.mxu0 0
  %2683 = vmatmul.mubr.bf16.gmra.mrb[0].mxu0 %v2559
  %v2684 = vpop.f32.mrb[0].mxu0
  %v2685 = vadd.f32 %v2508, %v2684
  %v2686 = vpop.f32.mrb[0].mxu0
  %v2687 = vadd.f32 %v2508, %v2686
  %v2688 = vpop.f32.mrb[0].mxu0
  %v2689 = vadd.f32 %v2513, %v2688
  %v2690 = vpop.f32.mrb[0].mxu0
  %v2691 = vadd.f32 %v2513, %v2690
  %2692 = vmatprep.mubr.bf16.mxu0 0
  %2693 = vmatmul.mubr.bf16.gmra.mrb[0].mxu0 %v2562
  %v2694 = vpop.f32.mrb[0].mxu0
  %v2695 = vadd.f32 %v2518, %v2694
  %v2696 = vpop.f32.mrb[0].mxu0
  %v2697 = vadd.f32 %v2518, %v2696
  %v2698 = vpop.f32.mrb[0].mxu0
  %v2699 = vadd.f32 %v2523, %v2698
  %v2700 = vpop.f32.mrb[0].mxu0
  %v2701 = vadd.f32 %v2523, %v2700
  %2702 = vmatprep.mubr.bf16.mxu0 0
  %2703 = vmatmul.mubr.bf16.gmra.mrb[0].mxu0 %v2565
  %v2704 = vpop.f32.mrb[0].mxu0
  %v2705 = vadd.f32 %v2528, %v2704
  %v2706 = vpop.f32.mrb[0].mxu0
  %v2707 = vadd.f32 %v2528, %v2706
  %v2708 = vpop.f32.mrb[0].mxu0
  %v2709 = vadd.f32 %v2533, %v2708
  %v2710 = vpop.f32.mrb[0].mxu0
  %v2711 = vadd.f32 %v2533, %v2710
  %2712 = vdwg.mxu0
  %v2713 = vadd.f32 %v2602, %v1438
  %v2714 = vadd.f32 %v2604, %v1440
  %v2715 = vadd.f32 %v2675, %v1631
  %v2716 = vadd.f32 %v2677, %v1633
  %v2717 = vadd.f32 %v2606, %v1442
  %v2718 = vadd.f32 %v2608, %v1444
  %v2719 = vadd.f32 %v2679, %v1635
  %v2720 = vadd.f32 %v2681, %v1637
  %v2721 = vadd.f32 %v2612, %v1448
  %v2722 = vadd.f32 %v2614, %v1450
  %v2723 = vadd.f32 %v2685, %v1641
  %v2724 = vadd.f32 %v2687, %v1643
  %v2725 = vadd.f32 %v2616, %v1452
  %v2726 = vadd.f32 %v2618, %v1454
  %v2727 = vadd.f32 %v2689, %v1645
  %v2728 = vadd.f32 %v2691, %v1647
  %v2729 = vadd.f32 %v2622, %v1458
  %v2730 = vadd.f32 %v2624, %v1460
  %v2731 = vadd.f32 %v2695, %v1651
  %v2732 = vadd.f32 %v2697, %v1653
  %v2733 = vadd.f32 %v2626, %v1462
  %v2734 = vadd.f32 %v2628, %v1464
  %v2735 = vadd.f32 %v2699, %v1655
  %v2736 = vadd.f32 %v2701, %v1657
  %v2737 = vadd.f32 %v2632, %v1468
  %v2738 = vadd.f32 %v2634, %v1470
  %v2739 = vadd.f32 %v2705, %v1661
  %v2740 = vadd.f32 %v2707, %v1663
  %v2741 = vadd.f32 %v2636, %v1472
  %v2742 = vadd.f32 %v2638, %v1474
  %v2743 = vadd.f32 %v2709, %v1665
  %v2744 = vadd.f32 %v2711, %v1667
  %v2745 = vmax.f32 %v2713, 0.0
  %v2746 = vmax.f32 %v2714, 0.0
  %v2747 = vmax.f32 %v2715, 0.0
  %v2748 = vmax.f32 %v2716, 0.0
  %v2749 = vmax.f32 %v2717, 0.0
  %v2750 = vmax.f32 %v2718, 0.0
  %v2751 = vmax.f32 %v2719, 0.0
  %v2752 = vmax.f32 %v2720, 0.0
  %v2753 = vmax.f32 %v2721, 0.0
  %v2754 = vmax.f32 %v2722, 0.0
  %v2755 = vmax.f32 %v2723, 0.0
  %v2756 = vmax.f32 %v2724, 0.0
  %v2757 = vmax.f32 %v2725, 0.0
  %v2758 = vmax.f32 %v2726, 0.0
  %v2759 = vmax.f32 %v2727, 0.0
  %v2760 = vmax.f32 %v2728, 0.0
  %v2761 = vmax.f32 %v2729, 0.0
  %v2762 = vmax.f32 %v2730, 0.0
  %v2763 = vmax.f32 %v2731, 0.0
  %v2764 = vmax.f32 %v2732, 0.0
  %v2765 = vmax.f32 %v2733, 0.0
  %v2766 = vmax.f32 %v2734, 0.0
  %v2767 = vmax.f32 %v2735, 0.0
  %v2768 = vmax.f32 %v2736, 0.0
  %v2769 = vmax.f32 %v2737, 0.0
  %v2770 = vmax.f32 %v2738, 0.0
  %v2771 = vmax.f32 %v2739, 0.0
  %v2772 = vmax.f32 %v2740, 0.0
  %v2773 = vmax.f32 %v2741, 0.0
  %v2774 = vmax.f32 %v2742, 0.0
  %v2775 = vmax.f32 %v2743, 0.0
  %v2776 = vmax.f32 %v2744, 0.0
  %v2777 = vld [vmem:[%s8] sm:$0xf]
  %v2778 = vld [vmem:[%s8 + $0x4] sm:$0xf]
  %v2779 = vld [vmem:[%s8 + $0x8] sm:$0xf]
  %v2780 = vld [vmem:[%s8 + $0xc] sm:$0xf]
  %v2781 = vld [vmem:[%s8 + $0x10] sm:$0xf]
  %v2782 = vld [vmem:[%s8 + $0x14] sm:$0xf]
  %v2783 = vld [vmem:[%s8 + $0x18] sm:$0xf]
  %v2784 = vld [vmem:[%s8 + $0x1c] sm:$0xf]
  %v2785 = vld [vmem:[%s8 + $0x20] sm:$0xf]
  %v2786 = vld [vmem:[%s8 + $0x24] sm:$0xf]
  %v2787 = vld [vmem:[%s8 + $0x28] sm:$0xf]
  %v2788 = vld [vmem:[%s8 + $0x2c] sm:$0xf]
  %v2789 = vld [vmem:[%s8 + $0x30] sm:$0xf]
  %v2790 = vld [vmem:[%s8 + $0x34] sm:$0xf]
  %v2791 = vld [vmem:[%s8 + $0x38] sm:$0xf]
  %v2792 = vld [vmem:[%s8 + $0x3c] sm:$0xf]
  %v2793 = vld [vmem:[%s8 + $0x40] sm:$0xf]
  %v2794 = vld [vmem:[%s8 + $0x44] sm:$0xf]
  %v2795 = vld [vmem:[%s8 + $0x48] sm:$0xf]
  %v2796 = vld [vmem:[%s8 + $0x4c] sm:$0xf]
  %v2797 = vld [vmem:[%s8 + $0x50] sm:$0xf]
  %v2798 = vld [vmem:[%s8 + $0x54] sm:$0xf]
  %v2799 = vld [vmem:[%s8 + $0x58] sm:$0xf]
  %v2800 = vld [vmem:[%s8 + $0x5c] sm:$0xf]
  %v2801 = vld [vmem:[%s8 + $0x60] sm:$0xf]
  %v2802 = vld [vmem:[%s8 + $0x64] sm:$0xf]
  %v2803 = vld [vmem:[%s8 + $0x68] sm:$0xf]
  %v2804 = vld [vmem:[%s8 + $0x6c] sm:$0xf]
  %v2805 = vld [vmem:[%s8 + $0x70] sm:$0xf]
  %v2806 = vld [vmem:[%s8 + $0x74] sm:$0xf]
  %v2807 = vld [vmem:[%s8 + $0x78] sm:$0xf]
  %v2808 = vld [vmem:[%s8 + $0x7c] sm:$0xf]
  %v2809 = vld [vmem:[%s9] sm:$0xff]
  %v2810 = vld [vmem:[%s9 + $0x8] sm:$0xff]
  %v2811 = vld [vmem:[%s9 + $0x10] sm:$0xff]
  %v2812 = vld [vmem:[%s9 + $0x18] sm:$0xff]
  %v2813 = vld [vmem:[%s9 + $0x20] sm:$0xff]
  %v2814 = vld [vmem:[%s9 + $0x28] sm:$0xff]
  %v2815 = vld [vmem:[%s9 + $0x30] sm:$0xff]
  %v2816 = vld [vmem:[%s9 + $0x38] sm:$0xff]
  %v2817 = vld [vmem:[%s9 + $0x40] sm:$0xff]
  %v2818 = vld [vmem:[%s9 + $0x48] sm:$0xff]
  %v2819 = vld [vmem:[%s9 + $0x50] sm:$0xff]
  %v2820 = vld [vmem:[%s9 + $0x58] sm:$0xff]
  %v2821 = vld [vmem:[%s9 + $0x60] sm:$0xff]
  %v2822 = vld [vmem:[%s9 + $0x68] sm:$0xff]
  %v2823 = vld [vmem:[%s9 + $0x70] sm:$0xff]
  %v2824 = vld [vmem:[%s9 + $0x78] sm:$0xff]
  %v2825 = vld [vmem:[%s9 + $0x80] sm:$0xff]
  %v2826 = vld [vmem:[%s9 + $0x88] sm:$0xff]
  %v2827 = vld [vmem:[%s9 + $0x90] sm:$0xff]
  %v2828 = vld [vmem:[%s9 + $0x98] sm:$0xff]
  %v2829 = vld [vmem:[%s9 + $0xa0] sm:$0xff]
  %v2830 = vld [vmem:[%s9 + $0xa8] sm:$0xff]
  %v2831 = vld [vmem:[%s9 + $0xb0] sm:$0xff]
  %v2832 = vld [vmem:[%s9 + $0xb8] sm:$0xff]
  %v2833 = vld [vmem:[%s9 + $0xc0] sm:$0xff]
  %v2834 = vld [vmem:[%s9 + $0xc8] sm:$0xff]
  %v2835 = vld [vmem:[%s9 + $0xd0] sm:$0xff]
  %v2836 = vld [vmem:[%s9 + $0xd8] sm:$0xff]
  %v2837 = vld [vmem:[%s9 + $0xe0] sm:$0xff]
  %v2838 = vld [vmem:[%s9 + $0xe8] sm:$0xff]
  %v2839 = vld [vmem:[%s9 + $0xf0] sm:$0xff]
  %v2840 = vld [vmem:[%s9 + $0xf8] sm:$0xff]
  %v2841 = vld [vmem:[%s10] sm:$0xf]
  %v2842 = vld [vmem:[%s10 + $0x4] sm:$0xf]
  %v2843 = vld [vmem:[%s10 + $0x8] sm:$0xf]
  %v2844 = vld [vmem:[%s10 + $0xc] sm:$0xf]
  %v2845 = vld [vmem:[%s10 + $0x10] sm:$0xf]
  %v2846 = vld [vmem:[%s10 + $0x14] sm:$0xf]
  %v2847 = vld [vmem:[%s10 + $0x18] sm:$0xf]
  %v2848 = vld [vmem:[%s10 + $0x1c] sm:$0xf]
  %v2849 = vld [vmem:[%s10 + $0x20] sm:$0xf]
  %v2850 = vld [vmem:[%s10 + $0x24] sm:$0xf]
  %v2851 = vld [vmem:[%s10 + $0x28] sm:$0xf]
  %v2852 = vld [vmem:[%s10 + $0x2c] sm:$0xf]
  %v2853 = vld [vmem:[%s10 + $0x30] sm:$0xf]
  %v2854 = vld [vmem:[%s10 + $0x34] sm:$0xf]
  %v2855 = vld [vmem:[%s10 + $0x38] sm:$0xf]
  %v2856 = vld [vmem:[%s10 + $0x3c] sm:$0xf]
  %v2857 = vld [vmem:[%s11] sm:$0xf]
  %v2858 = vld [vmem:[%s11 + $0x4] sm:$0xf]
  %v2859 = vld [vmem:[%s11 + $0x8] sm:$0xf]
  %v2860 = vld [vmem:[%s11 + $0xc] sm:$0xf]
  %v2861 = vld [vmem:[%s11 + $0x10] sm:$0xf]
  %v2862 = vld [vmem:[%s11 + $0x14] sm:$0xf]
  %v2863 = vld [vmem:[%s11 + $0x18] sm:$0xf]
  %v2864 = vld [vmem:[%s11 + $0x1c] sm:$0xf]
  %v2865 = vld [vmem:[%s12] sm:$0xff]
  %v2866 = vld [vmem:[%s12 + $0x8] sm:$0xff]
  %v2867 = vld [vmem:[%s12 + $0x10] sm:$0xff]
  %v2868 = vld [vmem:[%s12 + $0x18] sm:$0xff]
  %v2869 = vld [vmem:[%s12 + $0x20] sm:$0xff]
  %v2870 = vld [vmem:[%s12 + $0x28] sm:$0xff]
  %v2871 = vld [vmem:[%s12 + $0x30] sm:$0xff]
  %v2872 = vld [vmem:[%s12 + $0x38] sm:$0xff]
  %v2873 = vpack.c.bf16 %v2749, %v2745
  %v2874 = vpack.c.bf16 %v2750, %v2746
  %v2875 = vpack.c.bf16 %v2751, %v2747
  %v2876 = vpack.c.bf16 %v2752, %v2748
  %v2877 = vpack.c.bf16 %v2757, %v2753
  %v2878 = vpack.c.bf16 %v2758, %v2754
  %v2879 = vpack.c.bf16 %v2759, %v2755
  %v2880 = vpack.c.bf16 %v2760, %v2756
  %v2881 = vpack.c.bf16 %v2765, %v2761
  %v2882 = vpack.c.bf16 %v2766, %v2762
  %v2883 = vpack.c.bf16 %v2767, %v2763
  %v2884 = vpack.c.bf16 %v2768, %v2764
  %v2885 = vpack.c.bf16 %v2773, %v2769
  %v2886 = vpack.c.bf16 %v2774, %v2770
  %v2887 = vpack.c.bf16 %v2775, %v2771
  %v2888 = vpack.c.bf16 %v2776, %v2772
  %2890 = vset.pattern.permute.xlu0 0
  %2891 = vperm.xlu0 %2890, %v2809
  %v2892 = vpop.permute.xlu0 %2891
  %2895 = vset.pattern.permute.xlu0 0
  %2896 = vperm.xlu0 %2895, %v2810
  %v2897 = vpop.permute.xlu0 %2896
  %2900 = vset.pattern.permute.xlu0 0
  %2901 = vperm.xlu0 %2900, %v2811
  %v2902 = vpop.permute.xlu0 %2901
  %2905 = vset.pattern.permute.xlu0 0
  %2906 = vperm.xlu0 %2905, %v2812
  %v2907 = vpop.permute.xlu0 %2906
  %2910 = vset.pattern.permute.xlu0 0
  %2911 = vperm.xlu0 %2910, %v2813
  %v2912 = vpop.permute.xlu0 %2911
  %2915 = vset.pattern.permute.xlu0 0
  %2916 = vperm.xlu0 %2915, %v2814
  %v2917 = vpop.permute.xlu0 %2916
  %2920 = vset.pattern.permute.xlu0 0
  %2921 = vperm.xlu0 %2920, %v2815
  %v2922 = vpop.permute.xlu0 %2921
  %2925 = vset.pattern.permute.xlu0 0
  %2926 = vperm.xlu0 %2925, %v2816
  %v2927 = vpop.permute.xlu0 %2926
  %2930 = vset.pattern.permute.xlu0 0
  %2931 = vperm.xlu0 %2930, %v2817
  %v2932 = vpop.permute.xlu0 %2931
  %2935 = vset.pattern.permute.xlu0 0
  %2936 = vperm.xlu0 %2935, %v2818
  %v2937 = vpop.permute.xlu0 %2936
  %2940 = vset.pattern.permute.xlu0 0
  %2941 = vperm.xlu0 %2940, %v2819
  %v2942 = vpop.permute.xlu0 %2941
  %2945 = vset.pattern.permute.xlu0 0
  %2946 = vperm.xlu0 %2945, %v2820
  %v2947 = vpop.permute.xlu0 %2946
  %2950 = vset.pattern.permute.xlu0 0
  %2951 = vperm.xlu0 %2950, %v2821
  %v2952 = vpop.permute.xlu0 %2951
  %2955 = vset.pattern.permute.xlu0 0
  %2956 = vperm.xlu0 %2955, %v2822
  %v2957 = vpop.permute.xlu0 %2956
  %2960 = vset.pattern.permute.xlu0 0
  %2961 = vperm.xlu0 %2960, %v2823
  %v2962 = vpop.permute.xlu0 %2961
  %2965 = vset.pattern.permute.xlu0 0
  %2966 = vperm.xlu0 %2965, %v2824
  %v2967 = vpop.permute.xlu0 %2966
  %2970 = vset.pattern.permute.xlu0 0
  %2971 = vperm.xlu0 %2970, %v2825
  %v2972 = vpop.permute.xlu0 %2971
  %2975 = vset.pattern.permute.xlu0 0
  %2976 = vperm.xlu0 %2975, %v2826
  %v2977 = vpop.permute.xlu0 %2976
  %2980 = vset.pattern.permute.xlu0 0
  %2981 = vperm.xlu0 %2980, %v2827
  %v2982 = vpop.permute.xlu0 %2981
  %2985 = vset.pattern.permute.xlu0 0
  %2986 = vperm.xlu0 %2985, %v2828
  %v2987 = vpop.permute.xlu0 %2986
  %2990 = vset.pattern.permute.xlu0 0
  %2991 = vperm.xlu0 %2990, %v2829
  %v2992 = vpop.permute.xlu0 %2991
  %2995 = vset.pattern.permute.xlu0 0
  %2996 = vperm.xlu0 %2995, %v2830
  %v2997 = vpop.permute.xlu0 %2996
  %3000 = vset.pattern.permute.xlu0 0
  %3001 = vperm.xlu0 %3000, %v2831
  %v3002 = vpop.permute.xlu0 %3001
  %3005 = vset.pattern.permute.xlu0 0
  %3006 = vperm.xlu0 %3005, %v2832
  %v3007 = vpop.permute.xlu0 %3006
  %3010 = vset.pattern.permute.xlu0 0
  %3011 = vperm.xlu0 %3010, %v2833
  %v3012 = vpop.permute.xlu0 %3011
  %3015 = vset.pattern.permute.xlu0 0
  %3016 = vperm.xlu0 %3015, %v2834
  %v3017 = vpop.permute.xlu0 %3016
  %3020 = vset.pattern.permute.xlu0 0
  %3021 = vperm.xlu0 %3020, %v2835
  %v3022 = vpop.permute.xlu0 %3021
  %3025 = vset.pattern.permute.xlu0 0
  %3026 = vperm.xlu0 %3025, %v2836
  %v3027 = vpop.permute.xlu0 %3026
  %3030 = vset.pattern.permute.xlu0 0
  %3031 = vperm.xlu0 %3030, %v2837
  %v3032 = vpop.permute.xlu0 %3031
  %3035 = vset.pattern.permute.xlu0 0
  %3036 = vperm.xlu0 %3035, %v2838
  %v3037 = vpop.permute.xlu0 %3036
  %3040 = vset.pattern.permute.xlu0 0
  %3041 = vperm.xlu0 %3040, %v2839
  %v3042 = vpop.permute.xlu0 %3041
  %3045 = vset.pattern.permute.xlu0 0
  %3046 = vperm.xlu0 %3045, %v2840
  %v3047 = vpop.permute.xlu0 %3046
  %v3081 = vunpack.c.l.b16 %v2777
  %v3082 = vunpack.c.l.b16 %v2778
  %v3083 = vunpack.c.l.b16 %v2779
  %v3084 = vunpack.c.l.b16 %v2780
  %v3085 = vunpack.c.l.b16 %v2781
  %v3086 = vunpack.c.l.b16 %v2782
  %v3087 = vunpack.c.l.b16 %v2783
  %v3088 = vunpack.c.l.b16 %v2784
  %v3089 = vunpack.c.l.b16 %v2785
  %v3090 = vunpack.c.l.b16 %v2786
  %v3091 = vunpack.c.l.b16 %v2787
  %v3092 = vunpack.c.l.b16 %v2788
  %v3093 = vunpack.c.l.b16 %v2789
  %v3094 = vunpack.c.l.b16 %v2790
  %v3095 = vunpack.c.l.b16 %v2791
  %v3096 = vunpack.c.l.b16 %v2792
  %v3097 = vunpack.c.l.b16 %v2793
  %v3098 = vunpack.c.l.b16 %v2794
  %v3099 = vunpack.c.l.b16 %v2795
  %v3100 = vunpack.c.l.b16 %v2796
  %v3101 = vunpack.c.l.b16 %v2797
  %v3102 = vunpack.c.l.b16 %v2798
  %v3103 = vunpack.c.l.b16 %v2799
  %v3104 = vunpack.c.l.b16 %v2800
  %v3105 = vunpack.c.l.b16 %v2801
  %v3106 = vunpack.c.l.b16 %v2802
  %v3107 = vunpack.c.l.b16 %v2803
  %v3108 = vunpack.c.l.b16 %v2804
  %v3109 = vunpack.c.l.b16 %v2805
  %v3110 = vunpack.c.l.b16 %v2806
  %v3111 = vunpack.c.l.b16 %v2807
  %v3112 = vunpack.c.l.b16 %v2808
  %v3113 = vpack.c.b16 %v3082, %v3081
  %v3114 = vpack.c.b16 %v3084, %v3083
  %v3115 = vpack.c.b16 %v3086, %v3085
  %v3116 = vpack.c.b16 %v3088, %v3087
  %v3117 = vpack.c.b16 %v3090, %v3089
  %v3118 = vpack.c.b16 %v3092, %v3091
  %v3119 = vpack.c.b16 %v3094, %v3093
  %v3120 = vpack.c.b16 %v3096, %v3095
  %v3121 = vpack.c.b16 %v3098, %v3097
  %v3122 = vpack.c.b16 %v3100, %v3099
  %v3123 = vpack.c.b16 %v3102, %v3101
  %v3124 = vpack.c.b16 %v3104, %v3103
  %v3125 = vpack.c.b16 %v3106, %v3105
  %v3126 = vpack.c.b16 %v3108, %v3107
  %v3127 = vpack.c.b16 %v3110, %v3109
  %v3128 = vpack.c.b16 %v3112, %v3111
  %v3130 = vsel %vm1354, %v3113, 0
  %v3133 = vsel %vm1354, %v3114, 0
  %v3136 = vsel %vm1354, %v3115, 0
  %v3139 = vsel %vm1354, %v3116, 0
  %v3142 = vsel %vm1354, %v3117, 0
  %v3145 = vsel %vm1354, %v3118, 0
  %v3148 = vsel %vm1354, %v3119, 0
  %v3151 = vsel %vm1354, %v3120, 0
  %v3154 = vsel %vm1354, %v3121, 0
  %v3157 = vsel %vm1354, %v3122, 0
  %v3160 = vsel %vm1354, %v3123, 0
  %v3163 = vsel %vm1354, %v3124, 0
  %v3166 = vsel %vm1354, %v3125, 0
  %v3169 = vsel %vm1354, %v3126, 0
  %v3172 = vsel %vm1354, %v3127, 0
  %v3175 = vsel %vm1354, %v3128, 0
  %3177 = vmatprep.subr.bf16.mxu0 %v2874
  %3178 = vmatpush1.bf16.msra.mxu0 %v2873
  %3179 = vmatprep.subr.bf16.mxu0 %v2878
  %3180 = vmatpush1.bf16.msra.mxu0 %v2877
  %3181 = vmatprep.subr.bf16.mxu0 %v2882
  %3182 = vmatpush1.bf16.msra.mxu0 %v2881
  %3183 = vmatprep.subr.bf16.mxu0 %v2886
  %3184 = vmatpush1.bf16.msra.mxu0 %v2885
  %3185 = vmatprep.subr.bf16.mxu0 0
  %3186 = vmatpush1.bf16.msra.mxu0 0
  %3187 = vmatprep.subr.bf16.mxu0 0
  %3188 = vmatpush1.bf16.msra.mxu0 0
  %3189 = vmatprep.subr.bf16.mxu0 0
  %3190 = vmatpush1.bf16.msra.mxu0 0
  %3191 = vmatprep.subr.bf16.mxu0 0
  %3192 = vmatpush1.bf16.msra.mxu0 0
  %3193 = vmatprep.subr.bf16.mxu0 0
  %3194 = vmatpush1.bf16.msra.mxu0 0
  %3195 = vmatprep.subr.bf16.mxu0 0
  %3196 = vmatpush1.bf16.msra.mxu0 0
  %3197 = vmatprep.subr.bf16.mxu0 0
  %3198 = vmatpush1.bf16.msra.mxu0 0
  %3199 = vmatprep.subr.bf16.mxu0 0
  %3200 = vmatpush1.bf16.msra.mxu0 0
  %3201 = vmatprep.subr.bf16.mxu0 0
  %3202 = vmatpush1.bf16.msra.mxu0 0
  %3203 = vmatprep.subr.bf16.mxu0 0
  %3204 = vmatpush1.bf16.msra.mxu0 0
  %3205 = vmatprep.subr.bf16.mxu0 0
  %3206 = vmatpush1.bf16.msra.mxu0 0
  %3207 = vmatprep.subr.bf16.mxu0 0
  %3208 = vmatpush1.bf16.msra.mxu0 0
  %3209 = vmatprep.mubr.bf16.mxu0 0
  %3210 = vmatmul.mubr.bf16.gmra.mrb[0].mxu0 %v3130
  %v3211 = vpop.f32.mrb[0].mxu0
  %v3212 = vadd.f32 %v2892, %v3211
  %v3213 = vpop.f32.mrb[0].mxu0
  %v3214 = vadd.f32 %v2892, %v3213
  %v3215 = vpop.f32.mrb[0].mxu0
  %v3216 = vadd.f32 %v2897, %v3215
  %v3217 = vpop.f32.mrb[0].mxu0
  %v3218 = vadd.f32 %v2897, %v3217
  %3219 = vmatprep.mubr.bf16.mxu0 0
  %3220 = vmatmul.mubr.bf16.gmra.mrb[0].mxu0 %v3133
  %v3221 = vpop.f32.mrb[0].mxu0
  %v3222 = vadd.f32 %v2902, %v3221
  %v3223 = vpop.f32.mrb[0].mxu0
  %v3224 = vadd.f32 %v2902, %v3223
  %v3225 = vpop.f32.mrb[0].mxu0
  %v3226 = vadd.f32 %v2907, %v3225
  %v3227 = vpop.f32.mrb[0].mxu0
  %v3228 = vadd.f32 %v2907, %v3227
  %3229 = vmatprep.mubr.bf16.mxu0 0
  %3230 = vmatmul.mubr.bf16.gmra.mrb[0].mxu0 %v3136
  %v3231 = vpop.f32.mrb[0].mxu0
  %v3232 = vadd.f32 %v2912, %v3231
  %v3233 = vpop.f32.mrb[0].mxu0
  %v3234 = vadd.f32 %v2912, %v3233
  %v3235 = vpop.f32.mrb[0].mxu0
  %v3236 = vadd.f32 %v2917, %v3235
  %v3237 = vpop.f32.mrb[0].mxu0
  %v3238 = vadd.f32 %v2917, %v3237
  %3239 = vmatprep.mubr.bf16.mxu0 0
  %3240 = vmatmul.mubr.bf16.gmra.mrb[0].mxu0 %v3139
  %v3241 = vpop.f32.mrb[0].mxu0
  %v3242 = vadd.f32 %v2922, %v3241
  %v3243 = vpop.f32.mrb[0].mxu0
  %v3244 = vadd.f32 %v2922, %v3243
  %v3245 = vpop.f32.mrb[0].mxu0
  %v3246 = vadd.f32 %v2927, %v3245
  %v3247 = vpop.f32.mrb[0].mxu0
  %v3248 = vadd.f32 %v2927, %v3247
  %3249 = vmatprep.mubr.bf16.mxu0 0
  %3250 = vmatmul.mubr.bf16.gmra.mrb[0].mxu0 %v3142
  %v3251 = vpop.f32.mrb[0].mxu0
  %v3252 = vadd.f32 %v2932, %v3251
  %v3253 = vpop.f32.mrb[0].mxu0
  %v3254 = vadd.f32 %v2932, %v3253
  %v3255 = vpop.f32.mrb[0].mxu0
  %v3256 = vadd.f32 %v2937, %v3255
  %v3257 = vpop.f32.mrb[0].mxu0
  %v3258 = vadd.f32 %v2937, %v3257
  %3259 = vmatprep.mubr.bf16.mxu0 0
  %3260 = vmatmul.mubr.bf16.gmra.mrb[0].mxu0 %v3145
  %v3261 = vpop.f32.mrb[0].mxu0
  %v3262 = vadd.f32 %v2942, %v3261
  %v3263 = vpop.f32.mrb[0].mxu0
  %v3264 = vadd.f32 %v2942, %v3263
  %v3265 = vpop.f32.mrb[0].mxu0
  %v3266 = vadd.f32 %v2947, %v3265
  %v3267 = vpop.f32.mrb[0].mxu0
  %v3268 = vadd.f32 %v2947, %v3267
  %3269 = vmatprep.mubr.bf16.mxu0 0
  %3270 = vmatmul.mubr.bf16.gmra.mrb[0].mxu0 %v3148
  %v3271 = vpop.f32.mrb[0].mxu0
  %v3272 = vadd.f32 %v2952, %v3271
  %v3273 = vpop.f32.mrb[0].mxu0
  %v3274 = vadd.f32 %v2952, %v3273
  %v3275 = vpop.f32.mrb[0].mxu0
  %v3276 = vadd.f32 %v2957, %v3275
  %v3277 = vpop.f32.mrb[0].mxu0
  %v3278 = vadd.f32 %v2957, %v3277
  %3279 = vmatprep.mubr.bf16.mxu0 0
  %3280 = vmatmul.mubr.bf16.gmra.mrb[0].mxu0 %v3151
  %v3281 = vpop.f32.mrb[0].mxu0
  %v3282 = vadd.f32 %v2962, %v3281
  %v3283 = vpop.f32.mrb[0].mxu0
  %v3284 = vadd.f32 %v2962, %v3283
  %v3285 = vpop.f32.mrb[0].mxu0
  %v3286 = vadd.f32 %v2967, %v3285
  %v3287 = vpop.f32.mrb[0].mxu0
  %v3288 = vadd.f32 %v2967, %v3287
  %3289 = vmatprep.mubr.bf16.mxu0 0
  %3290 = vmatmul.mubr.bf16.gmra.mrb[0].mxu0 %v3154
  %v3291 = vpop.f32.mrb[0].mxu0
  %v3292 = vadd.f32 %v2972, %v3291
  %v3293 = vpop.f32.mrb[0].mxu0
  %v3294 = vadd.f32 %v2972, %v3293
  %v3295 = vpop.f32.mrb[0].mxu0
  %v3296 = vadd.f32 %v2977, %v3295
  %v3297 = vpop.f32.mrb[0].mxu0
  %v3298 = vadd.f32 %v2977, %v3297
  %3299 = vmatprep.mubr.bf16.mxu0 0
  %3300 = vmatmul.mubr.bf16.gmra.mrb[0].mxu0 %v3157
  %v3301 = vpop.f32.mrb[0].mxu0
  %v3302 = vadd.f32 %v2982, %v3301
  %v3303 = vpop.f32.mrb[0].mxu0
  %v3304 = vadd.f32 %v2982, %v3303
  %v3305 = vpop.f32.mrb[0].mxu0
  %v3306 = vadd.f32 %v2987, %v3305
  %v3307 = vpop.f32.mrb[0].mxu0
  %v3308 = vadd.f32 %v2987, %v3307
  %3309 = vmatprep.mubr.bf16.mxu0 0
  %3310 = vmatmul.mubr.bf16.gmra.mrb[0].mxu0 %v3160
  %v3311 = vpop.f32.mrb[0].mxu0
  %v3312 = vadd.f32 %v2992, %v3311
  %v3313 = vpop.f32.mrb[0].mxu0
  %v3314 = vadd.f32 %v2992, %v3313
  %v3315 = vpop.f32.mrb[0].mxu0
  %v3316 = vadd.f32 %v2997, %v3315
  %v3317 = vpop.f32.mrb[0].mxu0
  %v3318 = vadd.f32 %v2997, %v3317
  %3319 = vmatprep.mubr.bf16.mxu0 0
  %3320 = vmatmul.mubr.bf16.gmra.mrb[0].mxu0 %v3163
  %v3321 = vpop.f32.mrb[0].mxu0
  %v3322 = vadd.f32 %v3002, %v3321
  %v3323 = vpop.f32.mrb[0].mxu0
  %v3324 = vadd.f32 %v3002, %v3323
  %v3325 = vpop.f32.mrb[0].mxu0
  %v3326 = vadd.f32 %v3007, %v3325
  %v3327 = vpop.f32.mrb[0].mxu0
  %v3328 = vadd.f32 %v3007, %v3327
  %3329 = vmatprep.mubr.bf16.mxu0 0
  %3330 = vmatmul.mubr.bf16.gmra.mrb[0].mxu0 %v3166
  %v3331 = vpop.f32.mrb[0].mxu0
  %v3332 = vadd.f32 %v3012, %v3331
  %v3333 = vpop.f32.mrb[0].mxu0
  %v3334 = vadd.f32 %v3012, %v3333
  %v3335 = vpop.f32.mrb[0].mxu0
  %v3336 = vadd.f32 %v3017, %v3335
  %v3337 = vpop.f32.mrb[0].mxu0
  %v3338 = vadd.f32 %v3017, %v3337
  %3339 = vmatprep.mubr.bf16.mxu0 0
  %3340 = vmatmul.mubr.bf16.gmra.mrb[0].mxu0 %v3169
  %v3341 = vpop.f32.mrb[0].mxu0
  %v3342 = vadd.f32 %v3022, %v3341
  %v3343 = vpop.f32.mrb[0].mxu0
  %v3344 = vadd.f32 %v3022, %v3343
  %v3345 = vpop.f32.mrb[0].mxu0
  %v3346 = vadd.f32 %v3027, %v3345
  %v3347 = vpop.f32.mrb[0].mxu0
  %v3348 = vadd.f32 %v3027, %v3347
  %3349 = vmatprep.mubr.bf16.mxu0 0
  %3350 = vmatmul.mubr.bf16.gmra.mrb[0].mxu0 %v3172
  %v3351 = vpop.f32.mrb[0].mxu0
  %v3352 = vadd.f32 %v3032, %v3351
  %v3353 = vpop.f32.mrb[0].mxu0
  %v3354 = vadd.f32 %v3032, %v3353
  %v3355 = vpop.f32.mrb[0].mxu0
  %v3356 = vadd.f32 %v3037, %v3355
  %v3357 = vpop.f32.mrb[0].mxu0
  %v3358 = vadd.f32 %v3037, %v3357
  %3359 = vmatprep.mubr.bf16.mxu0 0
  %3360 = vmatmul.mubr.bf16.gmra.mrb[0].mxu0 %v3175
  %v3361 = vpop.f32.mrb[0].mxu0
  %v3362 = vadd.f32 %v3042, %v3361
  %v3363 = vpop.f32.mrb[0].mxu0
  %v3364 = vadd.f32 %v3042, %v3363
  %v3365 = vpop.f32.mrb[0].mxu0
  %v3366 = vadd.f32 %v3047, %v3365
  %v3367 = vpop.f32.mrb[0].mxu0
  %v3368 = vadd.f32 %v3047, %v3367
  %3369 = vdwg.mxu0
  %3370 = vmatprep.subr.bf16.mxu0 %v2876
  %3371 = vmatpush1.bf16.msra.mxu0 %v2875
  %3372 = vmatprep.subr.bf16.mxu0 %v2880
  %3373 = vmatpush1.bf16.msra.mxu0 %v2879
  %3374 = vmatprep.subr.bf16.mxu0 %v2884
  %3375 = vmatpush1.bf16.msra.mxu0 %v2883
  %3376 = vmatprep.subr.bf16.mxu0 %v2888
  %3377 = vmatpush1.bf16.msra.mxu0 %v2887
  %3378 = vmatprep.subr.bf16.mxu0 0
  %3379 = vmatpush1.bf16.msra.mxu0 0
  %3380 = vmatprep.subr.bf16.mxu0 0
  %3381 = vmatpush1.bf16.msra.mxu0 0
  %3382 = vmatprep.subr.bf16.mxu0 0
  %3383 = vmatpush1.bf16.msra.mxu0 0
  %3384 = vmatprep.subr.bf16.mxu0 0
  %3385 = vmatpush1.bf16.msra.mxu0 0
  %3386 = vmatprep.subr.bf16.mxu0 0
  %3387 = vmatpush1.bf16.msra.mxu0 0
  %3388 = vmatprep.subr.bf16.mxu0 0
  %3389 = vmatpush1.bf16.msra.mxu0 0
  %3390 = vmatprep.subr.bf16.mxu0 0
  %3391 = vmatpush1.bf16.msra.mxu0 0
  %3392 = vmatprep.subr.bf16.mxu0 0
  %3393 = vmatpush1.bf16.msra.mxu0 0
  %3394 = vmatprep.subr.bf16.mxu0 0
  %3395 = vmatpush1.bf16.msra.mxu0 0
  %3396 = vmatprep.subr.bf16.mxu0 0
  %3397 = vmatpush1.bf16.msra.mxu0 0
  %3398 = vmatprep.subr.bf16.mxu0 0
  %3399 = vmatpush1.bf16.msra.mxu0 0
  %3400 = vmatprep.subr.bf16.mxu0 0
  %3401 = vmatpush1.bf16.msra.mxu0 0
  %3402 = vmatprep.mubr.bf16.mxu0 0
  %3403 = vmatmul.mubr.bf16.gmra.mrb[0].mxu0 %v3130
  %v3404 = vpop.f32.mrb[0].mxu0
  %v3405 = vadd.f32 %v2892, %v3404
  %v3406 = vpop.f32.mrb[0].mxu0
  %v3407 = vadd.f32 %v2892, %v3406
  %v3408 = vpop.f32.mrb[0].mxu0
  %v3409 = vadd.f32 %v2897, %v3408
  %v3410 = vpop.f32.mrb[0].mxu0
  %v3411 = vadd.f32 %v2897, %v3410
  %3412 = vmatprep.mubr.bf16.mxu0 0
  %3413 = vmatmul.mubr.bf16.gmra.mrb[0].mxu0 %v3133
  %v3414 = vpop.f32.mrb[0].mxu0
  %v3415 = vadd.f32 %v2902, %v3414
  %v3416 = vpop.f32.mrb[0].mxu0
  %v3417 = vadd.f32 %v2902, %v3416
  %v3418 = vpop.f32.mrb[0].mxu0
  %v3419 = vadd.f32 %v2907, %v3418
  %v3420 = vpop.f32.mrb[0].mxu0
  %v3421 = vadd.f32 %v2907, %v3420
  %3422 = vmatprep.mubr.bf16.mxu0 0
  %3423 = vmatmul.mubr.bf16.gmra.mrb[0].mxu0 %v3136
  %v3424 = vpop.f32.mrb[0].mxu0
  %v3425 = vadd.f32 %v2912, %v3424
  %v3426 = vpop.f32.mrb[0].mxu0
  %v3427 = vadd.f32 %v2912, %v3426
  %v3428 = vpop.f32.mrb[0].mxu0
  %v3429 = vadd.f32 %v2917, %v3428
  %v3430 = vpop.f32.mrb[0].mxu0
  %v3431 = vadd.f32 %v2917, %v3430
  %3432 = vmatprep.mubr.bf16.mxu0 0
  %3433 = vmatmul.mubr.bf16.gmra.mrb[0].mxu0 %v3139
  %v3434 = vpop.f32.mrb[0].mxu0
  %v3435 = vadd.f32 %v2922, %v3434
  %v3436 = vpop.f32.mrb[0].mxu0
  %v3437 = vadd.f32 %v2922, %v3436
  %v3438 = vpop.f32.mrb[0].mxu0
  %v3439 = vadd.f32 %v2927, %v3438
  %v3440 = vpop.f32.mrb[0].mxu0
  %v3441 = vadd.f32 %v2927, %v3440
  %3442 = vmatprep.mubr.bf16.mxu0 0
  %3443 = vmatmul.mubr.bf16.gmra.mrb[0].mxu0 %v3142
  %v3444 = vpop.f32.mrb[0].mxu0
  %v3445 = vadd.f32 %v2932, %v3444
  %v3446 = vpop.f32.mrb[0].mxu0
  %v3447 = vadd.f32 %v2932, %v3446
  %v3448 = vpop.f32.mrb[0].mxu0
  %v3449 = vadd.f32 %v2937, %v3448
  %v3450 = vpop.f32.mrb[0].mxu0
  %v3451 = vadd.f32 %v2937, %v3450
  %3452 = vmatprep.mubr.bf16.mxu0 0
  %3453 = vmatmul.mubr.bf16.gmra.mrb[0].mxu0 %v3145
  %v3454 = vpop.f32.mrb[0].mxu0
  %v3455 = vadd.f32 %v2942, %v3454
  %v3456 = vpop.f32.mrb[0].mxu0
  %v3457 = vadd.f32 %v2942, %v3456
  %v3458 = vpop.f32.mrb[0].mxu0
  %v3459 = vadd.f32 %v2947, %v3458
  %v3460 = vpop.f32.mrb[0].mxu0
  %v3461 = vadd.f32 %v2947, %v3460
  %3462 = vmatprep.mubr.bf16.mxu0 0
  %3463 = vmatmul.mubr.bf16.gmra.mrb[0].mxu0 %v3148
  %v3464 = vpop.f32.mrb[0].mxu0
  %v3465 = vadd.f32 %v2952, %v3464
  %v3466 = vpop.f32.mrb[0].mxu0
  %v3467 = vadd.f32 %v2952, %v3466
  %v3468 = vpop.f32.mrb[0].mxu0
  %v3469 = vadd.f32 %v2957, %v3468
  %v3470 = vpop.f32.mrb[0].mxu0
  %v3471 = vadd.f32 %v2957, %v3470
  %3472 = vmatprep.mubr.bf16.mxu0 0
  %3473 = vmatmul.mubr.bf16.gmra.mrb[0].mxu0 %v3151
  %v3474 = vpop.f32.mrb[0].mxu0
  %v3475 = vadd.f32 %v2962, %v3474
  %v3476 = vpop.f32.mrb[0].mxu0
  %v3477 = vadd.f32 %v2962, %v3476
  %v3478 = vpop.f32.mrb[0].mxu0
  %v3479 = vadd.f32 %v2967, %v3478
  %v3480 = vpop.f32.mrb[0].mxu0
  %v3481 = vadd.f32 %v2967, %v3480
  %3482 = vmatprep.mubr.bf16.mxu0 0
  %3483 = vmatmul.mubr.bf16.gmra.mrb[0].mxu0 %v3154
  %v3484 = vpop.f32.mrb[0].mxu0
  %v3485 = vadd.f32 %v2972, %v3484
  %v3486 = vpop.f32.mrb[0].mxu0
  %v3487 = vadd.f32 %v2972, %v3486
  %v3488 = vpop.f32.mrb[0].mxu0
  %v3489 = vadd.f32 %v2977, %v3488
  %v3490 = vpop.f32.mrb[0].mxu0
  %v3491 = vadd.f32 %v2977, %v3490
  %3492 = vmatprep.mubr.bf16.mxu0 0
  %3493 = vmatmul.mubr.bf16.gmra.mrb[0].mxu0 %v3157
  %v3494 = vpop.f32.mrb[0].mxu0
  %v3495 = vadd.f32 %v2982, %v3494
  %v3496 = vpop.f32.mrb[0].mxu0
  %v3497 = vadd.f32 %v2982, %v3496
  %v3498 = vpop.f32.mrb[0].mxu0
  %v3499 = vadd.f32 %v2987, %v3498
  %v3500 = vpop.f32.mrb[0].mxu0
  %v3501 = vadd.f32 %v2987, %v3500
  %3502 = vmatprep.mubr.bf16.mxu0 0
  %3503 = vmatmul.mubr.bf16.gmra.mrb[0].mxu0 %v3160
  %v3504 = vpop.f32.mrb[0].mxu0
  %v3505 = vadd.f32 %v2992, %v3504
  %v3506 = vpop.f32.mrb[0].mxu0
  %v3507 = vadd.f32 %v2992, %v3506
  %v3508 = vpop.f32.mrb[0].mxu0
  %v3509 = vadd.f32 %v2997, %v3508
  %v3510 = vpop.f32.mrb[0].mxu0
  %v3511 = vadd.f32 %v2997, %v3510
  %3512 = vmatprep.mubr.bf16.mxu0 0
  %3513 = vmatmul.mubr.bf16.gmra.mrb[0].mxu0 %v3163
  %v3514 = vpop.f32.mrb[0].mxu0
  %v3515 = vadd.f32 %v3002, %v3514
  %v3516 = vpop.f32.mrb[0].mxu0
  %v3517 = vadd.f32 %v3002, %v3516
  %v3518 = vpop.f32.mrb[0].mxu0
  %v3519 = vadd.f32 %v3007, %v3518
  %v3520 = vpop.f32.mrb[0].mxu0
  %v3521 = vadd.f32 %v3007, %v3520
  %3522 = vmatprep.mubr.bf16.mxu0 0
  %3523 = vmatmul.mubr.bf16.gmra.mrb[0].mxu0 %v3166
  %v3524 = vpop.f32.mrb[0].mxu0
  %v3525 = vadd.f32 %v3012, %v3524
  %v3526 = vpop.f32.mrb[0].mxu0
  %v3527 = vadd.f32 %v3012, %v3526
  %v3528 = vpop.f32.mrb[0].mxu0
  %v3529 = vadd.f32 %v3017, %v3528
  %v3530 = vpop.f32.mrb[0].mxu0
  %v3531 = vadd.f32 %v3017, %v3530
  %3532 = vmatprep.mubr.bf16.mxu0 0
  %3533 = vmatmul.mubr.bf16.gmra.mrb[0].mxu0 %v3169
  %v3534 = vpop.f32.mrb[0].mxu0
  %v3535 = vadd.f32 %v3022, %v3534
  %v3536 = vpop.f32.mrb[0].mxu0
  %v3537 = vadd.f32 %v3022, %v3536
  %v3538 = vpop.f32.mrb[0].mxu0
  %v3539 = vadd.f32 %v3027, %v3538
  %v3540 = vpop.f32.mrb[0].mxu0
  %v3541 = vadd.f32 %v3027, %v3540
  %3542 = vmatprep.mubr.bf16.mxu0 0
  %3543 = vmatmul.mubr.bf16.gmra.mrb[0].mxu0 %v3172
  %v3544 = vpop.f32.mrb[0].mxu0
  %v3545 = vadd.f32 %v3032, %v3544
  %v3546 = vpop.f32.mrb[0].mxu0
  %v3547 = vadd.f32 %v3032, %v3546
  %v3548 = vpop.f32.mrb[0].mxu0
  %v3549 = vadd.f32 %v3037, %v3548
  %v3550 = vpop.f32.mrb[0].mxu0
  %v3551 = vadd.f32 %v3037, %v3550
  %3552 = vmatprep.mubr.bf16.mxu0 0
  %3553 = vmatmul.mubr.bf16.gmra.mrb[0].mxu0 %v3175
  %v3554 = vpop.f32.mrb[0].mxu0
  %v3555 = vadd.f32 %v3042, %v3554
  %v3556 = vpop.f32.mrb[0].mxu0
  %v3557 = vadd.f32 %v3042, %v3556
  %v3558 = vpop.f32.mrb[0].mxu0
  %v3559 = vadd.f32 %v3047, %v3558
  %v3560 = vpop.f32.mrb[0].mxu0
  %v3561 = vadd.f32 %v3047, %v3560
  %3562 = vdwg.mxu0
  %v3563 = vmul.f32 %v3252, %v3292
  %v3564 = vmul.f32 %v3254, %v3294
  %v3565 = vmul.f32 %v3252, %v3485
  %v3566 = vmul.f32 %v3254, %v3487
  %v3567 = vmul.f32 %v3256, %v3296
  %v3568 = vmul.f32 %v3258, %v3298
  %v3569 = vmul.f32 %v3256, %v3489
  %v3570 = vmul.f32 %v3258, %v3491
  %v3571 = vmul.f32 %v3262, %v3302
  %v3572 = vmul.f32 %v3264, %v3304
  %v3573 = vmul.f32 %v3262, %v3495
  %v3574 = vmul.f32 %v3264, %v3497
  %v3575 = vmul.f32 %v3266, %v3306
  %v3576 = vmul.f32 %v3268, %v3308
  %v3577 = vmul.f32 %v3266, %v3499
  %v3578 = vmul.f32 %v3268, %v3501
  %v3579 = vmul.f32 %v3272, %v3312
  %v3580 = vmul.f32 %v3274, %v3314
  %v3581 = vmul.f32 %v3272, %v3505
  %v3582 = vmul.f32 %v3274, %v3507
  %v3583 = vmul.f32 %v3276, %v3316
  %v3584 = vmul.f32 %v3278, %v3318
  %v3585 = vmul.f32 %v3276, %v3509
  %v3586 = vmul.f32 %v3278, %v3511
  %v3587 = vmul.f32 %v3282, %v3322
  %v3588 = vmul.f32 %v3284, %v3324
  %v3589 = vmul.f32 %v3282, %v3515
  %v3590 = vmul.f32 %v3284, %v3517
  %v3591 = vmul.f32 %v3286, %v3326
  %v3592 = vmul.f32 %v3288, %v3328
  %v3593 = vmul.f32 %v3286, %v3519
  %v3594 = vmul.f32 %v3288, %v3521
  %v3595 = vmul.f32 %v3445, %v3292
  %v3596 = vmul.f32 %v3447, %v3294
  %v3597 = vmul.f32 %v3445, %v3485
  %v3598 = vmul.f32 %v3447, %v3487
  %v3599 = vmul.f32 %v3449, %v3296
  %v3600 = vmul.f32 %v3451, %v3298
  %v3601 = vmul.f32 %v3449, %v3489
  %v3602 = vmul.f32 %v3451, %v3491
  %v3603 = vmul.f32 %v3455, %v3302
  %v3604 = vmul.f32 %v3457, %v3304
  %v3605 = vmul.f32 %v3455, %v3495
  %v3606 = vmul.f32 %v3457, %v3497
  %v3607 = vmul.f32 %v3459, %v3306
  %v3608 = vmul.f32 %v3461, %v3308
  %v3609 = vmul.f32 %v3459, %v3499
  %v3610 = vmul.f32 %v3461, %v3501
  %v3611 = vmul.f32 %v3465, %v3312
  %v3612 = vmul.f32 %v3467, %v3314
  %v3613 = vmul.f32 %v3465, %v3505
  %v3614 = vmul.f32 %v3467, %v3507
  %v3615 = vmul.f32 %v3469, %v3316
  %v3616 = vmul.f32 %v3471, %v3318
  %v3617 = vmul.f32 %v3469, %v3509
  %v3618 = vmul.f32 %v3471, %v3511
  %v3619 = vmul.f32 %v3475, %v3322
  %v3620 = vmul.f32 %v3477, %v3324
  %v3621 = vmul.f32 %v3475, %v3515
  %v3622 = vmul.f32 %v3477, %v3517
  %v3623 = vmul.f32 %v3479, %v3326
  %v3624 = vmul.f32 %v3481, %v3328
  %v3625 = vmul.f32 %v3479, %v3519
  %v3626 = vmul.f32 %v3481, %v3521
  %v3627 = vpack.c.bf16 %v3567, %v3563
  %v3628 = vpack.c.bf16 %v3568, %v3564
  %v3629 = vpack.c.bf16 %v3569, %v3565
  %v3630 = vpack.c.bf16 %v3570, %v3566
  %v3631 = vpack.c.bf16 %v3575, %v3571
  %v3632 = vpack.c.bf16 %v3576, %v3572
  %v3633 = vpack.c.bf16 %v3577, %v3573
  %v3634 = vpack.c.bf16 %v3578, %v3574
  %v3635 = vpack.c.bf16 %v3583, %v3579
  %v3636 = vpack.c.bf16 %v3584, %v3580
  %v3637 = vpack.c.bf16 %v3585, %v3581
  %v3638 = vpack.c.bf16 %v3586, %v3582
  %v3639 = vpack.c.bf16 %v3591, %v3587
  %v3640 = vpack.c.bf16 %v3592, %v3588
  %v3641 = vpack.c.bf16 %v3593, %v3589
  %v3642 = vpack.c.bf16 %v3594, %v3590
  %v3643 = vpack.c.bf16 %v3599, %v3595
  %v3644 = vpack.c.bf16 %v3600, %v3596
  %v3645 = vpack.c.bf16 %v3601, %v3597
  %v3646 = vpack.c.bf16 %v3602, %v3598
  %v3647 = vpack.c.bf16 %v3607, %v3603
  %v3648 = vpack.c.bf16 %v3608, %v3604
  %v3649 = vpack.c.bf16 %v3609, %v3605
  %v3650 = vpack.c.bf16 %v3610, %v3606
  %v3651 = vpack.c.bf16 %v3615, %v3611
  %v3652 = vpack.c.bf16 %v3616, %v3612
  %v3653 = vpack.c.bf16 %v3617, %v3613
  %v3654 = vpack.c.bf16 %v3618, %v3614
  %v3655 = vpack.c.bf16 %v3623, %v3619
  %v3656 = vpack.c.bf16 %v3624, %v3620
  %v3657 = vpack.c.bf16 %v3625, %v3621
  %v3658 = vpack.c.bf16 %v3626, %v3622
  %v3675 = vunpack.c.l.b16 %v2841
  %v3676 = vunpack.c.l.b16 %v2842
  %v3677 = vunpack.c.l.b16 %v2843
  %v3678 = vunpack.c.l.b16 %v2844
  %v3679 = vunpack.c.l.b16 %v2845
  %v3680 = vunpack.c.l.b16 %v2846
  %v3681 = vunpack.c.l.b16 %v2847
  %v3682 = vunpack.c.l.b16 %v2848
  %v3683 = vunpack.c.l.b16 %v2849
  %v3684 = vunpack.c.l.b16 %v2850
  %v3685 = vunpack.c.l.b16 %v2851
  %v3686 = vunpack.c.l.b16 %v2852
  %v3687 = vunpack.c.l.b16 %v2853
  %v3688 = vunpack.c.l.b16 %v2854
  %v3689 = vunpack.c.l.b16 %v2855
  %v3690 = vunpack.c.l.b16 %v2856
  %v3691 = vpack.c.b16 %v3676, %v3675
  %v3692 = vpack.c.b16 %v3678, %v3677
  %v3693 = vpack.c.b16 %v3680, %v3679
  %v3694 = vpack.c.b16 %v3682, %v3681
  %v3695 = vpack.c.b16 %v3684, %v3683
  %v3696 = vpack.c.b16 %v3686, %v3685
  %v3697 = vpack.c.b16 %v3688, %v3687
  %v3698 = vpack.c.b16 %v3690, %v3689
  %3707 = vmatprep.subr.bf16.mxu0 %v3628
  %3708 = vmatpush1.bf16.msra.mxu0 %v3627
  %3709 = vmatprep.subr.bf16.mxu0 %v3632
  %3710 = vmatpush1.bf16.msra.mxu0 %v3631
  %3711 = vmatprep.subr.bf16.mxu0 %v3636
  %3712 = vmatpush1.bf16.msra.mxu0 %v3635
  %3713 = vmatprep.subr.bf16.mxu0 %v3640
  %3714 = vmatpush1.bf16.msra.mxu0 %v3639
  %3715 = vmatprep.subr.bf16.mxu0 %v3644
  %3716 = vmatpush1.bf16.msra.mxu0 %v3643
  %3717 = vmatprep.subr.bf16.mxu0 %v3648
  %3718 = vmatpush1.bf16.msra.mxu0 %v3647
  %3719 = vmatprep.subr.bf16.mxu0 %v3652
  %3720 = vmatpush1.bf16.msra.mxu0 %v3651
  %3721 = vmatprep.subr.bf16.mxu0 %v3656
  %3722 = vmatpush1.bf16.msra.mxu0 %v3655
  %3723 = vmatprep.subr.bf16.mxu0 0
  %3724 = vmatpush1.bf16.msra.mxu0 0
  %3725 = vmatprep.subr.bf16.mxu0 0
  %3726 = vmatpush1.bf16.msra.mxu0 0
  %3727 = vmatprep.subr.bf16.mxu0 0
  %3728 = vmatpush1.bf16.msra.mxu0 0
  %3729 = vmatprep.subr.bf16.mxu0 0
  %3730 = vmatpush1.bf16.msra.mxu0 0
  %3731 = vmatprep.subr.bf16.mxu0 0
  %3732 = vmatpush1.bf16.msra.mxu0 0
  %3733 = vmatprep.subr.bf16.mxu0 0
  %3734 = vmatpush1.bf16.msra.mxu0 0
  %3735 = vmatprep.subr.bf16.mxu0 0
  %3736 = vmatpush1.bf16.msra.mxu0 0
  %3737 = vmatprep.subr.bf16.mxu0 0
  %3738 = vmatpush1.bf16.msra.mxu0 0
  %3739 = vmatprep.mubr.bf16.mxu0 0
  %3740 = vmatmul.mubr.bf16.gmra.mrb[0].mxu0 %v3691
  %v3741 = vpop.f32.mrb[0].mxu0
  %v3742 = vadd.f32 0.0, %v3741
  %v3743 = vpop.f32.mrb[0].mxu0
  %v3744 = vadd.f32 0.0, %v3743
  %v3745 = vpop.f32.mrb[0].mxu0
  %v3746 = vadd.f32 0.0, %v3745
  %v3747 = vpop.f32.mrb[0].mxu0
  %v3748 = vadd.f32 0.0, %v3747
  %3749 = vmatprep.mubr.bf16.mxu0 0
  %3750 = vmatmul.mubr.bf16.gmra.mrb[0].mxu0 %v3692
  %v3751 = vpop.f32.mrb[0].mxu0
  %v3752 = vadd.f32 0.0, %v3751
  %v3753 = vpop.f32.mrb[0].mxu0
  %v3754 = vadd.f32 0.0, %v3753
  %v3755 = vpop.f32.mrb[0].mxu0
  %v3756 = vadd.f32 0.0, %v3755
  %v3757 = vpop.f32.mrb[0].mxu0
  %v3758 = vadd.f32 0.0, %v3757
  %3759 = vmatprep.mubr.bf16.mxu0 0
  %3760 = vmatmul.mubr.bf16.gmra.mrb[0].mxu0 %v3693
  %v3761 = vpop.f32.mrb[0].mxu0
  %v3762 = vadd.f32 0.0, %v3761
  %v3763 = vpop.f32.mrb[0].mxu0
  %v3764 = vadd.f32 0.0, %v3763
  %v3765 = vpop.f32.mrb[0].mxu0
  %v3766 = vadd.f32 0.0, %v3765
  %v3767 = vpop.f32.mrb[0].mxu0
  %v3768 = vadd.f32 0.0, %v3767
  %3769 = vmatprep.mubr.bf16.mxu0 0
  %3770 = vmatmul.mubr.bf16.gmra.mrb[0].mxu0 %v3694
  %v3771 = vpop.f32.mrb[0].mxu0
  %v3772 = vadd.f32 0.0, %v3771
  %v3773 = vpop.f32.mrb[0].mxu0
  %v3774 = vadd.f32 0.0, %v3773
  %v3775 = vpop.f32.mrb[0].mxu0
  %v3776 = vadd.f32 0.0, %v3775
  %v3777 = vpop.f32.mrb[0].mxu0
  %v3778 = vadd.f32 0.0, %v3777
  %3779 = vmatprep.mubr.bf16.mxu0 0
  %3780 = vmatmul.mubr.bf16.gmra.mrb[0].mxu0 %v3695
  %v3781 = vpop.f32.mrb[0].mxu0
  %v3782 = vadd.f32 0.0, %v3781
  %v3783 = vpop.f32.mrb[0].mxu0
  %v3784 = vadd.f32 0.0, %v3783
  %v3785 = vpop.f32.mrb[0].mxu0
  %v3786 = vadd.f32 0.0, %v3785
  %v3787 = vpop.f32.mrb[0].mxu0
  %v3788 = vadd.f32 0.0, %v3787
  %3789 = vmatprep.mubr.bf16.mxu0 0
  %3790 = vmatmul.mubr.bf16.gmra.mrb[0].mxu0 %v3696
  %v3791 = vpop.f32.mrb[0].mxu0
  %v3792 = vadd.f32 0.0, %v3791
  %v3793 = vpop.f32.mrb[0].mxu0
  %v3794 = vadd.f32 0.0, %v3793
  %v3795 = vpop.f32.mrb[0].mxu0
  %v3796 = vadd.f32 0.0, %v3795
  %v3797 = vpop.f32.mrb[0].mxu0
  %v3798 = vadd.f32 0.0, %v3797
  %3799 = vmatprep.mubr.bf16.mxu0 0
  %3800 = vmatmul.mubr.bf16.gmra.mrb[0].mxu0 %v3697
  %v3801 = vpop.f32.mrb[0].mxu0
  %v3802 = vadd.f32 0.0, %v3801
  %v3803 = vpop.f32.mrb[0].mxu0
  %v3804 = vadd.f32 0.0, %v3803
  %v3805 = vpop.f32.mrb[0].mxu0
  %v3806 = vadd.f32 0.0, %v3805
  %v3807 = vpop.f32.mrb[0].mxu0
  %v3808 = vadd.f32 0.0, %v3807
  %3809 = vmatprep.mubr.bf16.mxu0 0
  %3810 = vmatmul.mubr.bf16.gmra.mrb[0].mxu0 %v3698
  %v3811 = vpop.f32.mrb[0].mxu0
  %v3812 = vadd.f32 0.0, %v3811
  %v3813 = vpop.f32.mrb[0].mxu0
  %v3814 = vadd.f32 0.0, %v3813
  %v3815 = vpop.f32.mrb[0].mxu0
  %v3816 = vadd.f32 0.0, %v3815
  %v3817 = vpop.f32.mrb[0].mxu0
  %v3818 = vadd.f32 0.0, %v3817
  %3819 = vdwg.mxu0
  %3820 = vmatprep.subr.bf16.mxu0 %v3630
  %3821 = vmatpush1.bf16.msra.mxu0 %v3629
  %3822 = vmatprep.subr.bf16.mxu0 %v3634
  %3823 = vmatpush1.bf16.msra.mxu0 %v3633
  %3824 = vmatprep.subr.bf16.mxu0 %v3638
  %3825 = vmatpush1.bf16.msra.mxu0 %v3637
  %3826 = vmatprep.subr.bf16.mxu0 %v3642
  %3827 = vmatpush1.bf16.msra.mxu0 %v3641
  %3828 = vmatprep.subr.bf16.mxu0 %v3646
  %3829 = vmatpush1.bf16.msra.mxu0 %v3645
  %3830 = vmatprep.subr.bf16.mxu0 %v3650
  %3831 = vmatpush1.bf16.msra.mxu0 %v3649
  %3832 = vmatprep.subr.bf16.mxu0 %v3654
  %3833 = vmatpush1.bf16.msra.mxu0 %v3653
  %3834 = vmatprep.subr.bf16.mxu0 %v3658
  %3835 = vmatpush1.bf16.msra.mxu0 %v3657
  %3836 = vmatprep.subr.bf16.mxu0 0
  %3837 = vmatpush1.bf16.msra.mxu0 0
  %3838 = vmatprep.subr.bf16.mxu0 0
  %3839 = vmatpush1.bf16.msra.mxu0 0
  %3840 = vmatprep.subr.bf16.mxu0 0
  %3841 = vmatpush1.bf16.msra.mxu0 0
  %3842 = vmatprep.subr.bf16.mxu0 0
  %3843 = vmatpush1.bf16.msra.mxu0 0
  %3844 = vmatprep.subr.bf16.mxu0 0
  %3845 = vmatpush1.bf16.msra.mxu0 0
  %3846 = vmatprep.subr.bf16.mxu0 0
  %3847 = vmatpush1.bf16.msra.mxu0 0
  %3848 = vmatprep.subr.bf16.mxu0 0
  %3849 = vmatpush1.bf16.msra.mxu0 0
  %3850 = vmatprep.subr.bf16.mxu0 0
  %3851 = vmatpush1.bf16.msra.mxu0 0
  %3852 = vmatprep.mubr.bf16.mxu0 0
  %3853 = vmatmul.mubr.bf16.gmra.mrb[0].mxu0 %v3691
  %v3854 = vpop.f32.mrb[0].mxu0
  %v3855 = vadd.f32 0.0, %v3854
  %v3856 = vpop.f32.mrb[0].mxu0
  %v3857 = vadd.f32 0.0, %v3856
  %v3858 = vpop.f32.mrb[0].mxu0
  %v3859 = vadd.f32 0.0, %v3858
  %v3860 = vpop.f32.mrb[0].mxu0
  %v3861 = vadd.f32 0.0, %v3860
  %3862 = vmatprep.mubr.bf16.mxu0 0
  %3863 = vmatmul.mubr.bf16.gmra.mrb[0].mxu0 %v3692
  %v3864 = vpop.f32.mrb[0].mxu0
  %v3865 = vadd.f32 0.0, %v3864
  %v3866 = vpop.f32.mrb[0].mxu0
  %v3867 = vadd.f32 0.0, %v3866
  %v3868 = vpop.f32.mrb[0].mxu0
  %v3869 = vadd.f32 0.0, %v3868
  %v3870 = vpop.f32.mrb[0].mxu0
  %v3871 = vadd.f32 0.0, %v3870
  %3872 = vmatprep.mubr.bf16.mxu0 0
  %3873 = vmatmul.mubr.bf16.gmra.mrb[0].mxu0 %v3693
  %v3874 = vpop.f32.mrb[0].mxu0
  %v3875 = vadd.f32 0.0, %v3874
  %v3876 = vpop.f32.mrb[0].mxu0
  %v3877 = vadd.f32 0.0, %v3876
  %v3878 = vpop.f32.mrb[0].mxu0
  %v3879 = vadd.f32 0.0, %v3878
  %v3880 = vpop.f32.mrb[0].mxu0
  %v3881 = vadd.f32 0.0, %v3880
  %3882 = vmatprep.mubr.bf16.mxu0 0
  %3883 = vmatmul.mubr.bf16.gmra.mrb[0].mxu0 %v3694
  %v3884 = vpop.f32.mrb[0].mxu0
  %v3885 = vadd.f32 0.0, %v3884
  %v3886 = vpop.f32.mrb[0].mxu0
  %v3887 = vadd.f32 0.0, %v3886
  %v3888 = vpop.f32.mrb[0].mxu0
  %v3889 = vadd.f32 0.0, %v3888
  %v3890 = vpop.f32.mrb[0].mxu0
  %v3891 = vadd.f32 0.0, %v3890
  %3892 = vmatprep.mubr.bf16.mxu0 0
  %3893 = vmatmul.mubr.bf16.gmra.mrb[0].mxu0 %v3695
  %v3894 = vpop.f32.mrb[0].mxu0
  %v3895 = vadd.f32 0.0, %v3894
  %v3896 = vpop.f32.mrb[0].mxu0
  %v3897 = vadd.f32 0.0, %v3896
  %v3898 = vpop.f32.mrb[0].mxu0
  %v3899 = vadd.f32 0.0, %v3898
  %v3900 = vpop.f32.mrb[0].mxu0
  %v3901 = vadd.f32 0.0, %v3900
  %3902 = vmatprep.mubr.bf16.mxu0 0
  %3903 = vmatmul.mubr.bf16.gmra.mrb[0].mxu0 %v3696
  %v3904 = vpop.f32.mrb[0].mxu0
  %v3905 = vadd.f32 0.0, %v3904
  %v3906 = vpop.f32.mrb[0].mxu0
  %v3907 = vadd.f32 0.0, %v3906
  %v3908 = vpop.f32.mrb[0].mxu0
  %v3909 = vadd.f32 0.0, %v3908
  %v3910 = vpop.f32.mrb[0].mxu0
  %v3911 = vadd.f32 0.0, %v3910
  %3912 = vmatprep.mubr.bf16.mxu0 0
  %3913 = vmatmul.mubr.bf16.gmra.mrb[0].mxu0 %v3697
  %v3914 = vpop.f32.mrb[0].mxu0
  %v3915 = vadd.f32 0.0, %v3914
  %v3916 = vpop.f32.mrb[0].mxu0
  %v3917 = vadd.f32 0.0, %v3916
  %v3918 = vpop.f32.mrb[0].mxu0
  %v3919 = vadd.f32 0.0, %v3918
  %v3920 = vpop.f32.mrb[0].mxu0
  %v3921 = vadd.f32 0.0, %v3920
  %3922 = vmatprep.mubr.bf16.mxu0 0
  %3923 = vmatmul.mubr.bf16.gmra.mrb[0].mxu0 %v3698
  %v3924 = vpop.f32.mrb[0].mxu0
  %v3925 = vadd.f32 0.0, %v3924
  %v3926 = vpop.f32.mrb[0].mxu0
  %v3927 = vadd.f32 0.0, %v3926
  %v3928 = vpop.f32.mrb[0].mxu0
  %v3929 = vadd.f32 0.0, %v3928
  %v3930 = vpop.f32.mrb[0].mxu0
  %v3931 = vadd.f32 0.0, %v3930
  %3932 = vdwg.mxu0
  %v3933 = vsub.f32 %v3742, %v3855
  %v3934 = vsub.f32 %v3744, %v3857
  %v3935 = vsub.f32 %v3746, %v3859
  %v3936 = vsub.f32 %v3748, %v3861
  %v3937 = vsub.f32 %v3752, %v3865
  %v3938 = vsub.f32 %v3754, %v3867
  %v3939 = vsub.f32 %v3756, %v3869
  %v3940 = vsub.f32 %v3758, %v3871
  %v3941 = vsub.f32 %v3762, %v3875
  %v3942 = vsub.f32 %v3764, %v3877
  %v3943 = vsub.f32 %v3766, %v3879
  %v3944 = vsub.f32 %v3768, %v3881
  %v3945 = vsub.f32 %v3772, %v3885
  %v3946 = vsub.f32 %v3774, %v3887
  %v3947 = vsub.f32 %v3776, %v3889
  %v3948 = vsub.f32 %v3778, %v3891
  %v3949 = vsub.f32 %v3782, %v3895
  %v3950 = vsub.f32 %v3784, %v3897
  %v3951 = vsub.f32 %v3786, %v3899
  %v3952 = vsub.f32 %v3788, %v3901
  %v3953 = vsub.f32 %v3792, %v3905
  %v3954 = vsub.f32 %v3794, %v3907
  %v3955 = vsub.f32 %v3796, %v3909
  %v3956 = vsub.f32 %v3798, %v3911
  %v3957 = vsub.f32 %v3802, %v3915
  %v3958 = vsub.f32 %v3804, %v3917
  %v3959 = vsub.f32 %v3806, %v3919
  %v3960 = vsub.f32 %v3808, %v3921
  %v3961 = vsub.f32 %v3812, %v3925
  %v3962 = vsub.f32 %v3814, %v3927
  %v3963 = vsub.f32 %v3816, %v3929
  %v3964 = vsub.f32 %v3818, %v3931
  %v3965 = vsub.f32 0.0, %v3933
  %v3966 = vsub.f32 0.0, %v3934
  %v3967 = vsub.f32 0.0, %v3935
  %v3968 = vsub.f32 0.0, %v3936
  %v3969 = vsub.f32 0.0, %v3937
  %v3970 = vsub.f32 0.0, %v3938
  %v3971 = vsub.f32 0.0, %v3939
  %v3972 = vsub.f32 0.0, %v3940
  %v3973 = vsub.f32 0.0, %v3941
  %v3974 = vsub.f32 0.0, %v3942
  %v3975 = vsub.f32 0.0, %v3943
  %v3976 = vsub.f32 0.0, %v3944
  %v3977 = vsub.f32 0.0, %v3945
  %v3978 = vsub.f32 0.0, %v3946
  %v3979 = vsub.f32 0.0, %v3947
  %v3980 = vsub.f32 0.0, %v3948
  %v3981 = vsub.f32 0.0, %v3949
  %v3982 = vsub.f32 0.0, %v3950
  %v3983 = vsub.f32 0.0, %v3951
  %v3984 = vsub.f32 0.0, %v3952
  %v3985 = vsub.f32 0.0, %v3953
  %v3986 = vsub.f32 0.0, %v3954
  %v3987 = vsub.f32 0.0, %v3955
  %v3988 = vsub.f32 0.0, %v3956
  %v3989 = vsub.f32 0.0, %v3957
  %v3990 = vsub.f32 0.0, %v3958
  %v3991 = vsub.f32 0.0, %v3959
  %v3992 = vsub.f32 0.0, %v3960
  %v3993 = vsub.f32 0.0, %v3961
  %v3994 = vsub.f32 0.0, %v3962
  %v3995 = vsub.f32 0.0, %v3963
  %v3996 = vsub.f32 0.0, %v3964
  %v3997 = vmul.f32 %v3965, 1.442695
  %v3998 = vpow.pop %v3997
  %v3999 = vmul.f32 %v3966, 1.442695
  %v4000 = vpow.pop %v3999
  %v4001 = vmul.f32 %v3967, 1.442695
  %v4002 = vpow.pop %v4001
  %v4003 = vmul.f32 %v3968, 1.442695
  %v4004 = vpow.pop %v4003
  %v4005 = vmul.f32 %v3969, 1.442695
  %v4006 = vpow.pop %v4005
  %v4007 = vmul.f32 %v3970, 1.442695
  %v4008 = vpow.pop %v4007
  %v4009 = vmul.f32 %v3971, 1.442695
  %v4010 = vpow.pop %v4009
  %v4011 = vmul.f32 %v3972, 1.442695
  %v4012 = vpow.pop %v4011
  %v4013 = vmul.f32 %v3973, 1.442695
  %v4014 = vpow.pop %v4013
  %v4015 = vmul.f32 %v3974, 1.442695
  %v4016 = vpow.pop %v4015
  %v4017 = vmul.f32 %v3975, 1.442695
  %v4018 = vpow.pop %v4017
  %v4019 = vmul.f32 %v3976, 1.442695
  %v4020 = vpow.pop %v4019
  %v4021 = vmul.f32 %v3977, 1.442695
  %v4022 = vpow.pop %v4021
  %v4023 = vmul.f32 %v3978, 1.442695
  %v4024 = vpow.pop %v4023
  %v4025 = vmul.f32 %v3979, 1.442695
  %v4026 = vpow.pop %v4025
  %v4027 = vmul.f32 %v3980, 1.442695
  %v4028 = vpow.pop %v4027
  %v4029 = vmul.f32 %v3981, 1.442695
  %v4030 = vpow.pop %v4029
  %v4031 = vmul.f32 %v3982, 1.442695
  %v4032 = vpow.pop %v4031
  %v4033 = vmul.f32 %v3983, 1.442695
  %v4034 = vpow.pop %v4033
  %v4035 = vmul.f32 %v3984, 1.442695
  %v4036 = vpow.pop %v4035
  %v4037 = vmul.f32 %v3985, 1.442695
  %v4038 = vpow.pop %v4037
  %v4039 = vmul.f32 %v3986, 1.442695
  %v4040 = vpow.pop %v4039
  %v4041 = vmul.f32 %v3987, 1.442695
  %v4042 = vpow.pop %v4041
  %v4043 = vmul.f32 %v3988, 1.442695
  %v4044 = vpow.pop %v4043
  %v4045 = vmul.f32 %v3989, 1.442695
  %v4046 = vpow.pop %v4045
  %v4047 = vmul.f32 %v3990, 1.442695
  %v4048 = vpow.pop %v4047
  %v4049 = vmul.f32 %v3991, 1.442695
  %v4050 = vpow.pop %v4049
  %v4051 = vmul.f32 %v3992, 1.442695
  %v4052 = vpow.pop %v4051
  %v4053 = vmul.f32 %v3993, 1.442695
  %v4054 = vpow.pop %v4053
  %v4055 = vmul.f32 %v3994, 1.442695
  %v4056 = vpow.pop %v4055
  %v4057 = vmul.f32 %v3995, 1.442695
  %v4058 = vpow.pop %v4057
  %v4059 = vmul.f32 %v3996, 1.442695
  %v4060 = vpow.pop %v4059
  %v4061 = vadd.f32 %v3998, 1.0
  %v4062 = vadd.f32 %v4000, 1.0
  %v4063 = vadd.f32 %v4002, 1.0
  %v4064 = vadd.f32 %v4004, 1.0
  %v4065 = vadd.f32 %v4006, 1.0
  %v4066 = vadd.f32 %v4008, 1.0
  %v4067 = vadd.f32 %v4010, 1.0
  %v4068 = vadd.f32 %v4012, 1.0
  %v4069 = vadd.f32 %v4014, 1.0
  %v4070 = vadd.f32 %v4016, 1.0
  %v4071 = vadd.f32 %v4018, 1.0
  %v4072 = vadd.f32 %v4020, 1.0
  %v4073 = vadd.f32 %v4022, 1.0
  %v4074 = vadd.f32 %v4024, 1.0
  %v4075 = vadd.f32 %v4026, 1.0
  %v4076 = vadd.f32 %v4028, 1.0
  %v4077 = vadd.f32 %v4030, 1.0
  %v4078 = vadd.f32 %v4032, 1.0
  %v4079 = vadd.f32 %v4034, 1.0
  %v4080 = vadd.f32 %v4036, 1.0
  %v4081 = vadd.f32 %v4038, 1.0
  %v4082 = vadd.f32 %v4040, 1.0
  %v4083 = vadd.f32 %v4042, 1.0
  %v4084 = vadd.f32 %v4044, 1.0
  %v4085 = vadd.f32 %v4046, 1.0
  %v4086 = vadd.f32 %v4048, 1.0
  %v4087 = vadd.f32 %v4050, 1.0
  %v4088 = vadd.f32 %v4052, 1.0
  %v4089 = vadd.f32 %v4054, 1.0
  %v4090 = vadd.f32 %v4056, 1.0
  %v4091 = vadd.f32 %v4058, 1.0
  %v4092 = vadd.f32 %v4060, 1.0
  %v4093 = vrcp.pop %v4061
  %v4094 = vrcp.pop %v4062
  %v4095 = vrcp.pop %v4063
  %v4096 = vrcp.pop %v4064
  %v4097 = vrcp.pop %v4065
  %v4098 = vrcp.pop %v4066
  %v4099 = vrcp.pop %v4067
  %v4100 = vrcp.pop %v4068
  %v4101 = vrcp.pop %v4069
  %v4102 = vrcp.pop %v4070
  %v4103 = vrcp.pop %v4071
  %v4104 = vrcp.pop %v4072
  %v4105 = vrcp.pop %v4073
  %v4106 = vrcp.pop %v4074
  %v4107 = vrcp.pop %v4075
  %v4108 = vrcp.pop %v4076
  %v4109 = vrcp.pop %v4077
  %v4110 = vrcp.pop %v4078
  %v4111 = vrcp.pop %v4079
  %v4112 = vrcp.pop %v4080
  %v4113 = vrcp.pop %v4081
  %v4114 = vrcp.pop %v4082
  %v4115 = vrcp.pop %v4083
  %v4116 = vrcp.pop %v4084
  %v4117 = vrcp.pop %v4085
  %v4118 = vrcp.pop %v4086
  %v4119 = vrcp.pop %v4087
  %v4120 = vrcp.pop %v4088
  %v4121 = vrcp.pop %v4089
  %v4122 = vrcp.pop %v4090
  %v4123 = vrcp.pop %v4091
  %v4124 = vrcp.pop %v4092
  %v4125 = vmul.f32 %v4093, %v3332
  %v4126 = vmul.f32 %v4094, %v3334
  %v4127 = vmul.f32 %v4095, %v3336
  %v4128 = vmul.f32 %v4096, %v3338
  %v4129 = vmul.f32 %v4097, %v3342
  %v4130 = vmul.f32 %v4098, %v3344
  %v4131 = vmul.f32 %v4099, %v3346
  %v4132 = vmul.f32 %v4100, %v3348
  %v4133 = vmul.f32 %v4101, %v3352
  %v4134 = vmul.f32 %v4102, %v3354
  %v4135 = vmul.f32 %v4103, %v3356
  %v4136 = vmul.f32 %v4104, %v3358
  %v4137 = vmul.f32 %v4105, %v3362
  %v4138 = vmul.f32 %v4106, %v3364
  %v4139 = vmul.f32 %v4107, %v3366
  %v4140 = vmul.f32 %v4108, %v3368
  %v4141 = vsub.f32 1.0, %v4093
  %v4142 = vsub.f32 1.0, %v4094
  %v4143 = vsub.f32 1.0, %v4095
  %v4144 = vsub.f32 1.0, %v4096
  %v4145 = vsub.f32 1.0, %v4097
  %v4146 = vsub.f32 1.0, %v4098
  %v4147 = vsub.f32 1.0, %v4099
  %v4148 = vsub.f32 1.0, %v4100
  %v4149 = vsub.f32 1.0, %v4101
  %v4150 = vsub.f32 1.0, %v4102
  %v4151 = vsub.f32 1.0, %v4103
  %v4152 = vsub.f32 1.0, %v4104
  %v4153 = vsub.f32 1.0, %v4105
  %v4154 = vsub.f32 1.0, %v4106
  %v4155 = vsub.f32 1.0, %v4107
  %v4156 = vsub.f32 1.0, %v4108
  %v4157 = vmul.f32 %v4141, %v3525
  %v4158 = vmul.f32 %v4142, %v3527
  %v4159 = vmul.f32 %v4143, %v3529
  %v4160 = vmul.f32 %v4144, %v3531
  %v4161 = vmul.f32 %v4145, %v3535
  %v4162 = vmul.f32 %v4146, %v3537
  %v4163 = vmul.f32 %v4147, %v3539
  %v4164 = vmul.f32 %v4148, %v3541
  %v4165 = vmul.f32 %v4149, %v3545
  %v4166 = vmul.f32 %v4150, %v3547
  %v4167 = vmul.f32 %v4151, %v3549
  %v4168 = vmul.f32 %v4152, %v3551
  %v4169 = vmul.f32 %v4153, %v3555
  %v4170 = vmul.f32 %v4154, %v3557
  %v4171 = vmul.f32 %v4155, %v3559
  %v4172 = vmul.f32 %v4156, %v3561
  %v4173 = vadd.f32 %v4125, %v4157
  %v4174 = vadd.f32 %v4126, %v4158
  %v4175 = vadd.f32 %v4127, %v4159
  %v4176 = vadd.f32 %v4128, %v4160
  %v4177 = vadd.f32 %v4129, %v4161
  %v4178 = vadd.f32 %v4130, %v4162
  %v4179 = vadd.f32 %v4131, %v4163
  %v4180 = vadd.f32 %v4132, %v4164
  %v4181 = vadd.f32 %v4133, %v4165
  %v4182 = vadd.f32 %v4134, %v4166
  %v4183 = vadd.f32 %v4135, %v4167
  %v4184 = vadd.f32 %v4136, %v4168
  %v4185 = vadd.f32 %v4137, %v4169
  %v4186 = vadd.f32 %v4138, %v4170
  %v4187 = vadd.f32 %v4139, %v4171
  %v4188 = vadd.f32 %v4140, %v4172
  %v4189 = vmul.f32 %v4109, %v3332
  %v4190 = vmul.f32 %v4110, %v3334
  %v4191 = vmul.f32 %v4111, %v3336
  %v4192 = vmul.f32 %v4112, %v3338
  %v4193 = vmul.f32 %v4113, %v3342
  %v4194 = vmul.f32 %v4114, %v3344
  %v4195 = vmul.f32 %v4115, %v3346
  %v4196 = vmul.f32 %v4116, %v3348
  %v4197 = vmul.f32 %v4117, %v3352
  %v4198 = vmul.f32 %v4118, %v3354
  %v4199 = vmul.f32 %v4119, %v3356
  %v4200 = vmul.f32 %v4120, %v3358
  %v4201 = vmul.f32 %v4121, %v3362
  %v4202 = vmul.f32 %v4122, %v3364
  %v4203 = vmul.f32 %v4123, %v3366
  %v4204 = vmul.f32 %v4124, %v3368
  %v4205 = vsub.f32 1.0, %v4109
  %v4206 = vsub.f32 1.0, %v4110
  %v4207 = vsub.f32 1.0, %v4111
  %v4208 = vsub.f32 1.0, %v4112
  %v4209 = vsub.f32 1.0, %v4113
  %v4210 = vsub.f32 1.0, %v4114
  %v4211 = vsub.f32 1.0, %v4115
  %v4212 = vsub.f32 1.0, %v4116
  %v4213 = vsub.f32 1.0, %v4117
  %v4214 = vsub.f32 1.0, %v4118
  %v4215 = vsub.f32 1.0, %v4119
  %v4216 = vsub.f32 1.0, %v4120
  %v4217 = vsub.f32 1.0, %v4121
  %v4218 = vsub.f32 1.0, %v4122
  %v4219 = vsub.f32 1.0, %v4123
  %v4220 = vsub.f32 1.0, %v4124
  %v4221 = vmul.f32 %v4205, %v3525
  %v4222 = vmul.f32 %v4206, %v3527
  %v4223 = vmul.f32 %v4207, %v3529
  %v4224 = vmul.f32 %v4208, %v3531
  %v4225 = vmul.f32 %v4209, %v3535
  %v4226 = vmul.f32 %v4210, %v3537
  %v4227 = vmul.f32 %v4211, %v3539
  %v4228 = vmul.f32 %v4212, %v3541
  %v4229 = vmul.f32 %v4213, %v3545
  %v4230 = vmul.f32 %v4214, %v3547
  %v4231 = vmul.f32 %v4215, %v3549
  %v4232 = vmul.f32 %v4216, %v3551
  %v4233 = vmul.f32 %v4217, %v3555
  %v4234 = vmul.f32 %v4218, %v3557
  %v4235 = vmul.f32 %v4219, %v3559
  %v4236 = vmul.f32 %v4220, %v3561
  %v4237 = vadd.f32 %v4189, %v4221
  %v4238 = vadd.f32 %v4190, %v4222
  %v4239 = vadd.f32 %v4191, %v4223
  %v4240 = vadd.f32 %v4192, %v4224
  %v4241 = vadd.f32 %v4193, %v4225
  %v4242 = vadd.f32 %v4194, %v4226
  %v4243 = vadd.f32 %v4195, %v4227
  %v4244 = vadd.f32 %v4196, %v4228
  %v4245 = vadd.f32 %v4197, %v4229
  %v4246 = vadd.f32 %v4198, %v4230
  %v4247 = vadd.f32 %v4199, %v4231
  %v4248 = vadd.f32 %v4200, %v4232
  %v4249 = vadd.f32 %v4201, %v4233
  %v4250 = vadd.f32 %v4202, %v4234
  %v4251 = vadd.f32 %v4203, %v4235
  %v4252 = vadd.f32 %v4204, %v4236
  %v4253 = vpack.c.bf16 %v4175, %v4173
  %v4254 = vpack.c.bf16 %v4176, %v4174
  %v4255 = vpack.c.bf16 %v4239, %v4237
  %v4256 = vpack.c.bf16 %v4240, %v4238
  %v4257 = vpack.c.bf16 %v4179, %v4177
  %v4258 = vpack.c.bf16 %v4180, %v4178
  %v4259 = vpack.c.bf16 %v4243, %v4241
  %v4260 = vpack.c.bf16 %v4244, %v4242
  %v4261 = vpack.c.bf16 %v4183, %v4181
  %v4262 = vpack.c.bf16 %v4184, %v4182
  %v4263 = vpack.c.bf16 %v4247, %v4245
  %v4264 = vpack.c.bf16 %v4248, %v4246
  %v4265 = vpack.c.bf16 %v4187, %v4185
  %v4266 = vpack.c.bf16 %v4188, %v4186
  %v4267 = vpack.c.bf16 %v4251, %v4249
  %v4268 = vpack.c.bf16 %v4252, %v4250
  %4270 = vset.pattern.permute.xlu0 0
  %4271 = vperm.xlu0 %4270, %v2865
  %v4272 = vpop.permute.xlu0 %4271
  %4275 = vset.pattern.permute.xlu0 0
  %4276 = vperm.xlu0 %4275, %v2866
  %v4277 = vpop.permute.xlu0 %4276
  %4280 = vset.pattern.permute.xlu0 0
  %4281 = vperm.xlu0 %4280, %v2867
  %v4282 = vpop.permute.xlu0 %4281
  %4285 = vset.pattern.permute.xlu0 0
  %4286 = vperm.xlu0 %4285, %v2868
  %v4287 = vpop.permute.xlu0 %4286
  %4290 = vset.pattern.permute.xlu0 0
  %4291 = vperm.xlu0 %4290, %v2869
  %v4292 = vpop.permute.xlu0 %4291
  %4295 = vset.pattern.permute.xlu0 0
  %4296 = vperm.xlu0 %4295, %v2870
  %v4297 = vpop.permute.xlu0 %4296
  %4300 = vset.pattern.permute.xlu0 0
  %4301 = vperm.xlu0 %4300, %v2871
  %v4302 = vpop.permute.xlu0 %4301
  %4305 = vset.pattern.permute.xlu0 0
  %4306 = vperm.xlu0 %4305, %v2872
  %v4307 = vpop.permute.xlu0 %4306
  %v4317 = vunpack.c.l.b16 %v2857
  %v4318 = vunpack.c.l.b16 %v2858
  %v4319 = vunpack.c.l.b16 %v2859
  %v4320 = vunpack.c.l.b16 %v2860
  %v4321 = vunpack.c.l.b16 %v2861
  %v4322 = vunpack.c.l.b16 %v2862
  %v4323 = vunpack.c.l.b16 %v2863
  %v4324 = vunpack.c.l.b16 %v2864
  %v4325 = vpack.c.b16 %v4318, %v4317
  %v4326 = vpack.c.b16 %v4320, %v4319
  %v4327 = vpack.c.b16 %v4322, %v4321
  %v4328 = vpack.c.b16 %v4324, %v4323
  %v4330 = vsel %vm1354, %v4325, 0
  %v4333 = vsel %vm1354, %v4326, 0
  %v4336 = vsel %vm1354, %v4327, 0
  %v4339 = vsel %vm1354, %v4328, 0
  %4341 = vmatprep.subr.bf16.mxu0 %v4254
  %4342 = vmatpush1.bf16.msra.mxu0 %v4253
  %4343 = vmatprep.subr.bf16.mxu0 %v4258
  %4344 = vmatpush1.bf16.msra.mxu0 %v4257
  %4345 = vmatprep.subr.bf16.mxu0 %v4262
  %4346 = vmatpush1.bf16.msra.mxu0 %v4261
  %4347 = vmatprep.subr.bf16.mxu0 %v4266
  %4348 = vmatpush1.bf16.msra.mxu0 %v4265
  %4349 = vmatprep.subr.bf16.mxu0 0
  %4350 = vmatpush1.bf16.msra.mxu0 0
  %4351 = vmatprep.subr.bf16.mxu0 0
  %4352 = vmatpush1.bf16.msra.mxu0 0
  %4353 = vmatprep.subr.bf16.mxu0 0
  %4354 = vmatpush1.bf16.msra.mxu0 0
  %4355 = vmatprep.subr.bf16.mxu0 0
  %4356 = vmatpush1.bf16.msra.mxu0 0
  %4357 = vmatprep.subr.bf16.mxu0 0
  %4358 = vmatpush1.bf16.msra.mxu0 0
  %4359 = vmatprep.subr.bf16.mxu0 0
  %4360 = vmatpush1.bf16.msra.mxu0 0
  %4361 = vmatprep.subr.bf16.mxu0 0
  %4362 = vmatpush1.bf16.msra.mxu0 0
  %4363 = vmatprep.subr.bf16.mxu0 0
  %4364 = vmatpush1.bf16.msra.mxu0 0
  %4365 = vmatprep.subr.bf16.mxu0 0
  %4366 = vmatpush1.bf16.msra.mxu0 0
  %4367 = vmatprep.subr.bf16.mxu0 0
  %4368 = vmatpush1.bf16.msra.mxu0 0
  %4369 = vmatprep.subr.bf16.mxu0 0
  %4370 = vmatpush1.bf16.msra.mxu0 0
  %4371 = vmatprep.subr.bf16.mxu0 0
  %4372 = vmatpush1.bf16.msra.mxu0 0
  %4373 = vmatprep.mubr.bf16.mxu0 0
  %4374 = vmatmul.mubr.bf16.gmra.mrb[0].mxu0 %v4330
  %v4375 = vpop.f32.mrb[0].mxu0
  %v4376 = vadd.f32 %v4272, %v4375
  %v4377 = vpop.f32.mrb[0].mxu0
  %v4378 = vadd.f32 %v4272, %v4377
  %v4379 = vpop.f32.mrb[0].mxu0
  %v4380 = vadd.f32 %v4277, %v4379
  %v4381 = vpop.f32.mrb[0].mxu0
  %v4382 = vadd.f32 %v4277, %v4381
  %4383 = vmatprep.mubr.bf16.mxu0 0
  %4384 = vmatmul.mubr.bf16.gmra.mrb[0].mxu0 %v4333
  %v4385 = vpop.f32.mrb[0].mxu0
  %v4386 = vadd.f32 %v4282, %v4385
  %v4387 = vpop.f32.mrb[0].mxu0
  %v4388 = vadd.f32 %v4282, %v4387
  %v4389 = vpop.f32.mrb[0].mxu0
  %v4390 = vadd.f32 %v4287, %v4389
  %v4391 = vpop.f32.mrb[0].mxu0
  %v4392 = vadd.f32 %v4287, %v4391
  %4393 = vmatprep.mubr.bf16.mxu0 0
  %4394 = vmatmul.mubr.bf16.gmra.mrb[0].mxu0 %v4336
  %v4395 = vpop.f32.mrb[0].mxu0
  %v4396 = vadd.f32 %v4292, %v4395
  %v4397 = vpop.f32.mrb[0].mxu0
  %v4398 = vadd.f32 %v4292, %v4397
  %v4399 = vpop.f32.mrb[0].mxu0
  %v4400 = vadd.f32 %v4297, %v4399
  %v4401 = vpop.f32.mrb[0].mxu0
  %v4402 = vadd.f32 %v4297, %v4401
  %4403 = vmatprep.mubr.bf16.mxu0 0
  %4404 = vmatmul.mubr.bf16.gmra.mrb[0].mxu0 %v4339
  %v4405 = vpop.f32.mrb[0].mxu0
  %v4406 = vadd.f32 %v4302, %v4405
  %v4407 = vpop.f32.mrb[0].mxu0
  %v4408 = vadd.f32 %v4302, %v4407
  %v4409 = vpop.f32.mrb[0].mxu0
  %v4410 = vadd.f32 %v4307, %v4409
  %v4411 = vpop.f32.mrb[0].mxu0
  %v4412 = vadd.f32 %v4307, %v4411
  %4413 = vdwg.mxu0
  %4414 = vmatprep.subr.bf16.mxu0 %v4256
  %4415 = vmatpush1.bf16.msra.mxu0 %v4255
  %4416 = vmatprep.subr.bf16.mxu0 %v4260
  %4417 = vmatpush1.bf16.msra.mxu0 %v4259
  %4418 = vmatprep.subr.bf16.mxu0 %v4264
  %4419 = vmatpush1.bf16.msra.mxu0 %v4263
  %4420 = vmatprep.subr.bf16.mxu0 %v4268
  %4421 = vmatpush1.bf16.msra.mxu0 %v4267
  %4422 = vmatprep.subr.bf16.mxu0 0
  %4423 = vmatpush1.bf16.msra.mxu0 0
  %4424 = vmatprep.subr.bf16.mxu0 0
  %4425 = vmatpush1.bf16.msra.mxu0 0
  %4426 = vmatprep.subr.bf16.mxu0 0
  %4427 = vmatpush1.bf16.msra.mxu0 0
  %4428 = vmatprep.subr.bf16.mxu0 0
  %4429 = vmatpush1.bf16.msra.mxu0 0
  %4430 = vmatprep.subr.bf16.mxu0 0
  %4431 = vmatpush1.bf16.msra.mxu0 0
  %4432 = vmatprep.subr.bf16.mxu0 0
  %4433 = vmatpush1.bf16.msra.mxu0 0
  %4434 = vmatprep.subr.bf16.mxu0 0
  %4435 = vmatpush1.bf16.msra.mxu0 0
  %4436 = vmatprep.subr.bf16.mxu0 0
  %4437 = vmatpush1.bf16.msra.mxu0 0
  %4438 = vmatprep.subr.bf16.mxu0 0
  %4439 = vmatpush1.bf16.msra.mxu0 0
  %4440 = vmatprep.subr.bf16.mxu0 0
  %4441 = vmatpush1.bf16.msra.mxu0 0
  %4442 = vmatprep.subr.bf16.mxu0 0
  %4443 = vmatpush1.bf16.msra.mxu0 0
  %4444 = vmatprep.subr.bf16.mxu0 0
  %4445 = vmatpush1.bf16.msra.mxu0 0
  %4446 = vmatprep.mubr.bf16.mxu0 0
  %4447 = vmatmul.mubr.bf16.gmra.mrb[0].mxu0 %v4330
  %v4448 = vpop.f32.mrb[0].mxu0
  %v4449 = vadd.f32 %v4272, %v4448
  %v4450 = vpop.f32.mrb[0].mxu0
  %v4451 = vadd.f32 %v4272, %v4450
  %v4452 = vpop.f32.mrb[0].mxu0
  %v4453 = vadd.f32 %v4277, %v4452
  %v4454 = vpop.f32.mrb[0].mxu0
  %v4455 = vadd.f32 %v4277, %v4454
  %4456 = vmatprep.mubr.bf16.mxu0 0
  %4457 = vmatmul.mubr.bf16.gmra.mrb[0].mxu0 %v4333
  %v4458 = vpop.f32.mrb[0].mxu0
  %v4459 = vadd.f32 %v4282, %v4458
  %v4460 = vpop.f32.mrb[0].mxu0
  %v4461 = vadd.f32 %v4282, %v4460
  %v4462 = vpop.f32.mrb[0].mxu0
  %v4463 = vadd.f32 %v4287, %v4462
  %v4464 = vpop.f32.mrb[0].mxu0
  %v4465 = vadd.f32 %v4287, %v4464
  %4466 = vmatprep.mubr.bf16.mxu0 0
  %4467 = vmatmul.mubr.bf16.gmra.mrb[0].mxu0 %v4336
  %v4468 = vpop.f32.mrb[0].mxu0
  %v4469 = vadd.f32 %v4292, %v4468
  %v4470 = vpop.f32.mrb[0].mxu0
  %v4471 = vadd.f32 %v4292, %v4470
  %v4472 = vpop.f32.mrb[0].mxu0
  %v4473 = vadd.f32 %v4297, %v4472
  %v4474 = vpop.f32.mrb[0].mxu0
  %v4475 = vadd.f32 %v4297, %v4474
  %4476 = vmatprep.mubr.bf16.mxu0 0
  %4477 = vmatmul.mubr.bf16.gmra.mrb[0].mxu0 %v4339
  %v4478 = vpop.f32.mrb[0].mxu0
  %v4479 = vadd.f32 %v4302, %v4478
  %v4480 = vpop.f32.mrb[0].mxu0
  %v4481 = vadd.f32 %v4302, %v4480
  %v4482 = vpop.f32.mrb[0].mxu0
  %v4483 = vadd.f32 %v4307, %v4482
  %v4484 = vpop.f32.mrb[0].mxu0
  %v4485 = vadd.f32 %v4307, %v4484
  %4486 = vdwg.mxu0
  %v4487 = vadd.f32 %v4376, %v3212
  %v4488 = vadd.f32 %v4378, %v3214
  %v4489 = vadd.f32 %v4449, %v3405
  %v4490 = vadd.f32 %v4451, %v3407
  %v4491 = vadd.f32 %v4380, %v3216
  %v4492 = vadd.f32 %v4382, %v3218
  %v4493 = vadd.f32 %v4453, %v3409
  %v4494 = vadd.f32 %v4455, %v3411
  %v4495 = vadd.f32 %v4386, %v3222
  %v4496 = vadd.f32 %v4388, %v3224
  %v4497 = vadd.f32 %v4459, %v3415
  %v4498 = vadd.f32 %v4461, %v3417
  %v4499 = vadd.f32 %v4390, %v3226
  %v4500 = vadd.f32 %v4392, %v3228
  %v4501 = vadd.f32 %v4463, %v3419
  %v4502 = vadd.f32 %v4465, %v3421
  %v4503 = vadd.f32 %v4396, %v3232
  %v4504 = vadd.f32 %v4398, %v3234
  %v4505 = vadd.f32 %v4469, %v3425
  %v4506 = vadd.f32 %v4471, %v3427
  %v4507 = vadd.f32 %v4400, %v3236
  %v4508 = vadd.f32 %v4402, %v3238
  %v4509 = vadd.f32 %v4473, %v3429
  %v4510 = vadd.f32 %v4475, %v3431
  %v4511 = vadd.f32 %v4406, %v3242
  %v4512 = vadd.f32 %v4408, %v3244
  %v4513 = vadd.f32 %v4479, %v3435
  %v4514 = vadd.f32 %v4481, %v3437
  %v4515 = vadd.f32 %v4410, %v3246
  %v4516 = vadd.f32 %v4412, %v3248
  %v4517 = vadd.f32 %v4483, %v3439
  %v4518 = vadd.f32 %v4485, %v3441
  %v4519 = vmax.f32 %v4487, 0.0
  %v4520 = vmax.f32 %v4488, 0.0
  %v4521 = vmax.f32 %v4489, 0.0
  %v4522 = vmax.f32 %v4490, 0.0
  %v4523 = vmax.f32 %v4491, 0.0
  %v4524 = vmax.f32 %v4492, 0.0
  %v4525 = vmax.f32 %v4493, 0.0
  %v4526 = vmax.f32 %v4494, 0.0
  %v4527 = vmax.f32 %v4495, 0.0
  %v4528 = vmax.f32 %v4496, 0.0
  %v4529 = vmax.f32 %v4497, 0.0
  %v4530 = vmax.f32 %v4498, 0.0
  %v4531 = vmax.f32 %v4499, 0.0
  %v4532 = vmax.f32 %v4500, 0.0
  %v4533 = vmax.f32 %v4501, 0.0
  %v4534 = vmax.f32 %v4502, 0.0
  %v4535 = vmax.f32 %v4503, 0.0
  %v4536 = vmax.f32 %v4504, 0.0
  %v4537 = vmax.f32 %v4505, 0.0
  %v4538 = vmax.f32 %v4506, 0.0
  %v4539 = vmax.f32 %v4507, 0.0
  %v4540 = vmax.f32 %v4508, 0.0
  %v4541 = vmax.f32 %v4509, 0.0
  %v4542 = vmax.f32 %v4510, 0.0
  %v4543 = vmax.f32 %v4511, 0.0
  %v4544 = vmax.f32 %v4512, 0.0
  %v4545 = vmax.f32 %v4513, 0.0
  %v4546 = vmax.f32 %v4514, 0.0
  %v4547 = vmax.f32 %v4515, 0.0
  %v4548 = vmax.f32 %v4516, 0.0
  %v4549 = vmax.f32 %v4517, 0.0
  %v4550 = vmax.f32 %v4518, 0.0
  %v4551 = vld [vmem:[%s13] sm:$0xf]
  %v4552 = vld [vmem:[%s13 + $0x4] sm:$0xf]
  %v4553 = vld [vmem:[%s13 + $0x8] sm:$0xf]
  %v4554 = vld [vmem:[%s13 + $0xc] sm:$0xf]
  %v4555 = vld [vmem:[%s13 + $0x10] sm:$0xf]
  %v4556 = vld [vmem:[%s13 + $0x14] sm:$0xf]
  %v4557 = vld [vmem:[%s13 + $0x18] sm:$0xf]
  %v4558 = vld [vmem:[%s13 + $0x1c] sm:$0xf]
  %v4559 = vld [vmem:[%s13 + $0x20] sm:$0xf]
  %v4560 = vld [vmem:[%s13 + $0x24] sm:$0xf]
  %v4561 = vld [vmem:[%s13 + $0x28] sm:$0xf]
  %v4562 = vld [vmem:[%s13 + $0x2c] sm:$0xf]
  %v4563 = vld [vmem:[%s13 + $0x30] sm:$0xf]
  %v4564 = vld [vmem:[%s13 + $0x34] sm:$0xf]
  %v4565 = vld [vmem:[%s13 + $0x38] sm:$0xf]
  %v4566 = vld [vmem:[%s13 + $0x3c] sm:$0xf]
  %v4567 = vld [vmem:[%s13 + $0x40] sm:$0xf]
  %v4568 = vld [vmem:[%s13 + $0x44] sm:$0xf]
  %v4569 = vld [vmem:[%s13 + $0x48] sm:$0xf]
  %v4570 = vld [vmem:[%s13 + $0x4c] sm:$0xf]
  %v4571 = vld [vmem:[%s13 + $0x50] sm:$0xf]
  %v4572 = vld [vmem:[%s13 + $0x54] sm:$0xf]
  %v4573 = vld [vmem:[%s13 + $0x58] sm:$0xf]
  %v4574 = vld [vmem:[%s13 + $0x5c] sm:$0xf]
  %v4575 = vld [vmem:[%s13 + $0x60] sm:$0xf]
  %v4576 = vld [vmem:[%s13 + $0x64] sm:$0xf]
  %v4577 = vld [vmem:[%s13 + $0x68] sm:$0xf]
  %v4578 = vld [vmem:[%s13 + $0x6c] sm:$0xf]
  %v4579 = vld [vmem:[%s13 + $0x70] sm:$0xf]
  %v4580 = vld [vmem:[%s13 + $0x74] sm:$0xf]
  %v4581 = vld [vmem:[%s13 + $0x78] sm:$0xf]
  %v4582 = vld [vmem:[%s13 + $0x7c] sm:$0xf]
  %v4583 = vld [vmem:[%s13 + $0x80] sm:$0xf]
  %v4584 = vld [vmem:[%s13 + $0x84] sm:$0xf]
  %v4585 = vld [vmem:[%s13 + $0x88] sm:$0xf]
  %v4586 = vld [vmem:[%s13 + $0x8c] sm:$0xf]
  %v4587 = vld [vmem:[%s13 + $0x90] sm:$0xf]
  %v4588 = vld [vmem:[%s13 + $0x94] sm:$0xf]
  %v4589 = vld [vmem:[%s13 + $0x98] sm:$0xf]
  %v4590 = vld [vmem:[%s13 + $0x9c] sm:$0xf]
  %v4591 = vld [vmem:[%s13 + $0xa0] sm:$0xf]
  %v4592 = vld [vmem:[%s13 + $0xa4] sm:$0xf]
  %v4593 = vld [vmem:[%s13 + $0xa8] sm:$0xf]
  %v4594 = vld [vmem:[%s13 + $0xac] sm:$0xf]
  %v4595 = vld [vmem:[%s13 + $0xb0] sm:$0xf]
  %v4596 = vld [vmem:[%s13 + $0xb4] sm:$0xf]
  %v4597 = vld [vmem:[%s13 + $0xb8] sm:$0xf]
  %v4598 = vld [vmem:[%s13 + $0xbc] sm:$0xf]
  %v4599 = vld [vmem:[%s13 + $0xc0] sm:$0xf]
  %v4600 = vld [vmem:[%s13 + $0xc4] sm:$0xf]
  %v4601 = vld [vmem:[%s13 + $0xc8] sm:$0xf]
  %v4602 = vld [vmem:[%s13 + $0xcc] sm:$0xf]
  %v4603 = vld [vmem:[%s13 + $0xd0] sm:$0xf]
  %v4604 = vld [vmem:[%s13 + $0xd4] sm:$0xf]
  %v4605 = vld [vmem:[%s13 + $0xd8] sm:$0xf]
  %v4606 = vld [vmem:[%s13 + $0xdc] sm:$0xf]
  %v4607 = vld [vmem:[%s13 + $0xe0] sm:$0xf]
  %v4608 = vld [vmem:[%s13 + $0xe4] sm:$0xf]
  %v4609 = vld [vmem:[%s13 + $0xe8] sm:$0xf]
  %v4610 = vld [vmem:[%s13 + $0xec] sm:$0xf]
  %v4611 = vld [vmem:[%s13 + $0xf0] sm:$0xf]
  %v4612 = vld [vmem:[%s13 + $0xf4] sm:$0xf]
  %v4613 = vld [vmem:[%s13 + $0xf8] sm:$0xf]
  %v4614 = vld [vmem:[%s13 + $0xfc] sm:$0xf]
  %v4615 = vld [vmem:[%s14] sm:$0xff]
  %v4616 = vld [vmem:[%s14 + $0x8] sm:$0xff]
  %v4617 = vld [vmem:[%s14 + $0x10] sm:$0xff]
  %v4618 = vld [vmem:[%s14 + $0x18] sm:$0xff]
  %v4619 = vld [vmem:[%s14 + $0x20] sm:$0xff]
  %v4620 = vld [vmem:[%s14 + $0x28] sm:$0xff]
  %v4621 = vld [vmem:[%s14 + $0x30] sm:$0xff]
  %v4622 = vld [vmem:[%s14 + $0x38] sm:$0xff]
  %v4623 = vld [vmem:[%s14 + $0x40] sm:$0xff]
  %v4624 = vld [vmem:[%s14 + $0x48] sm:$0xff]
  %v4625 = vld [vmem:[%s14 + $0x50] sm:$0xff]
  %v4626 = vld [vmem:[%s14 + $0x58] sm:$0xff]
  %v4627 = vld [vmem:[%s14 + $0x60] sm:$0xff]
  %v4628 = vld [vmem:[%s14 + $0x68] sm:$0xff]
  %v4629 = vld [vmem:[%s14 + $0x70] sm:$0xff]
  %v4630 = vld [vmem:[%s14 + $0x78] sm:$0xff]
  %v4631 = vld [vmem:[%s14 + $0x80] sm:$0xff]
  %v4632 = vld [vmem:[%s14 + $0x88] sm:$0xff]
  %v4633 = vld [vmem:[%s14 + $0x90] sm:$0xff]
  %v4634 = vld [vmem:[%s14 + $0x98] sm:$0xff]
  %v4635 = vld [vmem:[%s14 + $0xa0] sm:$0xff]
  %v4636 = vld [vmem:[%s14 + $0xa8] sm:$0xff]
  %v4637 = vld [vmem:[%s14 + $0xb0] sm:$0xff]
  %v4638 = vld [vmem:[%s14 + $0xb8] sm:$0xff]
  %v4639 = vld [vmem:[%s14 + $0xc0] sm:$0xff]
  %v4640 = vld [vmem:[%s14 + $0xc8] sm:$0xff]
  %v4641 = vld [vmem:[%s14 + $0xd0] sm:$0xff]
  %v4642 = vld [vmem:[%s14 + $0xd8] sm:$0xff]
  %v4643 = vld [vmem:[%s14 + $0xe0] sm:$0xff]
  %v4644 = vld [vmem:[%s14 + $0xe8] sm:$0xff]
  %v4645 = vld [vmem:[%s14 + $0xf0] sm:$0xff]
  %v4646 = vld [vmem:[%s14 + $0xf8] sm:$0xff]
  %v4647 = vld [vmem:[%s14 + $0x100] sm:$0xff]
  %v4648 = vld [vmem:[%s14 + $0x108] sm:$0xff]
  %v4649 = vld [vmem:[%s14 + $0x110] sm:$0xff]
  %v4650 = vld [vmem:[%s14 + $0x118] sm:$0xff]
  %v4651 = vld [vmem:[%s14 + $0x120] sm:$0xff]
  %v4652 = vld [vmem:[%s14 + $0x128] sm:$0xff]
  %v4653 = vld [vmem:[%s14 + $0x130] sm:$0xff]
  %v4654 = vld [vmem:[%s14 + $0x138] sm:$0xff]
  %v4655 = vld [vmem:[%s14 + $0x140] sm:$0xff]
  %v4656 = vld [vmem:[%s14 + $0x148] sm:$0xff]
  %v4657 = vld [vmem:[%s14 + $0x150] sm:$0xff]
  %v4658 = vld [vmem:[%s14 + $0x158] sm:$0xff]
  %v4659 = vld [vmem:[%s14 + $0x160] sm:$0xff]
  %v4660 = vld [vmem:[%s14 + $0x168] sm:$0xff]
  %v4661 = vld [vmem:[%s14 + $0x170] sm:$0xff]
  %v4662 = vld [vmem:[%s14 + $0x178] sm:$0xff]
  %v4663 = vld [vmem:[%s14 + $0x180] sm:$0xff]
  %v4664 = vld [vmem:[%s14 + $0x188] sm:$0xff]
  %v4665 = vld [vmem:[%s14 + $0x190] sm:$0xff]
  %v4666 = vld [vmem:[%s14 + $0x198] sm:$0xff]
  %v4667 = vld [vmem:[%s14 + $0x1a0] sm:$0xff]
  %v4668 = vld [vmem:[%s14 + $0x1a8] sm:$0xff]
  %v4669 = vld [vmem:[%s14 + $0x1b0] sm:$0xff]
  %v4670 = vld [vmem:[%s14 + $0x1b8] sm:$0xff]
  %v4671 = vld [vmem:[%s14 + $0x1c0] sm:$0xff]
  %v4672 = vld [vmem:[%s14 + $0x1c8] sm:$0xff]
  %v4673 = vld [vmem:[%s14 + $0x1d0] sm:$0xff]
  %v4674 = vld [vmem:[%s14 + $0x1d8] sm:$0xff]
  %v4675 = vld [vmem:[%s14 + $0x1e0] sm:$0xff]
  %v4676 = vld [vmem:[%s14 + $0x1e8] sm:$0xff]
  %v4677 = vld [vmem:[%s14 + $0x1f0] sm:$0xff]
  %v4678 = vld [vmem:[%s14 + $0x1f8] sm:$0xff]
  %v4679 = vld [vmem:[%s15] sm:$0xff]
  %v4680 = vld [vmem:[%s15 + $0x8] sm:$0xff]
  %v4681 = vld [vmem:[%s15 + $0x10] sm:$0xff]
  %v4682 = vld [vmem:[%s15 + $0x18] sm:$0xff]
  %v4683 = vld [vmem:[%s15 + $0x20] sm:$0xff]
  %v4684 = vld [vmem:[%s15 + $0x28] sm:$0xff]
  %v4685 = vld [vmem:[%s15 + $0x30] sm:$0xff]
  %v4686 = vld [vmem:[%s15 + $0x38] sm:$0xff]
  %v4687 = vld [vmem:[%s15 + $0x40] sm:$0xff]
  %v4688 = vld [vmem:[%s15 + $0x48] sm:$0xff]
  %v4689 = vld [vmem:[%s15 + $0x50] sm:$0xff]
  %v4690 = vld [vmem:[%s15 + $0x58] sm:$0xff]
  %v4691 = vld [vmem:[%s15 + $0x60] sm:$0xff]
  %v4692 = vld [vmem:[%s15 + $0x68] sm:$0xff]
  %v4693 = vld [vmem:[%s15 + $0x70] sm:$0xff]
  %v4694 = vld [vmem:[%s15 + $0x78] sm:$0xff]
  %v4695 = vld [vmem:[%s15 + $0x80] sm:$0xff]
  %v4696 = vld [vmem:[%s15 + $0x88] sm:$0xff]
  %v4697 = vld [vmem:[%s15 + $0x90] sm:$0xff]
  %v4698 = vld [vmem:[%s15 + $0x98] sm:$0xff]
  %v4699 = vld [vmem:[%s15 + $0xa0] sm:$0xff]
  %v4700 = vld [vmem:[%s15 + $0xa8] sm:$0xff]
  %v4701 = vld [vmem:[%s15 + $0xb0] sm:$0xff]
  %v4702 = vld [vmem:[%s15 + $0xb8] sm:$0xff]
  %v4703 = vld [vmem:[%s15 + $0xc0] sm:$0xff]
  %v4704 = vld [vmem:[%s15 + $0xc8] sm:$0xff]
  %v4705 = vld [vmem:[%s15 + $0xd0] sm:$0xff]
  %v4706 = vld [vmem:[%s15 + $0xd8] sm:$0xff]
  %v4707 = vld [vmem:[%s15 + $0xe0] sm:$0xff]
  %v4708 = vld [vmem:[%s15 + $0xe8] sm:$0xff]
  %v4709 = vld [vmem:[%s15 + $0xf0] sm:$0xff]
  %v4710 = vld [vmem:[%s15 + $0xf8] sm:$0xff]
  %v4711 = vld [vmem:[%s16] sm:$0xf]
  %v4712 = vld [vmem:[%s16 + $0x4] sm:$0xf]
  %v4713 = vld [vmem:[%s16 + $0x8] sm:$0xf]
  %v4714 = vld [vmem:[%s16 + $0xc] sm:$0xf]
  %v4715 = vld [vmem:[%s16 + $0x10] sm:$0xf]
  %v4716 = vld [vmem:[%s16 + $0x14] sm:$0xf]
  %v4717 = vld [vmem:[%s16 + $0x18] sm:$0xf]
  %v4718 = vld [vmem:[%s16 + $0x1c] sm:$0xf]
  %v4719 = vld [vmem:[%s16 + $0x20] sm:$0xf]
  %v4720 = vld [vmem:[%s16 + $0x24] sm:$0xf]
  %v4721 = vld [vmem:[%s16 + $0x28] sm:$0xf]
  %v4722 = vld [vmem:[%s16 + $0x2c] sm:$0xf]
  %v4723 = vld [vmem:[%s16 + $0x30] sm:$0xf]
  %v4724 = vld [vmem:[%s16 + $0x34] sm:$0xf]
  %v4725 = vld [vmem:[%s16 + $0x38] sm:$0xf]
  %v4726 = vld [vmem:[%s16 + $0x3c] sm:$0xf]
  %v4727 = vld [vmem:[%s17] sm:$0xff]
  %v4728 = vld [vmem:[%s17 + $0x8] sm:$0xff]
  %v4729 = vld [vmem:[%s17 + $0x10] sm:$0xff]
  %v4730 = vld [vmem:[%s17 + $0x18] sm:$0xff]
  %v4731 = vld [vmem:[%s17 + $0x20] sm:$0xff]
  %v4732 = vld [vmem:[%s17 + $0x28] sm:$0xff]
  %v4733 = vld [vmem:[%s17 + $0x30] sm:$0xff]
  %v4734 = vld [vmem:[%s17 + $0x38] sm:$0xff]
  %v4735 = vld [vmem:[%s17 + $0x40] sm:$0xff]
  %v4736 = vld [vmem:[%s17 + $0x48] sm:$0xff]
  %v4737 = vld [vmem:[%s17 + $0x50] sm:$0xff]
  %v4738 = vld [vmem:[%s17 + $0x58] sm:$0xff]
  %v4739 = vld [vmem:[%s17 + $0x60] sm:$0xff]
  %v4740 = vld [vmem:[%s17 + $0x68] sm:$0xff]
  %v4741 = vld [vmem:[%s17 + $0x70] sm:$0xff]
  %v4742 = vld [vmem:[%s17 + $0x78] sm:$0xff]
  %v4743 = vpack.c.bf16 %v4523, %v4519
  %v4744 = vpack.c.bf16 %v4524, %v4520
  %v4745 = vpack.c.bf16 %v4525, %v4521
  %v4746 = vpack.c.bf16 %v4526, %v4522
  %v4747 = vpack.c.bf16 %v4531, %v4527
  %v4748 = vpack.c.bf16 %v4532, %v4528
  %v4749 = vpack.c.bf16 %v4533, %v4529
  %v4750 = vpack.c.bf16 %v4534, %v4530
  %v4751 = vpack.c.bf16 %v4539, %v4535
  %v4752 = vpack.c.bf16 %v4540, %v4536
  %v4753 = vpack.c.bf16 %v4541, %v4537
  %v4754 = vpack.c.bf16 %v4542, %v4538
  %v4755 = vpack.c.bf16 %v4547, %v4543
  %v4756 = vpack.c.bf16 %v4548, %v4544
  %v4757 = vpack.c.bf16 %v4549, %v4545
  %v4758 = vpack.c.bf16 %v4550, %v4546
  %4760 = vset.pattern.permute.xlu0 0
  %4761 = vperm.xlu0 %4760, %v4615
  %v4762 = vpop.permute.xlu0 %4761
  %4765 = vset.pattern.permute.xlu0 0
  %4766 = vperm.xlu0 %4765, %v4616
  %v4767 = vpop.permute.xlu0 %4766
  %4770 = vset.pattern.permute.xlu0 0
  %4771 = vperm.xlu0 %4770, %v4617
  %v4772 = vpop.permute.xlu0 %4771
  %4775 = vset.pattern.permute.xlu0 0
  %4776 = vperm.xlu0 %4775, %v4618
  %v4777 = vpop.permute.xlu0 %4776
  %4780 = vset.pattern.permute.xlu0 0
  %4781 = vperm.xlu0 %4780, %v4619
  %v4782 = vpop.permute.xlu0 %4781
  %4785 = vset.pattern.permute.xlu0 0
  %4786 = vperm.xlu0 %4785, %v4620
  %v4787 = vpop.permute.xlu0 %4786
  %4790 = vset.pattern.permute.xlu0 0
  %4791 = vperm.xlu0 %4790, %v4621
  %v4792 = vpop.permute.xlu0 %4791
  %4795 = vset.pattern.permute.xlu0 0
  %4796 = vperm.xlu0 %4795, %v4622
  %v4797 = vpop.permute.xlu0 %4796
  %4800 = vset.pattern.permute.xlu0 0
  %4801 = vperm.xlu0 %4800, %v4623
  %v4802 = vpop.permute.xlu0 %4801
  %4805 = vset.pattern.permute.xlu0 0
  %4806 = vperm.xlu0 %4805, %v4624
  %v4807 = vpop.permute.xlu0 %4806
  %4810 = vset.pattern.permute.xlu0 0
  %4811 = vperm.xlu0 %4810, %v4625
  %v4812 = vpop.permute.xlu0 %4811
  %4815 = vset.pattern.permute.xlu0 0
  %4816 = vperm.xlu0 %4815, %v4626
  %v4817 = vpop.permute.xlu0 %4816
  %4820 = vset.pattern.permute.xlu0 0
  %4821 = vperm.xlu0 %4820, %v4627
  %v4822 = vpop.permute.xlu0 %4821
  %4825 = vset.pattern.permute.xlu0 0
  %4826 = vperm.xlu0 %4825, %v4628
  %v4827 = vpop.permute.xlu0 %4826
  %4830 = vset.pattern.permute.xlu0 0
  %4831 = vperm.xlu0 %4830, %v4629
  %v4832 = vpop.permute.xlu0 %4831
  %4835 = vset.pattern.permute.xlu0 0
  %4836 = vperm.xlu0 %4835, %v4630
  %v4837 = vpop.permute.xlu0 %4836
  %4840 = vset.pattern.permute.xlu0 0
  %4841 = vperm.xlu0 %4840, %v4631
  %v4842 = vpop.permute.xlu0 %4841
  %4845 = vset.pattern.permute.xlu0 0
  %4846 = vperm.xlu0 %4845, %v4632
  %v4847 = vpop.permute.xlu0 %4846
  %4850 = vset.pattern.permute.xlu0 0
  %4851 = vperm.xlu0 %4850, %v4633
  %v4852 = vpop.permute.xlu0 %4851
  %4855 = vset.pattern.permute.xlu0 0
  %4856 = vperm.xlu0 %4855, %v4634
  %v4857 = vpop.permute.xlu0 %4856
  %4860 = vset.pattern.permute.xlu0 0
  %4861 = vperm.xlu0 %4860, %v4635
  %v4862 = vpop.permute.xlu0 %4861
  %4865 = vset.pattern.permute.xlu0 0
  %4866 = vperm.xlu0 %4865, %v4636
  %v4867 = vpop.permute.xlu0 %4866
  %4870 = vset.pattern.permute.xlu0 0
  %4871 = vperm.xlu0 %4870, %v4637
  %v4872 = vpop.permute.xlu0 %4871
  %4875 = vset.pattern.permute.xlu0 0
  %4876 = vperm.xlu0 %4875, %v4638
  %v4877 = vpop.permute.xlu0 %4876
  %4880 = vset.pattern.permute.xlu0 0
  %4881 = vperm.xlu0 %4880, %v4639
  %v4882 = vpop.permute.xlu0 %4881
  %4885 = vset.pattern.permute.xlu0 0
  %4886 = vperm.xlu0 %4885, %v4640
  %v4887 = vpop.permute.xlu0 %4886
  %4890 = vset.pattern.permute.xlu0 0
  %4891 = vperm.xlu0 %4890, %v4641
  %v4892 = vpop.permute.xlu0 %4891
  %4895 = vset.pattern.permute.xlu0 0
  %4896 = vperm.xlu0 %4895, %v4642
  %v4897 = vpop.permute.xlu0 %4896
  %4900 = vset.pattern.permute.xlu0 0
  %4901 = vperm.xlu0 %4900, %v4643
  %v4902 = vpop.permute.xlu0 %4901
  %4905 = vset.pattern.permute.xlu0 0
  %4906 = vperm.xlu0 %4905, %v4644
  %v4907 = vpop.permute.xlu0 %4906
  %4910 = vset.pattern.permute.xlu0 0
  %4911 = vperm.xlu0 %4910, %v4645
  %v4912 = vpop.permute.xlu0 %4911
  %4915 = vset.pattern.permute.xlu0 0
  %4916 = vperm.xlu0 %4915, %v4646
  %v4917 = vpop.permute.xlu0 %4916
  %4920 = vset.pattern.permute.xlu0 0
  %4921 = vperm.xlu0 %4920, %v4647
  %v4922 = vpop.permute.xlu0 %4921
  %4925 = vset.pattern.permute.xlu0 0
  %4926 = vperm.xlu0 %4925, %v4648
  %v4927 = vpop.permute.xlu0 %4926
  %4930 = vset.pattern.permute.xlu0 0
  %4931 = vperm.xlu0 %4930, %v4649
  %v4932 = vpop.permute.xlu0 %4931
  %4935 = vset.pattern.permute.xlu0 0
  %4936 = vperm.xlu0 %4935, %v4650
  %v4937 = vpop.permute.xlu0 %4936
  %4940 = vset.pattern.permute.xlu0 0
  %4941 = vperm.xlu0 %4940, %v4651
  %v4942 = vpop.permute.xlu0 %4941
  %4945 = vset.pattern.permute.xlu0 0
  %4946 = vperm.xlu0 %4945, %v4652
  %v4947 = vpop.permute.xlu0 %4946
  %4950 = vset.pattern.permute.xlu0 0
  %4951 = vperm.xlu0 %4950, %v4653
  %v4952 = vpop.permute.xlu0 %4951
  %4955 = vset.pattern.permute.xlu0 0
  %4956 = vperm.xlu0 %4955, %v4654
  %v4957 = vpop.permute.xlu0 %4956
  %4960 = vset.pattern.permute.xlu0 0
  %4961 = vperm.xlu0 %4960, %v4655
  %v4962 = vpop.permute.xlu0 %4961
  %4965 = vset.pattern.permute.xlu0 0
  %4966 = vperm.xlu0 %4965, %v4656
  %v4967 = vpop.permute.xlu0 %4966
  %4970 = vset.pattern.permute.xlu0 0
  %4971 = vperm.xlu0 %4970, %v4657
  %v4972 = vpop.permute.xlu0 %4971
  %4975 = vset.pattern.permute.xlu0 0
  %4976 = vperm.xlu0 %4975, %v4658
  %v4977 = vpop.permute.xlu0 %4976
  %4980 = vset.pattern.permute.xlu0 0
  %4981 = vperm.xlu0 %4980, %v4659
  %v4982 = vpop.permute.xlu0 %4981
  %4985 = vset.pattern.permute.xlu0 0
  %4986 = vperm.xlu0 %4985, %v4660
  %v4987 = vpop.permute.xlu0 %4986
  %4990 = vset.pattern.permute.xlu0 0
  %4991 = vperm.xlu0 %4990, %v4661
  %v4992 = vpop.permute.xlu0 %4991
  %4995 = vset.pattern.permute.xlu0 0
  %4996 = vperm.xlu0 %4995, %v4662
  %v4997 = vpop.permute.xlu0 %4996
  %5000 = vset.pattern.permute.xlu0 0
  %5001 = vperm.xlu0 %5000, %v4663
  %v5002 = vpop.permute.xlu0 %5001
  %5005 = vset.pattern.permute.xlu0 0
  %5006 = vperm.xlu0 %5005, %v4664
  %v5007 = vpop.permute.xlu0 %5006
  %5010 = vset.pattern.permute.xlu0 0
  %5011 = vperm.xlu0 %5010, %v4665
  %v5012 = vpop.permute.xlu0 %5011
  %5015 = vset.pattern.permute.xlu0 0
  %5016 = vperm.xlu0 %5015, %v4666
  %v5017 = vpop.permute.xlu0 %5016
  %5020 = vset.pattern.permute.xlu0 0
  %5021 = vperm.xlu0 %5020, %v4667
  %v5022 = vpop.permute.xlu0 %5021
  %5025 = vset.pattern.permute.xlu0 0
  %5026 = vperm.xlu0 %5025, %v4668
  %v5027 = vpop.permute.xlu0 %5026
  %5030 = vset.pattern.permute.xlu0 0
  %5031 = vperm.xlu0 %5030, %v4669
  %v5032 = vpop.permute.xlu0 %5031
  %5035 = vset.pattern.permute.xlu0 0
  %5036 = vperm.xlu0 %5035, %v4670
  %v5037 = vpop.permute.xlu0 %5036
  %5040 = vset.pattern.permute.xlu0 0
  %5041 = vperm.xlu0 %5040, %v4671
  %v5042 = vpop.permute.xlu0 %5041
  %5045 = vset.pattern.permute.xlu0 0
  %5046 = vperm.xlu0 %5045, %v4672
  %v5047 = vpop.permute.xlu0 %5046
  %5050 = vset.pattern.permute.xlu0 0
  %5051 = vperm.xlu0 %5050, %v4673
  %v5052 = vpop.permute.xlu0 %5051
  %5055 = vset.pattern.permute.xlu0 0
  %5056 = vperm.xlu0 %5055, %v4674
  %v5057 = vpop.permute.xlu0 %5056
  %5060 = vset.pattern.permute.xlu0 0
  %5061 = vperm.xlu0 %5060, %v4675
  %v5062 = vpop.permute.xlu0 %5061
  %5065 = vset.pattern.permute.xlu0 0
  %5066 = vperm.xlu0 %5065, %v4676
  %v5067 = vpop.permute.xlu0 %5066
  %5070 = vset.pattern.permute.xlu0 0
  %5071 = vperm.xlu0 %5070, %v4677
  %v5072 = vpop.permute.xlu0 %5071
  %5075 = vset.pattern.permute.xlu0 0
  %5076 = vperm.xlu0 %5075, %v4678
  %v5077 = vpop.permute.xlu0 %5076
  %v5143 = vunpack.c.l.b16 %v4551
  %v5144 = vunpack.c.l.b16 %v4552
  %v5145 = vunpack.c.l.b16 %v4553
  %v5146 = vunpack.c.l.b16 %v4554
  %v5147 = vunpack.c.l.b16 %v4555
  %v5148 = vunpack.c.l.b16 %v4556
  %v5149 = vunpack.c.l.b16 %v4557
  %v5150 = vunpack.c.l.b16 %v4558
  %v5151 = vunpack.c.l.b16 %v4559
  %v5152 = vunpack.c.l.b16 %v4560
  %v5153 = vunpack.c.l.b16 %v4561
  %v5154 = vunpack.c.l.b16 %v4562
  %v5155 = vunpack.c.l.b16 %v4563
  %v5156 = vunpack.c.l.b16 %v4564
  %v5157 = vunpack.c.l.b16 %v4565
  %v5158 = vunpack.c.l.b16 %v4566
  %v5159 = vunpack.c.l.b16 %v4567
  %v5160 = vunpack.c.l.b16 %v4568
  %v5161 = vunpack.c.l.b16 %v4569
  %v5162 = vunpack.c.l.b16 %v4570
  %v5163 = vunpack.c.l.b16 %v4571
  %v5164 = vunpack.c.l.b16 %v4572
  %v5165 = vunpack.c.l.b16 %v4573
  %v5166 = vunpack.c.l.b16 %v4574
  %v5167 = vunpack.c.l.b16 %v4575
  %v5168 = vunpack.c.l.b16 %v4576
  %v5169 = vunpack.c.l.b16 %v4577
  %v5170 = vunpack.c.l.b16 %v4578
  %v5171 = vunpack.c.l.b16 %v4579
  %v5172 = vunpack.c.l.b16 %v4580
  %v5173 = vunpack.c.l.b16 %v4581
  %v5174 = vunpack.c.l.b16 %v4582
  %v5175 = vunpack.c.l.b16 %v4583
  %v5176 = vunpack.c.l.b16 %v4584
  %v5177 = vunpack.c.l.b16 %v4585
  %v5178 = vunpack.c.l.b16 %v4586
  %v5179 = vunpack.c.l.b16 %v4587
  %v5180 = vunpack.c.l.b16 %v4588
  %v5181 = vunpack.c.l.b16 %v4589
  %v5182 = vunpack.c.l.b16 %v4590
  %v5183 = vunpack.c.l.b16 %v4591
  %v5184 = vunpack.c.l.b16 %v4592
  %v5185 = vunpack.c.l.b16 %v4593
  %v5186 = vunpack.c.l.b16 %v4594
  %v5187 = vunpack.c.l.b16 %v4595
  %v5188 = vunpack.c.l.b16 %v4596
  %v5189 = vunpack.c.l.b16 %v4597
  %v5190 = vunpack.c.l.b16 %v4598
  %v5191 = vunpack.c.l.b16 %v4599
  %v5192 = vunpack.c.l.b16 %v4600
  %v5193 = vunpack.c.l.b16 %v4601
  %v5194 = vunpack.c.l.b16 %v4602
  %v5195 = vunpack.c.l.b16 %v4603
  %v5196 = vunpack.c.l.b16 %v4604
  %v5197 = vunpack.c.l.b16 %v4605
  %v5198 = vunpack.c.l.b16 %v4606
  %v5199 = vunpack.c.l.b16 %v4607
  %v5200 = vunpack.c.l.b16 %v4608
  %v5201 = vunpack.c.l.b16 %v4609
  %v5202 = vunpack.c.l.b16 %v4610
  %v5203 = vunpack.c.l.b16 %v4611
  %v5204 = vunpack.c.l.b16 %v4612
  %v5205 = vunpack.c.l.b16 %v4613
  %v5206 = vunpack.c.l.b16 %v4614
  %v5207 = vpack.c.b16 %v5144, %v5143
  %v5208 = vpack.c.b16 %v5146, %v5145
  %v5209 = vpack.c.b16 %v5148, %v5147
  %v5210 = vpack.c.b16 %v5150, %v5149
  %v5211 = vpack.c.b16 %v5152, %v5151
  %v5212 = vpack.c.b16 %v5154, %v5153
  %v5213 = vpack.c.b16 %v5156, %v5155
  %v5214 = vpack.c.b16 %v5158, %v5157
  %v5215 = vpack.c.b16 %v5160, %v5159
  %v5216 = vpack.c.b16 %v5162, %v5161
  %v5217 = vpack.c.b16 %v5164, %v5163
  %v5218 = vpack.c.b16 %v5166, %v5165
  %v5219 = vpack.c.b16 %v5168, %v5167
  %v5220 = vpack.c.b16 %v5170, %v5169
  %v5221 = vpack.c.b16 %v5172, %v5171
  %v5222 = vpack.c.b16 %v5174, %v5173
  %v5223 = vpack.c.b16 %v5176, %v5175
  %v5224 = vpack.c.b16 %v5178, %v5177
  %v5225 = vpack.c.b16 %v5180, %v5179
  %v5226 = vpack.c.b16 %v5182, %v5181
  %v5227 = vpack.c.b16 %v5184, %v5183
  %v5228 = vpack.c.b16 %v5186, %v5185
  %v5229 = vpack.c.b16 %v5188, %v5187
  %v5230 = vpack.c.b16 %v5190, %v5189
  %v5231 = vpack.c.b16 %v5192, %v5191
  %v5232 = vpack.c.b16 %v5194, %v5193
  %v5233 = vpack.c.b16 %v5196, %v5195
  %v5234 = vpack.c.b16 %v5198, %v5197
  %v5235 = vpack.c.b16 %v5200, %v5199
  %v5236 = vpack.c.b16 %v5202, %v5201
  %v5237 = vpack.c.b16 %v5204, %v5203
  %v5238 = vpack.c.b16 %v5206, %v5205
  %v5240 = vsel %vm1354, %v5207, 0
  %v5243 = vsel %vm1354, %v5208, 0
  %v5246 = vsel %vm1354, %v5209, 0
  %v5249 = vsel %vm1354, %v5210, 0
  %v5252 = vsel %vm1354, %v5211, 0
  %v5255 = vsel %vm1354, %v5212, 0
  %v5258 = vsel %vm1354, %v5213, 0
  %v5261 = vsel %vm1354, %v5214, 0
  %v5264 = vsel %vm1354, %v5215, 0
  %v5267 = vsel %vm1354, %v5216, 0
  %v5270 = vsel %vm1354, %v5217, 0
  %v5273 = vsel %vm1354, %v5218, 0
  %v5276 = vsel %vm1354, %v5219, 0
  %v5279 = vsel %vm1354, %v5220, 0
  %v5282 = vsel %vm1354, %v5221, 0
  %v5285 = vsel %vm1354, %v5222, 0
  %v5288 = vsel %vm1354, %v5223, 0
  %v5291 = vsel %vm1354, %v5224, 0
  %v5294 = vsel %vm1354, %v5225, 0
  %v5297 = vsel %vm1354, %v5226, 0
  %v5300 = vsel %vm1354, %v5227, 0
  %v5303 = vsel %vm1354, %v5228, 0
  %v5306 = vsel %vm1354, %v5229, 0
  %v5309 = vsel %vm1354, %v5230, 0
  %v5312 = vsel %vm1354, %v5231, 0
  %v5315 = vsel %vm1354, %v5232, 0
  %v5318 = vsel %vm1354, %v5233, 0
  %v5321 = vsel %vm1354, %v5234, 0
  %v5324 = vsel %vm1354, %v5235, 0
  %v5327 = vsel %vm1354, %v5236, 0
  %v5330 = vsel %vm1354, %v5237, 0
  %v5333 = vsel %vm1354, %v5238, 0
  %5335 = vmatprep.subr.bf16.mxu0 %v4744
  %5336 = vmatpush1.bf16.msra.mxu0 %v4743
  %5337 = vmatprep.subr.bf16.mxu0 %v4748
  %5338 = vmatpush1.bf16.msra.mxu0 %v4747
  %5339 = vmatprep.subr.bf16.mxu0 %v4752
  %5340 = vmatpush1.bf16.msra.mxu0 %v4751
  %5341 = vmatprep.subr.bf16.mxu0 %v4756
  %5342 = vmatpush1.bf16.msra.mxu0 %v4755
  %5343 = vmatprep.subr.bf16.mxu0 0
  %5344 = vmatpush1.bf16.msra.mxu0 0
  %5345 = vmatprep.subr.bf16.mxu0 0
  %5346 = vmatpush1.bf16.msra.mxu0 0
  %5347 = vmatprep.subr.bf16.mxu0 0
  %5348 = vmatpush1.bf16.msra.mxu0 0
  %5349 = vmatprep.subr.bf16.mxu0 0
  %5350 = vmatpush1.bf16.msra.mxu0 0
  %5351 = vmatprep.subr.bf16.mxu0 0
  %5352 = vmatpush1.bf16.msra.mxu0 0
  %5353 = vmatprep.subr.bf16.mxu0 0
  %5354 = vmatpush1.bf16.msra.mxu0 0
  %5355 = vmatprep.subr.bf16.mxu0 0
  %5356 = vmatpush1.bf16.msra.mxu0 0
  %5357 = vmatprep.subr.bf16.mxu0 0
  %5358 = vmatpush1.bf16.msra.mxu0 0
  %5359 = vmatprep.subr.bf16.mxu0 0
  %5360 = vmatpush1.bf16.msra.mxu0 0
  %5361 = vmatprep.subr.bf16.mxu0 0
  %5362 = vmatpush1.bf16.msra.mxu0 0
  %5363 = vmatprep.subr.bf16.mxu0 0
  %5364 = vmatpush1.bf16.msra.mxu0 0
  %5365 = vmatprep.subr.bf16.mxu0 0
  %5366 = vmatpush1.bf16.msra.mxu0 0
  %5367 = vmatprep.mubr.bf16.mxu0 0
  %5368 = vmatmul.mubr.bf16.gmra.mrb[0].mxu0 %v5240
  %v5369 = vpop.f32.mrb[0].mxu0
  %v5370 = vadd.f32 %v4762, %v5369
  %v5371 = vpop.f32.mrb[0].mxu0
  %v5372 = vadd.f32 %v4762, %v5371
  %v5373 = vpop.f32.mrb[0].mxu0
  %v5374 = vadd.f32 %v4767, %v5373
  %v5375 = vpop.f32.mrb[0].mxu0
  %v5376 = vadd.f32 %v4767, %v5375
  %5377 = vmatprep.mubr.bf16.mxu0 0
  %5378 = vmatmul.mubr.bf16.gmra.mrb[0].mxu0 %v5243
  %v5379 = vpop.f32.mrb[0].mxu0
  %v5380 = vadd.f32 %v4772, %v5379
  %v5381 = vpop.f32.mrb[0].mxu0
  %v5382 = vadd.f32 %v4772, %v5381
  %v5383 = vpop.f32.mrb[0].mxu0
  %v5384 = vadd.f32 %v4777, %v5383
  %v5385 = vpop.f32.mrb[0].mxu0
  %v5386 = vadd.f32 %v4777, %v5385
  %5387 = vmatprep.mubr.bf16.mxu0 0
  %5388 = vmatmul.mubr.bf16.gmra.mrb[0].mxu0 %v5246
  %v5389 = vpop.f32.mrb[0].mxu0
  %v5390 = vadd.f32 %v4782, %v5389
  %v5391 = vpop.f32.mrb[0].mxu0
  %v5392 = vadd.f32 %v4782, %v5391
  %v5393 = vpop.f32.mrb[0].mxu0
  %v5394 = vadd.f32 %v4787, %v5393
  %v5395 = vpop.f32.mrb[0].mxu0
  %v5396 = vadd.f32 %v4787, %v5395
  %5397 = vmatprep.mubr.bf16.mxu0 0
  %5398 = vmatmul.mubr.bf16.gmra.mrb[0].mxu0 %v5249
  %v5399 = vpop.f32.mrb[0].mxu0
  %v5400 = vadd.f32 %v4792, %v5399
  %v5401 = vpop.f32.mrb[0].mxu0
  %v5402 = vadd.f32 %v4792, %v5401
  %v5403 = vpop.f32.mrb[0].mxu0
  %v5404 = vadd.f32 %v4797, %v5403
  %v5405 = vpop.f32.mrb[0].mxu0
  %v5406 = vadd.f32 %v4797, %v5405
  %5407 = vmatprep.mubr.bf16.mxu0 0
  %5408 = vmatmul.mubr.bf16.gmra.mrb[0].mxu0 %v5252
  %v5409 = vpop.f32.mrb[0].mxu0
  %v5410 = vadd.f32 %v4802, %v5409
  %v5411 = vpop.f32.mrb[0].mxu0
  %v5412 = vadd.f32 %v4802, %v5411
  %v5413 = vpop.f32.mrb[0].mxu0
  %v5414 = vadd.f32 %v4807, %v5413
  %v5415 = vpop.f32.mrb[0].mxu0
  %v5416 = vadd.f32 %v4807, %v5415
  %5417 = vmatprep.mubr.bf16.mxu0 0
  %5418 = vmatmul.mubr.bf16.gmra.mrb[0].mxu0 %v5255
  %v5419 = vpop.f32.mrb[0].mxu0
  %v5420 = vadd.f32 %v4812, %v5419
  %v5421 = vpop.f32.mrb[0].mxu0
  %v5422 = vadd.f32 %v4812, %v5421
  %v5423 = vpop.f32.mrb[0].mxu0
  %v5424 = vadd.f32 %v4817, %v5423
  %v5425 = vpop.f32.mrb[0].mxu0
  %v5426 = vadd.f32 %v4817, %v5425
  %5427 = vmatprep.mubr.bf16.mxu0 0
  %5428 = vmatmul.mubr.bf16.gmra.mrb[0].mxu0 %v5258
  %v5429 = vpop.f32.mrb[0].mxu0
  %v5430 = vadd.f32 %v4822, %v5429
  %v5431 = vpop.f32.mrb[0].mxu0
  %v5432 = vadd.f32 %v4822, %v5431
  %v5433 = vpop.f32.mrb[0].mxu0
  %v5434 = vadd.f32 %v4827, %v5433
  %v5435 = vpop.f32.mrb[0].mxu0
  %v5436 = vadd.f32 %v4827, %v5435
  %5437 = vmatprep.mubr.bf16.mxu0 0
  %5438 = vmatmul.mubr.bf16.gmra.mrb[0].mxu0 %v5261
  %v5439 = vpop.f32.mrb[0].mxu0
  %v5440 = vadd.f32 %v4832, %v5439
  %v5441 = vpop.f32.mrb[0].mxu0
  %v5442 = vadd.f32 %v4832, %v5441
  %v5443 = vpop.f32.mrb[0].mxu0
  %v5444 = vadd.f32 %v4837, %v5443
  %v5445 = vpop.f32.mrb[0].mxu0
  %v5446 = vadd.f32 %v4837, %v5445
  %5447 = vmatprep.mubr.bf16.mxu0 0
  %5448 = vmatmul.mubr.bf16.gmra.mrb[0].mxu0 %v5264
  %v5449 = vpop.f32.mrb[0].mxu0
  %v5450 = vadd.f32 %v4842, %v5449
  %v5451 = vpop.f32.mrb[0].mxu0
  %v5452 = vadd.f32 %v4842, %v5451
  %v5453 = vpop.f32.mrb[0].mxu0
  %v5454 = vadd.f32 %v4847, %v5453
  %v5455 = vpop.f32.mrb[0].mxu0
  %v5456 = vadd.f32 %v4847, %v5455
  %5457 = vmatprep.mubr.bf16.mxu0 0
  %5458 = vmatmul.mubr.bf16.gmra.mrb[0].mxu0 %v5267
  %v5459 = vpop.f32.mrb[0].mxu0
  %v5460 = vadd.f32 %v4852, %v5459
  %v5461 = vpop.f32.mrb[0].mxu0
  %v5462 = vadd.f32 %v4852, %v5461
  %v5463 = vpop.f32.mrb[0].mxu0
  %v5464 = vadd.f32 %v4857, %v5463
  %v5465 = vpop.f32.mrb[0].mxu0
  %v5466 = vadd.f32 %v4857, %v5465
  %5467 = vmatprep.mubr.bf16.mxu0 0
  %5468 = vmatmul.mubr.bf16.gmra.mrb[0].mxu0 %v5270
  %v5469 = vpop.f32.mrb[0].mxu0
  %v5470 = vadd.f32 %v4862, %v5469
  %v5471 = vpop.f32.mrb[0].mxu0
  %v5472 = vadd.f32 %v4862, %v5471
  %v5473 = vpop.f32.mrb[0].mxu0
  %v5474 = vadd.f32 %v4867, %v5473
  %v5475 = vpop.f32.mrb[0].mxu0
  %v5476 = vadd.f32 %v4867, %v5475
  %5477 = vmatprep.mubr.bf16.mxu0 0
  %5478 = vmatmul.mubr.bf16.gmra.mrb[0].mxu0 %v5273
  %v5479 = vpop.f32.mrb[0].mxu0
  %v5480 = vadd.f32 %v4872, %v5479
  %v5481 = vpop.f32.mrb[0].mxu0
  %v5482 = vadd.f32 %v4872, %v5481
  %v5483 = vpop.f32.mrb[0].mxu0
  %v5484 = vadd.f32 %v4877, %v5483
  %v5485 = vpop.f32.mrb[0].mxu0
  %v5486 = vadd.f32 %v4877, %v5485
  %5487 = vmatprep.mubr.bf16.mxu0 0
  %5488 = vmatmul.mubr.bf16.gmra.mrb[0].mxu0 %v5276
  %v5489 = vpop.f32.mrb[0].mxu0
  %v5490 = vadd.f32 %v4882, %v5489
  %v5491 = vpop.f32.mrb[0].mxu0
  %v5492 = vadd.f32 %v4882, %v5491
  %v5493 = vpop.f32.mrb[0].mxu0
  %v5494 = vadd.f32 %v4887, %v5493
  %v5495 = vpop.f32.mrb[0].mxu0
  %v5496 = vadd.f32 %v4887, %v5495
  %5497 = vmatprep.mubr.bf16.mxu0 0
  %5498 = vmatmul.mubr.bf16.gmra.mrb[0].mxu0 %v5279
  %v5499 = vpop.f32.mrb[0].mxu0
  %v5500 = vadd.f32 %v4892, %v5499
  %v5501 = vpop.f32.mrb[0].mxu0
  %v5502 = vadd.f32 %v4892, %v5501
  %v5503 = vpop.f32.mrb[0].mxu0
  %v5504 = vadd.f32 %v4897, %v5503
  %v5505 = vpop.f32.mrb[0].mxu0
  %v5506 = vadd.f32 %v4897, %v5505
  %5507 = vmatprep.mubr.bf16.mxu0 0
  %5508 = vmatmul.mubr.bf16.gmra.mrb[0].mxu0 %v5282
  %v5509 = vpop.f32.mrb[0].mxu0
  %v5510 = vadd.f32 %v4902, %v5509
  %v5511 = vpop.f32.mrb[0].mxu0
  %v5512 = vadd.f32 %v4902, %v5511
  %v5513 = vpop.f32.mrb[0].mxu0
  %v5514 = vadd.f32 %v4907, %v5513
  %v5515 = vpop.f32.mrb[0].mxu0
  %v5516 = vadd.f32 %v4907, %v5515
  %5517 = vmatprep.mubr.bf16.mxu0 0
  %5518 = vmatmul.mubr.bf16.gmra.mrb[0].mxu0 %v5285
  %v5519 = vpop.f32.mrb[0].mxu0
  %v5520 = vadd.f32 %v4912, %v5519
  %v5521 = vpop.f32.mrb[0].mxu0
  %v5522 = vadd.f32 %v4912, %v5521
  %v5523 = vpop.f32.mrb[0].mxu0
  %v5524 = vadd.f32 %v4917, %v5523
  %v5525 = vpop.f32.mrb[0].mxu0
  %v5526 = vadd.f32 %v4917, %v5525
  %5527 = vmatprep.mubr.bf16.mxu0 0
  %5528 = vmatmul.mubr.bf16.gmra.mrb[0].mxu0 %v5288
  %v5529 = vpop.f32.mrb[0].mxu0
  %v5530 = vadd.f32 %v4922, %v5529
  %v5531 = vpop.f32.mrb[0].mxu0
  %v5532 = vadd.f32 %v4922, %v5531
  %v5533 = vpop.f32.mrb[0].mxu0
  %v5534 = vadd.f32 %v4927, %v5533
  %v5535 = vpop.f32.mrb[0].mxu0
  %v5536 = vadd.f32 %v4927, %v5535
  %5537 = vmatprep.mubr.bf16.mxu0 0
  %5538 = vmatmul.mubr.bf16.gmra.mrb[0].mxu0 %v5291
  %v5539 = vpop.f32.mrb[0].mxu0
  %v5540 = vadd.f32 %v4932, %v5539
  %v5541 = vpop.f32.mrb[0].mxu0
  %v5542 = vadd.f32 %v4932, %v5541
  %v5543 = vpop.f32.mrb[0].mxu0
  %v5544 = vadd.f32 %v4937, %v5543
  %v5545 = vpop.f32.mrb[0].mxu0
  %v5546 = vadd.f32 %v4937, %v5545
  %5547 = vmatprep.mubr.bf16.mxu0 0
  %5548 = vmatmul.mubr.bf16.gmra.mrb[0].mxu0 %v5294
  %v5549 = vpop.f32.mrb[0].mxu0
  %v5550 = vadd.f32 %v4942, %v5549
  %v5551 = vpop.f32.mrb[0].mxu0
  %v5552 = vadd.f32 %v4942, %v5551
  %v5553 = vpop.f32.mrb[0].mxu0
  %v5554 = vadd.f32 %v4947, %v5553
  %v5555 = vpop.f32.mrb[0].mxu0
  %v5556 = vadd.f32 %v4947, %v5555
  %5557 = vmatprep.mubr.bf16.mxu0 0
  %5558 = vmatmul.mubr.bf16.gmra.mrb[0].mxu0 %v5297
  %v5559 = vpop.f32.mrb[0].mxu0
  %v5560 = vadd.f32 %v4952, %v5559
  %v5561 = vpop.f32.mrb[0].mxu0
  %v5562 = vadd.f32 %v4952, %v5561
  %v5563 = vpop.f32.mrb[0].mxu0
  %v5564 = vadd.f32 %v4957, %v5563
  %v5565 = vpop.f32.mrb[0].mxu0
  %v5566 = vadd.f32 %v4957, %v5565
  %5567 = vmatprep.mubr.bf16.mxu0 0
  %5568 = vmatmul.mubr.bf16.gmra.mrb[0].mxu0 %v5300
  %v5569 = vpop.f32.mrb[0].mxu0
  %v5570 = vadd.f32 %v4962, %v5569
  %v5571 = vpop.f32.mrb[0].mxu0
  %v5572 = vadd.f32 %v4962, %v5571
  %v5573 = vpop.f32.mrb[0].mxu0
  %v5574 = vadd.f32 %v4967, %v5573
  %v5575 = vpop.f32.mrb[0].mxu0
  %v5576 = vadd.f32 %v4967, %v5575
  %5577 = vmatprep.mubr.bf16.mxu0 0
  %5578 = vmatmul.mubr.bf16.gmra.mrb[0].mxu0 %v5303
  %v5579 = vpop.f32.mrb[0].mxu0
  %v5580 = vadd.f32 %v4972, %v5579
  %v5581 = vpop.f32.mrb[0].mxu0
  %v5582 = vadd.f32 %v4972, %v5581
  %v5583 = vpop.f32.mrb[0].mxu0
  %v5584 = vadd.f32 %v4977, %v5583
  %v5585 = vpop.f32.mrb[0].mxu0
  %v5586 = vadd.f32 %v4977, %v5585
  %5587 = vmatprep.mubr.bf16.mxu0 0
  %5588 = vmatmul.mubr.bf16.gmra.mrb[0].mxu0 %v5306
  %v5589 = vpop.f32.mrb[0].mxu0
  %v5590 = vadd.f32 %v4982, %v5589
  %v5591 = vpop.f32.mrb[0].mxu0
  %v5592 = vadd.f32 %v4982, %v5591
  %v5593 = vpop.f32.mrb[0].mxu0
  %v5594 = vadd.f32 %v4987, %v5593
  %v5595 = vpop.f32.mrb[0].mxu0
  %v5596 = vadd.f32 %v4987, %v5595
  %5597 = vmatprep.mubr.bf16.mxu0 0
  %5598 = vmatmul.mubr.bf16.gmra.mrb[0].mxu0 %v5309
  %v5599 = vpop.f32.mrb[0].mxu0
  %v5600 = vadd.f32 %v4992, %v5599
  %v5601 = vpop.f32.mrb[0].mxu0
  %v5602 = vadd.f32 %v4992, %v5601
  %v5603 = vpop.f32.mrb[0].mxu0
  %v5604 = vadd.f32 %v4997, %v5603
  %v5605 = vpop.f32.mrb[0].mxu0
  %v5606 = vadd.f32 %v4997, %v5605
  %5607 = vmatprep.mubr.bf16.mxu0 0
  %5608 = vmatmul.mubr.bf16.gmra.mrb[0].mxu0 %v5312
  %v5609 = vpop.f32.mrb[0].mxu0
  %v5610 = vadd.f32 %v5002, %v5609
  %v5611 = vpop.f32.mrb[0].mxu0
  %v5612 = vadd.f32 %v5002, %v5611
  %v5613 = vpop.f32.mrb[0].mxu0
  %v5614 = vadd.f32 %v5007, %v5613
  %v5615 = vpop.f32.mrb[0].mxu0
  %v5616 = vadd.f32 %v5007, %v5615
  %5617 = vmatprep.mubr.bf16.mxu0 0
  %5618 = vmatmul.mubr.bf16.gmra.mrb[0].mxu0 %v5315
  %v5619 = vpop.f32.mrb[0].mxu0
  %v5620 = vadd.f32 %v5012, %v5619
  %v5621 = vpop.f32.mrb[0].mxu0
  %v5622 = vadd.f32 %v5012, %v5621
  %v5623 = vpop.f32.mrb[0].mxu0
  %v5624 = vadd.f32 %v5017, %v5623
  %v5625 = vpop.f32.mrb[0].mxu0
  %v5626 = vadd.f32 %v5017, %v5625
  %5627 = vmatprep.mubr.bf16.mxu0 0
  %5628 = vmatmul.mubr.bf16.gmra.mrb[0].mxu0 %v5318
  %v5629 = vpop.f32.mrb[0].mxu0
  %v5630 = vadd.f32 %v5022, %v5629
  %v5631 = vpop.f32.mrb[0].mxu0
  %v5632 = vadd.f32 %v5022, %v5631
  %v5633 = vpop.f32.mrb[0].mxu0
  %v5634 = vadd.f32 %v5027, %v5633
  %v5635 = vpop.f32.mrb[0].mxu0
  %v5636 = vadd.f32 %v5027, %v5635
  %5637 = vmatprep.mubr.bf16.mxu0 0
  %5638 = vmatmul.mubr.bf16.gmra.mrb[0].mxu0 %v5321
  %v5639 = vpop.f32.mrb[0].mxu0
  %v5640 = vadd.f32 %v5032, %v5639
  %v5641 = vpop.f32.mrb[0].mxu0
  %v5642 = vadd.f32 %v5032, %v5641
  %v5643 = vpop.f32.mrb[0].mxu0
  %v5644 = vadd.f32 %v5037, %v5643
  %v5645 = vpop.f32.mrb[0].mxu0
  %v5646 = vadd.f32 %v5037, %v5645
  %5647 = vmatprep.mubr.bf16.mxu0 0
  %5648 = vmatmul.mubr.bf16.gmra.mrb[0].mxu0 %v5324
  %v5649 = vpop.f32.mrb[0].mxu0
  %v5650 = vadd.f32 %v5042, %v5649
  %v5651 = vpop.f32.mrb[0].mxu0
  %v5652 = vadd.f32 %v5042, %v5651
  %v5653 = vpop.f32.mrb[0].mxu0
  %v5654 = vadd.f32 %v5047, %v5653
  %v5655 = vpop.f32.mrb[0].mxu0
  %v5656 = vadd.f32 %v5047, %v5655
  %5657 = vmatprep.mubr.bf16.mxu0 0
  %5658 = vmatmul.mubr.bf16.gmra.mrb[0].mxu0 %v5327
  %v5659 = vpop.f32.mrb[0].mxu0
  %v5660 = vadd.f32 %v5052, %v5659
  %v5661 = vpop.f32.mrb[0].mxu0
  %v5662 = vadd.f32 %v5052, %v5661
  %v5663 = vpop.f32.mrb[0].mxu0
  %v5664 = vadd.f32 %v5057, %v5663
  %v5665 = vpop.f32.mrb[0].mxu0
  %v5666 = vadd.f32 %v5057, %v5665
  %5667 = vmatprep.mubr.bf16.mxu0 0
  %5668 = vmatmul.mubr.bf16.gmra.mrb[0].mxu0 %v5330
  %v5669 = vpop.f32.mrb[0].mxu0
  %v5670 = vadd.f32 %v5062, %v5669
  %v5671 = vpop.f32.mrb[0].mxu0
  %v5672 = vadd.f32 %v5062, %v5671
  %v5673 = vpop.f32.mrb[0].mxu0
  %v5674 = vadd.f32 %v5067, %v5673
  %v5675 = vpop.f32.mrb[0].mxu0
  %v5676 = vadd.f32 %v5067, %v5675
  %5677 = vmatprep.mubr.bf16.mxu0 0
  %5678 = vmatmul.mubr.bf16.gmra.mrb[0].mxu0 %v5333
  %v5679 = vpop.f32.mrb[0].mxu0
  %v5680 = vadd.f32 %v5072, %v5679
  %v5681 = vpop.f32.mrb[0].mxu0
  %v5682 = vadd.f32 %v5072, %v5681
  %v5683 = vpop.f32.mrb[0].mxu0
  %v5684 = vadd.f32 %v5077, %v5683
  %v5685 = vpop.f32.mrb[0].mxu0
  %v5686 = vadd.f32 %v5077, %v5685
  %5687 = vdwg.mxu0
  %5688 = vmatprep.subr.bf16.mxu0 %v4746
  %5689 = vmatpush1.bf16.msra.mxu0 %v4745
  %5690 = vmatprep.subr.bf16.mxu0 %v4750
  %5691 = vmatpush1.bf16.msra.mxu0 %v4749
  %5692 = vmatprep.subr.bf16.mxu0 %v4754
  %5693 = vmatpush1.bf16.msra.mxu0 %v4753
  %5694 = vmatprep.subr.bf16.mxu0 %v4758
  %5695 = vmatpush1.bf16.msra.mxu0 %v4757
  %5696 = vmatprep.subr.bf16.mxu0 0
  %5697 = vmatpush1.bf16.msra.mxu0 0
  %5698 = vmatprep.subr.bf16.mxu0 0
  %5699 = vmatpush1.bf16.msra.mxu0 0
  %5700 = vmatprep.subr.bf16.mxu0 0
  %5701 = vmatpush1.bf16.msra.mxu0 0
  %5702 = vmatprep.subr.bf16.mxu0 0
  %5703 = vmatpush1.bf16.msra.mxu0 0
  %5704 = vmatprep.subr.bf16.mxu0 0
  %5705 = vmatpush1.bf16.msra.mxu0 0
  %5706 = vmatprep.subr.bf16.mxu0 0
  %5707 = vmatpush1.bf16.msra.mxu0 0
  %5708 = vmatprep.subr.bf16.mxu0 0
  %5709 = vmatpush1.bf16.msra.mxu0 0
  %5710 = vmatprep.subr.bf16.mxu0 0
  %5711 = vmatpush1.bf16.msra.mxu0 0
  %5712 = vmatprep.subr.bf16.mxu0 0
  %5713 = vmatpush1.bf16.msra.mxu0 0
  %5714 = vmatprep.subr.bf16.mxu0 0
  %5715 = vmatpush1.bf16.msra.mxu0 0
  %5716 = vmatprep.subr.bf16.mxu0 0
  %5717 = vmatpush1.bf16.msra.mxu0 0
  %5718 = vmatprep.subr.bf16.mxu0 0
  %5719 = vmatpush1.bf16.msra.mxu0 0
  %5720 = vmatprep.mubr.bf16.mxu0 0
  %5721 = vmatmul.mubr.bf16.gmra.mrb[0].mxu0 %v5240
  %v5722 = vpop.f32.mrb[0].mxu0
  %v5723 = vadd.f32 %v4762, %v5722
  %v5724 = vpop.f32.mrb[0].mxu0
  %v5725 = vadd.f32 %v4762, %v5724
  %v5726 = vpop.f32.mrb[0].mxu0
  %v5727 = vadd.f32 %v4767, %v5726
  %v5728 = vpop.f32.mrb[0].mxu0
  %v5729 = vadd.f32 %v4767, %v5728
  %5730 = vmatprep.mubr.bf16.mxu0 0
  %5731 = vmatmul.mubr.bf16.gmra.mrb[0].mxu0 %v5243
  %v5732 = vpop.f32.mrb[0].mxu0
  %v5733 = vadd.f32 %v4772, %v5732
  %v5734 = vpop.f32.mrb[0].mxu0
  %v5735 = vadd.f32 %v4772, %v5734
  %v5736 = vpop.f32.mrb[0].mxu0
  %v5737 = vadd.f32 %v4777, %v5736
  %v5738 = vpop.f32.mrb[0].mxu0
  %v5739 = vadd.f32 %v4777, %v5738
  %5740 = vmatprep.mubr.bf16.mxu0 0
  %5741 = vmatmul.mubr.bf16.gmra.mrb[0].mxu0 %v5246
  %v5742 = vpop.f32.mrb[0].mxu0
  %v5743 = vadd.f32 %v4782, %v5742
  %v5744 = vpop.f32.mrb[0].mxu0
  %v5745 = vadd.f32 %v4782, %v5744
  %v5746 = vpop.f32.mrb[0].mxu0
  %v5747 = vadd.f32 %v4787, %v5746
  %v5748 = vpop.f32.mrb[0].mxu0
  %v5749 = vadd.f32 %v4787, %v5748
  %5750 = vmatprep.mubr.bf16.mxu0 0
  %5751 = vmatmul.mubr.bf16.gmra.mrb[0].mxu0 %v5249
  %v5752 = vpop.f32.mrb[0].mxu0
  %v5753 = vadd.f32 %v4792, %v5752
  %v5754 = vpop.f32.mrb[0].mxu0
  %v5755 = vadd.f32 %v4792, %v5754
  %v5756 = vpop.f32.mrb[0].mxu0
  %v5757 = vadd.f32 %v4797, %v5756
  %v5758 = vpop.f32.mrb[0].mxu0
  %v5759 = vadd.f32 %v4797, %v5758
  %5760 = vmatprep.mubr.bf16.mxu0 0
  %5761 = vmatmul.mubr.bf16.gmra.mrb[0].mxu0 %v5252
  %v5762 = vpop.f32.mrb[0].mxu0
  %v5763 = vadd.f32 %v4802, %v5762
  %v5764 = vpop.f32.mrb[0].mxu0
  %v5765 = vadd.f32 %v4802, %v5764
  %v5766 = vpop.f32.mrb[0].mxu0
  %v5767 = vadd.f32 %v4807, %v5766
  %v5768 = vpop.f32.mrb[0].mxu0
  %v5769 = vadd.f32 %v4807, %v5768
  %5770 = vmatprep.mubr.bf16.mxu0 0
  %5771 = vmatmul.mubr.bf16.gmra.mrb[0].mxu0 %v5255
  %v5772 = vpop.f32.mrb[0].mxu0
  %v5773 = vadd.f32 %v4812, %v5772
  %v5774 = vpop.f32.mrb[0].mxu0
  %v5775 = vadd.f32 %v4812, %v5774
  %v5776 = vpop.f32.mrb[0].mxu0
  %v5777 = vadd.f32 %v4817, %v5776
  %v5778 = vpop.f32.mrb[0].mxu0
  %v5779 = vadd.f32 %v4817, %v5778
  %5780 = vmatprep.mubr.bf16.mxu0 0
  %5781 = vmatmul.mubr.bf16.gmra.mrb[0].mxu0 %v5258
  %v5782 = vpop.f32.mrb[0].mxu0
  %v5783 = vadd.f32 %v4822, %v5782
  %v5784 = vpop.f32.mrb[0].mxu0
  %v5785 = vadd.f32 %v4822, %v5784
  %v5786 = vpop.f32.mrb[0].mxu0
  %v5787 = vadd.f32 %v4827, %v5786
  %v5788 = vpop.f32.mrb[0].mxu0
  %v5789 = vadd.f32 %v4827, %v5788
  %5790 = vmatprep.mubr.bf16.mxu0 0
  %5791 = vmatmul.mubr.bf16.gmra.mrb[0].mxu0 %v5261
  %v5792 = vpop.f32.mrb[0].mxu0
  %v5793 = vadd.f32 %v4832, %v5792
  %v5794 = vpop.f32.mrb[0].mxu0
  %v5795 = vadd.f32 %v4832, %v5794
  %v5796 = vpop.f32.mrb[0].mxu0
  %v5797 = vadd.f32 %v4837, %v5796
  %v5798 = vpop.f32.mrb[0].mxu0
  %v5799 = vadd.f32 %v4837, %v5798
  %5800 = vmatprep.mubr.bf16.mxu0 0
  %5801 = vmatmul.mubr.bf16.gmra.mrb[0].mxu0 %v5264
  %v5802 = vpop.f32.mrb[0].mxu0
  %v5803 = vadd.f32 %v4842, %v5802
  %v5804 = vpop.f32.mrb[0].mxu0
  %v5805 = vadd.f32 %v4842, %v5804
  %v5806 = vpop.f32.mrb[0].mxu0
  %v5807 = vadd.f32 %v4847, %v5806
  %v5808 = vpop.f32.mrb[0].mxu0
  %v5809 = vadd.f32 %v4847, %v5808
  %5810 = vmatprep.mubr.bf16.mxu0 0
  %5811 = vmatmul.mubr.bf16.gmra.mrb[0].mxu0 %v5267
  %v5812 = vpop.f32.mrb[0].mxu0
  %v5813 = vadd.f32 %v4852, %v5812
  %v5814 = vpop.f32.mrb[0].mxu0
  %v5815 = vadd.f32 %v4852, %v5814
  %v5816 = vpop.f32.mrb[0].mxu0
  %v5817 = vadd.f32 %v4857, %v5816
  %v5818 = vpop.f32.mrb[0].mxu0
  %v5819 = vadd.f32 %v4857, %v5818
  %5820 = vmatprep.mubr.bf16.mxu0 0
  %5821 = vmatmul.mubr.bf16.gmra.mrb[0].mxu0 %v5270
  %v5822 = vpop.f32.mrb[0].mxu0
  %v5823 = vadd.f32 %v4862, %v5822
  %v5824 = vpop.f32.mrb[0].mxu0
  %v5825 = vadd.f32 %v4862, %v5824
  %v5826 = vpop.f32.mrb[0].mxu0
  %v5827 = vadd.f32 %v4867, %v5826
  %v5828 = vpop.f32.mrb[0].mxu0
  %v5829 = vadd.f32 %v4867, %v5828
  %5830 = vmatprep.mubr.bf16.mxu0 0
  %5831 = vmatmul.mubr.bf16.gmra.mrb[0].mxu0 %v5273
  %v5832 = vpop.f32.mrb[0].mxu0
  %v5833 = vadd.f32 %v4872, %v5832
  %v5834 = vpop.f32.mrb[0].mxu0
  %v5835 = vadd.f32 %v4872, %v5834
  %v5836 = vpop.f32.mrb[0].mxu0
  %v5837 = vadd.f32 %v4877, %v5836
  %v5838 = vpop.f32.mrb[0].mxu0
  %v5839 = vadd.f32 %v4877, %v5838
  %5840 = vmatprep.mubr.bf16.mxu0 0
  %5841 = vmatmul.mubr.bf16.gmra.mrb[0].mxu0 %v5276
  %v5842 = vpop.f32.mrb[0].mxu0
  %v5843 = vadd.f32 %v4882, %v5842
  %v5844 = vpop.f32.mrb[0].mxu0
  %v5845 = vadd.f32 %v4882, %v5844
  %v5846 = vpop.f32.mrb[0].mxu0
  %v5847 = vadd.f32 %v4887, %v5846
  %v5848 = vpop.f32.mrb[0].mxu0
  %v5849 = vadd.f32 %v4887, %v5848
  %5850 = vmatprep.mubr.bf16.mxu0 0
  %5851 = vmatmul.mubr.bf16.gmra.mrb[0].mxu0 %v5279
  %v5852 = vpop.f32.mrb[0].mxu0
  %v5853 = vadd.f32 %v4892, %v5852
  %v5854 = vpop.f32.mrb[0].mxu0
  %v5855 = vadd.f32 %v4892, %v5854
  %v5856 = vpop.f32.mrb[0].mxu0
  %v5857 = vadd.f32 %v4897, %v5856
  %v5858 = vpop.f32.mrb[0].mxu0
  %v5859 = vadd.f32 %v4897, %v5858
  %5860 = vmatprep.mubr.bf16.mxu0 0
  %5861 = vmatmul.mubr.bf16.gmra.mrb[0].mxu0 %v5282
  %v5862 = vpop.f32.mrb[0].mxu0
  %v5863 = vadd.f32 %v4902, %v5862
  %v5864 = vpop.f32.mrb[0].mxu0
  %v5865 = vadd.f32 %v4902, %v5864
  %v5866 = vpop.f32.mrb[0].mxu0
  %v5867 = vadd.f32 %v4907, %v5866
  %v5868 = vpop.f32.mrb[0].mxu0
  %v5869 = vadd.f32 %v4907, %v5868
  %5870 = vmatprep.mubr.bf16.mxu0 0
  %5871 = vmatmul.mubr.bf16.gmra.mrb[0].mxu0 %v5285
  %v5872 = vpop.f32.mrb[0].mxu0
  %v5873 = vadd.f32 %v4912, %v5872
  %v5874 = vpop.f32.mrb[0].mxu0
  %v5875 = vadd.f32 %v4912, %v5874
  %v5876 = vpop.f32.mrb[0].mxu0
  %v5877 = vadd.f32 %v4917, %v5876
  %v5878 = vpop.f32.mrb[0].mxu0
  %v5879 = vadd.f32 %v4917, %v5878
  %5880 = vmatprep.mubr.bf16.mxu0 0
  %5881 = vmatmul.mubr.bf16.gmra.mrb[0].mxu0 %v5288
  %v5882 = vpop.f32.mrb[0].mxu0
  %v5883 = vadd.f32 %v4922, %v5882
  %v5884 = vpop.f32.mrb[0].mxu0
  %v5885 = vadd.f32 %v4922, %v5884
  %v5886 = vpop.f32.mrb[0].mxu0
  %v5887 = vadd.f32 %v4927, %v5886
  %v5888 = vpop.f32.mrb[0].mxu0
  %v5889 = vadd.f32 %v4927, %v5888
  %5890 = vmatprep.mubr.bf16.mxu0 0
  %5891 = vmatmul.mubr.bf16.gmra.mrb[0].mxu0 %v5291
  %v5892 = vpop.f32.mrb[0].mxu0
  %v5893 = vadd.f32 %v4932, %v5892
  %v5894 = vpop.f32.mrb[0].mxu0
  %v5895 = vadd.f32 %v4932, %v5894
  %v5896 = vpop.f32.mrb[0].mxu0
  %v5897 = vadd.f32 %v4937, %v5896
  %v5898 = vpop.f32.mrb[0].mxu0
  %v5899 = vadd.f32 %v4937, %v5898
  %5900 = vmatprep.mubr.bf16.mxu0 0
  %5901 = vmatmul.mubr.bf16.gmra.mrb[0].mxu0 %v5294
  %v5902 = vpop.f32.mrb[0].mxu0
  %v5903 = vadd.f32 %v4942, %v5902
  %v5904 = vpop.f32.mrb[0].mxu0
  %v5905 = vadd.f32 %v4942, %v5904
  %v5906 = vpop.f32.mrb[0].mxu0
  %v5907 = vadd.f32 %v4947, %v5906
  %v5908 = vpop.f32.mrb[0].mxu0
  %v5909 = vadd.f32 %v4947, %v5908
  %5910 = vmatprep.mubr.bf16.mxu0 0
  %5911 = vmatmul.mubr.bf16.gmra.mrb[0].mxu0 %v5297
  %v5912 = vpop.f32.mrb[0].mxu0
  %v5913 = vadd.f32 %v4952, %v5912
  %v5914 = vpop.f32.mrb[0].mxu0
  %v5915 = vadd.f32 %v4952, %v5914
  %v5916 = vpop.f32.mrb[0].mxu0
  %v5917 = vadd.f32 %v4957, %v5916
  %v5918 = vpop.f32.mrb[0].mxu0
  %v5919 = vadd.f32 %v4957, %v5918
  %5920 = vmatprep.mubr.bf16.mxu0 0
  %5921 = vmatmul.mubr.bf16.gmra.mrb[0].mxu0 %v5300
  %v5922 = vpop.f32.mrb[0].mxu0
  %v5923 = vadd.f32 %v4962, %v5922
  %v5924 = vpop.f32.mrb[0].mxu0
  %v5925 = vadd.f32 %v4962, %v5924
  %v5926 = vpop.f32.mrb[0].mxu0
  %v5927 = vadd.f32 %v4967, %v5926
  %v5928 = vpop.f32.mrb[0].mxu0
  %v5929 = vadd.f32 %v4967, %v5928
  %5930 = vmatprep.mubr.bf16.mxu0 0
  %5931 = vmatmul.mubr.bf16.gmra.mrb[0].mxu0 %v5303
  %v5932 = vpop.f32.mrb[0].mxu0
  %v5933 = vadd.f32 %v4972, %v5932
  %v5934 = vpop.f32.mrb[0].mxu0
  %v5935 = vadd.f32 %v4972, %v5934
  %v5936 = vpop.f32.mrb[0].mxu0
  %v5937 = vadd.f32 %v4977, %v5936
  %v5938 = vpop.f32.mrb[0].mxu0
  %v5939 = vadd.f32 %v4977, %v5938
  %5940 = vmatprep.mubr.bf16.mxu0 0
  %5941 = vmatmul.mubr.bf16.gmra.mrb[0].mxu0 %v5306
  %v5942 = vpop.f32.mrb[0].mxu0
  %v5943 = vadd.f32 %v4982, %v5942
  %v5944 = vpop.f32.mrb[0].mxu0
  %v5945 = vadd.f32 %v4982, %v5944
  %v5946 = vpop.f32.mrb[0].mxu0
  %v5947 = vadd.f32 %v4987, %v5946
  %v5948 = vpop.f32.mrb[0].mxu0
  %v5949 = vadd.f32 %v4987, %v5948
  %5950 = vmatprep.mubr.bf16.mxu0 0
  %5951 = vmatmul.mubr.bf16.gmra.mrb[0].mxu0 %v5309
  %v5952 = vpop.f32.mrb[0].mxu0
  %v5953 = vadd.f32 %v4992, %v5952
  %v5954 = vpop.f32.mrb[0].mxu0
  %v5955 = vadd.f32 %v4992, %v5954
  %v5956 = vpop.f32.mrb[0].mxu0
  %v5957 = vadd.f32 %v4997, %v5956
  %v5958 = vpop.f32.mrb[0].mxu0
  %v5959 = vadd.f32 %v4997, %v5958
  %5960 = vmatprep.mubr.bf16.mxu0 0
  %5961 = vmatmul.mubr.bf16.gmra.mrb[0].mxu0 %v5312
  %v5962 = vpop.f32.mrb[0].mxu0
  %v5963 = vadd.f32 %v5002, %v5962
  %v5964 = vpop.f32.mrb[0].mxu0
  %v5965 = vadd.f32 %v5002, %v5964
  %v5966 = vpop.f32.mrb[0].mxu0
  %v5967 = vadd.f32 %v5007, %v5966
  %v5968 = vpop.f32.mrb[0].mxu0
  %v5969 = vadd.f32 %v5007, %v5968
  %5970 = vmatprep.mubr.bf16.mxu0 0
  %5971 = vmatmul.mubr.bf16.gmra.mrb[0].mxu0 %v5315
  %v5972 = vpop.f32.mrb[0].mxu0
  %v5973 = vadd.f32 %v5012, %v5972
  %v5974 = vpop.f32.mrb[0].mxu0
  %v5975 = vadd.f32 %v5012, %v5974
  %v5976 = vpop.f32.mrb[0].mxu0
  %v5977 = vadd.f32 %v5017, %v5976
  %v5978 = vpop.f32.mrb[0].mxu0
  %v5979 = vadd.f32 %v5017, %v5978
  %5980 = vmatprep.mubr.bf16.mxu0 0
  %5981 = vmatmul.mubr.bf16.gmra.mrb[0].mxu0 %v5318
  %v5982 = vpop.f32.mrb[0].mxu0
  %v5983 = vadd.f32 %v5022, %v5982
  %v5984 = vpop.f32.mrb[0].mxu0
  %v5985 = vadd.f32 %v5022, %v5984
  %v5986 = vpop.f32.mrb[0].mxu0
  %v5987 = vadd.f32 %v5027, %v5986
  %v5988 = vpop.f32.mrb[0].mxu0
  %v5989 = vadd.f32 %v5027, %v5988
  %5990 = vmatprep.mubr.bf16.mxu0 0
  %5991 = vmatmul.mubr.bf16.gmra.mrb[0].mxu0 %v5321
  %v5992 = vpop.f32.mrb[0].mxu0
  %v5993 = vadd.f32 %v5032, %v5992
  %v5994 = vpop.f32.mrb[0].mxu0
  %v5995 = vadd.f32 %v5032, %v5994
  %v5996 = vpop.f32.mrb[0].mxu0
  %v5997 = vadd.f32 %v5037, %v5996
  %v5998 = vpop.f32.mrb[0].mxu0
  %v5999 = vadd.f32 %v5037, %v5998
  %6000 = vmatprep.mubr.bf16.mxu0 0
  %6001 = vmatmul.mubr.bf16.gmra.mrb[0].mxu0 %v5324
  %v6002 = vpop.f32.mrb[0].mxu0
  %v6003 = vadd.f32 %v5042, %v6002
  %v6004 = vpop.f32.mrb[0].mxu0
  %v6005 = vadd.f32 %v5042, %v6004
  %v6006 = vpop.f32.mrb[0].mxu0
  %v6007 = vadd.f32 %v5047, %v6006
  %v6008 = vpop.f32.mrb[0].mxu0
  %v6009 = vadd.f32 %v5047, %v6008
  %6010 = vmatprep.mubr.bf16.mxu0 0
  %6011 = vmatmul.mubr.bf16.gmra.mrb[0].mxu0 %v5327
  %v6012 = vpop.f32.mrb[0].mxu0
  %v6013 = vadd.f32 %v5052, %v6012
  %v6014 = vpop.f32.mrb[0].mxu0
  %v6015 = vadd.f32 %v5052, %v6014
  %v6016 = vpop.f32.mrb[0].mxu0
  %v6017 = vadd.f32 %v5057, %v6016
  %v6018 = vpop.f32.mrb[0].mxu0
  %v6019 = vadd.f32 %v5057, %v6018
  %6020 = vmatprep.mubr.bf16.mxu0 0
  %6021 = vmatmul.mubr.bf16.gmra.mrb[0].mxu0 %v5330
  %v6022 = vpop.f32.mrb[0].mxu0
  %v6023 = vadd.f32 %v5062, %v6022
  %v6024 = vpop.f32.mrb[0].mxu0
  %v6025 = vadd.f32 %v5062, %v6024
  %v6026 = vpop.f32.mrb[0].mxu0
  %v6027 = vadd.f32 %v5067, %v6026
  %v6028 = vpop.f32.mrb[0].mxu0
  %v6029 = vadd.f32 %v5067, %v6028
  %6030 = vmatprep.mubr.bf16.mxu0 0
  %6031 = vmatmul.mubr.bf16.gmra.mrb[0].mxu0 %v5333
  %v6032 = vpop.f32.mrb[0].mxu0
  %v6033 = vadd.f32 %v5072, %v6032
  %v6034 = vpop.f32.mrb[0].mxu0
  %v6035 = vadd.f32 %v5072, %v6034
  %v6036 = vpop.f32.mrb[0].mxu0
  %v6037 = vadd.f32 %v5077, %v6036
  %v6038 = vpop.f32.mrb[0].mxu0
  %v6039 = vadd.f32 %v5077, %v6038
  %6040 = vdwg.mxu0
  %v6041 = vmul.f32 %v5450, %v5530
  %v6042 = vmul.f32 %v5452, %v5532
  %v6043 = vmul.f32 %v5450, %v5883
  %v6044 = vmul.f32 %v5452, %v5885
  %v6045 = vmul.f32 %v5454, %v5534
  %v6046 = vmul.f32 %v5456, %v5536
  %v6047 = vmul.f32 %v5454, %v5887
  %v6048 = vmul.f32 %v5456, %v5889
  %v6049 = vmul.f32 %v5460, %v5540
  %v6050 = vmul.f32 %v5462, %v5542
  %v6051 = vmul.f32 %v5460, %v5893
  %v6052 = vmul.f32 %v5462, %v5895
  %v6053 = vmul.f32 %v5464, %v5544
  %v6054 = vmul.f32 %v5466, %v5546
  %v6055 = vmul.f32 %v5464, %v5897
  %v6056 = vmul.f32 %v5466, %v5899
  %v6057 = vmul.f32 %v5470, %v5550
  %v6058 = vmul.f32 %v5472, %v5552
  %v6059 = vmul.f32 %v5470, %v5903
  %v6060 = vmul.f32 %v5472, %v5905
  %v6061 = vmul.f32 %v5474, %v5554
  %v6062 = vmul.f32 %v5476, %v5556
  %v6063 = vmul.f32 %v5474, %v5907
  %v6064 = vmul.f32 %v5476, %v5909
  %v6065 = vmul.f32 %v5480, %v5560
  %v6066 = vmul.f32 %v5482, %v5562
  %v6067 = vmul.f32 %v5480, %v5913
  %v6068 = vmul.f32 %v5482, %v5915
  %v6069 = vmul.f32 %v5484, %v5564
  %v6070 = vmul.f32 %v5486, %v5566
  %v6071 = vmul.f32 %v5484, %v5917
  %v6072 = vmul.f32 %v5486, %v5919
  %v6073 = vmul.f32 %v5490, %v5570
  %v6074 = vmul.f32 %v5492, %v5572
  %v6075 = vmul.f32 %v5490, %v5923
  %v6076 = vmul.f32 %v5492, %v5925
  %v6077 = vmul.f32 %v5494, %v5574
  %v6078 = vmul.f32 %v5496, %v5576
  %v6079 = vmul.f32 %v5494, %v5927
  %v6080 = vmul.f32 %v5496, %v5929
  %v6081 = vmul.f32 %v5500, %v5580
  %v6082 = vmul.f32 %v5502, %v5582
  %v6083 = vmul.f32 %v5500, %v5933
  %v6084 = vmul.f32 %v5502, %v5935
  %v6085 = vmul.f32 %v5504, %v5584
  %v6086 = vmul.f32 %v5506, %v5586
  %v6087 = vmul.f32 %v5504, %v5937
  %v6088 = vmul.f32 %v5506, %v5939
  %v6089 = vmul.f32 %v5510, %v5590
  %v6090 = vmul.f32 %v5512, %v5592
  %v6091 = vmul.f32 %v5510, %v5943
  %v6092 = vmul.f32 %v5512, %v5945
  %v6093 = vmul.f32 %v5514, %v5594
  %v6094 = vmul.f32 %v5516, %v5596
  %v6095 = vmul.f32 %v5514, %v5947
  %v6096 = vmul.f32 %v5516, %v5949
  %v6097 = vmul.f32 %v5520, %v5600
  %v6098 = vmul.f32 %v5522, %v5602
  %v6099 = vmul.f32 %v5520, %v5953
  %v6100 = vmul.f32 %v5522, %v5955
  %v6101 = vmul.f32 %v5524, %v5604
  %v6102 = vmul.f32 %v5526, %v5606
  %v6103 = vmul.f32 %v5524, %v5957
  %v6104 = vmul.f32 %v5526, %v5959
  %v6105 = vmul.f32 %v5803, %v5530
  %v6106 = vmul.f32 %v5805, %v5532
  %v6107 = vmul.f32 %v5803, %v5883
  %v6108 = vmul.f32 %v5805, %v5885
  %v6109 = vmul.f32 %v5807, %v5534
  %v6110 = vmul.f32 %v5809, %v5536
  %v6111 = vmul.f32 %v5807, %v5887
  %v6112 = vmul.f32 %v5809, %v5889
  %v6113 = vmul.f32 %v5813, %v5540
  %v6114 = vmul.f32 %v5815, %v5542
  %v6115 = vmul.f32 %v5813, %v5893
  %v6116 = vmul.f32 %v5815, %v5895
  %v6117 = vmul.f32 %v5817, %v5544
  %v6118 = vmul.f32 %v5819, %v5546
  %v6119 = vmul.f32 %v5817, %v5897
  %v6120 = vmul.f32 %v5819, %v5899
  %v6121 = vmul.f32 %v5823, %v5550
  %v6122 = vmul.f32 %v5825, %v5552
  %v6123 = vmul.f32 %v5823, %v5903
  %v6124 = vmul.f32 %v5825, %v5905
  %v6125 = vmul.f32 %v5827, %v5554
  %v6126 = vmul.f32 %v5829, %v5556
  %v6127 = vmul.f32 %v5827, %v5907
  %v6128 = vmul.f32 %v5829, %v5909
  %v6129 = vmul.f32 %v5833, %v5560
  %v6130 = vmul.f32 %v5835, %v5562
  %v6131 = vmul.f32 %v5833, %v5913
  %v6132 = vmul.f32 %v5835, %v5915
  %v6133 = vmul.f32 %v5837, %v5564
  %v6134 = vmul.f32 %v5839, %v5566
  %v6135 = vmul.f32 %v5837, %v5917
  %v6136 = vmul.f32 %v5839, %v5919
  %v6137 = vmul.f32 %v5843, %v5570
  %v6138 = vmul.f32 %v5845, %v5572
  %v6139 = vmul.f32 %v5843, %v5923
  %v6140 = vmul.f32 %v5845, %v5925
  %v6141 = vmul.f32 %v5847, %v5574
  %v6142 = vmul.f32 %v5849, %v5576
  %v6143 = vmul.f32 %v5847, %v5927
  %v6144 = vmul.f32 %v5849, %v5929
  %v6145 = vmul.f32 %v5853, %v5580
  %v6146 = vmul.f32 %v5855, %v5582
  %v6147 = vmul.f32 %v5853, %v5933
  %v6148 = vmul.f32 %v5855, %v5935
  %v6149 = vmul.f32 %v5857, %v5584
  %v6150 = vmul.f32 %v5859, %v5586
  %v6151 = vmul.f32 %v5857, %v5937
  %v6152 = vmul.f32 %v5859, %v5939
  %v6153 = vmul.f32 %v5863, %v5590
  %v6154 = vmul.f32 %v5865, %v5592
  %v6155 = vmul.f32 %v5863, %v5943
  %v6156 = vmul.f32 %v5865, %v5945
  %v6157 = vmul.f32 %v5867, %v5594
  %v6158 = vmul.f32 %v5869, %v5596
  %v6159 = vmul.f32 %v5867, %v5947
  %v6160 = vmul.f32 %v5869, %v5949
  %v6161 = vmul.f32 %v5873, %v5600
  %v6162 = vmul.f32 %v5875, %v5602
  %v6163 = vmul.f32 %v5873, %v5953
  %v6164 = vmul.f32 %v5875, %v5955
  %v6165 = vmul.f32 %v5877, %v5604
  %v6166 = vmul.f32 %v5879, %v5606
  %v6167 = vmul.f32 %v5877, %v5957
  %v6168 = vmul.f32 %v5879, %v5959
  %v6169 = vpack.c.bf16 %v6045, %v6041
  %v6170 = vpack.c.bf16 %v6046, %v6042
  %v6171 = vpack.c.bf16 %v6047, %v6043
  %v6172 = vpack.c.bf16 %v6048, %v6044
  %v6173 = vpack.c.bf16 %v6053, %v6049
  %v6174 = vpack.c.bf16 %v6054, %v6050
  %v6175 = vpack.c.bf16 %v6055, %v6051
  %v6176 = vpack.c.bf16 %v6056, %v6052
  %v6177 = vpack.c.bf16 %v6061, %v6057
  %v6178 = vpack.c.bf16 %v6062, %v6058
  %v6179 = vpack.c.bf16 %v6063, %v6059
  %v6180 = vpack.c.bf16 %v6064, %v6060
  %v6181 = vpack.c.bf16 %v6069, %v6065
  %v6182 = vpack.c.bf16 %v6070, %v6066
  %v6183 = vpack.c.bf16 %v6071, %v6067
  %v6184 = vpack.c.bf16 %v6072, %v6068
  %v6185 = vpack.c.bf16 %v6077, %v6073
  %v6186 = vpack.c.bf16 %v6078, %v6074
  %v6187 = vpack.c.bf16 %v6079, %v6075
  %v6188 = vpack.c.bf16 %v6080, %v6076
  %v6189 = vpack.c.bf16 %v6085, %v6081
  %v6190 = vpack.c.bf16 %v6086, %v6082
  %v6191 = vpack.c.bf16 %v6087, %v6083
  %v6192 = vpack.c.bf16 %v6088, %v6084
  %v6193 = vpack.c.bf16 %v6093, %v6089
  %v6194 = vpack.c.bf16 %v6094, %v6090
  %v6195 = vpack.c.bf16 %v6095, %v6091
  %v6196 = vpack.c.bf16 %v6096, %v6092
  %v6197 = vpack.c.bf16 %v6101, %v6097
  %v6198 = vpack.c.bf16 %v6102, %v6098
  %v6199 = vpack.c.bf16 %v6103, %v6099
  %v6200 = vpack.c.bf16 %v6104, %v6100
  %v6201 = vpack.c.bf16 %v6109, %v6105
  %v6202 = vpack.c.bf16 %v6110, %v6106
  %v6203 = vpack.c.bf16 %v6111, %v6107
  %v6204 = vpack.c.bf16 %v6112, %v6108
  %v6205 = vpack.c.bf16 %v6117, %v6113
  %v6206 = vpack.c.bf16 %v6118, %v6114
  %v6207 = vpack.c.bf16 %v6119, %v6115
  %v6208 = vpack.c.bf16 %v6120, %v6116
  %v6209 = vpack.c.bf16 %v6125, %v6121
  %v6210 = vpack.c.bf16 %v6126, %v6122
  %v6211 = vpack.c.bf16 %v6127, %v6123
  %v6212 = vpack.c.bf16 %v6128, %v6124
  %v6213 = vpack.c.bf16 %v6133, %v6129
  %v6214 = vpack.c.bf16 %v6134, %v6130
  %v6215 = vpack.c.bf16 %v6135, %v6131
  %v6216 = vpack.c.bf16 %v6136, %v6132
  %v6217 = vpack.c.bf16 %v6141, %v6137
  %v6218 = vpack.c.bf16 %v6142, %v6138
  %v6219 = vpack.c.bf16 %v6143, %v6139
  %v6220 = vpack.c.bf16 %v6144, %v6140
  %v6221 = vpack.c.bf16 %v6149, %v6145
  %v6222 = vpack.c.bf16 %v6150, %v6146
  %v6223 = vpack.c.bf16 %v6151, %v6147
  %v6224 = vpack.c.bf16 %v6152, %v6148
  %v6225 = vpack.c.bf16 %v6157, %v6153
  %v6226 = vpack.c.bf16 %v6158, %v6154
  %v6227 = vpack.c.bf16 %v6159, %v6155
  %v6228 = vpack.c.bf16 %v6160, %v6156
  %v6229 = vpack.c.bf16 %v6165, %v6161
  %v6230 = vpack.c.bf16 %v6166, %v6162
  %v6231 = vpack.c.bf16 %v6167, %v6163
  %v6232 = vpack.c.bf16 %v6168, %v6164
  %v6265 = vunpack.c.l.b16 %v4679
  %v6266 = vunpack.c.h.b16 %v4679
  %v6267 = vunpack.c.l.b16 %v4680
  %v6268 = vunpack.c.h.b16 %v4680
  %v6269 = vunpack.c.l.b16 %v4681
  %v6270 = vunpack.c.h.b16 %v4681
  %v6271 = vunpack.c.l.b16 %v4682
  %v6272 = vunpack.c.h.b16 %v4682
  %v6273 = vunpack.c.l.b16 %v4683
  %v6274 = vunpack.c.h.b16 %v4683
  %v6275 = vunpack.c.l.b16 %v4684
  %v6276 = vunpack.c.h.b16 %v4684
  %v6277 = vunpack.c.l.b16 %v4685
  %v6278 = vunpack.c.h.b16 %v4685
  %v6279 = vunpack.c.l.b16 %v4686
  %v6280 = vunpack.c.h.b16 %v4686
  %v6281 = vunpack.c.l.b16 %v4687
  %v6282 = vunpack.c.h.b16 %v4687
  %v6283 = vunpack.c.l.b16 %v4688
  %v6284 = vunpack.c.h.b16 %v4688
  %v6285 = vunpack.c.l.b16 %v4689
  %v6286 = vunpack.c.h.b16 %v4689
  %v6287 = vunpack.c.l.b16 %v4690
  %v6288 = vunpack.c.h.b16 %v4690
  %v6289 = vunpack.c.l.b16 %v4691
  %v6290 = vunpack.c.h.b16 %v4691
  %v6291 = vunpack.c.l.b16 %v4692
  %v6292 = vunpack.c.h.b16 %v4692
  %v6293 = vunpack.c.l.b16 %v4693
  %v6294 = vunpack.c.h.b16 %v4693
  %v6295 = vunpack.c.l.b16 %v4694
  %v6296 = vunpack.c.h.b16 %v4694
  %v6297 = vunpack.c.l.b16 %v4695
  %v6298 = vunpack.c.h.b16 %v4695
  %v6299 = vunpack.c.l.b16 %v4696
  %v6300 = vunpack.c.h.b16 %v4696
  %v6301 = vunpack.c.l.b16 %v4697
  %v6302 = vunpack.c.h.b16 %v4697
  %v6303 = vunpack.c.l.b16 %v4698
  %v6304 = vunpack.c.h.b16 %v4698
  %v6305 = vunpack.c.l.b16 %v4699
  %v6306 = vunpack.c.h.b16 %v4699
  %v6307 = vunpack.c.l.b16 %v4700
  %v6308 = vunpack.c.h.b16 %v4700
  %v6309 = vunpack.c.l.b16 %v4701
  %v6310 = vunpack.c.h.b16 %v4701
  %v6311 = vunpack.c.l.b16 %v4702
  %v6312 = vunpack.c.h.b16 %v4702
  %v6313 = vunpack.c.l.b16 %v4703
  %v6314 = vunpack.c.h.b16 %v4703
  %v6315 = vunpack.c.l.b16 %v4704
  %v6316 = vunpack.c.h.b16 %v4704
  %v6317 = vunpack.c.l.b16 %v4705
  %v6318 = vunpack.c.h.b16 %v4705
  %v6319 = vunpack.c.l.b16 %v4706
  %v6320 = vunpack.c.h.b16 %v4706
  %v6321 = vunpack.c.l.b16 %v4707
  %v6322 = vunpack.c.h.b16 %v4707
  %v6323 = vunpack.c.l.b16 %v4708
  %v6324 = vunpack.c.h.b16 %v4708
  %v6325 = vunpack.c.l.b16 %v4709
  %v6326 = vunpack.c.h.b16 %v4709
  %v6327 = vunpack.c.l.b16 %v4710
  %v6328 = vunpack.c.h.b16 %v4710
  %v6329 = vpack.c.b16 %v6267, %v6265
  %v6330 = vpack.c.b16 %v6268, %v6266
  %v6331 = vpack.c.b16 %v6271, %v6269
  %v6332 = vpack.c.b16 %v6272, %v6270
  %v6333 = vpack.c.b16 %v6275, %v6273
  %v6334 = vpack.c.b16 %v6276, %v6274
  %v6335 = vpack.c.b16 %v6279, %v6277
  %v6336 = vpack.c.b16 %v6280, %v6278
  %v6337 = vpack.c.b16 %v6283, %v6281
  %v6338 = vpack.c.b16 %v6284, %v6282
  %v6339 = vpack.c.b16 %v6287, %v6285
  %v6340 = vpack.c.b16 %v6288, %v6286
  %v6341 = vpack.c.b16 %v6291, %v6289
  %v6342 = vpack.c.b16 %v6292, %v6290
  %v6343 = vpack.c.b16 %v6295, %v6293
  %v6344 = vpack.c.b16 %v6296, %v6294
  %v6345 = vpack.c.b16 %v6299, %v6297
  %v6346 = vpack.c.b16 %v6300, %v6298
  %v6347 = vpack.c.b16 %v6303, %v6301
  %v6348 = vpack.c.b16 %v6304, %v6302
  %v6349 = vpack.c.b16 %v6307, %v6305
  %v6350 = vpack.c.b16 %v6308, %v6306
  %v6351 = vpack.c.b16 %v6311, %v6309
  %v6352 = vpack.c.b16 %v6312, %v6310
  %v6353 = vpack.c.b16 %v6315, %v6313
  %v6354 = vpack.c.b16 %v6316, %v6314
  %v6355 = vpack.c.b16 %v6319, %v6317
  %v6356 = vpack.c.b16 %v6320, %v6318
  %v6357 = vpack.c.b16 %v6323, %v6321
  %v6358 = vpack.c.b16 %v6324, %v6322
  %v6359 = vpack.c.b16 %v6327, %v6325
  %v6360 = vpack.c.b16 %v6328, %v6326
  %6393 = vmatprep.subr.bf16.mxu0 %v6170
  %6394 = vmatpush1.bf16.msra.mxu0 %v6169
  %6395 = vmatprep.subr.bf16.mxu0 %v6174
  %6396 = vmatpush1.bf16.msra.mxu0 %v6173
  %6397 = vmatprep.subr.bf16.mxu0 %v6178
  %6398 = vmatpush1.bf16.msra.mxu0 %v6177
  %6399 = vmatprep.subr.bf16.mxu0 %v6182
  %6400 = vmatpush1.bf16.msra.mxu0 %v6181
  %6401 = vmatprep.subr.bf16.mxu0 %v6186
  %6402 = vmatpush1.bf16.msra.mxu0 %v6185
  %6403 = vmatprep.subr.bf16.mxu0 %v6190
  %6404 = vmatpush1.bf16.msra.mxu0 %v6189
  %6405 = vmatprep.subr.bf16.mxu0 %v6194
  %6406 = vmatpush1.bf16.msra.mxu0 %v6193
  %6407 = vmatprep.subr.bf16.mxu0 %v6198
  %6408 = vmatpush1.bf16.msra.mxu0 %v6197
  %6409 = vmatprep.subr.bf16.mxu0 %v6202
  %6410 = vmatpush1.bf16.msra.mxu0 %v6201
  %6411 = vmatprep.subr.bf16.mxu0 %v6206
  %6412 = vmatpush1.bf16.msra.mxu0 %v6205
  %6413 = vmatprep.subr.bf16.mxu0 %v6210
  %6414 = vmatpush1.bf16.msra.mxu0 %v6209
  %6415 = vmatprep.subr.bf16.mxu0 %v6214
  %6416 = vmatpush1.bf16.msra.mxu0 %v6213
  %6417 = vmatprep.subr.bf16.mxu0 %v6218
  %6418 = vmatpush1.bf16.msra.mxu0 %v6217
  %6419 = vmatprep.subr.bf16.mxu0 %v6222
  %6420 = vmatpush1.bf16.msra.mxu0 %v6221
  %6421 = vmatprep.subr.bf16.mxu0 %v6226
  %6422 = vmatpush1.bf16.msra.mxu0 %v6225
  %6423 = vmatprep.subr.bf16.mxu0 %v6230
  %6424 = vmatpush1.bf16.msra.mxu0 %v6229
  %6425 = vmatprep.mubr.bf16.mxu0 %v6330
  %6426 = vmatmul.mubr.bf16.gmra.mrb[0].mxu0 %v6329
  %v6427 = vpop.f32.mrb[0].mxu0
  %v6428 = vadd.f32 0.0, %v6427
  %v6429 = vpop.f32.mrb[0].mxu0
  %v6430 = vadd.f32 0.0, %v6429
  %v6431 = vpop.f32.mrb[0].mxu0
  %v6432 = vadd.f32 0.0, %v6431
  %v6433 = vpop.f32.mrb[0].mxu0
  %v6434 = vadd.f32 0.0, %v6433
  %6435 = vmatprep.mubr.bf16.mxu0 %v6332
  %6436 = vmatmul.mubr.bf16.gmra.mrb[0].mxu0 %v6331
  %v6437 = vpop.f32.mrb[0].mxu0
  %v6438 = vadd.f32 0.0, %v6437
  %v6439 = vpop.f32.mrb[0].mxu0
  %v6440 = vadd.f32 0.0, %v6439
  %v6441 = vpop.f32.mrb[0].mxu0
  %v6442 = vadd.f32 0.0, %v6441
  %v6443 = vpop.f32.mrb[0].mxu0
  %v6444 = vadd.f32 0.0, %v6443
  %6445 = vmatprep.mubr.bf16.mxu0 %v6334
  %6446 = vmatmul.mubr.bf16.gmra.mrb[0].mxu0 %v6333
  %v6447 = vpop.f32.mrb[0].mxu0
  %v6448 = vadd.f32 0.0, %v6447
  %v6449 = vpop.f32.mrb[0].mxu0
  %v6450 = vadd.f32 0.0, %v6449
  %v6451 = vpop.f32.mrb[0].mxu0
  %v6452 = vadd.f32 0.0, %v6451
  %v6453 = vpop.f32.mrb[0].mxu0
  %v6454 = vadd.f32 0.0, %v6453
  %6455 = vmatprep.mubr.bf16.mxu0 %v6336
  %6456 = vmatmul.mubr.bf16.gmra.mrb[0].mxu0 %v6335
  %v6457 = vpop.f32.mrb[0].mxu0
  %v6458 = vadd.f32 0.0, %v6457
  %v6459 = vpop.f32.mrb[0].mxu0
  %v6460 = vadd.f32 0.0, %v6459
  %v6461 = vpop.f32.mrb[0].mxu0
  %v6462 = vadd.f32 0.0, %v6461
  %v6463 = vpop.f32.mrb[0].mxu0
  %v6464 = vadd.f32 0.0, %v6463
  %6465 = vmatprep.mubr.bf16.mxu0 %v6338
  %6466 = vmatmul.mubr.bf16.gmra.mrb[0].mxu0 %v6337
  %v6467 = vpop.f32.mrb[0].mxu0
  %v6468 = vadd.f32 0.0, %v6467
  %v6469 = vpop.f32.mrb[0].mxu0
  %v6470 = vadd.f32 0.0, %v6469
  %v6471 = vpop.f32.mrb[0].mxu0
  %v6472 = vadd.f32 0.0, %v6471
  %v6473 = vpop.f32.mrb[0].mxu0
  %v6474 = vadd.f32 0.0, %v6473
  %6475 = vmatprep.mubr.bf16.mxu0 %v6340
  %6476 = vmatmul.mubr.bf16.gmra.mrb[0].mxu0 %v6339
  %v6477 = vpop.f32.mrb[0].mxu0
  %v6478 = vadd.f32 0.0, %v6477
  %v6479 = vpop.f32.mrb[0].mxu0
  %v6480 = vadd.f32 0.0, %v6479
  %v6481 = vpop.f32.mrb[0].mxu0
  %v6482 = vadd.f32 0.0, %v6481
  %v6483 = vpop.f32.mrb[0].mxu0
  %v6484 = vadd.f32 0.0, %v6483
  %6485 = vmatprep.mubr.bf16.mxu0 %v6342
  %6486 = vmatmul.mubr.bf16.gmra.mrb[0].mxu0 %v6341
  %v6487 = vpop.f32.mrb[0].mxu0
  %v6488 = vadd.f32 0.0, %v6487
  %v6489 = vpop.f32.mrb[0].mxu0
  %v6490 = vadd.f32 0.0, %v6489
  %v6491 = vpop.f32.mrb[0].mxu0
  %v6492 = vadd.f32 0.0, %v6491
  %v6493 = vpop.f32.mrb[0].mxu0
  %v6494 = vadd.f32 0.0, %v6493
  %6495 = vmatprep.mubr.bf16.mxu0 %v6344
  %6496 = vmatmul.mubr.bf16.gmra.mrb[0].mxu0 %v6343
  %v6497 = vpop.f32.mrb[0].mxu0
  %v6498 = vadd.f32 0.0, %v6497
  %v6499 = vpop.f32.mrb[0].mxu0
  %v6500 = vadd.f32 0.0, %v6499
  %v6501 = vpop.f32.mrb[0].mxu0
  %v6502 = vadd.f32 0.0, %v6501
  %v6503 = vpop.f32.mrb[0].mxu0
  %v6504 = vadd.f32 0.0, %v6503
  %6505 = vmatprep.mubr.bf16.mxu0 %v6346
  %6506 = vmatmul.mubr.bf16.gmra.mrb[0].mxu0 %v6345
  %v6507 = vpop.f32.mrb[0].mxu0
  %v6508 = vadd.f32 0.0, %v6507
  %v6509 = vpop.f32.mrb[0].mxu0
  %v6510 = vadd.f32 0.0, %v6509
  %v6511 = vpop.f32.mrb[0].mxu0
  %v6512 = vadd.f32 0.0, %v6511
  %v6513 = vpop.f32.mrb[0].mxu0
  %v6514 = vadd.f32 0.0, %v6513
  %6515 = vmatprep.mubr.bf16.mxu0 %v6348
  %6516 = vmatmul.mubr.bf16.gmra.mrb[0].mxu0 %v6347
  %v6517 = vpop.f32.mrb[0].mxu0
  %v6518 = vadd.f32 0.0, %v6517
  %v6519 = vpop.f32.mrb[0].mxu0
  %v6520 = vadd.f32 0.0, %v6519
  %v6521 = vpop.f32.mrb[0].mxu0
  %v6522 = vadd.f32 0.0, %v6521
  %v6523 = vpop.f32.mrb[0].mxu0
  %v6524 = vadd.f32 0.0, %v6523
  %6525 = vmatprep.mubr.bf16.mxu0 %v6350
  %6526 = vmatmul.mubr.bf16.gmra.mrb[0].mxu0 %v6349
  %v6527 = vpop.f32.mrb[0].mxu0
  %v6528 = vadd.f32 0.0, %v6527
  %v6529 = vpop.f32.mrb[0].mxu0
  %v6530 = vadd.f32 0.0, %v6529
  %v6531 = vpop.f32.mrb[0].mxu0
  %v6532 = vadd.f32 0.0, %v6531
  %v6533 = vpop.f32.mrb[0].mxu0
  %v6534 = vadd.f32 0.0, %v6533
  %6535 = vmatprep.mubr.bf16.mxu0 %v6352
  %6536 = vmatmul.mubr.bf16.gmra.mrb[0].mxu0 %v6351
  %v6537 = vpop.f32.mrb[0].mxu0
  %v6538 = vadd.f32 0.0, %v6537
  %v6539 = vpop.f32.mrb[0].mxu0
  %v6540 = vadd.f32 0.0, %v6539
  %v6541 = vpop.f32.mrb[0].mxu0
  %v6542 = vadd.f32 0.0, %v6541
  %v6543 = vpop.f32.mrb[0].mxu0
  %v6544 = vadd.f32 0.0, %v6543
  %6545 = vmatprep.mubr.bf16.mxu0 %v6354
  %6546 = vmatmul.mubr.bf16.gmra.mrb[0].mxu0 %v6353
  %v6547 = vpop.f32.mrb[0].mxu0
  %v6548 = vadd.f32 0.0, %v6547
  %v6549 = vpop.f32.mrb[0].mxu0
  %v6550 = vadd.f32 0.0, %v6549
  %v6551 = vpop.f32.mrb[0].mxu0
  %v6552 = vadd.f32 0.0, %v6551
  %v6553 = vpop.f32.mrb[0].mxu0
  %v6554 = vadd.f32 0.0, %v6553
  %6555 = vmatprep.mubr.bf16.mxu0 %v6356
  %6556 = vmatmul.mubr.bf16.gmra.mrb[0].mxu0 %v6355
  %v6557 = vpop.f32.mrb[0].mxu0
  %v6558 = vadd.f32 0.0, %v6557
  %v6559 = vpop.f32.mrb[0].mxu0
  %v6560 = vadd.f32 0.0, %v6559
  %v6561 = vpop.f32.mrb[0].mxu0
  %v6562 = vadd.f32 0.0, %v6561
  %v6563 = vpop.f32.mrb[0].mxu0
  %v6564 = vadd.f32 0.0, %v6563
  %6565 = vmatprep.mubr.bf16.mxu0 %v6358
  %6566 = vmatmul.mubr.bf16.gmra.mrb[0].mxu0 %v6357
  %v6567 = vpop.f32.mrb[0].mxu0
  %v6568 = vadd.f32 0.0, %v6567
  %v6569 = vpop.f32.mrb[0].mxu0
  %v6570 = vadd.f32 0.0, %v6569
  %v6571 = vpop.f32.mrb[0].mxu0
  %v6572 = vadd.f32 0.0, %v6571
  %v6573 = vpop.f32.mrb[0].mxu0
  %v6574 = vadd.f32 0.0, %v6573
  %6575 = vmatprep.mubr.bf16.mxu0 %v6360
  %6576 = vmatmul.mubr.bf16.gmra.mrb[0].mxu0 %v6359
  %v6577 = vpop.f32.mrb[0].mxu0
  %v6578 = vadd.f32 0.0, %v6577
  %v6579 = vpop.f32.mrb[0].mxu0
  %v6580 = vadd.f32 0.0, %v6579
  %v6581 = vpop.f32.mrb[0].mxu0
  %v6582 = vadd.f32 0.0, %v6581
  %v6583 = vpop.f32.mrb[0].mxu0
  %v6584 = vadd.f32 0.0, %v6583
  %6585 = vdwg.mxu0
  %6586 = vmatprep.subr.bf16.mxu0 %v6172
  %6587 = vmatpush1.bf16.msra.mxu0 %v6171
  %6588 = vmatprep.subr.bf16.mxu0 %v6176
  %6589 = vmatpush1.bf16.msra.mxu0 %v6175
  %6590 = vmatprep.subr.bf16.mxu0 %v6180
  %6591 = vmatpush1.bf16.msra.mxu0 %v6179
  %6592 = vmatprep.subr.bf16.mxu0 %v6184
  %6593 = vmatpush1.bf16.msra.mxu0 %v6183
  %6594 = vmatprep.subr.bf16.mxu0 %v6188
  %6595 = vmatpush1.bf16.msra.mxu0 %v6187
  %6596 = vmatprep.subr.bf16.mxu0 %v6192
  %6597 = vmatpush1.bf16.msra.mxu0 %v6191
  %6598 = vmatprep.subr.bf16.mxu0 %v6196
  %6599 = vmatpush1.bf16.msra.mxu0 %v6195
  %6600 = vmatprep.subr.bf16.mxu0 %v6200
  %6601 = vmatpush1.bf16.msra.mxu0 %v6199
  %6602 = vmatprep.subr.bf16.mxu0 %v6204
  %6603 = vmatpush1.bf16.msra.mxu0 %v6203
  %6604 = vmatprep.subr.bf16.mxu0 %v6208
  %6605 = vmatpush1.bf16.msra.mxu0 %v6207
  %6606 = vmatprep.subr.bf16.mxu0 %v6212
  %6607 = vmatpush1.bf16.msra.mxu0 %v6211
  %6608 = vmatprep.subr.bf16.mxu0 %v6216
  %6609 = vmatpush1.bf16.msra.mxu0 %v6215
  %6610 = vmatprep.subr.bf16.mxu0 %v6220
  %6611 = vmatpush1.bf16.msra.mxu0 %v6219
  %6612 = vmatprep.subr.bf16.mxu0 %v6224
  %6613 = vmatpush1.bf16.msra.mxu0 %v6223
  %6614 = vmatprep.subr.bf16.mxu0 %v6228
  %6615 = vmatpush1.bf16.msra.mxu0 %v6227
  %6616 = vmatprep.subr.bf16.mxu0 %v6232
  %6617 = vmatpush1.bf16.msra.mxu0 %v6231
  %6618 = vmatprep.mubr.bf16.mxu0 %v6330
  %6619 = vmatmul.mubr.bf16.gmra.mrb[0].mxu0 %v6329
  %v6620 = vpop.f32.mrb[0].mxu0
  %v6621 = vadd.f32 0.0, %v6620
  %v6622 = vpop.f32.mrb[0].mxu0
  %v6623 = vadd.f32 0.0, %v6622
  %v6624 = vpop.f32.mrb[0].mxu0
  %v6625 = vadd.f32 0.0, %v6624
  %v6626 = vpop.f32.mrb[0].mxu0
  %v6627 = vadd.f32 0.0, %v6626
  %6628 = vmatprep.mubr.bf16.mxu0 %v6332
  %6629 = vmatmul.mubr.bf16.gmra.mrb[0].mxu0 %v6331
  %v6630 = vpop.f32.mrb[0].mxu0
  %v6631 = vadd.f32 0.0, %v6630
  %v6632 = vpop.f32.mrb[0].mxu0
  %v6633 = vadd.f32 0.0, %v6632
  %v6634 = vpop.f32.mrb[0].mxu0
  %v6635 = vadd.f32 0.0, %v6634
  %v6636 = vpop.f32.mrb[0].mxu0
  %v6637 = vadd.f32 0.0, %v6636
  %6638 = vmatprep.mubr.bf16.mxu0 %v6334
  %6639 = vmatmul.mubr.bf16.gmra.mrb[0].mxu0 %v6333
  %v6640 = vpop.f32.mrb[0].mxu0
  %v6641 = vadd.f32 0.0, %v6640
  %v6642 = vpop.f32.mrb[0].mxu0
  %v6643 = vadd.f32 0.0, %v6642
  %v6644 = vpop.f32.mrb[0].mxu0
  %v6645 = vadd.f32 0.0, %v6644
  %v6646 = vpop.f32.mrb[0].mxu0
  %v6647 = vadd.f32 0.0, %v6646
  %6648 = vmatprep.mubr.bf16.mxu0 %v6336
  %6649 = vmatmul.mubr.bf16.gmra.mrb[0].mxu0 %v6335
  %v6650 = vpop.f32.mrb[0].mxu0
  %v6651 = vadd.f32 0.0, %v6650
  %v6652 = vpop.f32.mrb[0].mxu0
  %v6653 = vadd.f32 0.0, %v6652
  %v6654 = vpop.f32.mrb[0].mxu0
  %v6655 = vadd.f32 0.0, %v6654
  %v6656 = vpop.f32.mrb[0].mxu0
  %v6657 = vadd.f32 0.0, %v6656
  %6658 = vmatprep.mubr.bf16.mxu0 %v6338
  %6659 = vmatmul.mubr.bf16.gmra.mrb[0].mxu0 %v6337
  %v6660 = vpop.f32.mrb[0].mxu0
  %v6661 = vadd.f32 0.0, %v6660
  %v6662 = vpop.f32.mrb[0].mxu0
  %v6663 = vadd.f32 0.0, %v6662
  %v6664 = vpop.f32.mrb[0].mxu0
  %v6665 = vadd.f32 0.0, %v6664
  %v6666 = vpop.f32.mrb[0].mxu0
  %v6667 = vadd.f32 0.0, %v6666
  %6668 = vmatprep.mubr.bf16.mxu0 %v6340
  %6669 = vmatmul.mubr.bf16.gmra.mrb[0].mxu0 %v6339
  %v6670 = vpop.f32.mrb[0].mxu0
  %v6671 = vadd.f32 0.0, %v6670
  %v6672 = vpop.f32.mrb[0].mxu0
  %v6673 = vadd.f32 0.0, %v6672
  %v6674 = vpop.f32.mrb[0].mxu0
  %v6675 = vadd.f32 0.0, %v6674
  %v6676 = vpop.f32.mrb[0].mxu0
  %v6677 = vadd.f32 0.0, %v6676
  %6678 = vmatprep.mubr.bf16.mxu0 %v6342
  %6679 = vmatmul.mubr.bf16.gmra.mrb[0].mxu0 %v6341
  %v6680 = vpop.f32.mrb[0].mxu0
  %v6681 = vadd.f32 0.0, %v6680
  %v6682 = vpop.f32.mrb[0].mxu0
  %v6683 = vadd.f32 0.0, %v6682
  %v6684 = vpop.f32.mrb[0].mxu0
  %v6685 = vadd.f32 0.0, %v6684
  %v6686 = vpop.f32.mrb[0].mxu0
  %v6687 = vadd.f32 0.0, %v6686
  %6688 = vmatprep.mubr.bf16.mxu0 %v6344
  %6689 = vmatmul.mubr.bf16.gmra.mrb[0].mxu0 %v6343
  %v6690 = vpop.f32.mrb[0].mxu0
  %v6691 = vadd.f32 0.0, %v6690
  %v6692 = vpop.f32.mrb[0].mxu0
  %v6693 = vadd.f32 0.0, %v6692
  %v6694 = vpop.f32.mrb[0].mxu0
  %v6695 = vadd.f32 0.0, %v6694
  %v6696 = vpop.f32.mrb[0].mxu0
  %v6697 = vadd.f32 0.0, %v6696
  %6698 = vmatprep.mubr.bf16.mxu0 %v6346
  %6699 = vmatmul.mubr.bf16.gmra.mrb[0].mxu0 %v6345
  %v6700 = vpop.f32.mrb[0].mxu0
  %v6701 = vadd.f32 0.0, %v6700
  %v6702 = vpop.f32.mrb[0].mxu0
  %v6703 = vadd.f32 0.0, %v6702
  %v6704 = vpop.f32.mrb[0].mxu0
  %v6705 = vadd.f32 0.0, %v6704
  %v6706 = vpop.f32.mrb[0].mxu0
  %v6707 = vadd.f32 0.0, %v6706
  %6708 = vmatprep.mubr.bf16.mxu0 %v6348
  %6709 = vmatmul.mubr.bf16.gmra.mrb[0].mxu0 %v6347
  %v6710 = vpop.f32.mrb[0].mxu0
  %v6711 = vadd.f32 0.0, %v6710
  %v6712 = vpop.f32.mrb[0].mxu0
  %v6713 = vadd.f32 0.0, %v6712
  %v6714 = vpop.f32.mrb[0].mxu0
  %v6715 = vadd.f32 0.0, %v6714
  %v6716 = vpop.f32.mrb[0].mxu0
  %v6717 = vadd.f32 0.0, %v6716
  %6718 = vmatprep.mubr.bf16.mxu0 %v6350
  %6719 = vmatmul.mubr.bf16.gmra.mrb[0].mxu0 %v6349
  %v6720 = vpop.f32.mrb[0].mxu0
  %v6721 = vadd.f32 0.0, %v6720
  %v6722 = vpop.f32.mrb[0].mxu0
  %v6723 = vadd.f32 0.0, %v6722
  %v6724 = vpop.f32.mrb[0].mxu0
  %v6725 = vadd.f32 0.0, %v6724
  %v6726 = vpop.f32.mrb[0].mxu0
  %v6727 = vadd.f32 0.0, %v6726
  %6728 = vmatprep.mubr.bf16.mxu0 %v6352
  %6729 = vmatmul.mubr.bf16.gmra.mrb[0].mxu0 %v6351
  %v6730 = vpop.f32.mrb[0].mxu0
  %v6731 = vadd.f32 0.0, %v6730
  %v6732 = vpop.f32.mrb[0].mxu0
  %v6733 = vadd.f32 0.0, %v6732
  %v6734 = vpop.f32.mrb[0].mxu0
  %v6735 = vadd.f32 0.0, %v6734
  %v6736 = vpop.f32.mrb[0].mxu0
  %v6737 = vadd.f32 0.0, %v6736
  %6738 = vmatprep.mubr.bf16.mxu0 %v6354
  %6739 = vmatmul.mubr.bf16.gmra.mrb[0].mxu0 %v6353
  %v6740 = vpop.f32.mrb[0].mxu0
  %v6741 = vadd.f32 0.0, %v6740
  %v6742 = vpop.f32.mrb[0].mxu0
  %v6743 = vadd.f32 0.0, %v6742
  %v6744 = vpop.f32.mrb[0].mxu0
  %v6745 = vadd.f32 0.0, %v6744
  %v6746 = vpop.f32.mrb[0].mxu0
  %v6747 = vadd.f32 0.0, %v6746
  %6748 = vmatprep.mubr.bf16.mxu0 %v6356
  %6749 = vmatmul.mubr.bf16.gmra.mrb[0].mxu0 %v6355
  %v6750 = vpop.f32.mrb[0].mxu0
  %v6751 = vadd.f32 0.0, %v6750
  %v6752 = vpop.f32.mrb[0].mxu0
  %v6753 = vadd.f32 0.0, %v6752
  %v6754 = vpop.f32.mrb[0].mxu0
  %v6755 = vadd.f32 0.0, %v6754
  %v6756 = vpop.f32.mrb[0].mxu0
  %v6757 = vadd.f32 0.0, %v6756
  %6758 = vmatprep.mubr.bf16.mxu0 %v6358
  %6759 = vmatmul.mubr.bf16.gmra.mrb[0].mxu0 %v6357
  %v6760 = vpop.f32.mrb[0].mxu0
  %v6761 = vadd.f32 0.0, %v6760
  %v6762 = vpop.f32.mrb[0].mxu0
  %v6763 = vadd.f32 0.0, %v6762
  %v6764 = vpop.f32.mrb[0].mxu0
  %v6765 = vadd.f32 0.0, %v6764
  %v6766 = vpop.f32.mrb[0].mxu0
  %v6767 = vadd.f32 0.0, %v6766
  %6768 = vmatprep.mubr.bf16.mxu0 %v6360
  %6769 = vmatmul.mubr.bf16.gmra.mrb[0].mxu0 %v6359
  %v6770 = vpop.f32.mrb[0].mxu0
  %v6771 = vadd.f32 0.0, %v6770
  %v6772 = vpop.f32.mrb[0].mxu0
  %v6773 = vadd.f32 0.0, %v6772
  %v6774 = vpop.f32.mrb[0].mxu0
  %v6775 = vadd.f32 0.0, %v6774
  %v6776 = vpop.f32.mrb[0].mxu0
  %v6777 = vadd.f32 0.0, %v6776
  %6778 = vdwg.mxu0
  %v6779 = vsub.f32 %v6428, %v6621
  %v6780 = vsub.f32 %v6430, %v6623
  %v6781 = vsub.f32 %v6432, %v6625
  %v6782 = vsub.f32 %v6434, %v6627
  %v6783 = vsub.f32 %v6438, %v6631
  %v6784 = vsub.f32 %v6440, %v6633
  %v6785 = vsub.f32 %v6442, %v6635
  %v6786 = vsub.f32 %v6444, %v6637
  %v6787 = vsub.f32 %v6448, %v6641
  %v6788 = vsub.f32 %v6450, %v6643
  %v6789 = vsub.f32 %v6452, %v6645
  %v6790 = vsub.f32 %v6454, %v6647
  %v6791 = vsub.f32 %v6458, %v6651
  %v6792 = vsub.f32 %v6460, %v6653
  %v6793 = vsub.f32 %v6462, %v6655
  %v6794 = vsub.f32 %v6464, %v6657
  %v6795 = vsub.f32 %v6468, %v6661
  %v6796 = vsub.f32 %v6470, %v6663
  %v6797 = vsub.f32 %v6472, %v6665
  %v6798 = vsub.f32 %v6474, %v6667
  %v6799 = vsub.f32 %v6478, %v6671
  %v6800 = vsub.f32 %v6480, %v6673
  %v6801 = vsub.f32 %v6482, %v6675
  %v6802 = vsub.f32 %v6484, %v6677
  %v6803 = vsub.f32 %v6488, %v6681
  %v6804 = vsub.f32 %v6490, %v6683
  %v6805 = vsub.f32 %v6492, %v6685
  %v6806 = vsub.f32 %v6494, %v6687
  %v6807 = vsub.f32 %v6498, %v6691
  %v6808 = vsub.f32 %v6500, %v6693
  %v6809 = vsub.f32 %v6502, %v6695
  %v6810 = vsub.f32 %v6504, %v6697
  %v6811 = vsub.f32 %v6508, %v6701
  %v6812 = vsub.f32 %v6510, %v6703
  %v6813 = vsub.f32 %v6512, %v6705
  %v6814 = vsub.f32 %v6514, %v6707
  %v6815 = vsub.f32 %v6518, %v6711
  %v6816 = vsub.f32 %v6520, %v6713
  %v6817 = vsub.f32 %v6522, %v6715
  %v6818 = vsub.f32 %v6524, %v6717
  %v6819 = vsub.f32 %v6528, %v6721
  %v6820 = vsub.f32 %v6530, %v6723
  %v6821 = vsub.f32 %v6532, %v6725
  %v6822 = vsub.f32 %v6534, %v6727
  %v6823 = vsub.f32 %v6538, %v6731
  %v6824 = vsub.f32 %v6540, %v6733
  %v6825 = vsub.f32 %v6542, %v6735
  %v6826 = vsub.f32 %v6544, %v6737
  %v6827 = vsub.f32 %v6548, %v6741
  %v6828 = vsub.f32 %v6550, %v6743
  %v6829 = vsub.f32 %v6552, %v6745
  %v6830 = vsub.f32 %v6554, %v6747
  %v6831 = vsub.f32 %v6558, %v6751
  %v6832 = vsub.f32 %v6560, %v6753
  %v6833 = vsub.f32 %v6562, %v6755
  %v6834 = vsub.f32 %v6564, %v6757
  %v6835 = vsub.f32 %v6568, %v6761
  %v6836 = vsub.f32 %v6570, %v6763
  %v6837 = vsub.f32 %v6572, %v6765
  %v6838 = vsub.f32 %v6574, %v6767
  %v6839 = vsub.f32 %v6578, %v6771
  %v6840 = vsub.f32 %v6580, %v6773
  %v6841 = vsub.f32 %v6582, %v6775
  %v6842 = vsub.f32 %v6584, %v6777
  %v6843 = vsub.f32 0.0, %v6779
  %v6844 = vsub.f32 0.0, %v6780
  %v6845 = vsub.f32 0.0, %v6781
  %v6846 = vsub.f32 0.0, %v6782
  %v6847 = vsub.f32 0.0, %v6783
  %v6848 = vsub.f32 0.0, %v6784
  %v6849 = vsub.f32 0.0, %v6785
  %v6850 = vsub.f32 0.0, %v6786
  %v6851 = vsub.f32 0.0, %v6787
  %v6852 = vsub.f32 0.0, %v6788
  %v6853 = vsub.f32 0.0, %v6789
  %v6854 = vsub.f32 0.0, %v6790
  %v6855 = vsub.f32 0.0, %v6791
  %v6856 = vsub.f32 0.0, %v6792
  %v6857 = vsub.f32 0.0, %v6793
  %v6858 = vsub.f32 0.0, %v6794
  %v6859 = vsub.f32 0.0, %v6795
  %v6860 = vsub.f32 0.0, %v6796
  %v6861 = vsub.f32 0.0, %v6797
  %v6862 = vsub.f32 0.0, %v6798
  %v6863 = vsub.f32 0.0, %v6799
  %v6864 = vsub.f32 0.0, %v6800
  %v6865 = vsub.f32 0.0, %v6801
  %v6866 = vsub.f32 0.0, %v6802
  %v6867 = vsub.f32 0.0, %v6803
  %v6868 = vsub.f32 0.0, %v6804
  %v6869 = vsub.f32 0.0, %v6805
  %v6870 = vsub.f32 0.0, %v6806
  %v6871 = vsub.f32 0.0, %v6807
  %v6872 = vsub.f32 0.0, %v6808
  %v6873 = vsub.f32 0.0, %v6809
  %v6874 = vsub.f32 0.0, %v6810
  %v6875 = vsub.f32 0.0, %v6811
  %v6876 = vsub.f32 0.0, %v6812
  %v6877 = vsub.f32 0.0, %v6813
  %v6878 = vsub.f32 0.0, %v6814
  %v6879 = vsub.f32 0.0, %v6815
  %v6880 = vsub.f32 0.0, %v6816
  %v6881 = vsub.f32 0.0, %v6817
  %v6882 = vsub.f32 0.0, %v6818
  %v6883 = vsub.f32 0.0, %v6819
  %v6884 = vsub.f32 0.0, %v6820
  %v6885 = vsub.f32 0.0, %v6821
  %v6886 = vsub.f32 0.0, %v6822
  %v6887 = vsub.f32 0.0, %v6823
  %v6888 = vsub.f32 0.0, %v6824
  %v6889 = vsub.f32 0.0, %v6825
  %v6890 = vsub.f32 0.0, %v6826
  %v6891 = vsub.f32 0.0, %v6827
  %v6892 = vsub.f32 0.0, %v6828
  %v6893 = vsub.f32 0.0, %v6829
  %v6894 = vsub.f32 0.0, %v6830
  %v6895 = vsub.f32 0.0, %v6831
  %v6896 = vsub.f32 0.0, %v6832
  %v6897 = vsub.f32 0.0, %v6833
  %v6898 = vsub.f32 0.0, %v6834
  %v6899 = vsub.f32 0.0, %v6835
  %v6900 = vsub.f32 0.0, %v6836
  %v6901 = vsub.f32 0.0, %v6837
  %v6902 = vsub.f32 0.0, %v6838
  %v6903 = vsub.f32 0.0, %v6839
  %v6904 = vsub.f32 0.0, %v6840
  %v6905 = vsub.f32 0.0, %v6841
  %v6906 = vsub.f32 0.0, %v6842
  %v6907 = vmul.f32 %v6843, 1.442695
  %v6908 = vpow.pop %v6907
  %v6909 = vmul.f32 %v6844, 1.442695
  %v6910 = vpow.pop %v6909
  %v6911 = vmul.f32 %v6845, 1.442695
  %v6912 = vpow.pop %v6911
  %v6913 = vmul.f32 %v6846, 1.442695
  %v6914 = vpow.pop %v6913
  %v6915 = vmul.f32 %v6847, 1.442695
  %v6916 = vpow.pop %v6915
  %v6917 = vmul.f32 %v6848, 1.442695
  %v6918 = vpow.pop %v6917
  %v6919 = vmul.f32 %v6849, 1.442695
  %v6920 = vpow.pop %v6919
  %v6921 = vmul.f32 %v6850, 1.442695
  %v6922 = vpow.pop %v6921
  %v6923 = vmul.f32 %v6851, 1.442695
  %v6924 = vpow.pop %v6923
  %v6925 = vmul.f32 %v6852, 1.442695
  %v6926 = vpow.pop %v6925
  %v6927 = vmul.f32 %v6853, 1.442695
  %v6928 = vpow.pop %v6927
  %v6929 = vmul.f32 %v6854, 1.442695
  %v6930 = vpow.pop %v6929
  %v6931 = vmul.f32 %v6855, 1.442695
  %v6932 = vpow.pop %v6931
  %v6933 = vmul.f32 %v6856, 1.442695
  %v6934 = vpow.pop %v6933
  %v6935 = vmul.f32 %v6857, 1.442695
  %v6936 = vpow.pop %v6935
  %v6937 = vmul.f32 %v6858, 1.442695
  %v6938 = vpow.pop %v6937
  %v6939 = vmul.f32 %v6859, 1.442695
  %v6940 = vpow.pop %v6939
  %v6941 = vmul.f32 %v6860, 1.442695
  %v6942 = vpow.pop %v6941
  %v6943 = vmul.f32 %v6861, 1.442695
  %v6944 = vpow.pop %v6943
  %v6945 = vmul.f32 %v6862, 1.442695
  %v6946 = vpow.pop %v6945
  %v6947 = vmul.f32 %v6863, 1.442695
  %v6948 = vpow.pop %v6947
  %v6949 = vmul.f32 %v6864, 1.442695
  %v6950 = vpow.pop %v6949
  %v6951 = vmul.f32 %v6865, 1.442695
  %v6952 = vpow.pop %v6951
  %v6953 = vmul.f32 %v6866, 1.442695
  %v6954 = vpow.pop %v6953
  %v6955 = vmul.f32 %v6867, 1.442695
  %v6956 = vpow.pop %v6955
  %v6957 = vmul.f32 %v6868, 1.442695
  %v6958 = vpow.pop %v6957
  %v6959 = vmul.f32 %v6869, 1.442695
  %v6960 = vpow.pop %v6959
  %v6961 = vmul.f32 %v6870, 1.442695
  %v6962 = vpow.pop %v6961
  %v6963 = vmul.f32 %v6871, 1.442695
  %v6964 = vpow.pop %v6963
  %v6965 = vmul.f32 %v6872, 1.442695
  %v6966 = vpow.pop %v6965
  %v6967 = vmul.f32 %v6873, 1.442695
  %v6968 = vpow.pop %v6967
  %v6969 = vmul.f32 %v6874, 1.442695
  %v6970 = vpow.pop %v6969
  %v6971 = vmul.f32 %v6875, 1.442695
  %v6972 = vpow.pop %v6971
  %v6973 = vmul.f32 %v6876, 1.442695
  %v6974 = vpow.pop %v6973
  %v6975 = vmul.f32 %v6877, 1.442695
  %v6976 = vpow.pop %v6975
  %v6977 = vmul.f32 %v6878, 1.442695
  %v6978 = vpow.pop %v6977
  %v6979 = vmul.f32 %v6879, 1.442695
  %v6980 = vpow.pop %v6979
  %v6981 = vmul.f32 %v6880, 1.442695
  %v6982 = vpow.pop %v6981
  %v6983 = vmul.f32 %v6881, 1.442695
  %v6984 = vpow.pop %v6983
  %v6985 = vmul.f32 %v6882, 1.442695
  %v6986 = vpow.pop %v6985
  %v6987 = vmul.f32 %v6883, 1.442695
  %v6988 = vpow.pop %v6987
  %v6989 = vmul.f32 %v6884, 1.442695
  %v6990 = vpow.pop %v6989
  %v6991 = vmul.f32 %v6885, 1.442695
  %v6992 = vpow.pop %v6991
  %v6993 = vmul.f32 %v6886, 1.442695
  %v6994 = vpow.pop %v6993
  %v6995 = vmul.f32 %v6887, 1.442695
  %v6996 = vpow.pop %v6995
  %v6997 = vmul.f32 %v6888, 1.442695
  %v6998 = vpow.pop %v6997
  %v6999 = vmul.f32 %v6889, 1.442695
  %v7000 = vpow.pop %v6999
  %v7001 = vmul.f32 %v6890, 1.442695
  %v7002 = vpow.pop %v7001
  %v7003 = vmul.f32 %v6891, 1.442695
  %v7004 = vpow.pop %v7003
  %v7005 = vmul.f32 %v6892, 1.442695
  %v7006 = vpow.pop %v7005
  %v7007 = vmul.f32 %v6893, 1.442695
  %v7008 = vpow.pop %v7007
  %v7009 = vmul.f32 %v6894, 1.442695
  %v7010 = vpow.pop %v7009
  %v7011 = vmul.f32 %v6895, 1.442695
  %v7012 = vpow.pop %v7011
  %v7013 = vmul.f32 %v6896, 1.442695
  %v7014 = vpow.pop %v7013
  %v7015 = vmul.f32 %v6897, 1.442695
  %v7016 = vpow.pop %v7015
  %v7017 = vmul.f32 %v6898, 1.442695
  %v7018 = vpow.pop %v7017
  %v7019 = vmul.f32 %v6899, 1.442695
  %v7020 = vpow.pop %v7019
  %v7021 = vmul.f32 %v6900, 1.442695
  %v7022 = vpow.pop %v7021
  %v7023 = vmul.f32 %v6901, 1.442695
  %v7024 = vpow.pop %v7023
  %v7025 = vmul.f32 %v6902, 1.442695
  %v7026 = vpow.pop %v7025
  %v7027 = vmul.f32 %v6903, 1.442695
  %v7028 = vpow.pop %v7027
  %v7029 = vmul.f32 %v6904, 1.442695
  %v7030 = vpow.pop %v7029
  %v7031 = vmul.f32 %v6905, 1.442695
  %v7032 = vpow.pop %v7031
  %v7033 = vmul.f32 %v6906, 1.442695
  %v7034 = vpow.pop %v7033
  %v7035 = vadd.f32 %v6908, 1.0
  %v7036 = vadd.f32 %v6910, 1.0
  %v7037 = vadd.f32 %v6912, 1.0
  %v7038 = vadd.f32 %v6914, 1.0
  %v7039 = vadd.f32 %v6916, 1.0
  %v7040 = vadd.f32 %v6918, 1.0
  %v7041 = vadd.f32 %v6920, 1.0
  %v7042 = vadd.f32 %v6922, 1.0
  %v7043 = vadd.f32 %v6924, 1.0
  %v7044 = vadd.f32 %v6926, 1.0
  %v7045 = vadd.f32 %v6928, 1.0
  %v7046 = vadd.f32 %v6930, 1.0
  %v7047 = vadd.f32 %v6932, 1.0
  %v7048 = vadd.f32 %v6934, 1.0
  %v7049 = vadd.f32 %v6936, 1.0
  %v7050 = vadd.f32 %v6938, 1.0
  %v7051 = vadd.f32 %v6940, 1.0
  %v7052 = vadd.f32 %v6942, 1.0
  %v7053 = vadd.f32 %v6944, 1.0
  %v7054 = vadd.f32 %v6946, 1.0
  %v7055 = vadd.f32 %v6948, 1.0
  %v7056 = vadd.f32 %v6950, 1.0
  %v7057 = vadd.f32 %v6952, 1.0
  %v7058 = vadd.f32 %v6954, 1.0
  %v7059 = vadd.f32 %v6956, 1.0
  %v7060 = vadd.f32 %v6958, 1.0
  %v7061 = vadd.f32 %v6960, 1.0
  %v7062 = vadd.f32 %v6962, 1.0
  %v7063 = vadd.f32 %v6964, 1.0
  %v7064 = vadd.f32 %v6966, 1.0
  %v7065 = vadd.f32 %v6968, 1.0
  %v7066 = vadd.f32 %v6970, 1.0
  %v7067 = vadd.f32 %v6972, 1.0
  %v7068 = vadd.f32 %v6974, 1.0
  %v7069 = vadd.f32 %v6976, 1.0
  %v7070 = vadd.f32 %v6978, 1.0
  %v7071 = vadd.f32 %v6980, 1.0
  %v7072 = vadd.f32 %v6982, 1.0
  %v7073 = vadd.f32 %v6984, 1.0
  %v7074 = vadd.f32 %v6986, 1.0
  %v7075 = vadd.f32 %v6988, 1.0
  %v7076 = vadd.f32 %v6990, 1.0
  %v7077 = vadd.f32 %v6992, 1.0
  %v7078 = vadd.f32 %v6994, 1.0
  %v7079 = vadd.f32 %v6996, 1.0
  %v7080 = vadd.f32 %v6998, 1.0
  %v7081 = vadd.f32 %v7000, 1.0
  %v7082 = vadd.f32 %v7002, 1.0
  %v7083 = vadd.f32 %v7004, 1.0
  %v7084 = vadd.f32 %v7006, 1.0
  %v7085 = vadd.f32 %v7008, 1.0
  %v7086 = vadd.f32 %v7010, 1.0
  %v7087 = vadd.f32 %v7012, 1.0
  %v7088 = vadd.f32 %v7014, 1.0
  %v7089 = vadd.f32 %v7016, 1.0
  %v7090 = vadd.f32 %v7018, 1.0
  %v7091 = vadd.f32 %v7020, 1.0
  %v7092 = vadd.f32 %v7022, 1.0
  %v7093 = vadd.f32 %v7024, 1.0
  %v7094 = vadd.f32 %v7026, 1.0
  %v7095 = vadd.f32 %v7028, 1.0
  %v7096 = vadd.f32 %v7030, 1.0
  %v7097 = vadd.f32 %v7032, 1.0
  %v7098 = vadd.f32 %v7034, 1.0
  %v7099 = vrcp.pop %v7035
  %v7100 = vrcp.pop %v7036
  %v7101 = vrcp.pop %v7037
  %v7102 = vrcp.pop %v7038
  %v7103 = vrcp.pop %v7039
  %v7104 = vrcp.pop %v7040
  %v7105 = vrcp.pop %v7041
  %v7106 = vrcp.pop %v7042
  %v7107 = vrcp.pop %v7043
  %v7108 = vrcp.pop %v7044
  %v7109 = vrcp.pop %v7045
  %v7110 = vrcp.pop %v7046
  %v7111 = vrcp.pop %v7047
  %v7112 = vrcp.pop %v7048
  %v7113 = vrcp.pop %v7049
  %v7114 = vrcp.pop %v7050
  %v7115 = vrcp.pop %v7051
  %v7116 = vrcp.pop %v7052
  %v7117 = vrcp.pop %v7053
  %v7118 = vrcp.pop %v7054
  %v7119 = vrcp.pop %v7055
  %v7120 = vrcp.pop %v7056
  %v7121 = vrcp.pop %v7057
  %v7122 = vrcp.pop %v7058
  %v7123 = vrcp.pop %v7059
  %v7124 = vrcp.pop %v7060
  %v7125 = vrcp.pop %v7061
  %v7126 = vrcp.pop %v7062
  %v7127 = vrcp.pop %v7063
  %v7128 = vrcp.pop %v7064
  %v7129 = vrcp.pop %v7065
  %v7130 = vrcp.pop %v7066
  %v7131 = vrcp.pop %v7067
  %v7132 = vrcp.pop %v7068
  %v7133 = vrcp.pop %v7069
  %v7134 = vrcp.pop %v7070
  %v7135 = vrcp.pop %v7071
  %v7136 = vrcp.pop %v7072
  %v7137 = vrcp.pop %v7073
  %v7138 = vrcp.pop %v7074
  %v7139 = vrcp.pop %v7075
  %v7140 = vrcp.pop %v7076
  %v7141 = vrcp.pop %v7077
  %v7142 = vrcp.pop %v7078
  %v7143 = vrcp.pop %v7079
  %v7144 = vrcp.pop %v7080
  %v7145 = vrcp.pop %v7081
  %v7146 = vrcp.pop %v7082
  %v7147 = vrcp.pop %v7083
  %v7148 = vrcp.pop %v7084
  %v7149 = vrcp.pop %v7085
  %v7150 = vrcp.pop %v7086
  %v7151 = vrcp.pop %v7087
  %v7152 = vrcp.pop %v7088
  %v7153 = vrcp.pop %v7089
  %v7154 = vrcp.pop %v7090
  %v7155 = vrcp.pop %v7091
  %v7156 = vrcp.pop %v7092
  %v7157 = vrcp.pop %v7093
  %v7158 = vrcp.pop %v7094
  %v7159 = vrcp.pop %v7095
  %v7160 = vrcp.pop %v7096
  %v7161 = vrcp.pop %v7097
  %v7162 = vrcp.pop %v7098
  %v7163 = vmul.f32 %v7099, %v5610
  %v7164 = vmul.f32 %v7100, %v5612
  %v7165 = vmul.f32 %v7101, %v5614
  %v7166 = vmul.f32 %v7102, %v5616
  %v7167 = vmul.f32 %v7103, %v5620
  %v7168 = vmul.f32 %v7104, %v5622
  %v7169 = vmul.f32 %v7105, %v5624
  %v7170 = vmul.f32 %v7106, %v5626
  %v7171 = vmul.f32 %v7107, %v5630
  %v7172 = vmul.f32 %v7108, %v5632
  %v7173 = vmul.f32 %v7109, %v5634
  %v7174 = vmul.f32 %v7110, %v5636
  %v7175 = vmul.f32 %v7111, %v5640
  %v7176 = vmul.f32 %v7112, %v5642
  %v7177 = vmul.f32 %v7113, %v5644
  %v7178 = vmul.f32 %v7114, %v5646
  %v7179 = vmul.f32 %v7115, %v5650
  %v7180 = vmul.f32 %v7116, %v5652
  %v7181 = vmul.f32 %v7117, %v5654
  %v7182 = vmul.f32 %v7118, %v5656
  %v7183 = vmul.f32 %v7119, %v5660
  %v7184 = vmul.f32 %v7120, %v5662
  %v7185 = vmul.f32 %v7121, %v5664
  %v7186 = vmul.f32 %v7122, %v5666
  %v7187 = vmul.f32 %v7123, %v5670
  %v7188 = vmul.f32 %v7124, %v5672
  %v7189 = vmul.f32 %v7125, %v5674
  %v7190 = vmul.f32 %v7126, %v5676
  %v7191 = vmul.f32 %v7127, %v5680
  %v7192 = vmul.f32 %v7128, %v5682
  %v7193 = vmul.f32 %v7129, %v5684
  %v7194 = vmul.f32 %v7130, %v5686
  %v7195 = vsub.f32 1.0, %v7099
  %v7196 = vsub.f32 1.0, %v7100
  %v7197 = vsub.f32 1.0, %v7101
  %v7198 = vsub.f32 1.0, %v7102
  %v7199 = vsub.f32 1.0, %v7103
  %v7200 = vsub.f32 1.0, %v7104
  %v7201 = vsub.f32 1.0, %v7105
  %v7202 = vsub.f32 1.0, %v7106
  %v7203 = vsub.f32 1.0, %v7107
  %v7204 = vsub.f32 1.0, %v7108
  %v7205 = vsub.f32 1.0, %v7109
  %v7206 = vsub.f32 1.0, %v7110
  %v7207 = vsub.f32 1.0, %v7111
  %v7208 = vsub.f32 1.0, %v7112
  %v7209 = vsub.f32 1.0, %v7113
  %v7210 = vsub.f32 1.0, %v7114
  %v7211 = vsub.f32 1.0, %v7115
  %v7212 = vsub.f32 1.0, %v7116
  %v7213 = vsub.f32 1.0, %v7117
  %v7214 = vsub.f32 1.0, %v7118
  %v7215 = vsub.f32 1.0, %v7119
  %v7216 = vsub.f32 1.0, %v7120
  %v7217 = vsub.f32 1.0, %v7121
  %v7218 = vsub.f32 1.0, %v7122
  %v7219 = vsub.f32 1.0, %v7123
  %v7220 = vsub.f32 1.0, %v7124
  %v7221 = vsub.f32 1.0, %v7125
  %v7222 = vsub.f32 1.0, %v7126
  %v7223 = vsub.f32 1.0, %v7127
  %v7224 = vsub.f32 1.0, %v7128
  %v7225 = vsub.f32 1.0, %v7129
  %v7226 = vsub.f32 1.0, %v7130
  %v7227 = vmul.f32 %v7195, %v5963
  %v7228 = vmul.f32 %v7196, %v5965
  %v7229 = vmul.f32 %v7197, %v5967
  %v7230 = vmul.f32 %v7198, %v5969
  %v7231 = vmul.f32 %v7199, %v5973
  %v7232 = vmul.f32 %v7200, %v5975
  %v7233 = vmul.f32 %v7201, %v5977
  %v7234 = vmul.f32 %v7202, %v5979
  %v7235 = vmul.f32 %v7203, %v5983
  %v7236 = vmul.f32 %v7204, %v5985
  %v7237 = vmul.f32 %v7205, %v5987
  %v7238 = vmul.f32 %v7206, %v5989
  %v7239 = vmul.f32 %v7207, %v5993
  %v7240 = vmul.f32 %v7208, %v5995
  %v7241 = vmul.f32 %v7209, %v5997
  %v7242 = vmul.f32 %v7210, %v5999
  %v7243 = vmul.f32 %v7211, %v6003
  %v7244 = vmul.f32 %v7212, %v6005
  %v7245 = vmul.f32 %v7213, %v6007
  %v7246 = vmul.f32 %v7214, %v6009
  %v7247 = vmul.f32 %v7215, %v6013
  %v7248 = vmul.f32 %v7216, %v6015
  %v7249 = vmul.f32 %v7217, %v6017
  %v7250 = vmul.f32 %v7218, %v6019
  %v7251 = vmul.f32 %v7219, %v6023
  %v7252 = vmul.f32 %v7220, %v6025
  %v7253 = vmul.f32 %v7221, %v6027
  %v7254 = vmul.f32 %v7222, %v6029
  %v7255 = vmul.f32 %v7223, %v6033
  %v7256 = vmul.f32 %v7224, %v6035
  %v7257 = vmul.f32 %v7225, %v6037
  %v7258 = vmul.f32 %v7226, %v6039
  %v7259 = vadd.f32 %v7163, %v7227
  %v7260 = vadd.f32 %v7164, %v7228
  %v7261 = vadd.f32 %v7165, %v7229
  %v7262 = vadd.f32 %v7166, %v7230
  %v7263 = vadd.f32 %v7167, %v7231
  %v7264 = vadd.f32 %v7168, %v7232
  %v7265 = vadd.f32 %v7169, %v7233
  %v7266 = vadd.f32 %v7170, %v7234
  %v7267 = vadd.f32 %v7171, %v7235
  %v7268 = vadd.f32 %v7172, %v7236
  %v7269 = vadd.f32 %v7173, %v7237
  %v7270 = vadd.f32 %v7174, %v7238
  %v7271 = vadd.f32 %v7175, %v7239
  %v7272 = vadd.f32 %v7176, %v7240
  %v7273 = vadd.f32 %v7177, %v7241
  %v7274 = vadd.f32 %v7178, %v7242
  %v7275 = vadd.f32 %v7179, %v7243
  %v7276 = vadd.f32 %v7180, %v7244
  %v7277 = vadd.f32 %v7181, %v7245
  %v7278 = vadd.f32 %v7182, %v7246
  %v7279 = vadd.f32 %v7183, %v7247
  %v7280 = vadd.f32 %v7184, %v7248
  %v7281 = vadd.f32 %v7185, %v7249
  %v7282 = vadd.f32 %v7186, %v7250
  %v7283 = vadd.f32 %v7187, %v7251
  %v7284 = vadd.f32 %v7188, %v7252
  %v7285 = vadd.f32 %v7189, %v7253
  %v7286 = vadd.f32 %v7190, %v7254
  %v7287 = vadd.f32 %v7191, %v7255
  %v7288 = vadd.f32 %v7192, %v7256
  %v7289 = vadd.f32 %v7193, %v7257
  %v7290 = vadd.f32 %v7194, %v7258
  %v7291 = vmul.f32 %v7131, %v5610
  %v7292 = vmul.f32 %v7132, %v5612
  %v7293 = vmul.f32 %v7133, %v5614
  %v7294 = vmul.f32 %v7134, %v5616
  %v7295 = vmul.f32 %v7135, %v5620
  %v7296 = vmul.f32 %v7136, %v5622
  %v7297 = vmul.f32 %v7137, %v5624
  %v7298 = vmul.f32 %v7138, %v5626
  %v7299 = vmul.f32 %v7139, %v5630
  %v7300 = vmul.f32 %v7140, %v5632
  %v7301 = vmul.f32 %v7141, %v5634
  %v7302 = vmul.f32 %v7142, %v5636
  %v7303 = vmul.f32 %v7143, %v5640
  %v7304 = vmul.f32 %v7144, %v5642
  %v7305 = vmul.f32 %v7145, %v5644
  %v7306 = vmul.f32 %v7146, %v5646
  %v7307 = vmul.f32 %v7147, %v5650
  %v7308 = vmul.f32 %v7148, %v5652
  %v7309 = vmul.f32 %v7149, %v5654
  %v7310 = vmul.f32 %v7150, %v5656
  %v7311 = vmul.f32 %v7151, %v5660
  %v7312 = vmul.f32 %v7152, %v5662
  %v7313 = vmul.f32 %v7153, %v5664
  %v7314 = vmul.f32 %v7154, %v5666
  %v7315 = vmul.f32 %v7155, %v5670
  %v7316 = vmul.f32 %v7156, %v5672
  %v7317 = vmul.f32 %v7157, %v5674
  %v7318 = vmul.f32 %v7158, %v5676
  %v7319 = vmul.f32 %v7159, %v5680
  %v7320 = vmul.f32 %v7160, %v5682
  %v7321 = vmul.f32 %v7161, %v5684
  %v7322 = vmul.f32 %v7162, %v5686
  %v7323 = vsub.f32 1.0, %v7131
  %v7324 = vsub.f32 1.0, %v7132
  %v7325 = vsub.f32 1.0, %v7133
  %v7326 = vsub.f32 1.0, %v7134
  %v7327 = vsub.f32 1.0, %v7135
  %v7328 = vsub.f32 1.0, %v7136
  %v7329 = vsub.f32 1.0, %v7137
  %v7330 = vsub.f32 1.0, %v7138
  %v7331 = vsub.f32 1.0, %v7139
  %v7332 = vsub.f32 1.0, %v7140
  %v7333 = vsub.f32 1.0, %v7141
  %v7334 = vsub.f32 1.0, %v7142
  %v7335 = vsub.f32 1.0, %v7143
  %v7336 = vsub.f32 1.0, %v7144
  %v7337 = vsub.f32 1.0, %v7145
  %v7338 = vsub.f32 1.0, %v7146
  %v7339 = vsub.f32 1.0, %v7147
  %v7340 = vsub.f32 1.0, %v7148
  %v7341 = vsub.f32 1.0, %v7149
  %v7342 = vsub.f32 1.0, %v7150
  %v7343 = vsub.f32 1.0, %v7151
  %v7344 = vsub.f32 1.0, %v7152
  %v7345 = vsub.f32 1.0, %v7153
  %v7346 = vsub.f32 1.0, %v7154
  %v7347 = vsub.f32 1.0, %v7155
  %v7348 = vsub.f32 1.0, %v7156
  %v7349 = vsub.f32 1.0, %v7157
  %v7350 = vsub.f32 1.0, %v7158
  %v7351 = vsub.f32 1.0, %v7159
  %v7352 = vsub.f32 1.0, %v7160
  %v7353 = vsub.f32 1.0, %v7161
  %v7354 = vsub.f32 1.0, %v7162
  %v7355 = vmul.f32 %v7323, %v5963
  %v7356 = vmul.f32 %v7324, %v5965
  %v7357 = vmul.f32 %v7325, %v5967
  %v7358 = vmul.f32 %v7326, %v5969
  %v7359 = vmul.f32 %v7327, %v5973
  %v7360 = vmul.f32 %v7328, %v5975
  %v7361 = vmul.f32 %v7329, %v5977
  %v7362 = vmul.f32 %v7330, %v5979
  %v7363 = vmul.f32 %v7331, %v5983
  %v7364 = vmul.f32 %v7332, %v5985
  %v7365 = vmul.f32 %v7333, %v5987
  %v7366 = vmul.f32 %v7334, %v5989
  %v7367 = vmul.f32 %v7335, %v5993
  %v7368 = vmul.f32 %v7336, %v5995
  %v7369 = vmul.f32 %v7337, %v5997
  %v7370 = vmul.f32 %v7338, %v5999
  %v7371 = vmul.f32 %v7339, %v6003
  %v7372 = vmul.f32 %v7340, %v6005
  %v7373 = vmul.f32 %v7341, %v6007
  %v7374 = vmul.f32 %v7342, %v6009
  %v7375 = vmul.f32 %v7343, %v6013
  %v7376 = vmul.f32 %v7344, %v6015
  %v7377 = vmul.f32 %v7345, %v6017
  %v7378 = vmul.f32 %v7346, %v6019
  %v7379 = vmul.f32 %v7347, %v6023
  %v7380 = vmul.f32 %v7348, %v6025
  %v7381 = vmul.f32 %v7349, %v6027
  %v7382 = vmul.f32 %v7350, %v6029
  %v7383 = vmul.f32 %v7351, %v6033
  %v7384 = vmul.f32 %v7352, %v6035
  %v7385 = vmul.f32 %v7353, %v6037
  %v7386 = vmul.f32 %v7354, %v6039
  %v7387 = vadd.f32 %v7291, %v7355
  %v7388 = vadd.f32 %v7292, %v7356
  %v7389 = vadd.f32 %v7293, %v7357
  %v7390 = vadd.f32 %v7294, %v7358
  %v7391 = vadd.f32 %v7295, %v7359
  %v7392 = vadd.f32 %v7296, %v7360
  %v7393 = vadd.f32 %v7297, %v7361
  %v7394 = vadd.f32 %v7298, %v7362
  %v7395 = vadd.f32 %v7299, %v7363
  %v7396 = vadd.f32 %v7300, %v7364
  %v7397 = vadd.f32 %v7301, %v7365
  %v7398 = vadd.f32 %v7302, %v7366
  %v7399 = vadd.f32 %v7303, %v7367
  %v7400 = vadd.f32 %v7304, %v7368
  %v7401 = vadd.f32 %v7305, %v7369
  %v7402 = vadd.f32 %v7306, %v7370
  %v7403 = vadd.f32 %v7307, %v7371
  %v7404 = vadd.f32 %v7308, %v7372
  %v7405 = vadd.f32 %v7309, %v7373
  %v7406 = vadd.f32 %v7310, %v7374
  %v7407 = vadd.f32 %v7311, %v7375
  %v7408 = vadd.f32 %v7312, %v7376
  %v7409 = vadd.f32 %v7313, %v7377
  %v7410 = vadd.f32 %v7314, %v7378
  %v7411 = vadd.f32 %v7315, %v7379
  %v7412 = vadd.f32 %v7316, %v7380
  %v7413 = vadd.f32 %v7317, %v7381
  %v7414 = vadd.f32 %v7318, %v7382
  %v7415 = vadd.f32 %v7319, %v7383
  %v7416 = vadd.f32 %v7320, %v7384
  %v7417 = vadd.f32 %v7321, %v7385
  %v7418 = vadd.f32 %v7322, %v7386
  %v7419 = vpack.c.bf16 %v7261, %v7259
  %v7420 = vpack.c.bf16 %v7262, %v7260
  %v7421 = vpack.c.bf16 %v7389, %v7387
  %v7422 = vpack.c.bf16 %v7390, %v7388
  %v7423 = vpack.c.bf16 %v7265, %v7263
  %v7424 = vpack.c.bf16 %v7266, %v7264
  %v7425 = vpack.c.bf16 %v7393, %v7391
  %v7426 = vpack.c.bf16 %v7394, %v7392
  %v7427 = vpack.c.bf16 %v7269, %v7267
  %v7428 = vpack.c.bf16 %v7270, %v7268
  %v7429 = vpack.c.bf16 %v7397, %v7395
  %v7430 = vpack.c.bf16 %v7398, %v7396
  %v7431 = vpack.c.bf16 %v7273, %v7271
  %v7432 = vpack.c.bf16 %v7274, %v7272
  %v7433 = vpack.c.bf16 %v7401, %v7399
  %v7434 = vpack.c.bf16 %v7402, %v7400
  %v7435 = vpack.c.bf16 %v7277, %v7275
  %v7436 = vpack.c.bf16 %v7278, %v7276
  %v7437 = vpack.c.bf16 %v7405, %v7403
  %v7438 = vpack.c.bf16 %v7406, %v7404
  %v7439 = vpack.c.bf16 %v7281, %v7279
  %v7440 = vpack.c.bf16 %v7282, %v7280
  %v7441 = vpack.c.bf16 %v7409, %v7407
  %v7442 = vpack.c.bf16 %v7410, %v7408
  %v7443 = vpack.c.bf16 %v7285, %v7283
  %v7444 = vpack.c.bf16 %v7286, %v7284
  %v7445 = vpack.c.bf16 %v7413, %v7411
  %v7446 = vpack.c.bf16 %v7414, %v7412
  %v7447 = vpack.c.bf16 %v7289, %v7287
  %v7448 = vpack.c.bf16 %v7290, %v7288
  %v7449 = vpack.c.bf16 %v7417, %v7415
  %v7450 = vpack.c.bf16 %v7418, %v7416
  %7452 = vset.pattern.permute.xlu0 0
  %7453 = vperm.xlu0 %7452, %v4727
  %v7454 = vpop.permute.xlu0 %7453
  %7457 = vset.pattern.permute.xlu0 0
  %7458 = vperm.xlu0 %7457, %v4728
  %v7459 = vpop.permute.xlu0 %7458
  %7462 = vset.pattern.permute.xlu0 0
  %7463 = vperm.xlu0 %7462, %v4729
  %v7464 = vpop.permute.xlu0 %7463
  %7467 = vset.pattern.permute.xlu0 0
  %7468 = vperm.xlu0 %7467, %v4730
  %v7469 = vpop.permute.xlu0 %7468
  %7472 = vset.pattern.permute.xlu0 0
  %7473 = vperm.xlu0 %7472, %v4731
  %v7474 = vpop.permute.xlu0 %7473
  %7477 = vset.pattern.permute.xlu0 0
  %7478 = vperm.xlu0 %7477, %v4732
  %v7479 = vpop.permute.xlu0 %7478
  %7482 = vset.pattern.permute.xlu0 0
  %7483 = vperm.xlu0 %7482, %v4733
  %v7484 = vpop.permute.xlu0 %7483
  %7487 = vset.pattern.permute.xlu0 0
  %7488 = vperm.xlu0 %7487, %v4734
  %v7489 = vpop.permute.xlu0 %7488
  %7492 = vset.pattern.permute.xlu0 0
  %7493 = vperm.xlu0 %7492, %v4735
  %v7494 = vpop.permute.xlu0 %7493
  %7497 = vset.pattern.permute.xlu0 0
  %7498 = vperm.xlu0 %7497, %v4736
  %v7499 = vpop.permute.xlu0 %7498
  %7502 = vset.pattern.permute.xlu0 0
  %7503 = vperm.xlu0 %7502, %v4737
  %v7504 = vpop.permute.xlu0 %7503
  %7507 = vset.pattern.permute.xlu0 0
  %7508 = vperm.xlu0 %7507, %v4738
  %v7509 = vpop.permute.xlu0 %7508
  %7512 = vset.pattern.permute.xlu0 0
  %7513 = vperm.xlu0 %7512, %v4739
  %v7514 = vpop.permute.xlu0 %7513
  %7517 = vset.pattern.permute.xlu0 0
  %7518 = vperm.xlu0 %7517, %v4740
  %v7519 = vpop.permute.xlu0 %7518
  %7522 = vset.pattern.permute.xlu0 0
  %7523 = vperm.xlu0 %7522, %v4741
  %v7524 = vpop.permute.xlu0 %7523
  %7527 = vset.pattern.permute.xlu0 0
  %7528 = vperm.xlu0 %7527, %v4742
  %v7529 = vpop.permute.xlu0 %7528
  %v7547 = vunpack.c.l.b16 %v4711
  %v7548 = vunpack.c.l.b16 %v4712
  %v7549 = vunpack.c.l.b16 %v4713
  %v7550 = vunpack.c.l.b16 %v4714
  %v7551 = vunpack.c.l.b16 %v4715
  %v7552 = vunpack.c.l.b16 %v4716
  %v7553 = vunpack.c.l.b16 %v4717
  %v7554 = vunpack.c.l.b16 %v4718
  %v7555 = vunpack.c.l.b16 %v4719
  %v7556 = vunpack.c.l.b16 %v4720
  %v7557 = vunpack.c.l.b16 %v4721
  %v7558 = vunpack.c.l.b16 %v4722
  %v7559 = vunpack.c.l.b16 %v4723
  %v7560 = vunpack.c.l.b16 %v4724
  %v7561 = vunpack.c.l.b16 %v4725
  %v7562 = vunpack.c.l.b16 %v4726
  %v7563 = vpack.c.b16 %v7548, %v7547
  %v7564 = vpack.c.b16 %v7550, %v7549
  %v7565 = vpack.c.b16 %v7552, %v7551
  %v7566 = vpack.c.b16 %v7554, %v7553
  %v7567 = vpack.c.b16 %v7556, %v7555
  %v7568 = vpack.c.b16 %v7558, %v7557
  %v7569 = vpack.c.b16 %v7560, %v7559
  %v7570 = vpack.c.b16 %v7562, %v7561
  %7579 = vmatprep.subr.bf16.mxu0 %v7420
  %7580 = vmatpush1.bf16.msra.mxu0 %v7419
  %7581 = vmatprep.subr.bf16.mxu0 %v7424
  %7582 = vmatpush1.bf16.msra.mxu0 %v7423
  %7583 = vmatprep.subr.bf16.mxu0 %v7428
  %7584 = vmatpush1.bf16.msra.mxu0 %v7427
  %7585 = vmatprep.subr.bf16.mxu0 %v7432
  %7586 = vmatpush1.bf16.msra.mxu0 %v7431
  %7587 = vmatprep.subr.bf16.mxu0 %v7436
  %7588 = vmatpush1.bf16.msra.mxu0 %v7435
  %7589 = vmatprep.subr.bf16.mxu0 %v7440
  %7590 = vmatpush1.bf16.msra.mxu0 %v7439
  %7591 = vmatprep.subr.bf16.mxu0 %v7444
  %7592 = vmatpush1.bf16.msra.mxu0 %v7443
  %7593 = vmatprep.subr.bf16.mxu0 %v7448
  %7594 = vmatpush1.bf16.msra.mxu0 %v7447
  %7595 = vmatprep.subr.bf16.mxu0 0
  %7596 = vmatpush1.bf16.msra.mxu0 0
  %7597 = vmatprep.subr.bf16.mxu0 0
  %7598 = vmatpush1.bf16.msra.mxu0 0
  %7599 = vmatprep.subr.bf16.mxu0 0
  %7600 = vmatpush1.bf16.msra.mxu0 0
  %7601 = vmatprep.subr.bf16.mxu0 0
  %7602 = vmatpush1.bf16.msra.mxu0 0
  %7603 = vmatprep.subr.bf16.mxu0 0
  %7604 = vmatpush1.bf16.msra.mxu0 0
  %7605 = vmatprep.subr.bf16.mxu0 0
  %7606 = vmatpush1.bf16.msra.mxu0 0
  %7607 = vmatprep.subr.bf16.mxu0 0
  %7608 = vmatpush1.bf16.msra.mxu0 0
  %7609 = vmatprep.subr.bf16.mxu0 0
  %7610 = vmatpush1.bf16.msra.mxu0 0
  %7611 = vmatprep.mubr.bf16.mxu0 0
  %7612 = vmatmul.mubr.bf16.gmra.mrb[0].mxu0 %v7563
  %v7613 = vpop.f32.mrb[0].mxu0
  %v7614 = vadd.f32 %v7454, %v7613
  %v7615 = vpop.f32.mrb[0].mxu0
  %v7616 = vadd.f32 %v7454, %v7615
  %v7617 = vpop.f32.mrb[0].mxu0
  %v7618 = vadd.f32 %v7459, %v7617
  %v7619 = vpop.f32.mrb[0].mxu0
  %v7620 = vadd.f32 %v7459, %v7619
  %7621 = vmatprep.mubr.bf16.mxu0 0
  %7622 = vmatmul.mubr.bf16.gmra.mrb[0].mxu0 %v7564
  %v7623 = vpop.f32.mrb[0].mxu0
  %v7624 = vadd.f32 %v7464, %v7623
  %v7625 = vpop.f32.mrb[0].mxu0
  %v7626 = vadd.f32 %v7464, %v7625
  %v7627 = vpop.f32.mrb[0].mxu0
  %v7628 = vadd.f32 %v7469, %v7627
  %v7629 = vpop.f32.mrb[0].mxu0
  %v7630 = vadd.f32 %v7469, %v7629
  %7631 = vmatprep.mubr.bf16.mxu0 0
  %7632 = vmatmul.mubr.bf16.gmra.mrb[0].mxu0 %v7565
  %v7633 = vpop.f32.mrb[0].mxu0
  %v7634 = vadd.f32 %v7474, %v7633
  %v7635 = vpop.f32.mrb[0].mxu0
  %v7636 = vadd.f32 %v7474, %v7635
  %v7637 = vpop.f32.mrb[0].mxu0
  %v7638 = vadd.f32 %v7479, %v7637
  %v7639 = vpop.f32.mrb[0].mxu0
  %v7640 = vadd.f32 %v7479, %v7639
  %7641 = vmatprep.mubr.bf16.mxu0 0
  %7642 = vmatmul.mubr.bf16.gmra.mrb[0].mxu0 %v7566
  %v7643 = vpop.f32.mrb[0].mxu0
  %v7644 = vadd.f32 %v7484, %v7643
  %v7645 = vpop.f32.mrb[0].mxu0
  %v7646 = vadd.f32 %v7484, %v7645
  %v7647 = vpop.f32.mrb[0].mxu0
  %v7648 = vadd.f32 %v7489, %v7647
  %v7649 = vpop.f32.mrb[0].mxu0
  %v7650 = vadd.f32 %v7489, %v7649
  %7651 = vmatprep.mubr.bf16.mxu0 0
  %7652 = vmatmul.mubr.bf16.gmra.mrb[0].mxu0 %v7567
  %v7653 = vpop.f32.mrb[0].mxu0
  %v7654 = vadd.f32 %v7494, %v7653
  %v7655 = vpop.f32.mrb[0].mxu0
  %v7656 = vadd.f32 %v7494, %v7655
  %v7657 = vpop.f32.mrb[0].mxu0
  %v7658 = vadd.f32 %v7499, %v7657
  %v7659 = vpop.f32.mrb[0].mxu0
  %v7660 = vadd.f32 %v7499, %v7659
  %7661 = vmatprep.mubr.bf16.mxu0 0
  %7662 = vmatmul.mubr.bf16.gmra.mrb[0].mxu0 %v7568
  %v7663 = vpop.f32.mrb[0].mxu0
  %v7664 = vadd.f32 %v7504, %v7663
  %v7665 = vpop.f32.mrb[0].mxu0
  %v7666 = vadd.f32 %v7504, %v7665
  %v7667 = vpop.f32.mrb[0].mxu0
  %v7668 = vadd.f32 %v7509, %v7667
  %v7669 = vpop.f32.mrb[0].mxu0
  %v7670 = vadd.f32 %v7509, %v7669
  %7671 = vmatprep.mubr.bf16.mxu0 0
  %7672 = vmatmul.mubr.bf16.gmra.mrb[0].mxu0 %v7569
  %v7673 = vpop.f32.mrb[0].mxu0
  %v7674 = vadd.f32 %v7514, %v7673
  %v7675 = vpop.f32.mrb[0].mxu0
  %v7676 = vadd.f32 %v7514, %v7675
  %v7677 = vpop.f32.mrb[0].mxu0
  %v7678 = vadd.f32 %v7519, %v7677
  %v7679 = vpop.f32.mrb[0].mxu0
  %v7680 = vadd.f32 %v7519, %v7679
  %7681 = vmatprep.mubr.bf16.mxu0 0
  %7682 = vmatmul.mubr.bf16.gmra.mrb[0].mxu0 %v7570
  %v7683 = vpop.f32.mrb[0].mxu0
  %v7684 = vadd.f32 %v7524, %v7683
  %v7685 = vpop.f32.mrb[0].mxu0
  %v7686 = vadd.f32 %v7524, %v7685
  %v7687 = vpop.f32.mrb[0].mxu0
  %v7688 = vadd.f32 %v7529, %v7687
  %v7689 = vpop.f32.mrb[0].mxu0
  %v7690 = vadd.f32 %v7529, %v7689
  %7691 = vdwg.mxu0
  %7692 = vmatprep.subr.bf16.mxu0 %v7422
  %7693 = vmatpush1.bf16.msra.mxu0 %v7421
  %7694 = vmatprep.subr.bf16.mxu0 %v7426
  %7695 = vmatpush1.bf16.msra.mxu0 %v7425
  %7696 = vmatprep.subr.bf16.mxu0 %v7430
  %7697 = vmatpush1.bf16.msra.mxu0 %v7429
  %7698 = vmatprep.subr.bf16.mxu0 %v7434
  %7699 = vmatpush1.bf16.msra.mxu0 %v7433
  %7700 = vmatprep.subr.bf16.mxu0 %v7438
  %7701 = vmatpush1.bf16.msra.mxu0 %v7437
  %7702 = vmatprep.subr.bf16.mxu0 %v7442
  %7703 = vmatpush1.bf16.msra.mxu0 %v7441
  %7704 = vmatprep.subr.bf16.mxu0 %v7446
  %7705 = vmatpush1.bf16.msra.mxu0 %v7445
  %7706 = vmatprep.subr.bf16.mxu0 %v7450
  %7707 = vmatpush1.bf16.msra.mxu0 %v7449
  %7708 = vmatprep.subr.bf16.mxu0 0
  %7709 = vmatpush1.bf16.msra.mxu0 0
  %7710 = vmatprep.subr.bf16.mxu0 0
  %7711 = vmatpush1.bf16.msra.mxu0 0
  %7712 = vmatprep.subr.bf16.mxu0 0
  %7713 = vmatpush1.bf16.msra.mxu0 0
  %7714 = vmatprep.subr.bf16.mxu0 0
  %7715 = vmatpush1.bf16.msra.mxu0 0
  %7716 = vmatprep.subr.bf16.mxu0 0
  %7717 = vmatpush1.bf16.msra.mxu0 0
  %7718 = vmatprep.subr.bf16.mxu0 0
  %7719 = vmatpush1.bf16.msra.mxu0 0
  %7720 = vmatprep.subr.bf16.mxu0 0
  %7721 = vmatpush1.bf16.msra.mxu0 0
  %7722 = vmatprep.subr.bf16.mxu0 0
  %7723 = vmatpush1.bf16.msra.mxu0 0
  %7724 = vmatprep.mubr.bf16.mxu0 0
  %7725 = vmatmul.mubr.bf16.gmra.mrb[0].mxu0 %v7563
  %v7726 = vpop.f32.mrb[0].mxu0
  %v7727 = vadd.f32 %v7454, %v7726
  %v7728 = vpop.f32.mrb[0].mxu0
  %v7729 = vadd.f32 %v7454, %v7728
  %v7730 = vpop.f32.mrb[0].mxu0
  %v7731 = vadd.f32 %v7459, %v7730
  %v7732 = vpop.f32.mrb[0].mxu0
  %v7733 = vadd.f32 %v7459, %v7732
  %7734 = vmatprep.mubr.bf16.mxu0 0
  %7735 = vmatmul.mubr.bf16.gmra.mrb[0].mxu0 %v7564
  %v7736 = vpop.f32.mrb[0].mxu0
  %v7737 = vadd.f32 %v7464, %v7736
  %v7738 = vpop.f32.mrb[0].mxu0
  %v7739 = vadd.f32 %v7464, %v7738
  %v7740 = vpop.f32.mrb[0].mxu0
  %v7741 = vadd.f32 %v7469, %v7740
  %v7742 = vpop.f32.mrb[0].mxu0
  %v7743 = vadd.f32 %v7469, %v7742
  %7744 = vmatprep.mubr.bf16.mxu0 0
  %7745 = vmatmul.mubr.bf16.gmra.mrb[0].mxu0 %v7565
  %v7746 = vpop.f32.mrb[0].mxu0
  %v7747 = vadd.f32 %v7474, %v7746
  %v7748 = vpop.f32.mrb[0].mxu0
  %v7749 = vadd.f32 %v7474, %v7748
  %v7750 = vpop.f32.mrb[0].mxu0
  %v7751 = vadd.f32 %v7479, %v7750
  %v7752 = vpop.f32.mrb[0].mxu0
  %v7753 = vadd.f32 %v7479, %v7752
  %7754 = vmatprep.mubr.bf16.mxu0 0
  %7755 = vmatmul.mubr.bf16.gmra.mrb[0].mxu0 %v7566
  %v7756 = vpop.f32.mrb[0].mxu0
  %v7757 = vadd.f32 %v7484, %v7756
  %v7758 = vpop.f32.mrb[0].mxu0
  %v7759 = vadd.f32 %v7484, %v7758
  %v7760 = vpop.f32.mrb[0].mxu0
  %v7761 = vadd.f32 %v7489, %v7760
  %v7762 = vpop.f32.mrb[0].mxu0
  %v7763 = vadd.f32 %v7489, %v7762
  %7764 = vmatprep.mubr.bf16.mxu0 0
  %7765 = vmatmul.mubr.bf16.gmra.mrb[0].mxu0 %v7567
  %v7766 = vpop.f32.mrb[0].mxu0
  %v7767 = vadd.f32 %v7494, %v7766
  %v7768 = vpop.f32.mrb[0].mxu0
  %v7769 = vadd.f32 %v7494, %v7768
  %v7770 = vpop.f32.mrb[0].mxu0
  %v7771 = vadd.f32 %v7499, %v7770
  %v7772 = vpop.f32.mrb[0].mxu0
  %v7773 = vadd.f32 %v7499, %v7772
  %7774 = vmatprep.mubr.bf16.mxu0 0
  %7775 = vmatmul.mubr.bf16.gmra.mrb[0].mxu0 %v7568
  %v7776 = vpop.f32.mrb[0].mxu0
  %v7777 = vadd.f32 %v7504, %v7776
  %v7778 = vpop.f32.mrb[0].mxu0
  %v7779 = vadd.f32 %v7504, %v7778
  %v7780 = vpop.f32.mrb[0].mxu0
  %v7781 = vadd.f32 %v7509, %v7780
  %v7782 = vpop.f32.mrb[0].mxu0
  %v7783 = vadd.f32 %v7509, %v7782
  %7784 = vmatprep.mubr.bf16.mxu0 0
  %7785 = vmatmul.mubr.bf16.gmra.mrb[0].mxu0 %v7569
  %v7786 = vpop.f32.mrb[0].mxu0
  %v7787 = vadd.f32 %v7514, %v7786
  %v7788 = vpop.f32.mrb[0].mxu0
  %v7789 = vadd.f32 %v7514, %v7788
  %v7790 = vpop.f32.mrb[0].mxu0
  %v7791 = vadd.f32 %v7519, %v7790
  %v7792 = vpop.f32.mrb[0].mxu0
  %v7793 = vadd.f32 %v7519, %v7792
  %7794 = vmatprep.mubr.bf16.mxu0 0
  %7795 = vmatmul.mubr.bf16.gmra.mrb[0].mxu0 %v7570
  %v7796 = vpop.f32.mrb[0].mxu0
  %v7797 = vadd.f32 %v7524, %v7796
  %v7798 = vpop.f32.mrb[0].mxu0
  %v7799 = vadd.f32 %v7524, %v7798
  %v7800 = vpop.f32.mrb[0].mxu0
  %v7801 = vadd.f32 %v7529, %v7800
  %v7802 = vpop.f32.mrb[0].mxu0
  %v7803 = vadd.f32 %v7529, %v7802
  %7804 = vdwg.mxu0
  %v7805 = vadd.f32 %v7614, %v5370
  %v7806 = vadd.f32 %v7616, %v5372
  %v7807 = vadd.f32 %v7727, %v5723
  %v7808 = vadd.f32 %v7729, %v5725
  %v7809 = vadd.f32 %v7618, %v5374
  %v7810 = vadd.f32 %v7620, %v5376
  %v7811 = vadd.f32 %v7731, %v5727
  %v7812 = vadd.f32 %v7733, %v5729
  %v7813 = vadd.f32 %v7624, %v5380
  %v7814 = vadd.f32 %v7626, %v5382
  %v7815 = vadd.f32 %v7737, %v5733
  %v7816 = vadd.f32 %v7739, %v5735
  %v7817 = vadd.f32 %v7628, %v5384
  %v7818 = vadd.f32 %v7630, %v5386
  %v7819 = vadd.f32 %v7741, %v5737
  %v7820 = vadd.f32 %v7743, %v5739
  %v7821 = vadd.f32 %v7634, %v5390
  %v7822 = vadd.f32 %v7636, %v5392
  %v7823 = vadd.f32 %v7747, %v5743
  %v7824 = vadd.f32 %v7749, %v5745
  %v7825 = vadd.f32 %v7638, %v5394
  %v7826 = vadd.f32 %v7640, %v5396
  %v7827 = vadd.f32 %v7751, %v5747
  %v7828 = vadd.f32 %v7753, %v5749
  %v7829 = vadd.f32 %v7644, %v5400
  %v7830 = vadd.f32 %v7646, %v5402
  %v7831 = vadd.f32 %v7757, %v5753
  %v7832 = vadd.f32 %v7759, %v5755
  %v7833 = vadd.f32 %v7648, %v5404
  %v7834 = vadd.f32 %v7650, %v5406
  %v7835 = vadd.f32 %v7761, %v5757
  %v7836 = vadd.f32 %v7763, %v5759
  %v7837 = vadd.f32 %v7654, %v5410
  %v7838 = vadd.f32 %v7656, %v5412
  %v7839 = vadd.f32 %v7767, %v5763
  %v7840 = vadd.f32 %v7769, %v5765
  %v7841 = vadd.f32 %v7658, %v5414
  %v7842 = vadd.f32 %v7660, %v5416
  %v7843 = vadd.f32 %v7771, %v5767
  %v7844 = vadd.f32 %v7773, %v5769
  %v7845 = vadd.f32 %v7664, %v5420
  %v7846 = vadd.f32 %v7666, %v5422
  %v7847 = vadd.f32 %v7777, %v5773
  %v7848 = vadd.f32 %v7779, %v5775
  %v7849 = vadd.f32 %v7668, %v5424
  %v7850 = vadd.f32 %v7670, %v5426
  %v7851 = vadd.f32 %v7781, %v5777
  %v7852 = vadd.f32 %v7783, %v5779
  %v7853 = vadd.f32 %v7674, %v5430
  %v7854 = vadd.f32 %v7676, %v5432
  %v7855 = vadd.f32 %v7787, %v5783
  %v7856 = vadd.f32 %v7789, %v5785
  %v7857 = vadd.f32 %v7678, %v5434
  %v7858 = vadd.f32 %v7680, %v5436
  %v7859 = vadd.f32 %v7791, %v5787
  %v7860 = vadd.f32 %v7793, %v5789
  %v7861 = vadd.f32 %v7684, %v5440
  %v7862 = vadd.f32 %v7686, %v5442
  %v7863 = vadd.f32 %v7797, %v5793
  %v7864 = vadd.f32 %v7799, %v5795
  %v7865 = vadd.f32 %v7688, %v5444
  %v7866 = vadd.f32 %v7690, %v5446
  %v7867 = vadd.f32 %v7801, %v5797
  %v7868 = vadd.f32 %v7803, %v5799
  %v7869 = vmax.f32 %v7805, 0.0
  %v7870 = vmax.f32 %v7806, 0.0
  %v7871 = vmax.f32 %v7807, 0.0
  %v7872 = vmax.f32 %v7808, 0.0
  %v7873 = vmax.f32 %v7809, 0.0
  %v7874 = vmax.f32 %v7810, 0.0
  %v7875 = vmax.f32 %v7811, 0.0
  %v7876 = vmax.f32 %v7812, 0.0
  %v7877 = vmax.f32 %v7813, 0.0
  %v7878 = vmax.f32 %v7814, 0.0
  %v7879 = vmax.f32 %v7815, 0.0
  %v7880 = vmax.f32 %v7816, 0.0
  %v7881 = vmax.f32 %v7817, 0.0
  %v7882 = vmax.f32 %v7818, 0.0
  %v7883 = vmax.f32 %v7819, 0.0
  %v7884 = vmax.f32 %v7820, 0.0
  %v7885 = vmax.f32 %v7821, 0.0
  %v7886 = vmax.f32 %v7822, 0.0
  %v7887 = vmax.f32 %v7823, 0.0
  %v7888 = vmax.f32 %v7824, 0.0
  %v7889 = vmax.f32 %v7825, 0.0
  %v7890 = vmax.f32 %v7826, 0.0
  %v7891 = vmax.f32 %v7827, 0.0
  %v7892 = vmax.f32 %v7828, 0.0
  %v7893 = vmax.f32 %v7829, 0.0
  %v7894 = vmax.f32 %v7830, 0.0
  %v7895 = vmax.f32 %v7831, 0.0
  %v7896 = vmax.f32 %v7832, 0.0
  %v7897 = vmax.f32 %v7833, 0.0
  %v7898 = vmax.f32 %v7834, 0.0
  %v7899 = vmax.f32 %v7835, 0.0
  %v7900 = vmax.f32 %v7836, 0.0
  %v7901 = vmax.f32 %v7837, 0.0
  %v7902 = vmax.f32 %v7838, 0.0
  %v7903 = vmax.f32 %v7839, 0.0
  %v7904 = vmax.f32 %v7840, 0.0
  %v7905 = vmax.f32 %v7841, 0.0
  %v7906 = vmax.f32 %v7842, 0.0
  %v7907 = vmax.f32 %v7843, 0.0
  %v7908 = vmax.f32 %v7844, 0.0
  %v7909 = vmax.f32 %v7845, 0.0
  %v7910 = vmax.f32 %v7846, 0.0
  %v7911 = vmax.f32 %v7847, 0.0
  %v7912 = vmax.f32 %v7848, 0.0
  %v7913 = vmax.f32 %v7849, 0.0
  %v7914 = vmax.f32 %v7850, 0.0
  %v7915 = vmax.f32 %v7851, 0.0
  %v7916 = vmax.f32 %v7852, 0.0
  %v7917 = vmax.f32 %v7853, 0.0
  %v7918 = vmax.f32 %v7854, 0.0
  %v7919 = vmax.f32 %v7855, 0.0
  %v7920 = vmax.f32 %v7856, 0.0
  %v7921 = vmax.f32 %v7857, 0.0
  %v7922 = vmax.f32 %v7858, 0.0
  %v7923 = vmax.f32 %v7859, 0.0
  %v7924 = vmax.f32 %v7860, 0.0
  %v7925 = vmax.f32 %v7861, 0.0
  %v7926 = vmax.f32 %v7862, 0.0
  %v7927 = vmax.f32 %v7863, 0.0
  %v7928 = vmax.f32 %v7864, 0.0
  %v7929 = vmax.f32 %v7865, 0.0
  %v7930 = vmax.f32 %v7866, 0.0
  %v7931 = vmax.f32 %v7867, 0.0
  %v7932 = vmax.f32 %v7868, 0.0
  %s7933 = smul.u32 4, 32
  %s7934 = smul.u32 %s7933, 1
  %s7935 = sshll.u32 %s7934, 4
  %7936 = dma.done [#allocation4], %s7935
  %v7937 = vld [vmem:[#allocation2] sm:$0xff]
  %v7938 = vld [vmem:[#allocation2 + $0x8] sm:$0xff]
  %v7939 = vld [vmem:[#allocation2 + $0x10] sm:$0xff]
  %v7940 = vld [vmem:[#allocation2 + $0x18] sm:$0xff]
  %v7941 = vld [vmem:[#allocation2 + $0x20] sm:$0xff]
  %v7942 = vld [vmem:[#allocation2 + $0x28] sm:$0xff]
  %v7943 = vld [vmem:[#allocation2 + $0x30] sm:$0xff]
  %v7944 = vld [vmem:[#allocation2 + $0x38] sm:$0xff]
  %v7945 = vld [vmem:[#allocation2 + $0x40] sm:$0xff]
  %v7946 = vld [vmem:[#allocation2 + $0x48] sm:$0xff]
  %v7947 = vld [vmem:[#allocation2 + $0x50] sm:$0xff]
  %v7948 = vld [vmem:[#allocation2 + $0x58] sm:$0xff]
  %v7949 = vld [vmem:[#allocation2 + $0x60] sm:$0xff]
  %v7950 = vld [vmem:[#allocation2 + $0x68] sm:$0xff]
  %v7951 = vld [vmem:[#allocation2 + $0x70] sm:$0xff]
  %v7952 = vld [vmem:[#allocation2 + $0x78] sm:$0xff]
  %v7953 = vpack.c.bf16 %v7873, %v7869
  %v7954 = vpack.c.bf16 %v7874, %v7870
  %v7955 = vpack.c.bf16 %v7875, %v7871
  %v7956 = vpack.c.bf16 %v7876, %v7872
  %v7957 = vpack.c.bf16 %v7881, %v7877
  %v7958 = vpack.c.bf16 %v7882, %v7878
  %v7959 = vpack.c.bf16 %v7883, %v7879
  %v7960 = vpack.c.bf16 %v7884, %v7880
  %v7961 = vpack.c.bf16 %v7889, %v7885
  %v7962 = vpack.c.bf16 %v7890, %v7886
  %v7963 = vpack.c.bf16 %v7891, %v7887
  %v7964 = vpack.c.bf16 %v7892, %v7888
  %v7965 = vpack.c.bf16 %v7897, %v7893
  %v7966 = vpack.c.bf16 %v7898, %v7894
  %v7967 = vpack.c.bf16 %v7899, %v7895
  %v7968 = vpack.c.bf16 %v7900, %v7896
  %v7969 = vpack.c.bf16 %v7905, %v7901
  %v7970 = vpack.c.bf16 %v7906, %v7902
  %v7971 = vpack.c.bf16 %v7907, %v7903
  %v7972 = vpack.c.bf16 %v7908, %v7904
  %v7973 = vpack.c.bf16 %v7913, %v7909
  %v7974 = vpack.c.bf16 %v7914, %v7910
  %v7975 = vpack.c.bf16 %v7915, %v7911
  %v7976 = vpack.c.bf16 %v7916, %v7912
  %v7977 = vpack.c.bf16 %v7921, %v7917
  %v7978 = vpack.c.bf16 %v7922, %v7918
  %v7979 = vpack.c.bf16 %v7923, %v7919
  %v7980 = vpack.c.bf16 %v7924, %v7920
  %v7981 = vpack.c.bf16 %v7929, %v7925
  %v7982 = vpack.c.bf16 %v7930, %v7926
  %v7983 = vpack.c.bf16 %v7931, %v7927
  %v7984 = vpack.c.bf16 %v7932, %v7928
  %v7985 = vld [vmem:[%s18] sm:$0xff]
  %v7986 = vld [vmem:[%s18 + $0x8] sm:$0xff]
  %v7987 = vld [vmem:[%s18 + $0x10] sm:$0xff]
  %v7988 = vld [vmem:[%s18 + $0x18] sm:$0xff]
  %v7989 = vld [vmem:[%s18 + $0x20] sm:$0xff]
  %v7990 = vld [vmem:[%s18 + $0x28] sm:$0xff]
  %v7991 = vld [vmem:[%s18 + $0x30] sm:$0xff]
  %v7992 = vld [vmem:[%s18 + $0x38] sm:$0xff]
  %v7993 = vld [vmem:[%s18 + $0x40] sm:$0xff]
  %v7994 = vld [vmem:[%s18 + $0x48] sm:$0xff]
  %v7995 = vld [vmem:[%s18 + $0x50] sm:$0xff]
  %v7996 = vld [vmem:[%s18 + $0x58] sm:$0xff]
  %v7997 = vld [vmem:[%s18 + $0x60] sm:$0xff]
  %v7998 = vld [vmem:[%s18 + $0x68] sm:$0xff]
  %v7999 = vld [vmem:[%s18 + $0x70] sm:$0xff]
  %v8000 = vld [vmem:[%s18 + $0x78] sm:$0xff]
  %v8001 = vld [vmem:[%s18 + $0x80] sm:$0xff]
  %v8002 = vld [vmem:[%s18 + $0x88] sm:$0xff]
  %v8003 = vld [vmem:[%s18 + $0x90] sm:$0xff]
  %v8004 = vld [vmem:[%s18 + $0x98] sm:$0xff]
  %v8005 = vld [vmem:[%s18 + $0xa0] sm:$0xff]
  %v8006 = vld [vmem:[%s18 + $0xa8] sm:$0xff]
  %v8007 = vld [vmem:[%s18 + $0xb0] sm:$0xff]
  %v8008 = vld [vmem:[%s18 + $0xb8] sm:$0xff]
  %v8009 = vld [vmem:[%s18 + $0xc0] sm:$0xff]
  %v8010 = vld [vmem:[%s18 + $0xc8] sm:$0xff]
  %v8011 = vld [vmem:[%s18 + $0xd0] sm:$0xff]
  %v8012 = vld [vmem:[%s18 + $0xd8] sm:$0xff]
  %v8013 = vld [vmem:[%s18 + $0xe0] sm:$0xff]
  %v8014 = vld [vmem:[%s18 + $0xe8] sm:$0xff]
  %v8015 = vld [vmem:[%s18 + $0xf0] sm:$0xff]
  %v8016 = vld [vmem:[%s18 + $0xf8] sm:$0xff]
  %8018 = vset.pattern.permute.xlu0 0
  %8019 = vperm.xlu0 %8018, %v7985
  %v8020 = vpop.permute.xlu0 %8019
  %8023 = vset.pattern.permute.xlu0 0
  %8024 = vperm.xlu0 %8023, %v7986
  %v8025 = vpop.permute.xlu0 %8024
  %8028 = vset.pattern.permute.xlu0 0
  %8029 = vperm.xlu0 %8028, %v7987
  %v8030 = vpop.permute.xlu0 %8029
  %8033 = vset.pattern.permute.xlu0 0
  %8034 = vperm.xlu0 %8033, %v7988
  %v8035 = vpop.permute.xlu0 %8034
  %8038 = vset.pattern.permute.xlu0 0
  %8039 = vperm.xlu0 %8038, %v7989
  %v8040 = vpop.permute.xlu0 %8039
  %8043 = vset.pattern.permute.xlu0 0
  %8044 = vperm.xlu0 %8043, %v7990
  %v8045 = vpop.permute.xlu0 %8044
  %8048 = vset.pattern.permute.xlu0 0
  %8049 = vperm.xlu0 %8048, %v7991
  %v8050 = vpop.permute.xlu0 %8049
  %8053 = vset.pattern.permute.xlu0 0
  %8054 = vperm.xlu0 %8053, %v7992
  %v8055 = vpop.permute.xlu0 %8054
  %8058 = vset.pattern.permute.xlu0 0
  %8059 = vperm.xlu0 %8058, %v7993
  %v8060 = vpop.permute.xlu0 %8059
  %8063 = vset.pattern.permute.xlu0 0
  %8064 = vperm.xlu0 %8063, %v7994
  %v8065 = vpop.permute.xlu0 %8064
  %8068 = vset.pattern.permute.xlu0 0
  %8069 = vperm.xlu0 %8068, %v7995
  %v8070 = vpop.permute.xlu0 %8069
  %8073 = vset.pattern.permute.xlu0 0
  %8074 = vperm.xlu0 %8073, %v7996
  %v8075 = vpop.permute.xlu0 %8074
  %8078 = vset.pattern.permute.xlu0 0
  %8079 = vperm.xlu0 %8078, %v7997
  %v8080 = vpop.permute.xlu0 %8079
  %8083 = vset.pattern.permute.xlu0 0
  %8084 = vperm.xlu0 %8083, %v7998
  %v8085 = vpop.permute.xlu0 %8084
  %8088 = vset.pattern.permute.xlu0 0
  %8089 = vperm.xlu0 %8088, %v7999
  %v8090 = vpop.permute.xlu0 %8089
  %8093 = vset.pattern.permute.xlu0 0
  %8094 = vperm.xlu0 %8093, %v8000
  %v8095 = vpop.permute.xlu0 %8094
  %8098 = vset.pattern.permute.xlu0 0
  %8099 = vperm.xlu0 %8098, %v8001
  %v8100 = vpop.permute.xlu0 %8099
  %8103 = vset.pattern.permute.xlu0 0
  %8104 = vperm.xlu0 %8103, %v8002
  %v8105 = vpop.permute.xlu0 %8104
  %8108 = vset.pattern.permute.xlu0 0
  %8109 = vperm.xlu0 %8108, %v8003
  %v8110 = vpop.permute.xlu0 %8109
  %8113 = vset.pattern.permute.xlu0 0
  %8114 = vperm.xlu0 %8113, %v8004
  %v8115 = vpop.permute.xlu0 %8114
  %8118 = vset.pattern.permute.xlu0 0
  %8119 = vperm.xlu0 %8118, %v8005
  %v8120 = vpop.permute.xlu0 %8119
  %8123 = vset.pattern.permute.xlu0 0
  %8124 = vperm.xlu0 %8123, %v8006
  %v8125 = vpop.permute.xlu0 %8124
  %8128 = vset.pattern.permute.xlu0 0
  %8129 = vperm.xlu0 %8128, %v8007
  %v8130 = vpop.permute.xlu0 %8129
  %8133 = vset.pattern.permute.xlu0 0
  %8134 = vperm.xlu0 %8133, %v8008
  %v8135 = vpop.permute.xlu0 %8134
  %8138 = vset.pattern.permute.xlu0 0
  %8139 = vperm.xlu0 %8138, %v8009
  %v8140 = vpop.permute.xlu0 %8139
  %8143 = vset.pattern.permute.xlu0 0
  %8144 = vperm.xlu0 %8143, %v8010
  %v8145 = vpop.permute.xlu0 %8144
  %8148 = vset.pattern.permute.xlu0 0
  %8149 = vperm.xlu0 %8148, %v8011
  %v8150 = vpop.permute.xlu0 %8149
  %8153 = vset.pattern.permute.xlu0 0
  %8154 = vperm.xlu0 %8153, %v8012
  %v8155 = vpop.permute.xlu0 %8154
  %8158 = vset.pattern.permute.xlu0 0
  %8159 = vperm.xlu0 %8158, %v8013
  %v8160 = vpop.permute.xlu0 %8159
  %8163 = vset.pattern.permute.xlu0 0
  %8164 = vperm.xlu0 %8163, %v8014
  %v8165 = vpop.permute.xlu0 %8164
  %8168 = vset.pattern.permute.xlu0 0
  %8169 = vperm.xlu0 %8168, %v8015
  %v8170 = vpop.permute.xlu0 %8169
  %8173 = vset.pattern.permute.xlu0 0
  %8174 = vperm.xlu0 %8173, %v8016
  %v8175 = vpop.permute.xlu0 %8174
  %8177 = vmatprep.subr.bf16.mxu0 %v7954
  %8178 = vmatpush1.bf16.msra.mxu0 %v7953
  %8179 = vmatprep.subr.bf16.mxu0 %v7958
  %8180 = vmatpush1.bf16.msra.mxu0 %v7957
  %8181 = vmatprep.subr.bf16.mxu0 %v7962
  %8182 = vmatpush1.bf16.msra.mxu0 %v7961
  %8183 = vmatprep.subr.bf16.mxu0 %v7966
  %8184 = vmatpush1.bf16.msra.mxu0 %v7965
  %8185 = vmatprep.subr.bf16.mxu0 %v7970
  %8186 = vmatpush1.bf16.msra.mxu0 %v7969
  %8187 = vmatprep.subr.bf16.mxu0 %v7974
  %8188 = vmatpush1.bf16.msra.mxu0 %v7973
  %8189 = vmatprep.subr.bf16.mxu0 %v7978
  %8190 = vmatpush1.bf16.msra.mxu0 %v7977
  %8191 = vmatprep.subr.bf16.mxu0 %v7982
  %8192 = vmatpush1.bf16.msra.mxu0 %v7981
  %8193 = vmatprep.subr.bf16.mxu0 0
  %8194 = vmatpush1.bf16.msra.mxu0 0
  %8195 = vmatprep.subr.bf16.mxu0 0
  %8196 = vmatpush1.bf16.msra.mxu0 0
  %8197 = vmatprep.subr.bf16.mxu0 0
  %8198 = vmatpush1.bf16.msra.mxu0 0
  %8199 = vmatprep.subr.bf16.mxu0 0
  %8200 = vmatpush1.bf16.msra.mxu0 0
  %8201 = vmatprep.subr.bf16.mxu0 0
  %8202 = vmatpush1.bf16.msra.mxu0 0
  %8203 = vmatprep.subr.bf16.mxu0 0
  %8204 = vmatpush1.bf16.msra.mxu0 0
  %8205 = vmatprep.subr.bf16.mxu0 0
  %8206 = vmatpush1.bf16.msra.mxu0 0
  %8207 = vmatprep.subr.bf16.mxu0 0
  %8208 = vmatpush1.bf16.msra.mxu0 0
  %8209 = vmatprep.mubr.bf16.mxu0 0
  %8210 = vmatmul.mubr.bf16.gmra.mrb[0].mxu0 %v7937
  %v8211 = vpop.f32.mrb[0].mxu0
  %v8212 = vadd.f32 %v8020, %v8211
  %v8213 = vpop.f32.mrb[0].mxu0
  %v8214 = vadd.f32 %v8020, %v8213
  %v8215 = vpop.f32.mrb[0].mxu0
  %v8216 = vadd.f32 %v8025, %v8215
  %v8217 = vpop.f32.mrb[0].mxu0
  %v8218 = vadd.f32 %v8025, %v8217
  %8219 = vmatprep.mubr.bf16.mxu0 0
  %8220 = vmatmul.mubr.bf16.gmra.mrb[0].mxu0 %v7938
  %v8221 = vpop.f32.mrb[0].mxu0
  %v8222 = vadd.f32 %v8030, %v8221
  %v8223 = vpop.f32.mrb[0].mxu0
  %v8224 = vadd.f32 %v8030, %v8223
  %v8225 = vpop.f32.mrb[0].mxu0
  %v8226 = vadd.f32 %v8035, %v8225
  %v8227 = vpop.f32.mrb[0].mxu0
  %v8228 = vadd.f32 %v8035, %v8227
  %8229 = vmatprep.mubr.bf16.mxu0 0
  %8230 = vmatmul.mubr.bf16.gmra.mrb[0].mxu0 %v7939
  %v8231 = vpop.f32.mrb[0].mxu0
  %v8232 = vadd.f32 %v8040, %v8231
  %v8233 = vpop.f32.mrb[0].mxu0
  %v8234 = vadd.f32 %v8040, %v8233
  %v8235 = vpop.f32.mrb[0].mxu0
  %v8236 = vadd.f32 %v8045, %v8235
  %v8237 = vpop.f32.mrb[0].mxu0
  %v8238 = vadd.f32 %v8045, %v8237
  %8239 = vmatprep.mubr.bf16.mxu0 0
  %8240 = vmatmul.mubr.bf16.gmra.mrb[0].mxu0 %v7940
  %v8241 = vpop.f32.mrb[0].mxu0
  %v8242 = vadd.f32 %v8050, %v8241
  %v8243 = vpop.f32.mrb[0].mxu0
  %v8244 = vadd.f32 %v8050, %v8243
  %v8245 = vpop.f32.mrb[0].mxu0
  %v8246 = vadd.f32 %v8055, %v8245
  %v8247 = vpop.f32.mrb[0].mxu0
  %v8248 = vadd.f32 %v8055, %v8247
  %8249 = vmatprep.mubr.bf16.mxu0 0
  %8250 = vmatmul.mubr.bf16.gmra.mrb[0].mxu0 %v7941
  %v8251 = vpop.f32.mrb[0].mxu0
  %v8252 = vadd.f32 %v8060, %v8251
  %v8253 = vpop.f32.mrb[0].mxu0
  %v8254 = vadd.f32 %v8060, %v8253
  %v8255 = vpop.f32.mrb[0].mxu0
  %v8256 = vadd.f32 %v8065, %v8255
  %v8257 = vpop.f32.mrb[0].mxu0
  %v8258 = vadd.f32 %v8065, %v8257
  %8259 = vmatprep.mubr.bf16.mxu0 0
  %8260 = vmatmul.mubr.bf16.gmra.mrb[0].mxu0 %v7942
  %v8261 = vpop.f32.mrb[0].mxu0
  %v8262 = vadd.f32 %v8070, %v8261
  %v8263 = vpop.f32.mrb[0].mxu0
  %v8264 = vadd.f32 %v8070, %v8263
  %v8265 = vpop.f32.mrb[0].mxu0
  %v8266 = vadd.f32 %v8075, %v8265
  %v8267 = vpop.f32.mrb[0].mxu0
  %v8268 = vadd.f32 %v8075, %v8267
  %8269 = vmatprep.mubr.bf16.mxu0 0
  %8270 = vmatmul.mubr.bf16.gmra.mrb[0].mxu0 %v7943
  %v8271 = vpop.f32.mrb[0].mxu0
  %v8272 = vadd.f32 %v8080, %v8271
  %v8273 = vpop.f32.mrb[0].mxu0
  %v8274 = vadd.f32 %v8080, %v8273
  %v8275 = vpop.f32.mrb[0].mxu0
  %v8276 = vadd.f32 %v8085, %v8275
  %v8277 = vpop.f32.mrb[0].mxu0
  %v8278 = vadd.f32 %v8085, %v8277
  %8279 = vmatprep.mubr.bf16.mxu0 0
  %8280 = vmatmul.mubr.bf16.gmra.mrb[0].mxu0 %v7944
  %v8281 = vpop.f32.mrb[0].mxu0
  %v8282 = vadd.f32 %v8090, %v8281
  %v8283 = vpop.f32.mrb[0].mxu0
  %v8284 = vadd.f32 %v8090, %v8283
  %v8285 = vpop.f32.mrb[0].mxu0
  %v8286 = vadd.f32 %v8095, %v8285
  %v8287 = vpop.f32.mrb[0].mxu0
  %v8288 = vadd.f32 %v8095, %v8287
  %8289 = vmatprep.mubr.bf16.mxu0 0
  %8290 = vmatmul.mubr.bf16.gmra.mrb[0].mxu0 %v7945
  %v8291 = vpop.f32.mrb[0].mxu0
  %v8292 = vadd.f32 %v8100, %v8291
  %v8293 = vpop.f32.mrb[0].mxu0
  %v8294 = vadd.f32 %v8100, %v8293
  %v8295 = vpop.f32.mrb[0].mxu0
  %v8296 = vadd.f32 %v8105, %v8295
  %v8297 = vpop.f32.mrb[0].mxu0
  %v8298 = vadd.f32 %v8105, %v8297
  %8299 = vmatprep.mubr.bf16.mxu0 0
  %8300 = vmatmul.mubr.bf16.gmra.mrb[0].mxu0 %v7946
  %v8301 = vpop.f32.mrb[0].mxu0
  %v8302 = vadd.f32 %v8110, %v8301
  %v8303 = vpop.f32.mrb[0].mxu0
  %v8304 = vadd.f32 %v8110, %v8303
  %v8305 = vpop.f32.mrb[0].mxu0
  %v8306 = vadd.f32 %v8115, %v8305
  %v8307 = vpop.f32.mrb[0].mxu0
  %v8308 = vadd.f32 %v8115, %v8307
  %8309 = vmatprep.mubr.bf16.mxu0 0
  %8310 = vmatmul.mubr.bf16.gmra.mrb[0].mxu0 %v7947
  %v8311 = vpop.f32.mrb[0].mxu0
  %v8312 = vadd.f32 %v8120, %v8311
  %v8313 = vpop.f32.mrb[0].mxu0
  %v8314 = vadd.f32 %v8120, %v8313
  %v8315 = vpop.f32.mrb[0].mxu0
  %v8316 = vadd.f32 %v8125, %v8315
  %v8317 = vpop.f32.mrb[0].mxu0
  %v8318 = vadd.f32 %v8125, %v8317
  %8319 = vmatprep.mubr.bf16.mxu0 0
  %8320 = vmatmul.mubr.bf16.gmra.mrb[0].mxu0 %v7948
  %v8321 = vpop.f32.mrb[0].mxu0
  %v8322 = vadd.f32 %v8130, %v8321
  %v8323 = vpop.f32.mrb[0].mxu0
  %v8324 = vadd.f32 %v8130, %v8323
  %v8325 = vpop.f32.mrb[0].mxu0
  %v8326 = vadd.f32 %v8135, %v8325
  %v8327 = vpop.f32.mrb[0].mxu0
  %v8328 = vadd.f32 %v8135, %v8327
  %8329 = vmatprep.mubr.bf16.mxu0 0
  %8330 = vmatmul.mubr.bf16.gmra.mrb[0].mxu0 %v7949
  %v8331 = vpop.f32.mrb[0].mxu0
  %v8332 = vadd.f32 %v8140, %v8331
  %v8333 = vpop.f32.mrb[0].mxu0
  %v8334 = vadd.f32 %v8140, %v8333
  %v8335 = vpop.f32.mrb[0].mxu0
  %v8336 = vadd.f32 %v8145, %v8335
  %v8337 = vpop.f32.mrb[0].mxu0
  %v8338 = vadd.f32 %v8145, %v8337
  %8339 = vmatprep.mubr.bf16.mxu0 0
  %8340 = vmatmul.mubr.bf16.gmra.mrb[0].mxu0 %v7950
  %v8341 = vpop.f32.mrb[0].mxu0
  %v8342 = vadd.f32 %v8150, %v8341
  %v8343 = vpop.f32.mrb[0].mxu0
  %v8344 = vadd.f32 %v8150, %v8343
  %v8345 = vpop.f32.mrb[0].mxu0
  %v8346 = vadd.f32 %v8155, %v8345
  %v8347 = vpop.f32.mrb[0].mxu0
  %v8348 = vadd.f32 %v8155, %v8347
  %8349 = vmatprep.mubr.bf16.mxu0 0
  %8350 = vmatmul.mubr.bf16.gmra.mrb[0].mxu0 %v7951
  %v8351 = vpop.f32.mrb[0].mxu0
  %v8352 = vadd.f32 %v8160, %v8351
  %v8353 = vpop.f32.mrb[0].mxu0
  %v8354 = vadd.f32 %v8160, %v8353
  %v8355 = vpop.f32.mrb[0].mxu0
  %v8356 = vadd.f32 %v8165, %v8355
  %v8357 = vpop.f32.mrb[0].mxu0
  %v8358 = vadd.f32 %v8165, %v8357
  %8359 = vmatprep.mubr.bf16.mxu0 0
  %8360 = vmatmul.mubr.bf16.gmra.mrb[0].mxu0 %v7952
  %v8361 = vpop.f32.mrb[0].mxu0
  %v8362 = vadd.f32 %v8170, %v8361
  %v8363 = vpop.f32.mrb[0].mxu0
  %v8364 = vadd.f32 %v8170, %v8363
  %v8365 = vpop.f32.mrb[0].mxu0
  %v8366 = vadd.f32 %v8175, %v8365
  %v8367 = vpop.f32.mrb[0].mxu0
  %v8368 = vadd.f32 %v8175, %v8367
  %8369 = vdwg.mxu0
  %8370 = vmatprep.subr.bf16.mxu0 %v7956
  %8371 = vmatpush1.bf16.msra.mxu0 %v7955
  %8372 = vmatprep.subr.bf16.mxu0 %v7960
  %8373 = vmatpush1.bf16.msra.mxu0 %v7959
  %8374 = vmatprep.subr.bf16.mxu0 %v7964
  %8375 = vmatpush1.bf16.msra.mxu0 %v7963
  %8376 = vmatprep.subr.bf16.mxu0 %v7968
  %8377 = vmatpush1.bf16.msra.mxu0 %v7967
  %8378 = vmatprep.subr.bf16.mxu0 %v7972
  %8379 = vmatpush1.bf16.msra.mxu0 %v7971
  %8380 = vmatprep.subr.bf16.mxu0 %v7976
  %8381 = vmatpush1.bf16.msra.mxu0 %v7975
  %8382 = vmatprep.subr.bf16.mxu0 %v7980
  %8383 = vmatpush1.bf16.msra.mxu0 %v7979
  %8384 = vmatprep.subr.bf16.mxu0 %v7984
  %8385 = vmatpush1.bf16.msra.mxu0 %v7983
  %8386 = vmatprep.subr.bf16.mxu0 0
  %8387 = vmatpush1.bf16.msra.mxu0 0
  %8388 = vmatprep.subr.bf16.mxu0 0
  %8389 = vmatpush1.bf16.msra.mxu0 0
  %8390 = vmatprep.subr.bf16.mxu0 0
  %8391 = vmatpush1.bf16.msra.mxu0 0
  %8392 = vmatprep.subr.bf16.mxu0 0
  %8393 = vmatpush1.bf16.msra.mxu0 0
  %8394 = vmatprep.subr.bf16.mxu0 0
  %8395 = vmatpush1.bf16.msra.mxu0 0
  %8396 = vmatprep.subr.bf16.mxu0 0
  %8397 = vmatpush1.bf16.msra.mxu0 0
  %8398 = vmatprep.subr.bf16.mxu0 0
  %8399 = vmatpush1.bf16.msra.mxu0 0
  %8400 = vmatprep.subr.bf16.mxu0 0
  %8401 = vmatpush1.bf16.msra.mxu0 0
  %8402 = vmatprep.mubr.bf16.mxu0 0
  %8403 = vmatmul.mubr.bf16.gmra.mrb[0].mxu0 %v7937
  %v8404 = vpop.f32.mrb[0].mxu0
  %v8405 = vadd.f32 %v8020, %v8404
  %v8406 = vpop.f32.mrb[0].mxu0
  %v8407 = vadd.f32 %v8020, %v8406
  %v8408 = vpop.f32.mrb[0].mxu0
  %v8409 = vadd.f32 %v8025, %v8408
  %v8410 = vpop.f32.mrb[0].mxu0
  %v8411 = vadd.f32 %v8025, %v8410
  %8412 = vmatprep.mubr.bf16.mxu0 0
  %8413 = vmatmul.mubr.bf16.gmra.mrb[0].mxu0 %v7938
  %v8414 = vpop.f32.mrb[0].mxu0
  %v8415 = vadd.f32 %v8030, %v8414
  %v8416 = vpop.f32.mrb[0].mxu0
  %v8417 = vadd.f32 %v8030, %v8416
  %v8418 = vpop.f32.mrb[0].mxu0
  %v8419 = vadd.f32 %v8035, %v8418
  %v8420 = vpop.f32.mrb[0].mxu0
  %v8421 = vadd.f32 %v8035, %v8420
  %8422 = vmatprep.mubr.bf16.mxu0 0
  %8423 = vmatmul.mubr.bf16.gmra.mrb[0].mxu0 %v7939
  %v8424 = vpop.f32.mrb[0].mxu0
  %v8425 = vadd.f32 %v8040, %v8424
  %v8426 = vpop.f32.mrb[0].mxu0
  %v8427 = vadd.f32 %v8040, %v8426
  %v8428 = vpop.f32.mrb[0].mxu0
  %v8429 = vadd.f32 %v8045, %v8428
  %v8430 = vpop.f32.mrb[0].mxu0
  %v8431 = vadd.f32 %v8045, %v8430
  %8432 = vmatprep.mubr.bf16.mxu0 0
  %8433 = vmatmul.mubr.bf16.gmra.mrb[0].mxu0 %v7940
  %v8434 = vpop.f32.mrb[0].mxu0
  %v8435 = vadd.f32 %v8050, %v8434
  %v8436 = vpop.f32.mrb[0].mxu0
  %v8437 = vadd.f32 %v8050, %v8436
  %v8438 = vpop.f32.mrb[0].mxu0
  %v8439 = vadd.f32 %v8055, %v8438
  %v8440 = vpop.f32.mrb[0].mxu0
  %v8441 = vadd.f32 %v8055, %v8440
  %8442 = vmatprep.mubr.bf16.mxu0 0
  %8443 = vmatmul.mubr.bf16.gmra.mrb[0].mxu0 %v7941
  %v8444 = vpop.f32.mrb[0].mxu0
  %v8445 = vadd.f32 %v8060, %v8444
  %v8446 = vpop.f32.mrb[0].mxu0
  %v8447 = vadd.f32 %v8060, %v8446
  %v8448 = vpop.f32.mrb[0].mxu0
  %v8449 = vadd.f32 %v8065, %v8448
  %v8450 = vpop.f32.mrb[0].mxu0
  %v8451 = vadd.f32 %v8065, %v8450
  %8452 = vmatprep.mubr.bf16.mxu0 0
  %8453 = vmatmul.mubr.bf16.gmra.mrb[0].mxu0 %v7942
  %v8454 = vpop.f32.mrb[0].mxu0
  %v8455 = vadd.f32 %v8070, %v8454
  %v8456 = vpop.f32.mrb[0].mxu0
  %v8457 = vadd.f32 %v8070, %v8456
  %v8458 = vpop.f32.mrb[0].mxu0
  %v8459 = vadd.f32 %v8075, %v8458
  %v8460 = vpop.f32.mrb[0].mxu0
  %v8461 = vadd.f32 %v8075, %v8460
  %8462 = vmatprep.mubr.bf16.mxu0 0
  %8463 = vmatmul.mubr.bf16.gmra.mrb[0].mxu0 %v7943
  %v8464 = vpop.f32.mrb[0].mxu0
  %v8465 = vadd.f32 %v8080, %v8464
  %v8466 = vpop.f32.mrb[0].mxu0
  %v8467 = vadd.f32 %v8080, %v8466
  %v8468 = vpop.f32.mrb[0].mxu0
  %v8469 = vadd.f32 %v8085, %v8468
  %v8470 = vpop.f32.mrb[0].mxu0
  %v8471 = vadd.f32 %v8085, %v8470
  %8472 = vmatprep.mubr.bf16.mxu0 0
  %8473 = vmatmul.mubr.bf16.gmra.mrb[0].mxu0 %v7944
  %v8474 = vpop.f32.mrb[0].mxu0
  %v8475 = vadd.f32 %v8090, %v8474
  %v8476 = vpop.f32.mrb[0].mxu0
  %v8477 = vadd.f32 %v8090, %v8476
  %v8478 = vpop.f32.mrb[0].mxu0
  %v8479 = vadd.f32 %v8095, %v8478
  %v8480 = vpop.f32.mrb[0].mxu0
  %v8481 = vadd.f32 %v8095, %v8480
  %8482 = vmatprep.mubr.bf16.mxu0 0
  %8483 = vmatmul.mubr.bf16.gmra.mrb[0].mxu0 %v7945
  %v8484 = vpop.f32.mrb[0].mxu0
  %v8485 = vadd.f32 %v8100, %v8484
  %v8486 = vpop.f32.mrb[0].mxu0
  %v8487 = vadd.f32 %v8100, %v8486
  %v8488 = vpop.f32.mrb[0].mxu0
  %v8489 = vadd.f32 %v8105, %v8488
  %v8490 = vpop.f32.mrb[0].mxu0
  %v8491 = vadd.f32 %v8105, %v8490
  %8492 = vmatprep.mubr.bf16.mxu0 0
  %8493 = vmatmul.mubr.bf16.gmra.mrb[0].mxu0 %v7946
  %v8494 = vpop.f32.mrb[0].mxu0
  %v8495 = vadd.f32 %v8110, %v8494
  %v8496 = vpop.f32.mrb[0].mxu0
  %v8497 = vadd.f32 %v8110, %v8496
  %v8498 = vpop.f32.mrb[0].mxu0
  %v8499 = vadd.f32 %v8115, %v8498
  %v8500 = vpop.f32.mrb[0].mxu0
  %v8501 = vadd.f32 %v8115, %v8500
  %8502 = vmatprep.mubr.bf16.mxu0 0
  %8503 = vmatmul.mubr.bf16.gmra.mrb[0].mxu0 %v7947
  %v8504 = vpop.f32.mrb[0].mxu0
  %v8505 = vadd.f32 %v8120, %v8504
  %v8506 = vpop.f32.mrb[0].mxu0
  %v8507 = vadd.f32 %v8120, %v8506
  %v8508 = vpop.f32.mrb[0].mxu0
  %v8509 = vadd.f32 %v8125, %v8508
  %v8510 = vpop.f32.mrb[0].mxu0
  %v8511 = vadd.f32 %v8125, %v8510
  %8512 = vmatprep.mubr.bf16.mxu0 0
  %8513 = vmatmul.mubr.bf16.gmra.mrb[0].mxu0 %v7948
  %v8514 = vpop.f32.mrb[0].mxu0
  %v8515 = vadd.f32 %v8130, %v8514
  %v8516 = vpop.f32.mrb[0].mxu0
  %v8517 = vadd.f32 %v8130, %v8516
  %v8518 = vpop.f32.mrb[0].mxu0
  %v8519 = vadd.f32 %v8135, %v8518
  %v8520 = vpop.f32.mrb[0].mxu0
  %v8521 = vadd.f32 %v8135, %v8520
  %8522 = vmatprep.mubr.bf16.mxu0 0
  %8523 = vmatmul.mubr.bf16.gmra.mrb[0].mxu0 %v7949
  %v8524 = vpop.f32.mrb[0].mxu0
  %v8525 = vadd.f32 %v8140, %v8524
  %v8526 = vpop.f32.mrb[0].mxu0
  %v8527 = vadd.f32 %v8140, %v8526
  %v8528 = vpop.f32.mrb[0].mxu0
  %v8529 = vadd.f32 %v8145, %v8528
  %v8530 = vpop.f32.mrb[0].mxu0
  %v8531 = vadd.f32 %v8145, %v8530
  %8532 = vmatprep.mubr.bf16.mxu0 0
  %8533 = vmatmul.mubr.bf16.gmra.mrb[0].mxu0 %v7950
  %v8534 = vpop.f32.mrb[0].mxu0
  %v8535 = vadd.f32 %v8150, %v8534
  %v8536 = vpop.f32.mrb[0].mxu0
  %v8537 = vadd.f32 %v8150, %v8536
  %v8538 = vpop.f32.mrb[0].mxu0
  %v8539 = vadd.f32 %v8155, %v8538
  %v8540 = vpop.f32.mrb[0].mxu0
  %v8541 = vadd.f32 %v8155, %v8540
  %8542 = vmatprep.mubr.bf16.mxu0 0
  %8543 = vmatmul.mubr.bf16.gmra.mrb[0].mxu0 %v7951
  %v8544 = vpop.f32.mrb[0].mxu0
  %v8545 = vadd.f32 %v8160, %v8544
  %v8546 = vpop.f32.mrb[0].mxu0
  %v8547 = vadd.f32 %v8160, %v8546
  %v8548 = vpop.f32.mrb[0].mxu0
  %v8549 = vadd.f32 %v8165, %v8548
  %v8550 = vpop.f32.mrb[0].mxu0
  %v8551 = vadd.f32 %v8165, %v8550
  %8552 = vmatprep.mubr.bf16.mxu0 0
  %8553 = vmatmul.mubr.bf16.gmra.mrb[0].mxu0 %v7952
  %v8554 = vpop.f32.mrb[0].mxu0
  %v8555 = vadd.f32 %v8170, %v8554
  %v8556 = vpop.f32.mrb[0].mxu0
  %v8557 = vadd.f32 %v8170, %v8556
  %v8558 = vpop.f32.mrb[0].mxu0
  %v8559 = vadd.f32 %v8175, %v8558
  %v8560 = vpop.f32.mrb[0].mxu0
  %v8561 = vadd.f32 %v8175, %v8560
  %8562 = vdwg.mxu0
  %v8563 = vmax.f32 %v8212, 0.0
  %v8564 = vmax.f32 %v8214, 0.0
  %v8565 = vmax.f32 %v8405, 0.0
  %v8566 = vmax.f32 %v8407, 0.0
  %v8567 = vmax.f32 %v8216, 0.0
  %v8568 = vmax.f32 %v8218, 0.0
  %v8569 = vmax.f32 %v8409, 0.0
  %v8570 = vmax.f32 %v8411, 0.0
  %v8571 = vmax.f32 %v8222, 0.0
  %v8572 = vmax.f32 %v8224, 0.0
  %v8573 = vmax.f32 %v8415, 0.0
  %v8574 = vmax.f32 %v8417, 0.0
  %v8575 = vmax.f32 %v8226, 0.0
  %v8576 = vmax.f32 %v8228, 0.0
  %v8577 = vmax.f32 %v8419, 0.0
  %v8578 = vmax.f32 %v8421, 0.0
  %v8579 = vmax.f32 %v8232, 0.0
  %v8580 = vmax.f32 %v8234, 0.0
  %v8581 = vmax.f32 %v8425, 0.0
  %v8582 = vmax.f32 %v8427, 0.0
  %v8583 = vmax.f32 %v8236, 0.0
  %v8584 = vmax.f32 %v8238, 0.0
  %v8585 = vmax.f32 %v8429, 0.0
  %v8586 = vmax.f32 %v8431, 0.0
  %v8587 = vmax.f32 %v8242, 0.0
  %v8588 = vmax.f32 %v8244, 0.0
  %v8589 = vmax.f32 %v8435, 0.0
  %v8590 = vmax.f32 %v8437, 0.0
  %v8591 = vmax.f32 %v8246, 0.0
  %v8592 = vmax.f32 %v8248, 0.0
  %v8593 = vmax.f32 %v8439, 0.0
  %v8594 = vmax.f32 %v8441, 0.0
  %v8595 = vmax.f32 %v8252, 0.0
  %v8596 = vmax.f32 %v8254, 0.0
  %v8597 = vmax.f32 %v8445, 0.0
  %v8598 = vmax.f32 %v8447, 0.0
  %v8599 = vmax.f32 %v8256, 0.0
  %v8600 = vmax.f32 %v8258, 0.0
  %v8601 = vmax.f32 %v8449, 0.0
  %v8602 = vmax.f32 %v8451, 0.0
  %v8603 = vmax.f32 %v8262, 0.0
  %v8604 = vmax.f32 %v8264, 0.0
  %v8605 = vmax.f32 %v8455, 0.0
  %v8606 = vmax.f32 %v8457, 0.0
  %v8607 = vmax.f32 %v8266, 0.0
  %v8608 = vmax.f32 %v8268, 0.0
  %v8609 = vmax.f32 %v8459, 0.0
  %v8610 = vmax.f32 %v8461, 0.0
  %v8611 = vmax.f32 %v8272, 0.0
  %v8612 = vmax.f32 %v8274, 0.0
  %v8613 = vmax.f32 %v8465, 0.0
  %v8614 = vmax.f32 %v8467, 0.0
  %v8615 = vmax.f32 %v8276, 0.0
  %v8616 = vmax.f32 %v8278, 0.0
  %v8617 = vmax.f32 %v8469, 0.0
  %v8618 = vmax.f32 %v8471, 0.0
  %v8619 = vmax.f32 %v8282, 0.0
  %v8620 = vmax.f32 %v8284, 0.0
  %v8621 = vmax.f32 %v8475, 0.0
  %v8622 = vmax.f32 %v8477, 0.0
  %v8623 = vmax.f32 %v8286, 0.0
  %v8624 = vmax.f32 %v8288, 0.0
  %v8625 = vmax.f32 %v8479, 0.0
  %v8626 = vmax.f32 %v8481, 0.0
  %v8627 = vmax.f32 %v8292, 0.0
  %v8628 = vmax.f32 %v8294, 0.0
  %v8629 = vmax.f32 %v8485, 0.0
  %v8630 = vmax.f32 %v8487, 0.0
  %v8631 = vmax.f32 %v8296, 0.0
  %v8632 = vmax.f32 %v8298, 0.0
  %v8633 = vmax.f32 %v8489, 0.0
  %v8634 = vmax.f32 %v8491, 0.0
  %v8635 = vmax.f32 %v8302, 0.0
  %v8636 = vmax.f32 %v8304, 0.0
  %v8637 = vmax.f32 %v8495, 0.0
  %v8638 = vmax.f32 %v8497, 0.0
  %v8639 = vmax.f32 %v8306, 0.0
  %v8640 = vmax.f32 %v8308, 0.0
  %v8641 = vmax.f32 %v8499, 0.0
  %v8642 = vmax.f32 %v8501, 0.0
  %v8643 = vmax.f32 %v8312, 0.0
  %v8644 = vmax.f32 %v8314, 0.0
  %v8645 = vmax.f32 %v8505, 0.0
  %v8646 = vmax.f32 %v8507, 0.0
  %v8647 = vmax.f32 %v8316, 0.0
  %v8648 = vmax.f32 %v8318, 0.0
  %v8649 = vmax.f32 %v8509, 0.0
  %v8650 = vmax.f32 %v8511, 0.0
  %v8651 = vmax.f32 %v8322, 0.0
  %v8652 = vmax.f32 %v8324, 0.0
  %v8653 = vmax.f32 %v8515, 0.0
  %v8654 = vmax.f32 %v8517, 0.0
  %v8655 = vmax.f32 %v8326, 0.0
  %v8656 = vmax.f32 %v8328, 0.0
  %v8657 = vmax.f32 %v8519, 0.0
  %v8658 = vmax.f32 %v8521, 0.0
  %v8659 = vmax.f32 %v8332, 0.0
  %v8660 = vmax.f32 %v8334, 0.0
  %v8661 = vmax.f32 %v8525, 0.0
  %v8662 = vmax.f32 %v8527, 0.0
  %v8663 = vmax.f32 %v8336, 0.0
  %v8664 = vmax.f32 %v8338, 0.0
  %v8665 = vmax.f32 %v8529, 0.0
  %v8666 = vmax.f32 %v8531, 0.0
  %v8667 = vmax.f32 %v8342, 0.0
  %v8668 = vmax.f32 %v8344, 0.0
  %v8669 = vmax.f32 %v8535, 0.0
  %v8670 = vmax.f32 %v8537, 0.0
  %v8671 = vmax.f32 %v8346, 0.0
  %v8672 = vmax.f32 %v8348, 0.0
  %v8673 = vmax.f32 %v8539, 0.0
  %v8674 = vmax.f32 %v8541, 0.0
  %v8675 = vmax.f32 %v8352, 0.0
  %v8676 = vmax.f32 %v8354, 0.0
  %v8677 = vmax.f32 %v8545, 0.0
  %v8678 = vmax.f32 %v8547, 0.0
  %v8679 = vmax.f32 %v8356, 0.0
  %v8680 = vmax.f32 %v8358, 0.0
  %v8681 = vmax.f32 %v8549, 0.0
  %v8682 = vmax.f32 %v8551, 0.0
  %v8683 = vmax.f32 %v8362, 0.0
  %v8684 = vmax.f32 %v8364, 0.0
  %v8685 = vmax.f32 %v8555, 0.0
  %v8686 = vmax.f32 %v8557, 0.0
  %v8687 = vmax.f32 %v8366, 0.0
  %v8688 = vmax.f32 %v8368, 0.0
  %v8689 = vmax.f32 %v8559, 0.0
  %v8690 = vmax.f32 %v8561, 0.0
  %v8691 = vmax.f32 %v8563, %v8564
  %8692 = vmax.xlane.f32.xlu0 %v8691
  %v8693 = vpop.xlane.xlu0 %8692
  %v8694 = vmax.f32 %v8567, %v8568
  %8695 = vmax.xlane.f32.xlu0 %v8694
  %v8696 = vpop.xlane.xlu0 %8695
  %v8697 = vmax.f32 %v8571, %v8572
  %8698 = vmax.xlane.f32.xlu0 %v8697
  %v8699 = vpop.xlane.xlu0 %8698
  %v8700 = vmax.f32 %v8575, %v8576
  %8701 = vmax.xlane.f32.xlu0 %v8700
  %v8702 = vpop.xlane.xlu0 %8701
  %v8703 = vmax.f32 %v8579, %v8580
  %8704 = vmax.xlane.f32.xlu0 %v8703
  %v8705 = vpop.xlane.xlu0 %8704
  %v8706 = vmax.f32 %v8583, %v8584
  %8707 = vmax.xlane.f32.xlu0 %v8706
  %v8708 = vpop.xlane.xlu0 %8707
  %v8709 = vmax.f32 %v8587, %v8588
  %8710 = vmax.xlane.f32.xlu0 %v8709
  %v8711 = vpop.xlane.xlu0 %8710
  %v8712 = vmax.f32 %v8591, %v8592
  %8713 = vmax.xlane.f32.xlu0 %v8712
  %v8714 = vpop.xlane.xlu0 %8713
  %v8715 = vmax.f32 %v8595, %v8596
  %8716 = vmax.xlane.f32.xlu0 %v8715
  %v8717 = vpop.xlane.xlu0 %8716
  %v8718 = vmax.f32 %v8599, %v8600
  %8719 = vmax.xlane.f32.xlu0 %v8718
  %v8720 = vpop.xlane.xlu0 %8719
  %v8721 = vmax.f32 %v8603, %v8604
  %8722 = vmax.xlane.f32.xlu0 %v8721
  %v8723 = vpop.xlane.xlu0 %8722
  %v8724 = vmax.f32 %v8607, %v8608
  %8725 = vmax.xlane.f32.xlu0 %v8724
  %v8726 = vpop.xlane.xlu0 %8725
  %v8727 = vmax.f32 %v8611, %v8612
  %8728 = vmax.xlane.f32.xlu0 %v8727
  %v8729 = vpop.xlane.xlu0 %8728
  %v8730 = vmax.f32 %v8615, %v8616
  %8731 = vmax.xlane.f32.xlu0 %v8730
  %v8732 = vpop.xlane.xlu0 %8731
  %v8733 = vmax.f32 %v8619, %v8620
  %8734 = vmax.xlane.f32.xlu0 %v8733
  %v8735 = vpop.xlane.xlu0 %8734
  %v8736 = vmax.f32 %v8623, %v8624
  %8737 = vmax.xlane.f32.xlu0 %v8736
  %v8738 = vpop.xlane.xlu0 %8737
  %v8739 = vmax.f32 %v8627, %v8628
  %8740 = vmax.xlane.f32.xlu0 %v8739
  %v8741 = vpop.xlane.xlu0 %8740
  %v8742 = vmax.f32 %v8631, %v8632
  %8743 = vmax.xlane.f32.xlu0 %v8742
  %v8744 = vpop.xlane.xlu0 %8743
  %v8745 = vmax.f32 %v8635, %v8636
  %8746 = vmax.xlane.f32.xlu0 %v8745
  %v8747 = vpop.xlane.xlu0 %8746
  %v8748 = vmax.f32 %v8639, %v8640
  %8749 = vmax.xlane.f32.xlu0 %v8748
  %v8750 = vpop.xlane.xlu0 %8749
  %v8751 = vmax.f32 %v8643, %v8644
  %8752 = vmax.xlane.f32.xlu0 %v8751
  %v8753 = vpop.xlane.xlu0 %8752
  %v8754 = vmax.f32 %v8647, %v8648
  %8755 = vmax.xlane.f32.xlu0 %v8754
  %v8756 = vpop.xlane.xlu0 %8755
  %v8757 = vmax.f32 %v8651, %v8652
  %8758 = vmax.xlane.f32.xlu0 %v8757
  %v8759 = vpop.xlane.xlu0 %8758
  %v8760 = vmax.f32 %v8655, %v8656
  %8761 = vmax.xlane.f32.xlu0 %v8760
  %v8762 = vpop.xlane.xlu0 %8761
  %v8763 = vmax.f32 %v8659, %v8660
  %8764 = vmax.xlane.f32.xlu0 %v8763
  %v8765 = vpop.xlane.xlu0 %8764
  %v8766 = vmax.f32 %v8663, %v8664
  %8767 = vmax.xlane.f32.xlu0 %v8766
  %v8768 = vpop.xlane.xlu0 %8767
  %v8769 = vmax.f32 %v8667, %v8668
  %8770 = vmax.xlane.f32.xlu0 %v8769
  %v8771 = vpop.xlane.xlu0 %8770
  %v8772 = vmax.f32 %v8671, %v8672
  %8773 = vmax.xlane.f32.xlu0 %v8772
  %v8774 = vpop.xlane.xlu0 %8773
  %v8775 = vmax.f32 %v8675, %v8676
  %8776 = vmax.xlane.f32.xlu0 %v8775
  %v8777 = vpop.xlane.xlu0 %8776
  %v8778 = vmax.f32 %v8679, %v8680
  %8779 = vmax.xlane.f32.xlu0 %v8778
  %v8780 = vpop.xlane.xlu0 %8779
  %v8781 = vmax.f32 %v8683, %v8684
  %8782 = vmax.xlane.f32.xlu0 %v8781
  %v8783 = vpop.xlane.xlu0 %8782
  %v8784 = vmax.f32 %v8687, %v8688
  %8785 = vmax.xlane.f32.xlu0 %v8784
  %v8786 = vpop.xlane.xlu0 %8785
  %v8787 = vmax.f32 %v8565, %v8566
  %8788 = vmax.xlane.f32.xlu0 %v8787
  %v8789 = vpop.xlane.xlu0 %8788
  %v8790 = vmax.f32 %v8569, %v8570
  %8791 = vmax.xlane.f32.xlu0 %v8790
  %v8792 = vpop.xlane.xlu0 %8791
  %v8793 = vmax.f32 %v8573, %v8574
  %8794 = vmax.xlane.f32.xlu0 %v8793
  %v8795 = vpop.xlane.xlu0 %8794
  %v8796 = vmax.f32 %v8577, %v8578
  %8797 = vmax.xlane.f32.xlu0 %v8796
  %v8798 = vpop.xlane.xlu0 %8797
  %v8799 = vmax.f32 %v8581, %v8582
  %8800 = vmax.xlane.f32.xlu0 %v8799
  %v8801 = vpop.xlane.xlu0 %8800
  %v8802 = vmax.f32 %v8585, %v8586
  %8803 = vmax.xlane.f32.xlu0 %v8802
  %v8804 = vpop.xlane.xlu0 %8803
  %v8805 = vmax.f32 %v8589, %v8590
  %8806 = vmax.xlane.f32.xlu0 %v8805
  %v8807 = vpop.xlane.xlu0 %8806
  %v8808 = vmax.f32 %v8593, %v8594
  %8809 = vmax.xlane.f32.xlu0 %v8808
  %v8810 = vpop.xlane.xlu0 %8809
  %v8811 = vmax.f32 %v8597, %v8598
  %8812 = vmax.xlane.f32.xlu0 %v8811
  %v8813 = vpop.xlane.xlu0 %8812
  %v8814 = vmax.f32 %v8601, %v8602
  %8815 = vmax.xlane.f32.xlu0 %v8814
  %v8816 = vpop.xlane.xlu0 %8815
  %v8817 = vmax.f32 %v8605, %v8606
  %8818 = vmax.xlane.f32.xlu0 %v8817
  %v8819 = vpop.xlane.xlu0 %8818
  %v8820 = vmax.f32 %v8609, %v8610
  %8821 = vmax.xlane.f32.xlu0 %v8820
  %v8822 = vpop.xlane.xlu0 %8821
  %v8823 = vmax.f32 %v8613, %v8614
  %8824 = vmax.xlane.f32.xlu0 %v8823
  %v8825 = vpop.xlane.xlu0 %8824
  %v8826 = vmax.f32 %v8617, %v8618
  %8827 = vmax.xlane.f32.xlu0 %v8826
  %v8828 = vpop.xlane.xlu0 %8827
  %v8829 = vmax.f32 %v8621, %v8622
  %8830 = vmax.xlane.f32.xlu0 %v8829
  %v8831 = vpop.xlane.xlu0 %8830
  %v8832 = vmax.f32 %v8625, %v8626
  %8833 = vmax.xlane.f32.xlu0 %v8832
  %v8834 = vpop.xlane.xlu0 %8833
  %v8835 = vmax.f32 %v8629, %v8630
  %8836 = vmax.xlane.f32.xlu0 %v8835
  %v8837 = vpop.xlane.xlu0 %8836
  %v8838 = vmax.f32 %v8633, %v8634
  %8839 = vmax.xlane.f32.xlu0 %v8838
  %v8840 = vpop.xlane.xlu0 %8839
  %v8841 = vmax.f32 %v8637, %v8638
  %8842 = vmax.xlane.f32.xlu0 %v8841
  %v8843 = vpop.xlane.xlu0 %8842
  %v8844 = vmax.f32 %v8641, %v8642
  %8845 = vmax.xlane.f32.xlu0 %v8844
  %v8846 = vpop.xlane.xlu0 %8845
  %v8847 = vmax.f32 %v8645, %v8646
  %8848 = vmax.xlane.f32.xlu0 %v8847
  %v8849 = vpop.xlane.xlu0 %8848
  %v8850 = vmax.f32 %v8649, %v8650
  %8851 = vmax.xlane.f32.xlu0 %v8850
  %v8852 = vpop.xlane.xlu0 %8851
  %v8853 = vmax.f32 %v8653, %v8654
  %8854 = vmax.xlane.f32.xlu0 %v8853
  %v8855 = vpop.xlane.xlu0 %8854
  %v8856 = vmax.f32 %v8657, %v8658
  %8857 = vmax.xlane.f32.xlu0 %v8856
  %v8858 = vpop.xlane.xlu0 %8857
  %v8859 = vmax.f32 %v8661, %v8662
  %8860 = vmax.xlane.f32.xlu0 %v8859
  %v8861 = vpop.xlane.xlu0 %8860
  %v8862 = vmax.f32 %v8665, %v8666
  %8863 = vmax.xlane.f32.xlu0 %v8862
  %v8864 = vpop.xlane.xlu0 %8863
  %v8865 = vmax.f32 %v8669, %v8670
  %8866 = vmax.xlane.f32.xlu0 %v8865
  %v8867 = vpop.xlane.xlu0 %8866
  %v8868 = vmax.f32 %v8673, %v8674
  %8869 = vmax.xlane.f32.xlu0 %v8868
  %v8870 = vpop.xlane.xlu0 %8869
  %v8871 = vmax.f32 %v8677, %v8678
  %8872 = vmax.xlane.f32.xlu0 %v8871
  %v8873 = vpop.xlane.xlu0 %8872
  %v8874 = vmax.f32 %v8681, %v8682
  %8875 = vmax.xlane.f32.xlu0 %v8874
  %v8876 = vpop.xlane.xlu0 %8875
  %v8877 = vmax.f32 %v8685, %v8686
  %8878 = vmax.xlane.f32.xlu0 %v8877
  %v8879 = vpop.xlane.xlu0 %8878
  %v8880 = vmax.f32 %v8689, %v8690
  %8881 = vmax.xlane.f32.xlu0 %v8880
  %v8882 = vpop.xlane.xlu0 %8881
  %vm8883 = vcmask 7168
  %v8884 = vsel %vm8883, %v8693, %v8789
  %v8885 = vsel %vm8883, %v8696, %v8792
  %v8886 = vsel %vm8883, %v8699, %v8795
  %v8887 = vsel %vm8883, %v8702, %v8798
  %v8888 = vsel %vm8883, %v8705, %v8801
  %v8889 = vsel %vm8883, %v8708, %v8804
  %v8890 = vsel %vm8883, %v8711, %v8807
  %v8891 = vsel %vm8883, %v8714, %v8810
  %v8892 = vsel %vm8883, %v8717, %v8813
  %v8893 = vsel %vm8883, %v8720, %v8816
  %v8894 = vsel %vm8883, %v8723, %v8819
  %v8895 = vsel %vm8883, %v8726, %v8822
  %v8896 = vsel %vm8883, %v8729, %v8825
  %v8897 = vsel %vm8883, %v8732, %v8828
  %v8898 = vsel %vm8883, %v8735, %v8831
  %v8899 = vsel %vm8883, %v8738, %v8834
  %v8900 = vsel %vm8883, %v8741, %v8837
  %v8901 = vsel %vm8883, %v8744, %v8840
  %v8902 = vsel %vm8883, %v8747, %v8843
  %v8903 = vsel %vm8883, %v8750, %v8846
  %v8904 = vsel %vm8883, %v8753, %v8849
  %v8905 = vsel %vm8883, %v8756, %v8852
  %v8906 = vsel %vm8883, %v8759, %v8855
  %v8907 = vsel %vm8883, %v8762, %v8858
  %v8908 = vsel %vm8883, %v8765, %v8861
  %v8909 = vsel %vm8883, %v8768, %v8864
  %v8910 = vsel %vm8883, %v8771, %v8867
  %v8911 = vsel %vm8883, %v8774, %v8870
  %v8912 = vsel %vm8883, %v8777, %v8873
  %v8913 = vsel %vm8883, %v8780, %v8876
  %v8914 = vsel %vm8883, %v8783, %v8879
  %v8915 = vsel %vm8883, %v8786, %v8882
  %s8916 = smul.u32 4, 64
  %s8917 = smul.u32 %s8916, 2
  %s8918 = sshll.u32 %s8917, 4
  %8919 = dma.done %s146, %s8918
  %v8920 = vld [vmem:[#allocation3] sm:$0xff]
  %v8921 = vld [vmem:[#allocation3 + $0x8] sm:$0xff]
  %v8922 = vld [vmem:[#allocation3 + $0x10] sm:$0xff]
  %v8923 = vld [vmem:[#allocation3 + $0x18] sm:$0xff]
  %v8924 = vld [vmem:[#allocation3 + $0x20] sm:$0xff]
  %v8925 = vld [vmem:[#allocation3 + $0x28] sm:$0xff]
  %v8926 = vld [vmem:[#allocation3 + $0x30] sm:$0xff]
  %v8927 = vld [vmem:[#allocation3 + $0x38] sm:$0xff]
  %v8928 = vld [vmem:[#allocation3 + $0x40] sm:$0xff]
  %v8929 = vld [vmem:[#allocation3 + $0x48] sm:$0xff]
  %v8930 = vld [vmem:[#allocation3 + $0x50] sm:$0xff]
  %v8931 = vld [vmem:[#allocation3 + $0x58] sm:$0xff]
  %v8932 = vld [vmem:[#allocation3 + $0x60] sm:$0xff]
  %v8933 = vld [vmem:[#allocation3 + $0x68] sm:$0xff]
  %v8934 = vld [vmem:[#allocation3 + $0x70] sm:$0xff]
  %v8935 = vld [vmem:[#allocation3 + $0x78] sm:$0xff]
  %v8936 = vld [vmem:[#allocation3 + $0x80] sm:$0xff]
  %v8937 = vld [vmem:[#allocation3 + $0x88] sm:$0xff]
  %v8938 = vld [vmem:[#allocation3 + $0x90] sm:$0xff]
  %v8939 = vld [vmem:[#allocation3 + $0x98] sm:$0xff]
  %v8940 = vld [vmem:[#allocation3 + $0xa0] sm:$0xff]
  %v8941 = vld [vmem:[#allocation3 + $0xa8] sm:$0xff]
  %v8942 = vld [vmem:[#allocation3 + $0xb0] sm:$0xff]
  %v8943 = vld [vmem:[#allocation3 + $0xb8] sm:$0xff]
  %v8944 = vld [vmem:[#allocation3 + $0xc0] sm:$0xff]
  %v8945 = vld [vmem:[#allocation3 + $0xc8] sm:$0xff]
  %v8946 = vld [vmem:[#allocation3 + $0xd0] sm:$0xff]
  %v8947 = vld [vmem:[#allocation3 + $0xd8] sm:$0xff]
  %v8948 = vld [vmem:[#allocation3 + $0xe0] sm:$0xff]
  %v8949 = vld [vmem:[#allocation3 + $0xe8] sm:$0xff]
  %v8950 = vld [vmem:[#allocation3 + $0xf0] sm:$0xff]
  %v8951 = vld [vmem:[#allocation3 + $0xf8] sm:$0xff]
  %v8952 = vld [vmem:[#allocation3 + $0x100] sm:$0xff]
  %v8953 = vld [vmem:[#allocation3 + $0x108] sm:$0xff]
  %v8954 = vld [vmem:[#allocation3 + $0x110] sm:$0xff]
  %v8955 = vld [vmem:[#allocation3 + $0x118] sm:$0xff]
  %v8956 = vld [vmem:[#allocation3 + $0x120] sm:$0xff]
  %v8957 = vld [vmem:[#allocation3 + $0x128] sm:$0xff]
  %v8958 = vld [vmem:[#allocation3 + $0x130] sm:$0xff]
  %v8959 = vld [vmem:[#allocation3 + $0x138] sm:$0xff]
  %v8960 = vld [vmem:[#allocation3 + $0x140] sm:$0xff]
  %v8961 = vld [vmem:[#allocation3 + $0x148] sm:$0xff]
  %v8962 = vld [vmem:[#allocation3 + $0x150] sm:$0xff]
  %v8963 = vld [vmem:[#allocation3 + $0x158] sm:$0xff]
  %v8964 = vld [vmem:[#allocation3 + $0x160] sm:$0xff]
  %v8965 = vld [vmem:[#allocation3 + $0x168] sm:$0xff]
  %v8966 = vld [vmem:[#allocation3 + $0x170] sm:$0xff]
  %v8967 = vld [vmem:[#allocation3 + $0x178] sm:$0xff]
  %v8968 = vld [vmem:[#allocation3 + $0x180] sm:$0xff]
  %v8969 = vld [vmem:[#allocation3 + $0x188] sm:$0xff]
  %v8970 = vld [vmem:[#allocation3 + $0x190] sm:$0xff]
  %v8971 = vld [vmem:[#allocation3 + $0x198] sm:$0xff]
  %v8972 = vld [vmem:[#allocation3 + $0x1a0] sm:$0xff]
  %v8973 = vld [vmem:[#allocation3 + $0x1a8] sm:$0xff]
  %v8974 = vld [vmem:[#allocation3 + $0x1b0] sm:$0xff]
  %v8975 = vld [vmem:[#allocation3 + $0x1b8] sm:$0xff]
  %v8976 = vld [vmem:[#allocation3 + $0x1c0] sm:$0xff]
  %v8977 = vld [vmem:[#allocation3 + $0x1c8] sm:$0xff]
  %v8978 = vld [vmem:[#allocation3 + $0x1d0] sm:$0xff]
  %v8979 = vld [vmem:[#allocation3 + $0x1d8] sm:$0xff]
  %v8980 = vld [vmem:[#allocation3 + $0x1e0] sm:$0xff]
  %v8981 = vld [vmem:[#allocation3 + $0x1e8] sm:$0xff]
  %v8982 = vld [vmem:[#allocation3 + $0x1f0] sm:$0xff]
  %v8983 = vld [vmem:[#allocation3 + $0x1f8] sm:$0xff]
  %v8984 = vpack.c.bf16 %v8885, %v8884
  %v8985 = vpack.c.bf16 %v8887, %v8886
  %v8986 = vpack.c.bf16 %v8889, %v8888
  %v8987 = vpack.c.bf16 %v8891, %v8890
  %v8988 = vpack.c.bf16 %v8893, %v8892
  %v8989 = vpack.c.bf16 %v8895, %v8894
  %v8990 = vpack.c.bf16 %v8897, %v8896
  %v8991 = vpack.c.bf16 %v8899, %v8898
  %v8992 = vpack.c.bf16 %v8901, %v8900
  %v8993 = vpack.c.bf16 %v8903, %v8902
  %v8994 = vpack.c.bf16 %v8905, %v8904
  %v8995 = vpack.c.bf16 %v8907, %v8906
  %v8996 = vpack.c.bf16 %v8909, %v8908
  %v8997 = vpack.c.bf16 %v8911, %v8910
  %v8998 = vpack.c.bf16 %v8913, %v8912
  %v8999 = vpack.c.bf16 %v8915, %v8914
  %v9000 = vld [vmem:[%s19] sm:$0xff]
  %v9001 = vld [vmem:[%s19 + $0x8] sm:$0xff]
  %v9002 = vld [vmem:[%s19 + $0x10] sm:$0xff]
  %v9003 = vld [vmem:[%s19 + $0x18] sm:$0xff]
  %v9004 = vld [vmem:[%s19 + $0x20] sm:$0xff]
  %v9005 = vld [vmem:[%s19 + $0x28] sm:$0xff]
  %v9006 = vld [vmem:[%s19 + $0x30] sm:$0xff]
  %v9007 = vld [vmem:[%s19 + $0x38] sm:$0xff]
  %v9008 = vld [vmem:[%s19 + $0x40] sm:$0xff]
  %v9009 = vld [vmem:[%s19 + $0x48] sm:$0xff]
  %v9010 = vld [vmem:[%s19 + $0x50] sm:$0xff]
  %v9011 = vld [vmem:[%s19 + $0x58] sm:$0xff]
  %v9012 = vld [vmem:[%s19 + $0x60] sm:$0xff]
  %v9013 = vld [vmem:[%s19 + $0x68] sm:$0xff]
  %v9014 = vld [vmem:[%s19 + $0x70] sm:$0xff]
  %v9015 = vld [vmem:[%s19 + $0x78] sm:$0xff]
  %v9016 = vld [vmem:[%s19 + $0x80] sm:$0xff]
  %v9017 = vld [vmem:[%s19 + $0x88] sm:$0xff]
  %v9018 = vld [vmem:[%s19 + $0x90] sm:$0xff]
  %v9019 = vld [vmem:[%s19 + $0x98] sm:$0xff]
  %v9020 = vld [vmem:[%s19 + $0xa0] sm:$0xff]
  %v9021 = vld [vmem:[%s19 + $0xa8] sm:$0xff]
  %v9022 = vld [vmem:[%s19 + $0xb0] sm:$0xff]
  %v9023 = vld [vmem:[%s19 + $0xb8] sm:$0xff]
  %v9024 = vld [vmem:[%s19 + $0xc0] sm:$0xff]
  %v9025 = vld [vmem:[%s19 + $0xc8] sm:$0xff]
  %v9026 = vld [vmem:[%s19 + $0xd0] sm:$0xff]
  %v9027 = vld [vmem:[%s19 + $0xd8] sm:$0xff]
  %v9028 = vld [vmem:[%s19 + $0xe0] sm:$0xff]
  %v9029 = vld [vmem:[%s19 + $0xe8] sm:$0xff]
  %v9030 = vld [vmem:[%s19 + $0xf0] sm:$0xff]
  %v9031 = vld [vmem:[%s19 + $0xf8] sm:$0xff]
  %v9032 = vld [vmem:[%s19 + $0x100] sm:$0xff]
  %v9033 = vld [vmem:[%s19 + $0x108] sm:$0xff]
  %v9034 = vld [vmem:[%s19 + $0x110] sm:$0xff]
  %v9035 = vld [vmem:[%s19 + $0x118] sm:$0xff]
  %v9036 = vld [vmem:[%s19 + $0x120] sm:$0xff]
  %v9037 = vld [vmem:[%s19 + $0x128] sm:$0xff]
  %v9038 = vld [vmem:[%s19 + $0x130] sm:$0xff]
  %v9039 = vld [vmem:[%s19 + $0x138] sm:$0xff]
  %v9040 = vld [vmem:[%s19 + $0x140] sm:$0xff]
  %v9041 = vld [vmem:[%s19 + $0x148] sm:$0xff]
  %v9042 = vld [vmem:[%s19 + $0x150] sm:$0xff]
  %v9043 = vld [vmem:[%s19 + $0x158] sm:$0xff]
  %v9044 = vld [vmem:[%s19 + $0x160] sm:$0xff]
  %v9045 = vld [vmem:[%s19 + $0x168] sm:$0xff]
  %v9046 = vld [vmem:[%s19 + $0x170] sm:$0xff]
  %v9047 = vld [vmem:[%s19 + $0x178] sm:$0xff]
  %v9048 = vld [vmem:[%s19 + $0x180] sm:$0xff]
  %v9049 = vld [vmem:[%s19 + $0x188] sm:$0xff]
  %v9050 = vld [vmem:[%s19 + $0x190] sm:$0xff]
  %v9051 = vld [vmem:[%s19 + $0x198] sm:$0xff]
  %v9052 = vld [vmem:[%s19 + $0x1a0] sm:$0xff]
  %v9053 = vld [vmem:[%s19 + $0x1a8] sm:$0xff]
  %v9054 = vld [vmem:[%s19 + $0x1b0] sm:$0xff]
  %v9055 = vld [vmem:[%s19 + $0x1b8] sm:$0xff]
  %v9056 = vld [vmem:[%s19 + $0x1c0] sm:$0xff]
  %v9057 = vld [vmem:[%s19 + $0x1c8] sm:$0xff]
  %v9058 = vld [vmem:[%s19 + $0x1d0] sm:$0xff]
  %v9059 = vld [vmem:[%s19 + $0x1d8] sm:$0xff]
  %v9060 = vld [vmem:[%s19 + $0x1e0] sm:$0xff]
  %v9061 = vld [vmem:[%s19 + $0x1e8] sm:$0xff]
  %v9062 = vld [vmem:[%s19 + $0x1f0] sm:$0xff]
  %v9063 = vld [vmem:[%s19 + $0x1f8] sm:$0xff]
  %9065 = vset.pattern.permute.xlu0 0
  %9066 = vperm.xlu0 %9065, %v9000
  %v9067 = vpop.permute.xlu0 %9066
  %9070 = vset.pattern.permute.xlu0 0
  %9071 = vperm.xlu0 %9070, %v9001
  %v9072 = vpop.permute.xlu0 %9071
  %9075 = vset.pattern.permute.xlu0 0
  %9076 = vperm.xlu0 %9075, %v9002
  %v9077 = vpop.permute.xlu0 %9076
  %9080 = vset.pattern.permute.xlu0 0
  %9081 = vperm.xlu0 %9080, %v9003
  %v9082 = vpop.permute.xlu0 %9081
  %9085 = vset.pattern.permute.xlu0 0
  %9086 = vperm.xlu0 %9085, %v9004
  %v9087 = vpop.permute.xlu0 %9086
  %9090 = vset.pattern.permute.xlu0 0
  %9091 = vperm.xlu0 %9090, %v9005
  %v9092 = vpop.permute.xlu0 %9091
  %9095 = vset.pattern.permute.xlu0 0
  %9096 = vperm.xlu0 %9095, %v9006
  %v9097 = vpop.permute.xlu0 %9096
  %9100 = vset.pattern.permute.xlu0 0
  %9101 = vperm.xlu0 %9100, %v9007
  %v9102 = vpop.permute.xlu0 %9101
  %9105 = vset.pattern.permute.xlu0 0
  %9106 = vperm.xlu0 %9105, %v9008
  %v9107 = vpop.permute.xlu0 %9106
  %9110 = vset.pattern.permute.xlu0 0
  %9111 = vperm.xlu0 %9110, %v9009
  %v9112 = vpop.permute.xlu0 %9111
  %9115 = vset.pattern.permute.xlu0 0
  %9116 = vperm.xlu0 %9115, %v9010
  %v9117 = vpop.permute.xlu0 %9116
  %9120 = vset.pattern.permute.xlu0 0
  %9121 = vperm.xlu0 %9120, %v9011
  %v9122 = vpop.permute.xlu0 %9121
  %9125 = vset.pattern.permute.xlu0 0
  %9126 = vperm.xlu0 %9125, %v9012
  %v9127 = vpop.permute.xlu0 %9126
  %9130 = vset.pattern.permute.xlu0 0
  %9131 = vperm.xlu0 %9130, %v9013
  %v9132 = vpop.permute.xlu0 %9131
  %9135 = vset.pattern.permute.xlu0 0
  %9136 = vperm.xlu0 %9135, %v9014
  %v9137 = vpop.permute.xlu0 %9136
  %9140 = vset.pattern.permute.xlu0 0
  %9141 = vperm.xlu0 %9140, %v9015
  %v9142 = vpop.permute.xlu0 %9141
  %9145 = vset.pattern.permute.xlu0 0
  %9146 = vperm.xlu0 %9145, %v9016
  %v9147 = vpop.permute.xlu0 %9146
  %9150 = vset.pattern.permute.xlu0 0
  %9151 = vperm.xlu0 %9150, %v9017
  %v9152 = vpop.permute.xlu0 %9151
  %9155 = vset.pattern.permute.xlu0 0
  %9156 = vperm.xlu0 %9155, %v9018
  %v9157 = vpop.permute.xlu0 %9156
  %9160 = vset.pattern.permute.xlu0 0
  %9161 = vperm.xlu0 %9160, %v9019
  %v9162 = vpop.permute.xlu0 %9161
  %9165 = vset.pattern.permute.xlu0 0
  %9166 = vperm.xlu0 %9165, %v9020
  %v9167 = vpop.permute.xlu0 %9166
  %9170 = vset.pattern.permute.xlu0 0
  %9171 = vperm.xlu0 %9170, %v9021
  %v9172 = vpop.permute.xlu0 %9171
  %9175 = vset.pattern.permute.xlu0 0
  %9176 = vperm.xlu0 %9175, %v9022
  %v9177 = vpop.permute.xlu0 %9176
  %9180 = vset.pattern.permute.xlu0 0
  %9181 = vperm.xlu0 %9180, %v9023
  %v9182 = vpop.permute.xlu0 %9181
  %9185 = vset.pattern.permute.xlu0 0
  %9186 = vperm.xlu0 %9185, %v9024
  %v9187 = vpop.permute.xlu0 %9186
  %9190 = vset.pattern.permute.xlu0 0
  %9191 = vperm.xlu0 %9190, %v9025
  %v9192 = vpop.permute.xlu0 %9191
  %9195 = vset.pattern.permute.xlu0 0
  %9196 = vperm.xlu0 %9195, %v9026
  %v9197 = vpop.permute.xlu0 %9196
  %9200 = vset.pattern.permute.xlu0 0
  %9201 = vperm.xlu0 %9200, %v9027
  %v9202 = vpop.permute.xlu0 %9201
  %9205 = vset.pattern.permute.xlu0 0
  %9206 = vperm.xlu0 %9205, %v9028
  %v9207 = vpop.permute.xlu0 %9206
  %9210 = vset.pattern.permute.xlu0 0
  %9211 = vperm.xlu0 %9210, %v9029
  %v9212 = vpop.permute.xlu0 %9211
  %9215 = vset.pattern.permute.xlu0 0
  %9216 = vperm.xlu0 %9215, %v9030
  %v9217 = vpop.permute.xlu0 %9216
  %9220 = vset.pattern.permute.xlu0 0
  %9221 = vperm.xlu0 %9220, %v9031
  %v9222 = vpop.permute.xlu0 %9221
  %9225 = vset.pattern.permute.xlu0 0
  %9226 = vperm.xlu0 %9225, %v9032
  %v9227 = vpop.permute.xlu0 %9226
  %9230 = vset.pattern.permute.xlu0 0
  %9231 = vperm.xlu0 %9230, %v9033
  %v9232 = vpop.permute.xlu0 %9231
  %9235 = vset.pattern.permute.xlu0 0
  %9236 = vperm.xlu0 %9235, %v9034
  %v9237 = vpop.permute.xlu0 %9236
  %9240 = vset.pattern.permute.xlu0 0
  %9241 = vperm.xlu0 %9240, %v9035
  %v9242 = vpop.permute.xlu0 %9241
  %9245 = vset.pattern.permute.xlu0 0
  %9246 = vperm.xlu0 %9245, %v9036
  %v9247 = vpop.permute.xlu0 %9246
  %9250 = vset.pattern.permute.xlu0 0
  %9251 = vperm.xlu0 %9250, %v9037
  %v9252 = vpop.permute.xlu0 %9251
  %9255 = vset.pattern.permute.xlu0 0
  %9256 = vperm.xlu0 %9255, %v9038
  %v9257 = vpop.permute.xlu0 %9256
  %9260 = vset.pattern.permute.xlu0 0
  %9261 = vperm.xlu0 %9260, %v9039
  %v9262 = vpop.permute.xlu0 %9261
  %9265 = vset.pattern.permute.xlu0 0
  %9266 = vperm.xlu0 %9265, %v9040
  %v9267 = vpop.permute.xlu0 %9266
  %9270 = vset.pattern.permute.xlu0 0
  %9271 = vperm.xlu0 %9270, %v9041
  %v9272 = vpop.permute.xlu0 %9271
  %9275 = vset.pattern.permute.xlu0 0
  %9276 = vperm.xlu0 %9275, %v9042
  %v9277 = vpop.permute.xlu0 %9276
  %9280 = vset.pattern.permute.xlu0 0
  %9281 = vperm.xlu0 %9280, %v9043
  %v9282 = vpop.permute.xlu0 %9281
  %9285 = vset.pattern.permute.xlu0 0
  %9286 = vperm.xlu0 %9285, %v9044
  %v9287 = vpop.permute.xlu0 %9286
  %9290 = vset.pattern.permute.xlu0 0
  %9291 = vperm.xlu0 %9290, %v9045
  %v9292 = vpop.permute.xlu0 %9291
  %9295 = vset.pattern.permute.xlu0 0
  %9296 = vperm.xlu0 %9295, %v9046
  %v9297 = vpop.permute.xlu0 %9296
  %9300 = vset.pattern.permute.xlu0 0
  %9301 = vperm.xlu0 %9300, %v9047
  %v9302 = vpop.permute.xlu0 %9301
  %9305 = vset.pattern.permute.xlu0 0
  %9306 = vperm.xlu0 %9305, %v9048
  %v9307 = vpop.permute.xlu0 %9306
  %9310 = vset.pattern.permute.xlu0 0
  %9311 = vperm.xlu0 %9310, %v9049
  %v9312 = vpop.permute.xlu0 %9311
  %9315 = vset.pattern.permute.xlu0 0
  %9316 = vperm.xlu0 %9315, %v9050
  %v9317 = vpop.permute.xlu0 %9316
  %9320 = vset.pattern.permute.xlu0 0
  %9321 = vperm.xlu0 %9320, %v9051
  %v9322 = vpop.permute.xlu0 %9321
  %9325 = vset.pattern.permute.xlu0 0
  %9326 = vperm.xlu0 %9325, %v9052
  %v9327 = vpop.permute.xlu0 %9326
  %9330 = vset.pattern.permute.xlu0 0
  %9331 = vperm.xlu0 %9330, %v9053
  %v9332 = vpop.permute.xlu0 %9331
  %9335 = vset.pattern.permute.xlu0 0
  %9336 = vperm.xlu0 %9335, %v9054
  %v9337 = vpop.permute.xlu0 %9336
  %9340 = vset.pattern.permute.xlu0 0
  %9341 = vperm.xlu0 %9340, %v9055
  %v9342 = vpop.permute.xlu0 %9341
  %9345 = vset.pattern.permute.xlu0 0
  %9346 = vperm.xlu0 %9345, %v9056
  %v9347 = vpop.permute.xlu0 %9346
  %9350 = vset.pattern.permute.xlu0 0
  %9351 = vperm.xlu0 %9350, %v9057
  %v9352 = vpop.permute.xlu0 %9351
  %9355 = vset.pattern.permute.xlu0 0
  %9356 = vperm.xlu0 %9355, %v9058
  %v9357 = vpop.permute.xlu0 %9356
  %9360 = vset.pattern.permute.xlu0 0
  %9361 = vperm.xlu0 %9360, %v9059
  %v9362 = vpop.permute.xlu0 %9361
  %9365 = vset.pattern.permute.xlu0 0
  %9366 = vperm.xlu0 %9365, %v9060
  %v9367 = vpop.permute.xlu0 %9366
  %9370 = vset.pattern.permute.xlu0 0
  %9371 = vperm.xlu0 %9370, %v9061
  %v9372 = vpop.permute.xlu0 %9371
  %9375 = vset.pattern.permute.xlu0 0
  %9376 = vperm.xlu0 %9375, %v9062
  %v9377 = vpop.permute.xlu0 %9376
  %9380 = vset.pattern.permute.xlu0 0
  %9381 = vperm.xlu0 %9380, %v9063
  %v9382 = vpop.permute.xlu0 %9381
  %9384 = vmatprep.subr.bf16.mxu0 0
  %9385 = vmatpush1.bf16.msra.mxu0 %v8984
  %9386 = vmatprep.subr.bf16.mxu0 0
  %9387 = vmatpush1.bf16.msra.mxu0 %v8985
  %9388 = vmatprep.subr.bf16.mxu0 0
  %9389 = vmatpush1.bf16.msra.mxu0 %v8986
  %9390 = vmatprep.subr.bf16.mxu0 0
  %9391 = vmatpush1.bf16.msra.mxu0 %v8987
  %9392 = vmatprep.subr.bf16.mxu0 0
  %9393 = vmatpush1.bf16.msra.mxu0 %v8988
  %9394 = vmatprep.subr.bf16.mxu0 0
  %9395 = vmatpush1.bf16.msra.mxu0 %v8989
  %9396 = vmatprep.subr.bf16.mxu0 0
  %9397 = vmatpush1.bf16.msra.mxu0 %v8990
  %9398 = vmatprep.subr.bf16.mxu0 0
  %9399 = vmatpush1.bf16.msra.mxu0 %v8991
  %9400 = vmatprep.subr.bf16.mxu0 0
  %9401 = vmatpush1.bf16.msra.mxu0 %v8992
  %9402 = vmatprep.subr.bf16.mxu0 0
  %9403 = vmatpush1.bf16.msra.mxu0 %v8993
  %9404 = vmatprep.subr.bf16.mxu0 0
  %9405 = vmatpush1.bf16.msra.mxu0 %v8994
  %9406 = vmatprep.subr.bf16.mxu0 0
  %9407 = vmatpush1.bf16.msra.mxu0 %v8995
  %9408 = vmatprep.subr.bf16.mxu0 0
  %9409 = vmatpush1.bf16.msra.mxu0 %v8996
  %9410 = vmatprep.subr.bf16.mxu0 0
  %9411 = vmatpush1.bf16.msra.mxu0 %v8997
  %9412 = vmatprep.subr.bf16.mxu0 0
  %9413 = vmatpush1.bf16.msra.mxu0 %v8998
  %9414 = vmatprep.subr.bf16.mxu0 0
  %9415 = vmatpush1.bf16.msra.mxu0 %v8999
  %9416 = vmatprep.mubr.bf16.mxu0 %v8921
  %9417 = vmatmul.mubr.bf16.gmra.mrb[0].mxu0 %v8920
  %v9418 = vpop.f32.mrb[0].mxu0
  %v9419 = vadd.f32 %v9067, %v9418
  %v9420 = vpop.f32.mrb[0].mxu0
  %v9421 = vpop.f32.mrb[0].mxu0
  %v9422 = vadd.f32 %v9072, %v9421
  %v9423 = vpop.f32.mrb[0].mxu0
  %9424 = vmatprep.mubr.bf16.mxu0 %v8923
  %9425 = vmatmul.mubr.bf16.gmra.mrb[0].mxu0 %v8922
  %v9426 = vpop.f32.mrb[0].mxu0
  %v9427 = vadd.f32 %v9077, %v9426
  %v9428 = vpop.f32.mrb[0].mxu0
  %v9429 = vpop.f32.mrb[0].mxu0
  %v9430 = vadd.f32 %v9082, %v9429
  %v9431 = vpop.f32.mrb[0].mxu0
  %9432 = vmatprep.mubr.bf16.mxu0 %v8925
  %9433 = vmatmul.mubr.bf16.gmra.mrb[0].mxu0 %v8924
  %v9434 = vpop.f32.mrb[0].mxu0
  %v9435 = vadd.f32 %v9087, %v9434
  %v9436 = vpop.f32.mrb[0].mxu0
  %v9437 = vpop.f32.mrb[0].mxu0
  %v9438 = vadd.f32 %v9092, %v9437
  %v9439 = vpop.f32.mrb[0].mxu0
  %9440 = vmatprep.mubr.bf16.mxu0 %v8927
  %9441 = vmatmul.mubr.bf16.gmra.mrb[0].mxu0 %v8926
  %v9442 = vpop.f32.mrb[0].mxu0
  %v9443 = vadd.f32 %v9097, %v9442
  %v9444 = vpop.f32.mrb[0].mxu0
  %v9445 = vpop.f32.mrb[0].mxu0
  %v9446 = vadd.f32 %v9102, %v9445
  %v9447 = vpop.f32.mrb[0].mxu0
  %9448 = vmatprep.mubr.bf16.mxu0 %v8929
  %9449 = vmatmul.mubr.bf16.gmra.mrb[0].mxu0 %v8928
  %v9450 = vpop.f32.mrb[0].mxu0
  %v9451 = vadd.f32 %v9107, %v9450
  %v9452 = vpop.f32.mrb[0].mxu0
  %v9453 = vpop.f32.mrb[0].mxu0
  %v9454 = vadd.f32 %v9112, %v9453
  %v9455 = vpop.f32.mrb[0].mxu0
  %9456 = vmatprep.mubr.bf16.mxu0 %v8931
  %9457 = vmatmul.mubr.bf16.gmra.mrb[0].mxu0 %v8930
  %v9458 = vpop.f32.mrb[0].mxu0
  %v9459 = vadd.f32 %v9117, %v9458
  %v9460 = vpop.f32.mrb[0].mxu0
  %v9461 = vpop.f32.mrb[0].mxu0
  %v9462 = vadd.f32 %v9122, %v9461
  %v9463 = vpop.f32.mrb[0].mxu0
  %9464 = vmatprep.mubr.bf16.mxu0 %v8933
  %9465 = vmatmul.mubr.bf16.gmra.mrb[0].mxu0 %v8932
  %v9466 = vpop.f32.mrb[0].mxu0
  %v9467 = vadd.f32 %v9127, %v9466
  %v9468 = vpop.f32.mrb[0].mxu0
  %v9469 = vpop.f32.mrb[0].mxu0
  %v9470 = vadd.f32 %v9132, %v9469
  %v9471 = vpop.f32.mrb[0].mxu0
  %9472 = vmatprep.mubr.bf16.mxu0 %v8935
  %9473 = vmatmul.mubr.bf16.gmra.mrb[0].mxu0 %v8934
  %v9474 = vpop.f32.mrb[0].mxu0
  %v9475 = vadd.f32 %v9137, %v9474
  %v9476 = vpop.f32.mrb[0].mxu0
  %v9477 = vpop.f32.mrb[0].mxu0
  %v9478 = vadd.f32 %v9142, %v9477
  %v9479 = vpop.f32.mrb[0].mxu0
  %9480 = vmatprep.mubr.bf16.mxu0 %v8937
  %9481 = vmatmul.mubr.bf16.gmra.mrb[0].mxu0 %v8936
  %v9482 = vpop.f32.mrb[0].mxu0
  %v9483 = vadd.f32 %v9147, %v9482
  %v9484 = vpop.f32.mrb[0].mxu0
  %v9485 = vpop.f32.mrb[0].mxu0
  %v9486 = vadd.f32 %v9152, %v9485
  %v9487 = vpop.f32.mrb[0].mxu0
  %9488 = vmatprep.mubr.bf16.mxu0 %v8939
  %9489 = vmatmul.mubr.bf16.gmra.mrb[0].mxu0 %v8938
  %v9490 = vpop.f32.mrb[0].mxu0
  %v9491 = vadd.f32 %v9157, %v9490
  %v9492 = vpop.f32.mrb[0].mxu0
  %v9493 = vpop.f32.mrb[0].mxu0
  %v9494 = vadd.f32 %v9162, %v9493
  %v9495 = vpop.f32.mrb[0].mxu0
  %9496 = vmatprep.mubr.bf16.mxu0 %v8941
  %9497 = vmatmul.mubr.bf16.gmra.mrb[0].mxu0 %v8940
  %v9498 = vpop.f32.mrb[0].mxu0
  %v9499 = vadd.f32 %v9167, %v9498
  %v9500 = vpop.f32.mrb[0].mxu0
  %v9501 = vpop.f32.mrb[0].mxu0
  %v9502 = vadd.f32 %v9172, %v9501
  %v9503 = vpop.f32.mrb[0].mxu0
  %9504 = vmatprep.mubr.bf16.mxu0 %v8943
  %9505 = vmatmul.mubr.bf16.gmra.mrb[0].mxu0 %v8942
  %v9506 = vpop.f32.mrb[0].mxu0
  %v9507 = vadd.f32 %v9177, %v9506
  %v9508 = vpop.f32.mrb[0].mxu0
  %v9509 = vpop.f32.mrb[0].mxu0
  %v9510 = vadd.f32 %v9182, %v9509
  %v9511 = vpop.f32.mrb[0].mxu0
  %9512 = vmatprep.mubr.bf16.mxu0 %v8945
  %9513 = vmatmul.mubr.bf16.gmra.mrb[0].mxu0 %v8944
  %v9514 = vpop.f32.mrb[0].mxu0
  %v9515 = vadd.f32 %v9187, %v9514
  %v9516 = vpop.f32.mrb[0].mxu0
  %v9517 = vpop.f32.mrb[0].mxu0
  %v9518 = vadd.f32 %v9192, %v9517
  %v9519 = vpop.f32.mrb[0].mxu0
  %9520 = vmatprep.mubr.bf16.mxu0 %v8947
  %9521 = vmatmul.mubr.bf16.gmra.mrb[0].mxu0 %v8946
  %v9522 = vpop.f32.mrb[0].mxu0
  %v9523 = vadd.f32 %v9197, %v9522
  %v9524 = vpop.f32.mrb[0].mxu0
  %v9525 = vpop.f32.mrb[0].mxu0
  %v9526 = vadd.f32 %v9202, %v9525
  %v9527 = vpop.f32.mrb[0].mxu0
  %9528 = vmatprep.mubr.bf16.mxu0 %v8949
  %9529 = vmatmul.mubr.bf16.gmra.mrb[0].mxu0 %v8948
  %v9530 = vpop.f32.mrb[0].mxu0
  %v9531 = vadd.f32 %v9207, %v9530
  %v9532 = vpop.f32.mrb[0].mxu0
  %v9533 = vpop.f32.mrb[0].mxu0
  %v9534 = vadd.f32 %v9212, %v9533
  %v9535 = vpop.f32.mrb[0].mxu0
  %9536 = vmatprep.mubr.bf16.mxu0 %v8951
  %9537 = vmatmul.mubr.bf16.gmra.mrb[0].mxu0 %v8950
  %v9538 = vpop.f32.mrb[0].mxu0
  %v9539 = vadd.f32 %v9217, %v9538
  %v9540 = vpop.f32.mrb[0].mxu0
  %v9541 = vpop.f32.mrb[0].mxu0
  %v9542 = vadd.f32 %v9222, %v9541
  %v9543 = vpop.f32.mrb[0].mxu0
  %9544 = vmatprep.mubr.bf16.mxu0 %v8953
  %9545 = vmatmul.mubr.bf16.gmra.mrb[0].mxu0 %v8952
  %v9546 = vpop.f32.mrb[0].mxu0
  %v9547 = vadd.f32 %v9227, %v9546
  %v9548 = vpop.f32.mrb[0].mxu0
  %v9549 = vpop.f32.mrb[0].mxu0
  %v9550 = vadd.f32 %v9232, %v9549
  %v9551 = vpop.f32.mrb[0].mxu0
  %9552 = vmatprep.mubr.bf16.mxu0 %v8955
  %9553 = vmatmul.mubr.bf16.gmra.mrb[0].mxu0 %v8954
  %v9554 = vpop.f32.mrb[0].mxu0
  %v9555 = vadd.f32 %v9237, %v9554
  %v9556 = vpop.f32.mrb[0].mxu0
  %v9557 = vpop.f32.mrb[0].mxu0
  %v9558 = vadd.f32 %v9242, %v9557
  %v9559 = vpop.f32.mrb[0].mxu0
  %9560 = vmatprep.mubr.bf16.mxu0 %v8957
  %9561 = vmatmul.mubr.bf16.gmra.mrb[0].mxu0 %v8956
  %v9562 = vpop.f32.mrb[0].mxu0
  %v9563 = vadd.f32 %v9247, %v9562
  %v9564 = vpop.f32.mrb[0].mxu0
  %v9565 = vpop.f32.mrb[0].mxu0
  %v9566 = vadd.f32 %v9252, %v9565
  %v9567 = vpop.f32.mrb[0].mxu0
  %9568 = vmatprep.mubr.bf16.mxu0 %v8959
  %9569 = vmatmul.mubr.bf16.gmra.mrb[0].mxu0 %v8958
  %v9570 = vpop.f32.mrb[0].mxu0
  %v9571 = vadd.f32 %v9257, %v9570
  %v9572 = vpop.f32.mrb[0].mxu0
  %v9573 = vpop.f32.mrb[0].mxu0
  %v9574 = vadd.f32 %v9262, %v9573
  %v9575 = vpop.f32.mrb[0].mxu0
  %9576 = vmatprep.mubr.bf16.mxu0 %v8961
  %9577 = vmatmul.mubr.bf16.gmra.mrb[0].mxu0 %v8960
  %v9578 = vpop.f32.mrb[0].mxu0
  %v9579 = vadd.f32 %v9267, %v9578
  %v9580 = vpop.f32.mrb[0].mxu0
  %v9581 = vpop.f32.mrb[0].mxu0
  %v9582 = vadd.f32 %v9272, %v9581
  %v9583 = vpop.f32.mrb[0].mxu0
  %9584 = vmatprep.mubr.bf16.mxu0 %v8963
  %9585 = vmatmul.mubr.bf16.gmra.mrb[0].mxu0 %v8962
  %v9586 = vpop.f32.mrb[0].mxu0
  %v9587 = vadd.f32 %v9277, %v9586
  %v9588 = vpop.f32.mrb[0].mxu0
  %v9589 = vpop.f32.mrb[0].mxu0
  %v9590 = vadd.f32 %v9282, %v9589
  %v9591 = vpop.f32.mrb[0].mxu0
  %9592 = vmatprep.mubr.bf16.mxu0 %v8965
  %9593 = vmatmul.mubr.bf16.gmra.mrb[0].mxu0 %v8964
  %v9594 = vpop.f32.mrb[0].mxu0
  %v9595 = vadd.f32 %v9287, %v9594
  %v9596 = vpop.f32.mrb[0].mxu0
  %v9597 = vpop.f32.mrb[0].mxu0
  %v9598 = vadd.f32 %v9292, %v9597
  %v9599 = vpop.f32.mrb[0].mxu0
  %9600 = vmatprep.mubr.bf16.mxu0 %v8967
  %9601 = vmatmul.mubr.bf16.gmra.mrb[0].mxu0 %v8966
  %v9602 = vpop.f32.mrb[0].mxu0
  %v9603 = vadd.f32 %v9297, %v9602
  %v9604 = vpop.f32.mrb[0].mxu0
  %v9605 = vpop.f32.mrb[0].mxu0
  %v9606 = vadd.f32 %v9302, %v9605
  %v9607 = vpop.f32.mrb[0].mxu0
  %9608 = vmatprep.mubr.bf16.mxu0 %v8969
  %9609 = vmatmul.mubr.bf16.gmra.mrb[0].mxu0 %v8968
  %v9610 = vpop.f32.mrb[0].mxu0
  %v9611 = vadd.f32 %v9307, %v9610
  %v9612 = vpop.f32.mrb[0].mxu0
  %v9613 = vpop.f32.mrb[0].mxu0
  %v9614 = vadd.f32 %v9312, %v9613
  %v9615 = vpop.f32.mrb[0].mxu0
  %9616 = vmatprep.mubr.bf16.mxu0 %v8971
  %9617 = vmatmul.mubr.bf16.gmra.mrb[0].mxu0 %v8970
  %v9618 = vpop.f32.mrb[0].mxu0
  %v9619 = vadd.f32 %v9317, %v9618
  %v9620 = vpop.f32.mrb[0].mxu0
  %v9621 = vpop.f32.mrb[0].mxu0
  %v9622 = vadd.f32 %v9322, %v9621
  %v9623 = vpop.f32.mrb[0].mxu0
  %9624 = vmatprep.mubr.bf16.mxu0 %v8973
  %9625 = vmatmul.mubr.bf16.gmra.mrb[0].mxu0 %v8972
  %v9626 = vpop.f32.mrb[0].mxu0
  %v9627 = vadd.f32 %v9327, %v9626
  %v9628 = vpop.f32.mrb[0].mxu0
  %v9629 = vpop.f32.mrb[0].mxu0
  %v9630 = vadd.f32 %v9332, %v9629
  %v9631 = vpop.f32.mrb[0].mxu0
  %9632 = vmatprep.mubr.bf16.mxu0 %v8975
  %9633 = vmatmul.mubr.bf16.gmra.mrb[0].mxu0 %v8974
  %v9634 = vpop.f32.mrb[0].mxu0
  %v9635 = vadd.f32 %v9337, %v9634
  %v9636 = vpop.f32.mrb[0].mxu0
  %v9637 = vpop.f32.mrb[0].mxu0
  %v9638 = vadd.f32 %v9342, %v9637
  %v9639 = vpop.f32.mrb[0].mxu0
  %9640 = vmatprep.mubr.bf16.mxu0 %v8977
  %9641 = vmatmul.mubr.bf16.gmra.mrb[0].mxu0 %v8976
  %v9642 = vpop.f32.mrb[0].mxu0
  %v9643 = vadd.f32 %v9347, %v9642
  %v9644 = vpop.f32.mrb[0].mxu0
  %v9645 = vpop.f32.mrb[0].mxu0
  %v9646 = vadd.f32 %v9352, %v9645
  %v9647 = vpop.f32.mrb[0].mxu0
  %9648 = vmatprep.mubr.bf16.mxu0 %v8979
  %9649 = vmatmul.mubr.bf16.gmra.mrb[0].mxu0 %v8978
  %v9650 = vpop.f32.mrb[0].mxu0
  %v9651 = vadd.f32 %v9357, %v9650
  %v9652 = vpop.f32.mrb[0].mxu0
  %v9653 = vpop.f32.mrb[0].mxu0
  %v9654 = vadd.f32 %v9362, %v9653
  %v9655 = vpop.f32.mrb[0].mxu0
  %9656 = vmatprep.mubr.bf16.mxu0 %v8981
  %9657 = vmatmul.mubr.bf16.gmra.mrb[0].mxu0 %v8980
  %v9658 = vpop.f32.mrb[0].mxu0
  %v9659 = vadd.f32 %v9367, %v9658
  %v9660 = vpop.f32.mrb[0].mxu0
  %v9661 = vpop.f32.mrb[0].mxu0
  %v9662 = vadd.f32 %v9372, %v9661
  %v9663 = vpop.f32.mrb[0].mxu0
  %9664 = vmatprep.mubr.bf16.mxu0 %v8983
  %9665 = vmatmul.mubr.bf16.gmra.mrb[0].mxu0 %v8982
  %v9666 = vpop.f32.mrb[0].mxu0
  %v9667 = vadd.f32 %v9377, %v9666
  %v9668 = vpop.f32.mrb[0].mxu0
  %v9669 = vpop.f32.mrb[0].mxu0
  %v9670 = vadd.f32 %v9382, %v9669
  %v9671 = vpop.f32.mrb[0].mxu0
  %9672 = vdwg.mxu0
  %v9673 = vmax.f32 %v9419, 0.0
  %v9674 = vmax.f32 %v9422, 0.0
  %v9675 = vmax.f32 %v9427, 0.0
  %v9676 = vmax.f32 %v9430, 0.0
  %v9677 = vmax.f32 %v9435, 0.0
  %v9678 = vmax.f32 %v9438, 0.0
  %v9679 = vmax.f32 %v9443, 0.0
  %v9680 = vmax.f32 %v9446, 0.0
  %v9681 = vmax.f32 %v9451, 0.0
  %v9682 = vmax.f32 %v9454, 0.0
  %v9683 = vmax.f32 %v9459, 0.0
  %v9684 = vmax.f32 %v9462, 0.0
  %v9685 = vmax.f32 %v9467, 0.0
  %v9686 = vmax.f32 %v9470, 0.0
  %v9687 = vmax.f32 %v9475, 0.0
  %v9688 = vmax.f32 %v9478, 0.0
  %v9689 = vmax.f32 %v9483, 0.0
  %v9690 = vmax.f32 %v9486, 0.0
  %v9691 = vmax.f32 %v9491, 0.0
  %v9692 = vmax.f32 %v9494, 0.0
  %v9693 = vmax.f32 %v9499, 0.0
  %v9694 = vmax.f32 %v9502, 0.0
  %v9695 = vmax.f32 %v9507, 0.0
  %v9696 = vmax.f32 %v9510, 0.0
  %v9697 = vmax.f32 %v9515, 0.0
  %v9698 = vmax.f32 %v9518, 0.0
  %v9699 = vmax.f32 %v9523, 0.0
  %v9700 = vmax.f32 %v9526, 0.0
  %v9701 = vmax.f32 %v9531, 0.0
  %v9702 = vmax.f32 %v9534, 0.0
  %v9703 = vmax.f32 %v9539, 0.0
  %v9704 = vmax.f32 %v9542, 0.0
  %v9705 = vmax.f32 %v9547, 0.0
  %v9706 = vmax.f32 %v9550, 0.0
  %v9707 = vmax.f32 %v9555, 0.0
  %v9708 = vmax.f32 %v9558, 0.0
  %v9709 = vmax.f32 %v9563, 0.0
  %v9710 = vmax.f32 %v9566, 0.0
  %v9711 = vmax.f32 %v9571, 0.0
  %v9712 = vmax.f32 %v9574, 0.0
  %v9713 = vmax.f32 %v9579, 0.0
  %v9714 = vmax.f32 %v9582, 0.0
  %v9715 = vmax.f32 %v9587, 0.0
  %v9716 = vmax.f32 %v9590, 0.0
  %v9717 = vmax.f32 %v9595, 0.0
  %v9718 = vmax.f32 %v9598, 0.0
  %v9719 = vmax.f32 %v9603, 0.0
  %v9720 = vmax.f32 %v9606, 0.0
  %v9721 = vmax.f32 %v9611, 0.0
  %v9722 = vmax.f32 %v9614, 0.0
  %v9723 = vmax.f32 %v9619, 0.0
  %v9724 = vmax.f32 %v9622, 0.0
  %v9725 = vmax.f32 %v9627, 0.0
  %v9726 = vmax.f32 %v9630, 0.0
  %v9727 = vmax.f32 %v9635, 0.0
  %v9728 = vmax.f32 %v9638, 0.0
  %v9729 = vmax.f32 %v9643, 0.0
  %v9730 = vmax.f32 %v9646, 0.0
  %v9731 = vmax.f32 %v9651, 0.0
  %v9732 = vmax.f32 %v9654, 0.0
  %v9733 = vmax.f32 %v9659, 0.0
  %v9734 = vmax.f32 %v9662, 0.0
  %v9735 = vmax.f32 %v9667, 0.0
  %v9736 = vmax.f32 %v9670, 0.0
  %v9737 = vld [vmem:[%s20] sm:$0xff]
  %v9738 = vld [vmem:[%s20 + $0x8] sm:$0xff]
  %v9739 = vld [vmem:[%s20 + $0x10] sm:$0x11]
  %v9740 = vld [vmem:[%s20 + $0x18] sm:$0x11]
  %v9741 = vpack.c.bf16 %v9674, %v9673
  %v9742 = vpack.c.bf16 %v9676, %v9675
  %v9743 = vpack.c.bf16 %v9678, %v9677
  %v9744 = vpack.c.bf16 %v9680, %v9679
  %v9745 = vpack.c.bf16 %v9682, %v9681
  %v9746 = vpack.c.bf16 %v9684, %v9683
  %v9747 = vpack.c.bf16 %v9686, %v9685
  %v9748 = vpack.c.bf16 %v9688, %v9687
  %v9749 = vpack.c.bf16 %v9690, %v9689
  %v9750 = vpack.c.bf16 %v9692, %v9691
  %v9751 = vpack.c.bf16 %v9694, %v9693
  %v9752 = vpack.c.bf16 %v9696, %v9695
  %v9753 = vpack.c.bf16 %v9698, %v9697
  %v9754 = vpack.c.bf16 %v9700, %v9699
  %v9755 = vpack.c.bf16 %v9702, %v9701
  %v9756 = vpack.c.bf16 %v9704, %v9703
  %v9757 = vpack.c.bf16 %v9706, %v9705
  %v9758 = vpack.c.bf16 %v9708, %v9707
  %v9759 = vpack.c.bf16 %v9710, %v9709
  %v9760 = vpack.c.bf16 %v9712, %v9711
  %v9761 = vpack.c.bf16 %v9714, %v9713
  %v9762 = vpack.c.bf16 %v9716, %v9715
  %v9763 = vpack.c.bf16 %v9718, %v9717
  %v9764 = vpack.c.bf16 %v9720, %v9719
  %v9765 = vpack.c.bf16 %v9722, %v9721
  %v9766 = vpack.c.bf16 %v9724, %v9723
  %v9767 = vpack.c.bf16 %v9726, %v9725
  %v9768 = vpack.c.bf16 %v9728, %v9727
  %v9769 = vpack.c.bf16 %v9730, %v9729
  %v9770 = vpack.c.bf16 %v9732, %v9731
  %v9771 = vpack.c.bf16 %v9734, %v9733
  %v9772 = vpack.c.bf16 %v9736, %v9735
  %v9773 = vld [vmem:[%s21] sm:$0xff]
  %v9774 = vld [vmem:[%s21 + $0x8] sm:$0x3]
  %9776 = vset.pattern.permute.xlu0 0
  %9777 = vperm.xlu0 %9776, %v9773
  %v9778 = vpop.permute.xlu0 %9777
  %9781 = vset.pattern.permute.xlu0 0
  %9782 = vperm.xlu0 %9781, %v9774
  %v9783 = vpop.permute.xlu0 %9782
  %v9789 = vunpack.c.l.b16 %v9737
  %v9790 = vunpack.c.h.b16 %v9737
  %v9791 = vunpack.c.l.b16 %v9738
  %v9792 = vunpack.c.h.b16 %v9738
  %v9793 = vunpack.c.l.b16 %v9739
  %v9794 = vunpack.c.h.b16 %v9739
  %v9795 = vunpack.c.l.b16 %v9740
  %v9796 = vunpack.c.h.b16 %v9740
  %v9797 = vpack.c.b16 %v9793, %v9789
  %v9798 = vpack.c.b16 %v9794, %v9790
  %v9799 = vpack.c.b16 %v9795, %v9791
  %v9800 = vpack.c.b16 %v9796, %v9792
  %9805 = vmatprep.subr.bf16.mxu0 0
  %9806 = vmatpush1.bf16.msra.mxu0 %v9741
  %9807 = vmatprep.subr.bf16.mxu0 0
  %9808 = vmatpush1.bf16.msra.mxu0 %v9742
  %9809 = vmatprep.subr.bf16.mxu0 0
  %9810 = vmatpush1.bf16.msra.mxu0 %v9743
  %9811 = vmatprep.subr.bf16.mxu0 0
  %9812 = vmatpush1.bf16.msra.mxu0 %v9744
  %9813 = vmatprep.subr.bf16.mxu0 0
  %9814 = vmatpush1.bf16.msra.mxu0 %v9745
  %9815 = vmatprep.subr.bf16.mxu0 0
  %9816 = vmatpush1.bf16.msra.mxu0 %v9746
  %9817 = vmatprep.subr.bf16.mxu0 0
  %9818 = vmatpush1.bf16.msra.mxu0 %v9747
  %9819 = vmatprep.subr.bf16.mxu0 0
  %9820 = vmatpush1.bf16.msra.mxu0 %v9748
  %9821 = vmatprep.subr.bf16.mxu0 0
  %9822 = vmatpush1.bf16.msra.mxu0 %v9749
  %9823 = vmatprep.subr.bf16.mxu0 0
  %9824 = vmatpush1.bf16.msra.mxu0 %v9750
  %9825 = vmatprep.subr.bf16.mxu0 0
  %9826 = vmatpush1.bf16.msra.mxu0 %v9751
  %9827 = vmatprep.subr.bf16.mxu0 0
  %9828 = vmatpush1.bf16.msra.mxu0 %v9752
  %9829 = vmatprep.subr.bf16.mxu0 0
  %9830 = vmatpush1.bf16.msra.mxu0 %v9753
  %9831 = vmatprep.subr.bf16.mxu0 0
  %9832 = vmatpush1.bf16.msra.mxu0 %v9754
  %9833 = vmatprep.subr.bf16.mxu0 0
  %9834 = vmatpush1.bf16.msra.mxu0 %v9755
  %9835 = vmatprep.subr.bf16.mxu0 0
  %9836 = vmatpush1.bf16.msra.mxu0 %v9756
  %9837 = vmatprep.mubr.bf16.mxu0 %v9798
  %9838 = vmatmul.mubr.bf16.gmra.mrb[0].mxu0 %v9797
  %v9839 = vpop.f32.mrb[0].mxu0
  %v9840 = vadd.f32 %v9778, %v9839
  %v9841 = vpop.f32.mrb[0].mxu0
  %v9842 = vpop.f32.mrb[0].mxu0
  %v9843 = vadd.f32 %v9783, %v9842
  %v9844 = vpop.f32.mrb[0].mxu0
  %9845 = vdwg.mxu0
  %9846 = vmatprep.subr.bf16.mxu0 0
  %9847 = vmatpush1.bf16.msra.mxu0 %v9757
  %9848 = vmatprep.subr.bf16.mxu0 0
  %9849 = vmatpush1.bf16.msra.mxu0 %v9758
  %9850 = vmatprep.subr.bf16.mxu0 0
  %9851 = vmatpush1.bf16.msra.mxu0 %v9759
  %9852 = vmatprep.subr.bf16.mxu0 0
  %9853 = vmatpush1.bf16.msra.mxu0 %v9760
  %9854 = vmatprep.subr.bf16.mxu0 0
  %9855 = vmatpush1.bf16.msra.mxu0 %v9761
  %9856 = vmatprep.subr.bf16.mxu0 0
  %9857 = vmatpush1.bf16.msra.mxu0 %v9762
  %9858 = vmatprep.subr.bf16.mxu0 0
  %9859 = vmatpush1.bf16.msra.mxu0 %v9763
  %9860 = vmatprep.subr.bf16.mxu0 0
  %9861 = vmatpush1.bf16.msra.mxu0 %v9764
  %9862 = vmatprep.subr.bf16.mxu0 0
  %9863 = vmatpush1.bf16.msra.mxu0 %v9765
  %9864 = vmatprep.subr.bf16.mxu0 0
  %9865 = vmatpush1.bf16.msra.mxu0 %v9766
  %9866 = vmatprep.subr.bf16.mxu0 0
  %9867 = vmatpush1.bf16.msra.mxu0 %v9767
  %9868 = vmatprep.subr.bf16.mxu0 0
  %9869 = vmatpush1.bf16.msra.mxu0 %v9768
  %9870 = vmatprep.subr.bf16.mxu0 0
  %9871 = vmatpush1.bf16.msra.mxu0 %v9769
  %9872 = vmatprep.subr.bf16.mxu0 0
  %9873 = vmatpush1.bf16.msra.mxu0 %v9770
  %9874 = vmatprep.subr.bf16.mxu0 0
  %9875 = vmatpush1.bf16.msra.mxu0 %v9771
  %9876 = vmatprep.subr.bf16.mxu0 0
  %9877 = vmatpush1.bf16.msra.mxu0 %v9772
  %9878 = vmatprep.mubr.bf16.mxu0 %v9800
  %9879 = vmatmul.mubr.bf16.gmra.mrb[0].mxu0 %v9799
  %v9880 = vpop.f32.mrb[0].mxu0
  %v9881 = vadd.f32 %v9840, %v9880
  %v9882 = vpop.f32.mrb[0].mxu0
  %v9883 = vpop.f32.mrb[0].mxu0
  %v9884 = vadd.f32 %v9843, %v9883
  %v9885 = vpop.f32.mrb[0].mxu0
  %9886 = vdwg.mxu0
  %vm9887 = vcmask 15360
  %9888 = vst.msk [vmem:[%s24] sm:$0xff] %vm9887, %v9881
  %vm9889 = vcmask 9216
  %9890 = vst.msk [vmem:[%s24 + $0x8] sm:$0x3] %vm9889, %v9884
  // Predicated region
  $region161: #{tpu_custom_call.1} parent=0 // pred_check
    _
  $region162: #{tpu_custom_call.1} parent=0 // pred_check_branch
    %9892 = sbr.rel (0) target = $region164
  $region163: #{tpu_custom_call.1} parent=0 // pred_region
    _
  $region164: #{tpu_custom_call.1} parent=0 // pred_fallthru
    _
  // Predicated region
  $region165: #{tpu_custom_call.1} parent=0 // pred_check
    _
  $region166: #{tpu_custom_call.1} parent=0 // pred_check_branch
    %9894 = sbr.rel (0) target = $region168
  $region167: #{tpu_custom_call.1} parent=0 // pred_region
    _
  $region168: #{tpu_custom_call.1} parent=0 // pred_fallthru
    _
  %9895 = vsyncmov [#allocation4]
  %s9896 = vpop.sfrf %9895
  %p9897 = scmp.eq.s32.totalorder %s9896, 0
  %p9898 = pneg %p9897
  %9900 = shalt.err (%p9898)
  %s9901 = scalar_lea.sflag [#allocation4], 1
  %9902 = vsyncmov %s9901
  %s9903 = vpop.sfrf %9902
  %p9904 = scmp.eq.s32.totalorder %s9903, 0
  %p9905 = pneg %p9904
  %9907 = shalt.err (%p9905)

</llo_original>
